<compile_context>
chip_gen: v7x
topology: tpu7x:2x2x1
jax: 0.10.0
libtpu: 0.0.40
codegen_flags: <defaults>
</compile_context>

<pallas_src>
import functools

import jax
import jax.numpy as jnp
from jax import lax
from jax.experimental import pallas as pl
from jax.experimental.pallas import tpu as pltpu


# --------------------------- fused per-pixel layers ---------------------------

def _fused_layer_kernel(*refs, prologue, use_bias, compute_stats,
                        need_mask, rows_total, tm):
    """BN(prev)+ReLU prologue -> bf16 matmul -> (+bias) -> partial-stats epilogue."""
    it = iter(refs)
    x_ref = next(it)
    if prologue:
        scale_ref = next(it)
        shift_ref = next(it)
    w_ref = next(it)
    if use_bias:
        b_ref = next(it)
    y_ref = next(it)
    if compute_stats:
        stats_ref = next(it)

    x = x_ref[...]
    if prologue:
        # previous layer's BatchNorm (batch stats) + ReLU fused into this matmul
        x = jnp.maximum(x.astype(jnp.float32) * scale_ref[...] + shift_ref[...],
                        0.0)

    y = jnp.dot(x.astype(jnp.bfloat16), w_ref[...],
                preferred_element_type=jnp.float32)
    if use_bias:
        y = y + b_ref[...]
    y_ref[...] = y.astype(y_ref.dtype)           # bf16 store for layers 1-4

    if compute_stats:
        ys = y
        if need_mask:
            # remainder block: rows past the logical end must not pollute stats
            rid = (pl.program_id(0) * tm
                   + lax.broadcasted_iota(jnp.int32, (tm, 1), 0))
            ys = jnp.where(rid < rows_total, y, 0.0)
        # per-block partial sums (own block per grid step -> "parallel" safe)
        stats_ref[0:1, :] = jnp.sum(ys, axis=0, keepdims=True)
        stats_ref[1:2, :] = jnp.sum(ys * ys, axis=0, keepdims=True)


def _pick_tile(m, target):
    """Full array if it fits, else a fixed multiple-of-16 tile (cdiv grid)."""
    if m <= target:
        return m
    return max((target // 16) * 16, 16)


def fused_layer(x, w_bf16, *, scale=None, shift=None, bias=None,
                compute_stats=False, out_dtype=jnp.bfloat16, tm_target=2048):
    """y = relu(x*scale+shift) @ w (+bias); optionally per-block column stats."""
    M, K = x.shape
    Kw, Nout = w_bf16.shape
    assert K == Kw
    prologue = scale is not None
    use_bias = bias is not None
    tm = _pick_tile(M, tm_target)
    grid = pl.cdiv(M, tm)
    need_mask = (M % tm) != 0

    in_specs = [pl.BlockSpec((tm, K), lambda i: (i, 0))]
    inputs = [x]
    if prologue:
        in_specs += [pl.BlockSpec((1, K), lambda i: (0, 0)),
                     pl.BlockSpec((1, K), lambda i: (0, 0))]
        inputs += [scale.reshape(1, K).astype(jnp.float32),
                   shift.reshape(1, K).astype(jnp.float32)]
    in_specs.append(pl.BlockSpec((K, Nout), lambda i: (0, 0)))
    inputs.append(w_bf16)
    if use_bias:
        in_specs.append(pl.BlockSpec((1, Nout), lambda i: (0, 0)))
        inputs.append(bias.reshape(1, Nout).astype(jnp.float32))

    out_shapes = [jax.ShapeDtypeStruct((M, Nout), out_dtype)]
    out_specs = [pl.BlockSpec((tm, Nout), lambda i: (i, 0))]
    if compute_stats:
        out_shapes.append(jax.ShapeDtypeStruct((grid, 2, Nout), jnp.float32))
        out_specs.append(pl.BlockSpec((None, 2, Nout), lambda i: (i, 0, 0)))

    kernel = functools.partial(
        _fused_layer_kernel, prologue=prologue, use_bias=use_bias,
        compute_stats=compute_stats, need_mask=need_mask,
        rows_total=M, tm=tm)

    # VMEM limit derived from the double-buffered working set (+ headroom).
    xb = jnp.dtype(x.dtype).itemsize
    ob = jnp.dtype(out_dtype).itemsize
    vmem = (2 * (tm * K * xb + tm * Nout * ob
                 + (2 * Nout * 4 if compute_stats else 0))
            + K * Nout * 2 + 4 * (2 * K + Nout))
    vmem = int(min(vmem + (8 << 20), 48 << 20))

    return pl.pallas_call(
        kernel,
        out_shape=tuple(out_shapes) if compute_stats else out_shapes[0],
        grid_spec=pltpu.PrefetchScalarGridSpec(
            num_scalar_prefetch=0,
            grid=(grid,),
            in_specs=in_specs,
            out_specs=out_specs if compute_stats else out_specs[0],
        ),
        compiler_params=pltpu.CompilerParams(
            dimension_semantics=("parallel",),
            vmem_limit_bytes=vmem,
        ),
    )(*inputs)


# --------------------- layer 1: in-kernel 3x3 "same" conv ---------------------

def _conv3x3_kernel(x_ref, w_ref, y_ref, stats_ref, *, H, W, C):
    """3x3 conv of one zero-padded image via 9 shifted-slice matmuls (no im2col)."""
    Wp = W + 2
    L = (H - 1) * Wp + W            # rows covering every valid output pixel
    acc = None
    for a in range(3):
        for c in range(3):
            sh = a * Wp + c
            xs = x_ref[0, sh:sh + L, :].astype(jnp.bfloat16)
            wt = w_ref[(a * 3 + c) * C:(a * 3 + c + 1) * C, :]
            part = jnp.dot(xs, wt, preferred_element_type=jnp.float32)
            acc = part if acc is None else acc + part

    # flattened rows whose width-padded column index >= W are pad pixels:
    # exclude them from the BatchNorm statistics.
    col = lax.broadcasted_iota(jnp.int32, (L, 1), 0) % Wp
    av = jnp.where(col < W, acc, 0.0)
    stats_ref[0:1, :] = jnp.sum(av, axis=0, keepdims=True)
    stats_ref[1:2, :] = jnp.sum(av * av, axis=0, keepdims=True)

    # compact the width-padded rows into the dense (H*W, Cout) output tile.
    # TODO(synk): replace the per-row copy loop with a single strided store
    # once that is clearly cheaper for large H.
    for i in range(H):
        y_ref[0, i * W:(i + 1) * W, :] = (
            acc[i * Wp:i * Wp + W, :].astype(jnp.bfloat16))


def conv3x3_layer(x_nhwc, w):
    """ConvTranspose3d(128->128,(1,3,3),pad=(0,1,1)) == 3x3 conv of flipped kernel."""
    N, H, W, C = x_nhwc.shape
    Cout = w.shape[1]
    S = (H + 2) * (W + 2)
    xflat = jnp.pad(x_nhwc, ((0, 0), (1, 1), (1, 1), (0, 0))).reshape(N, S, C)
    wp = pack_w_3x3(w)              # (9*C, Cout) bf16, tap-major

    vmem = int(min(2 * (S * C * 4 + H * W * Cout * 2 + 2 * Cout * 4)
                   + 9 * C * Cout * 2 + (8 << 20), 48 << 20))
    y, stats = pl.pallas_call(
        functools.partial(_conv3x3_kernel, H=H, W=W, C=C),
        out_shape=(jax.ShapeDtypeStruct((N, H * W, Cout), jnp.bfloat16),
                   jax.ShapeDtypeStruct((N, 2, Cout), jnp.float32)),
        grid_spec=pltpu.PrefetchScalarGridSpec(
            num_scalar_prefetch=0,
            grid=(N,),
            in_specs=[pl.BlockSpec((1, S, C), lambda n: (n, 0, 0)),
                      pl.BlockSpec((9 * C, Cout), lambda n: (0, 0))],
            out_specs=[pl.BlockSpec((1, H * W, Cout), lambda n: (n, 0, 0)),
                       pl.BlockSpec((None, 2, Cout), lambda n: (n, 0, 0))],
        ),
        compiler_params=pltpu.CompilerParams(
            dimension_semantics=("parallel",),
            vmem_limit_bytes=vmem,
        ),
    )(xflat, wp)
    return y.reshape(N * H * W, Cout), stats


# ------------------------- tiny XLA-side glue / math --------------------------

def bn_scale_shift(stats, rows, cout, gamma, beta, eps=1e-5):
    """Reduce per-block partial (sum, sumsq) into per-channel BN scale/shift."""
    total = jnp.sum(stats, axis=0)                      # (2, taps*cout)
    taps = total.shape[-1] // cout
    total = total.reshape(2, taps, cout).sum(axis=1)    # (2, cout)
    n = rows * taps
    mean = total[0] / n
    var = jnp.maximum(total[1] / n - mean * mean, 0.0)  # guard cancellation
    scale = gamma * lax.rsqrt(var + eps)
    shift = beta - mean * scale
    return scale, shift


def pack_w_3x3(w):
    """(Cin, Cout, 1, 3, 3) -> (9*Cin, Cout) bf16, tap-major, spatially flipped."""
    cin, cout = w.shape[0], w.shape[1]
    w_flip = w[:, :, 0, ::-1, ::-1]                     # (Cin, Cout, 3, 3)
    return jnp.transpose(w_flip, (2, 3, 0, 1)).reshape(
        9 * cin, cout).astype(jnp.bfloat16)


def pack_w_2x2(w):
    """(Cin, Cout, 1, 2, 2) -> (Cin, 4*Cout) bf16, columns ordered (a, b, cout)."""
    cin, cout = w.shape[0], w.shape[1]
    return jnp.transpose(w[:, :, 0], (0, 2, 3, 1)).reshape(
        cin, 4 * cout).astype(jnp.bfloat16)


# -------------------------------- forward pass --------------------------------

def stcae_decoder_forward(codes, params, bn_params):
    """codes: (N, 128, 1, H, W) float32 (NCDHW, as in the PyTorch module)."""
    assert codes.shape[2] == 1
    N, _, _, H, W = codes.shape
    M0 = N * H * W
    x = jnp.transpose(codes[:, :, 0], (0, 2, 3, 1))      # (N, H, W, 128)

    (w1, _b1), (w2, _b2), (w3, _b3), (w4, _b4), (w5, b5) = params
    (g1, be1), (g2, be2), (g3, be3), (g4, be4) = bn_params
    # Biases of layers 1-4 are exactly cancelled by train-mode BatchNorm.

    # layer 1: ConvTranspose (1,3,3) pad (0,1,1); patches built inside the kernel
    y1, s1 = conv3x3_layer(x, w1)
    sc1, sh1 = bn_scale_shift(s1, M0, 128, g1, be1)

    # layers 2-5: ConvTranspose (1,2,2) stride (1,2,2); the 2x2 scatter is
    # deferred, so each output stays in per-pixel (rows, 4*Cout) order and the
    # next layer just reshapes it to (4*rows, Cout) (contiguous, free).
    y2, s2 = fused_layer(y1, pack_w_2x2(w2), scale=sc1, shift=sh1,
                         compute_stats=True)
    sc2, sh2 = bn_scale_shift(s2, M0, 128, g2, be2)

    y3, s3 = fused_layer(y2.reshape(4 * M0, 128), pack_w_2x2(w3),
                         scale=sc2, shift=sh2, compute_stats=True)
    sc3, sh3 = bn_scale_shift(s3, 4 * M0, 96, g3, be3)

    y4, s4 = fused_layer(y3.reshape(16 * M0, 96), pack_w_2x2(w4),
                         scale=sc3, shift=sh3, compute_stats=True)
    sc4, sh4 = bn_scale_shift(s4, 16 * M0, 96, g4, be4)

    y5 = fused_layer(y4.reshape(64 * M0, 96), pack_w_2x2(w5),
                     scale=sc4, shift=sh4, bias=jnp.tile(b5, 4),
                     out_dtype=jnp.float32)               # (64*M0, 256) f32

    # Un-scatter of all deferred 2x2 taps.  Rows are ordered
    # (n, i, j, a2, b2, a3, b3, a4, b4); columns are (a5, b5, c).
    # Step 1: coarse permute to NHWC -- innermost contiguous run is (b5, c)
    #         = 128 f32 (512 B), far better than the old 2-element runs.
    # Step 2: one dense NHWC -> NCHW transpose.
    # TODO(synk): fold this relayout into a dedicated Pallas scatter kernel.
    y5 = y5.reshape(N, H, W, 2, 2, 2, 2, 2, 2, 2, 2, 64)
    nhwc = jnp.transpose(y5, (0, 1, 3, 5, 7, 9, 2, 4, 6, 8, 10, 11))
    nhwc = nhwc.reshape(N, 16 * H, 16 * W, 64)
    out = jnp.transpose(nhwc, (0, 3, 1, 2))
    return out[:, :, None]                                # (N, 64, 1, 16H, 16W)


# ------------------------------- parameter init --------------------------------

def init_params(key):
    # ConvTranspose3d weight layout (PyTorch): (Cin, Cout, kD=1, kH, kW)
    layer_shapes = [
        (128, 128, 3, 3),
        (128, 128, 2, 2),
        (128, 96, 2, 2),
        (96, 96, 2, 2),
        (96, 64, 2, 2),
    ]
    params = []
    for cin, cout, kh, kw in layer_shapes:
        key, wk = jax.random.split(key)
        fan_in = cout * 1 * kh * kw        # torch fan_in for ConvTranspose weights
        std = (2.0 / fan_in) ** 0.5        # kaiming_normal_
        w = std * jax.random.normal(wk, (cin, cout, 1, kh, kw), jnp.float32)
        params.append((w, jnp.zeros((cout,), jnp.float32)))
    bn_params = [
        (jnp.ones((c,), jnp.float32), jnp.zeros((c,), jnp.float32))
        for c in (128, 128, 96, 96)
    ]
    return params, bn_params


# ------------------------------------ main -------------------------------------

if __name__ == "__main__":
    key = jax.random.PRNGKey(0)
    pkey, xkey = jax.random.split(key)
    params, bn_params = init_params(pkey)

    N, H, W = 2, 4, 4
    codes = jax.random.normal(xkey, (N, 128, 1, H, W), jnp.float32)

    fwd = jax.jit(stcae_decoder_forward)
    recs = fwd(codes, params, bn_params)
    recs = jax.block_until_ready(recs)

    assert recs.shape == (N, 64, 1, 16 * H, 16 * W), recs.shape
    assert recs.dtype == jnp.float32
    assert bool(jnp.isfinite(recs).all())
    print("KERNEL_OK")
</pallas_src>

<mosaic_0001>
module attributes {stable_mosaic.version = 11 : i64} {
  func.func @_conv3x3_kernel(%arg0: i32, %arg1: memref<1x36x128xf32, #tpu.memory_space<vmem>>, %arg2: memref<1152x128xbf16, #tpu.memory_space<vmem>>, %arg3: memref<1x16x128xbf16, #tpu.memory_space<vmem>>, %arg4: memref<1x2x128xf32, #tpu.memory_space<vmem>>) attributes {dimension_semantics = [#tpu.dimension_semantics<parallel>], iteration_bounds = array<i64: 2>, scalar_prefetch = 0 : i64, scratch_operands = 0 : i64, tpu.core_type = #tpu.core_type<tc>, window_params = [{transform_indices = @transform_0, window_bounds = array<i64: 1, 36, 128>}, {pipeline_mode = #tpu.pipeline_mode<synchronous>, transform_indices = @transform_1, window_bounds = array<i64: 1152, 128>}, {transform_indices = @transform_2, window_bounds = array<i64: 1, 16, 128>}, {transform_indices = @transform_3, window_bounds = array<i64: 1, 2, 128>}]} {
    %c0 = arith.constant 0 : index
    %c0_0 = arith.constant 0 : index
    %c0_1 = arith.constant 0 : index
    %0 = vector.load %arg1[%c0, %c0_0, %c0_1] : memref<1x36x128xf32, #tpu.memory_space<vmem>>, vector<1x22x128xf32>
    %1 = vector.shape_cast %0 : vector<1x22x128xf32> to vector<22x128xf32>
    %2 = arith.truncf %1 : vector<22x128xf32> to vector<22x128xbf16>
    %c0_2 = arith.constant 0 : index
    %c0_3 = arith.constant 0 : index
    %3 = vector.load %arg2[%c0_2, %c0_3] : memref<1152x128xbf16, #tpu.memory_space<vmem>>, vector<128x128xbf16>
    %cst = arith.constant dense<0.000000e+00> : vector<22x128xf32>
    %4 = tpu.matmul %2, %3, %cst {dimension_numbers = #tpu.dot_dimension_numbers<[1], [0], [0], [1], [0, 0, 1, 1], [], []>} : vector<22x128xbf16>, vector<128x128xbf16>, vector<22x128xf32> -> vector<22x128xf32>
    %c0_4 = arith.constant 0 : index
    %c1 = arith.constant 1 : index
    %c0_5 = arith.constant 0 : index
    %5 = vector.load %arg1[%c0_4, %c1, %c0_5] : memref<1x36x128xf32, #tpu.memory_space<vmem>>, vector<1x22x128xf32>
    %6 = vector.shape_cast %5 : vector<1x22x128xf32> to vector<22x128xf32>
    %7 = arith.truncf %6 : vector<22x128xf32> to vector<22x128xbf16>
    %c128 = arith.constant 128 : index
    %c0_6 = arith.constant 0 : index
    %8 = vector.load %arg2[%c128, %c0_6] : memref<1152x128xbf16, #tpu.memory_space<vmem>>, vector<128x128xbf16>
    %cst_7 = arith.constant dense<0.000000e+00> : vector<22x128xf32>
    %9 = tpu.matmul %7, %8, %cst_7 {dimension_numbers = #tpu.dot_dimension_numbers<[1], [0], [0], [1], [0, 0, 1, 1], [], []>} : vector<22x128xbf16>, vector<128x128xbf16>, vector<22x128xf32> -> vector<22x128xf32>
    %10 = arith.addf %4, %9 : vector<22x128xf32>
    %c0_8 = arith.constant 0 : index
    %c2 = arith.constant 2 : index
    %c0_9 = arith.constant 0 : index
    %11 = vector.load %arg1[%c0_8, %c2, %c0_9] : memref<1x36x128xf32, #tpu.memory_space<vmem>>, vector<1x22x128xf32>
    %12 = vector.shape_cast %11 : vector<1x22x128xf32> to vector<22x128xf32>
    %13 = arith.truncf %12 : vector<22x128xf32> to vector<22x128xbf16>
    %c256 = arith.constant 256 : index
    %c0_10 = arith.constant 0 : index
    %14 = vector.load %arg2[%c256, %c0_10] : memref<1152x128xbf16, #tpu.memory_space<vmem>>, vector<128x128xbf16>
    %cst_11 = arith.constant dense<0.000000e+00> : vector<22x128xf32>
    %15 = tpu.matmul %13, %14, %cst_11 {dimension_numbers = #tpu.dot_dimension_numbers<[1], [0], [0], [1], [0, 0, 1, 1], [], []>} : vector<22x128xbf16>, vector<128x128xbf16>, vector<22x128xf32> -> vector<22x128xf32>
    %16 = arith.addf %10, %15 : vector<22x128xf32>
    %c0_12 = arith.constant 0 : index
    %c6 = arith.constant 6 : index
    %c0_13 = arith.constant 0 : index
    %17 = vector.load %arg1[%c0_12, %c6, %c0_13] : memref<1x36x128xf32, #tpu.memory_space<vmem>>, vector<1x22x128xf32>
    %18 = vector.shape_cast %17 : vector<1x22x128xf32> to vector<22x128xf32>
    %19 = arith.truncf %18 : vector<22x128xf32> to vector<22x128xbf16>
    %c384 = arith.constant 384 : index
    %c0_14 = arith.constant 0 : index
    %20 = vector.load %arg2[%c384, %c0_14] : memref<1152x128xbf16, #tpu.memory_space<vmem>>, vector<128x128xbf16>
    %cst_15 = arith.constant dense<0.000000e+00> : vector<22x128xf32>
    %21 = tpu.matmul %19, %20, %cst_15 {dimension_numbers = #tpu.dot_dimension_numbers<[1], [0], [0], [1], [0, 0, 1, 1], [], []>} : vector<22x128xbf16>, vector<128x128xbf16>, vector<22x128xf32> -> vector<22x128xf32>
    %22 = arith.addf %16, %21 : vector<22x128xf32>
    %c0_16 = arith.constant 0 : index
    %c7 = arith.constant 7 : index
    %c0_17 = arith.constant 0 : index
    %23 = vector.load %arg1[%c0_16, %c7, %c0_17] : memref<1x36x128xf32, #tpu.memory_space<vmem>>, vector<1x22x128xf32>
    %24 = vector.shape_cast %23 : vector<1x22x128xf32> to vector<22x128xf32>
    %25 = arith.truncf %24 : vector<22x128xf32> to vector<22x128xbf16>
    %c512 = arith.constant 512 : index
    %c0_18 = arith.constant 0 : index
    %26 = vector.load %arg2[%c512, %c0_18] : memref<1152x128xbf16, #tpu.memory_space<vmem>>, vector<128x128xbf16>
    %cst_19 = arith.constant dense<0.000000e+00> : vector<22x128xf32>
    %27 = tpu.matmul %25, %26, %cst_19 {dimension_numbers = #tpu.dot_dimension_numbers<[1], [0], [0], [1], [0, 0, 1, 1], [], []>} : vector<22x128xbf16>, vector<128x128xbf16>, vector<22x128xf32> -> vector<22x128xf32>
    %28 = arith.addf %22, %27 : vector<22x128xf32>
    %c0_20 = arith.constant 0 : index
    %c8 = arith.constant 8 : index
    %c0_21 = arith.constant 0 : index
    %29 = vector.load %arg1[%c0_20, %c8, %c0_21] : memref<1x36x128xf32, #tpu.memory_space<vmem>>, vector<1x22x128xf32>
    %30 = vector.shape_cast %29 : vector<1x22x128xf32> to vector<22x128xf32>
    %31 = arith.truncf %30 : vector<22x128xf32> to vector<22x128xbf16>
    %c640 = arith.constant 640 : index
    %c0_22 = arith.constant 0 : index
    %32 = vector.load %arg2[%c640, %c0_22] : memref<1152x128xbf16, #tpu.memory_space<vmem>>, vector<128x128xbf16>
    %cst_23 = arith.constant dense<0.000000e+00> : vector<22x128xf32>
    %33 = tpu.matmul %31, %32, %cst_23 {dimension_numbers = #tpu.dot_dimension_numbers<[1], [0], [0], [1], [0, 0, 1, 1], [], []>} : vector<22x128xbf16>, vector<128x128xbf16>, vector<22x128xf32> -> vector<22x128xf32>
    %34 = arith.addf %28, %33 : vector<22x128xf32>
    %c0_24 = arith.constant 0 : index
    %c12 = arith.constant 12 : index
    %c0_25 = arith.constant 0 : index
    %35 = vector.load %arg1[%c0_24, %c12, %c0_25] : memref<1x36x128xf32, #tpu.memory_space<vmem>>, vector<1x22x128xf32>
    %36 = vector.shape_cast %35 : vector<1x22x128xf32> to vector<22x128xf32>
    %37 = arith.truncf %36 : vector<22x128xf32> to vector<22x128xbf16>
    %c768 = arith.constant 768 : index
    %c0_26 = arith.constant 0 : index
    %38 = vector.load %arg2[%c768, %c0_26] : memref<1152x128xbf16, #tpu.memory_space<vmem>>, vector<128x128xbf16>
    %cst_27 = arith.constant dense<0.000000e+00> : vector<22x128xf32>
    %39 = tpu.matmul %37, %38, %cst_27 {dimension_numbers = #tpu.dot_dimension_numbers<[1], [0], [0], [1], [0, 0, 1, 1], [], []>} : vector<22x128xbf16>, vector<128x128xbf16>, vector<22x128xf32> -> vector<22x128xf32>
    %40 = arith.addf %34, %39 : vector<22x128xf32>
    %c0_28 = arith.constant 0 : index
    %c13 = arith.constant 13 : index
    %c0_29 = arith.constant 0 : index
    %41 = vector.load %arg1[%c0_28, %c13, %c0_29] : memref<1x36x128xf32, #tpu.memory_space<vmem>>, vector<1x22x128xf32>
    %42 = vector.shape_cast %41 : vector<1x22x128xf32> to vector<22x128xf32>
    %43 = arith.truncf %42 : vector<22x128xf32> to vector<22x128xbf16>
    %c896 = arith.constant 896 : index
    %c0_30 = arith.constant 0 : index
    %44 = vector.load %arg2[%c896, %c0_30] : memref<1152x128xbf16, #tpu.memory_space<vmem>>, vector<128x128xbf16>
    %cst_31 = arith.constant dense<0.000000e+00> : vector<22x128xf32>
    %45 = tpu.matmul %43, %44, %cst_31 {dimension_numbers = #tpu.dot_dimension_numbers<[1], [0], [0], [1], [0, 0, 1, 1], [], []>} : vector<22x128xbf16>, vector<128x128xbf16>, vector<22x128xf32> -> vector<22x128xf32>
    %46 = arith.addf %40, %45 : vector<22x128xf32>
    %c0_32 = arith.constant 0 : index
    %c14 = arith.constant 14 : index
    %c0_33 = arith.constant 0 : index
    %47 = vector.load %arg1[%c0_32, %c14, %c0_33] : memref<1x36x128xf32, #tpu.memory_space<vmem>>, vector<1x22x128xf32>
    %48 = vector.shape_cast %47 : vector<1x22x128xf32> to vector<22x128xf32>
    %49 = arith.truncf %48 : vector<22x128xf32> to vector<22x128xbf16>
    %c1024 = arith.constant 1024 : index
    %c0_34 = arith.constant 0 : index
    %50 = vector.load %arg2[%c1024, %c0_34] : memref<1152x128xbf16, #tpu.memory_space<vmem>>, vector<128x128xbf16>
    %cst_35 = arith.constant dense<0.000000e+00> : vector<22x128xf32>
    %51 = tpu.matmul %49, %50, %cst_35 {dimension_numbers = #tpu.dot_dimension_numbers<[1], [0], [0], [1], [0, 0, 1, 1], [], []>} : vector<22x128xbf16>, vector<128x128xbf16>, vector<22x128xf32> -> vector<22x128xf32>
    %52 = arith.addf %46, %51 : vector<22x128xf32>
    %53 = tpu.iota {dimensions = array<i32: 0>} : vector<22x1xi32>
    %c6_i32 = arith.constant 6 : i32
    %c0_i32 = arith.constant 0 : i32
    %54 = arith.cmpi eq, %c6_i32, %c0_i32 : i32
    %c1_i32 = arith.constant 1 : i32
    %55 = arith.select %54, %c1_i32, %c6_i32 : i32
    %56 = vector.broadcast %55 : i32 to vector<22x1xi32>
    %57 = arith.remsi %53, %56 : vector<22x1xi32>
    %c0_i32_36 = arith.constant 0 : i32
    %58 = vector.broadcast %c0_i32_36 : i32 to vector<22x1xi32>
    %59 = arith.cmpi ne, %57, %58 : vector<22x1xi32>
    %c0_i32_37 = arith.constant 0 : i32
    %60 = vector.broadcast %c0_i32_37 : i32 to vector<22x1xi32>
    %61 = arith.cmpi slt, %57, %60 : vector<22x1xi32>
    %c0_i32_38 = arith.constant 0 : i32
    %62 = arith.cmpi slt, %55, %c0_i32_38 : i32
    %63 = vector.broadcast %62 : i1 to vector<22x1xi1>
    %64 = vector.broadcast %63 : vector<22x1xi1> to vector<22x1xi1>
    %65 = arith.xori %61, %64 : vector<22x1xi1>
    %66 = arith.andi %65, %59 : vector<22x1xi1>
    %67 = vector.broadcast %55 : i32 to vector<22x1xi32>
    %68 = arith.addi %57, %67 : vector<22x1xi32>
    %69 = arith.select %66, %68, %57 : vector<22x1xi1>, vector<22x1xi32>
    %c4_i32 = arith.constant 4 : i32
    %70 = vector.broadcast %c4_i32 : i32 to vector<22x1xi32>
    %71 = arith.cmpi slt, %69, %70 : vector<22x1xi32>
    %cst_39 = arith.constant 0.000000e+00 : f32
    %72 = vector.shape_cast %71 : vector<22x1xi1> to vector<22x1xi1>
    %73 = vector.broadcast %72 : vector<22x1xi1> to vector<22x128xi1>
    %74 = vector.broadcast %cst_39 : f32 to vector<22x128xf32>
    %75 = arith.select %73, %52, %74 : vector<22x128xi1>, vector<22x128xf32>
    %cst_40 = arith.constant dense<0.000000e+00> : vector<128xf32>
    %76 = vector.multi_reduction <add>, %75, %cst_40 [0] : vector<22x128xf32> to vector<128xf32>
    %77 = vector.shape_cast %76 : vector<128xf32> to vector<1x128xf32>
    %c0_41 = arith.constant 0 : index
    %c0_42 = arith.constant 0 : index
    %c0_43 = arith.constant 0 : index
    %78 = vector.load %arg4[%c0_41, %c0_42, %c0_43] : memref<1x2x128xf32, #tpu.memory_space<vmem>>, vector<1x1x128xf32>
    %79 = vector.shape_cast %78 : vector<1x1x128xf32> to vector<1x128xf32>
    %80 = vector.shape_cast %77 : vector<1x128xf32> to vector<1x1x128xf32>
    tpu.vector_store %arg4[%c0_41, %c0_42, %c0_43], %80 {strides = array<i32>} : memref<1x2x128xf32, #tpu.memory_space<vmem>>, vector<1x1x128xf32>,
    %81 = arith.mulf %75, %75 : vector<22x128xf32>
    %cst_44 = arith.constant dense<0.000000e+00> : vector<128xf32>
    %82 = vector.multi_reduction <add>, %81, %cst_44 [0] : vector<22x128xf32> to vector<128xf32>
    %83 = vector.shape_cast %82 : vector<128xf32> to vector<1x128xf32>
    %c0_45 = arith.constant 0 : index
    %c1_46 = arith.constant 1 : index
    %c0_47 = arith.constant 0 : index
    %84 = vector.load %arg4[%c0_45, %c1_46, %c0_47] : memref<1x2x128xf32, #tpu.memory_space<vmem>>, vector<1x1x128xf32>
    %85 = vector.shape_cast %84 : vector<1x1x128xf32> to vector<1x128xf32>
    %86 = vector.shape_cast %83 : vector<1x128xf32> to vector<1x1x128xf32>
    tpu.vector_store %arg4[%c0_45, %c1_46, %c0_47], %86 {strides = array<i32>} : memref<1x2x128xf32, #tpu.memory_space<vmem>>, vector<1x1x128xf32>,
    %87 = vector.extract_strided_slice %52 {offsets = [0, 0], sizes = [4, 128], strides = [1, 1]} : vector<22x128xf32> to vector<4x128xf32>
    %88 = arith.truncf %87 : vector<4x128xf32> to vector<4x128xbf16>
    %c0_48 = arith.constant 0 : index
    %c0_49 = arith.constant 0 : index
    %c0_50 = arith.constant 0 : index
    %89 = vector.load %arg3[%c0_48, %c0_49, %c0_50] : memref<1x16x128xbf16, #tpu.memory_space<vmem>>, vector<1x4x128xbf16>
    %90 = vector.shape_cast %89 : vector<1x4x128xbf16> to vector<4x128xbf16>
    %91 = vector.shape_cast %88 : vector<4x128xbf16> to vector<1x4x128xbf16>
    tpu.vector_store %arg3[%c0_48, %c0_49, %c0_50], %91 {strides = array<i32>} : memref<1x16x128xbf16, #tpu.memory_space<vmem>>, vector<1x4x128xbf16>,
    %92 = vector.extract_strided_slice %52 {offsets = [6, 0], sizes = [4, 128], strides = [1, 1]} : vector<22x128xf32> to vector<4x128xf32>
    %93 = arith.truncf %92 : vector<4x128xf32> to vector<4x128xbf16>
    %c0_51 = arith.constant 0 : index
    %c4 = arith.constant 4 : index
    %c0_52 = arith.constant 0 : index
    %94 = vector.load %arg3[%c0_51, %c4, %c0_52] : memref<1x16x128xbf16, #tpu.memory_space<vmem>>, vector<1x4x128xbf16>
    %95 = vector.shape_cast %94 : vector<1x4x128xbf16> to vector<4x128xbf16>
    %96 = vector.shape_cast %93 : vector<4x128xbf16> to vector<1x4x128xbf16>
    tpu.vector_store %arg3[%c0_51, %c4, %c0_52], %96 {strides = array<i32>} : memref<1x16x128xbf16, #tpu.memory_space<vmem>>, vector<1x4x128xbf16>,
    %97 = vector.extract_strided_slice %52 {offsets = [12, 0], sizes = [4, 128], strides = [1, 1]} : vector<22x128xf32> to vector<4x128xf32>
    %98 = arith.truncf %97 : vector<4x128xf32> to vector<4x128xbf16>
    %c0_53 = arith.constant 0 : index
    %c8_54 = arith.constant 8 : index
    %c0_55 = arith.constant 0 : index
    %99 = vector.load %arg3[%c0_53, %c8_54, %c0_55] : memref<1x16x128xbf16, #tpu.memory_space<vmem>>, vector<1x4x128xbf16>
    %100 = vector.shape_cast %99 : vector<1x4x128xbf16> to vector<4x128xbf16>
    %101 = vector.shape_cast %98 : vector<4x128xbf16> to vector<1x4x128xbf16>
    tpu.vector_store %arg3[%c0_53, %c8_54, %c0_55], %101 {strides = array<i32>} : memref<1x16x128xbf16, #tpu.memory_space<vmem>>, vector<1x4x128xbf16>,
    %102 = vector.extract_strided_slice %52 {offsets = [18, 0], sizes = [4, 128], strides = [1, 1]} : vector<22x128xf32> to vector<4x128xf32>
    %103 = arith.truncf %102 : vector<4x128xf32> to vector<4x128xbf16>
    %c0_56 = arith.constant 0 : index
    %c12_57 = arith.constant 12 : index
    %c0_58 = arith.constant 0 : index
    %104 = vector.load %arg3[%c0_56, %c12_57, %c0_58] : memref<1x16x128xbf16, #tpu.memory_space<vmem>>, vector<1x4x128xbf16>
    %105 = vector.shape_cast %104 : vector<1x4x128xbf16> to vector<4x128xbf16>
    %106 = vector.shape_cast %103 : vector<4x128xbf16> to vector<1x4x128xbf16>
    tpu.vector_store %arg3[%c0_56, %c12_57, %c0_58], %106 {strides = array<i32>} : memref<1x16x128xbf16, #tpu.memory_space<vmem>>, vector<1x4x128xbf16>,
    return
  }
  func.func @transform_0(%arg0: i32) -> (i32, i32, i32) {
    %c0_i32 = arith.constant 0 : i32
    %c0_i32_0 = arith.constant 0 : i32
    %c0_i32_1 = arith.constant 0 : i32
    return %arg0, %c0_i32, %c0_i32_0 : i32, i32, i32
  }
  func.func @transform_1(%arg0: i32) -> (i32, i32) {
    %c0_i32 = arith.constant 0 : i32
    %c0_i32_0 = arith.constant 0 : i32
    %c0_i32_1 = arith.constant 0 : i32
    return %c0_i32, %c0_i32_0 : i32, i32
  }
  func.func @transform_2(%arg0: i32) -> (i32, i32, i32) {
    %c0_i32 = arith.constant 0 : i32
    %c0_i32_0 = arith.constant 0 : i32
    %c0_i32_1 = arith.constant 0 : i32
    return %arg0, %c0_i32, %c0_i32_0 : i32, i32, i32
  }
  func.func @transform_3(%arg0: i32) -> (i32, i32, i32) {
    %c0_i32 = arith.constant 0 : i32
    %c0_i32_0 = arith.constant 0 : i32
    %c0_i32_1 = arith.constant 0 : i32
    return %arg0, %c0_i32, %c0_i32_0 : i32, i32, i32
  }
}

module attributes {stable_mosaic.version = 11 : i64} {
  func.func @_fused_layer_kernel(%arg0: i32, %arg1: memref<32x128xbf16, #tpu.memory_space<vmem>>, %arg2: memref<1x128xf32, #tpu.memory_space<vmem>>, %arg3: memref<1x128xf32, #tpu.memory_space<vmem>>, %arg4: memref<128x512xbf16, #tpu.memory_space<vmem>>, %arg5: memref<32x512xbf16, #tpu.memory_space<vmem>>, %arg6: memref<1x2x512xf32, #tpu.memory_space<vmem>>) attributes {dimension_semantics = [#tpu.dimension_semantics<parallel>], iteration_bounds = array<i64: 1>, scalar_prefetch = 0 : i64, scratch_operands = 0 : i64, tpu.core_type = #tpu.core_type<tc>, window_params = [{transform_indices = @transform_0, window_bounds = array<i64: 32, 128>}, {pipeline_mode = #tpu.pipeline_mode<synchronous>, transform_indices = @transform_1, window_bounds = array<i64: 1, 128>}, {pipeline_mode = #tpu.pipeline_mode<synchronous>, transform_indices = @transform_2, window_bounds = array<i64: 1, 128>}, {pipeline_mode = #tpu.pipeline_mode<synchronous>, transform_indices = @transform_3, window_bounds = array<i64: 128, 512>}, {transform_indices = @transform_4, window_bounds = array<i64: 32, 512>}, {transform_indices = @transform_5, window_bounds = array<i64: 1, 2, 512>}]} {
    %c0 = arith.constant 0 : index
    %c0_0 = arith.constant 0 : index
    %0 = vector.load %arg1[%c0, %c0_0] : memref<32x128xbf16, #tpu.memory_space<vmem>>, vector<32x128xbf16>
    %1 = arith.extf %0 : vector<32x128xbf16> to vector<32x128xf32>
    %c0_1 = arith.constant 0 : index
    %c0_2 = arith.constant 0 : index
    %2 = vector.load %arg2[%c0_1, %c0_2] : memref<1x128xf32, #tpu.memory_space<vmem>>, vector<1x128xf32>
    %3 = vector.broadcast %2 : vector<1x128xf32> to vector<32x128xf32>
    %4 = arith.mulf %1, %3 : vector<32x128xf32>
    %c0_3 = arith.constant 0 : index
    %c0_4 = arith.constant 0 : index
    %5 = vector.load %arg3[%c0_3, %c0_4] : memref<1x128xf32, #tpu.memory_space<vmem>>, vector<1x128xf32>
    %6 = vector.broadcast %5 : vector<1x128xf32> to vector<32x128xf32>
    %7 = arith.addf %4, %6 : vector<32x128xf32>
    %cst = arith.constant 0.000000e+00 : f32
    %8 = vector.broadcast %cst : f32 to vector<32x128xf32>
    %9 = arith.maximumf %7, %8 : vector<32x128xf32>
    %10 = arith.truncf %9 : vector<32x128xf32> to vector<32x128xbf16>
    %c0_5 = arith.constant 0 : index
    %c0_6 = arith.constant 0 : index
    %11 = vector.load %arg4[%c0_5, %c0_6] : memref<128x512xbf16, #tpu.memory_space<vmem>>, vector<128x512xbf16>
    %cst_7 = arith.constant dense<0.000000e+00> : vector<32x512xf32>
    %12 = tpu.matmul %10, %11, %cst_7 {dimension_numbers = #tpu.dot_dimension_numbers<[1], [0], [0], [1], [0, 0, 1, 1], [], []>} : vector<32x128xbf16>, vector<128x512xbf16>, vector<32x512xf32> -> vector<32x512xf32>
    %13 = arith.truncf %12 : vector<32x512xf32> to vector<32x512xbf16>
    %c0_8 = arith.constant 0 : index
    %c0_9 = arith.constant 0 : index
    %14 = vector.load %arg5[%c0_8, %c0_9] : memref<32x512xbf16, #tpu.memory_space<vmem>>, vector<32x512xbf16>
    tpu.vector_store %arg5[%c0_8, %c0_9], %13 {strides = array<i32>} : memref<32x512xbf16, #tpu.memory_space<vmem>>, vector<32x512xbf16>,
    %cst_10 = arith.constant dense<0.000000e+00> : vector<512xf32>
    %15 = vector.multi_reduction <add>, %12, %cst_10 [0] : vector<32x512xf32> to vector<512xf32>
    %16 = vector.shape_cast %15 : vector<512xf32> to vector<1x512xf32>
    %c0_11 = arith.constant 0 : index
    %c0_12 = arith.constant 0 : index
    %c0_13 = arith.constant 0 : index
    %17 = vector.load %arg6[%c0_11, %c0_12, %c0_13] : memref<1x2x512xf32, #tpu.memory_space<vmem>>, vector<1x1x512xf32>
    %18 = vector.shape_cast %17 : vector<1x1x512xf32> to vector<1x512xf32>
    %19 = vector.shape_cast %16 : vector<1x512xf32> to vector<1x1x512xf32>
    tpu.vector_store %arg6[%c0_11, %c0_12, %c0_13], %19 {strides = array<i32>} : memref<1x2x512xf32, #tpu.memory_space<vmem>>, vector<1x1x512xf32>,
    %20 = arith.mulf %12, %12 : vector<32x512xf32>
    %cst_14 = arith.constant dense<0.000000e+00> : vector<512xf32>
    %21 = vector.multi_reduction <add>, %20, %cst_14 [0] : vector<32x512xf32> to vector<512xf32>
    %22 = vector.shape_cast %21 : vector<512xf32> to vector<1x512xf32>
    %c0_15 = arith.constant 0 : index
    %c1 = arith.constant 1 : index
    %c0_16 = arith.constant 0 : index
    %23 = vector.load %arg6[%c0_15, %c1, %c0_16] : memref<1x2x512xf32, #tpu.memory_space<vmem>>, vector<1x1x512xf32>
    %24 = vector.shape_cast %23 : vector<1x1x512xf32> to vector<1x512xf32>
    %25 = vector.shape_cast %22 : vector<1x512xf32> to vector<1x1x512xf32>
    tpu.vector_store %arg6[%c0_15, %c1, %c0_16], %25 {strides = array<i32>} : memref<1x2x512xf32, #tpu.memory_space<vmem>>, vector<1x1x512xf32>,
    return
  }
  func.func @transform_0(%arg0: i32) -> (i32, i32) {
    %c0_i32 = arith.constant 0 : i32
    %c0_i32_0 = arith.constant 0 : i32
    return %arg0, %c0_i32 : i32, i32
  }
  func.func @transform_1(%arg0: i32) -> (i32, i32) {
    %c0_i32 = arith.constant 0 : i32
    %c0_i32_0 = arith.constant 0 : i32
    %c0_i32_1 = arith.constant 0 : i32
    return %c0_i32, %c0_i32_0 : i32, i32
  }
  func.func @transform_2(%arg0: i32) -> (i32, i32) {
    %c0_i32 = arith.constant 0 : i32
    %c0_i32_0 = arith.constant 0 : i32
    %c0_i32_1 = arith.constant 0 : i32
    return %c0_i32, %c0_i32_0 : i32, i32
  }
  func.func @transform_3(%arg0: i32) -> (i32, i32) {
    %c0_i32 = arith.constant 0 : i32
    %c0_i32_0 = arith.constant 0 : i32
    %c0_i32_1 = arith.constant 0 : i32
    return %c0_i32, %c0_i32_0 : i32, i32
  }
  func.func @transform_4(%arg0: i32) -> (i32, i32) {
    %c0_i32 = arith.constant 0 : i32
    %c0_i32_0 = arith.constant 0 : i32
    return %arg0, %c0_i32 : i32, i32
  }
  func.func @transform_5(%arg0: i32) -> (i32, i32, i32) {
    %c0_i32 = arith.constant 0 : i32
    %c0_i32_0 = arith.constant 0 : i32
    %c0_i32_1 = arith.constant 0 : i32
    return %arg0, %c0_i32, %c0_i32_0 : i32, i32, i32
  }
}

module attributes {stable_mosaic.version = 11 : i64} {
  func.func @_fused_layer_kernel(%arg0: i32, %arg1: memref<128x128xbf16, #tpu.memory_space<vmem>>, %arg2: memref<1x128xf32, #tpu.memory_space<vmem>>, %arg3: memref<1x128xf32, #tpu.memory_space<vmem>>, %arg4: memref<128x384xbf16, #tpu.memory_space<vmem>>, %arg5: memref<128x384xbf16, #tpu.memory_space<vmem>>, %arg6: memref<1x2x384xf32, #tpu.memory_space<vmem>>) attributes {dimension_semantics = [#tpu.dimension_semantics<parallel>], iteration_bounds = array<i64: 1>, scalar_prefetch = 0 : i64, scratch_operands = 0 : i64, tpu.core_type = #tpu.core_type<tc>, window_params = [{transform_indices = @transform_0, window_bounds = array<i64: 128, 128>}, {pipeline_mode = #tpu.pipeline_mode<synchronous>, transform_indices = @transform_1, window_bounds = array<i64: 1, 128>}, {pipeline_mode = #tpu.pipeline_mode<synchronous>, transform_indices = @transform_2, window_bounds = array<i64: 1, 128>}, {pipeline_mode = #tpu.pipeline_mode<synchronous>, transform_indices = @transform_3, window_bounds = array<i64: 128, 384>}, {transform_indices = @transform_4, window_bounds = array<i64: 128, 384>}, {transform_indices = @transform_5, window_bounds = array<i64: 1, 2, 384>}]} {
    %c0 = arith.constant 0 : index
    %c0_0 = arith.constant 0 : index
    %0 = vector.load %arg1[%c0, %c0_0] : memref<128x128xbf16, #tpu.memory_space<vmem>>, vector<128x128xbf16>
    %1 = arith.extf %0 : vector<128x128xbf16> to vector<128x128xf32>
    %c0_1 = arith.constant 0 : index
    %c0_2 = arith.constant 0 : index
    %2 = vector.load %arg2[%c0_1, %c0_2] : memref<1x128xf32, #tpu.memory_space<vmem>>, vector<1x128xf32>
    %3 = vector.broadcast %2 : vector<1x128xf32> to vector<128x128xf32>
    %4 = arith.mulf %1, %3 : vector<128x128xf32>
    %c0_3 = arith.constant 0 : index
    %c0_4 = arith.constant 0 : index
    %5 = vector.load %arg3[%c0_3, %c0_4] : memref<1x128xf32, #tpu.memory_space<vmem>>, vector<1x128xf32>
    %6 = vector.broadcast %5 : vector<1x128xf32> to vector<128x128xf32>
    %7 = arith.addf %4, %6 : vector<128x128xf32>
    %cst = arith.constant 0.000000e+00 : f32
    %8 = vector.broadcast %cst : f32 to vector<128x128xf32>
    %9 = arith.maximumf %7, %8 : vector<128x128xf32>
    %10 = arith.truncf %9 : vector<128x128xf32> to vector<128x128xbf16>
    %c0_5 = arith.constant 0 : index
    %c0_6 = arith.constant 0 : index
    %11 = vector.load %arg4[%c0_5, %c0_6] : memref<128x384xbf16, #tpu.memory_space<vmem>>, vector<128x384xbf16>
    %cst_7 = arith.constant dense<0.000000e+00> : vector<128x384xf32>
    %12 = tpu.matmul %10, %11, %cst_7 {dimension_numbers = #tpu.dot_dimension_numbers<[1], [0], [0], [1], [0, 0, 1, 1], [], []>} : vector<128x128xbf16>, vector<128x384xbf16>, vector<128x384xf32> -> vector<128x384xf32>
    %13 = arith.truncf %12 : vector<128x384xf32> to vector<128x384xbf16>
    %c0_8 = arith.constant 0 : index
    %c0_9 = arith.constant 0 : index
    %14 = vector.load %arg5[%c0_8, %c0_9] : memref<128x384xbf16, #tpu.memory_space<vmem>>, vector<128x384xbf16>
    tpu.vector_store %arg5[%c0_8, %c0_9], %13 {strides = array<i32>} : memref<128x384xbf16, #tpu.memory_space<vmem>>, vector<128x384xbf16>,
    %cst_10 = arith.constant dense<0.000000e+00> : vector<384xf32>
    %15 = vector.multi_reduction <add>, %12, %cst_10 [0] : vector<128x384xf32> to vector<384xf32>
    %16 = vector.shape_cast %15 : vector<384xf32> to vector<1x384xf32>
    %c0_11 = arith.constant 0 : index
    %c0_12 = arith.constant 0 : index
    %c0_13 = arith.constant 0 : index
    %17 = vector.load %arg6[%c0_11, %c0_12, %c0_13] : memref<1x2x384xf32, #tpu.memory_space<vmem>>, vector<1x1x384xf32>
    %18 = vector.shape_cast %17 : vector<1x1x384xf32> to vector<1x384xf32>
    %19 = vector.shape_cast %16 : vector<1x384xf32> to vector<1x1x384xf32>
    tpu.vector_store %arg6[%c0_11, %c0_12, %c0_13], %19 {strides = array<i32>} : memref<1x2x384xf32, #tpu.memory_space<vmem>>, vector<1x1x384xf32>,
    %20 = arith.mulf %12, %12 : vector<128x384xf32>
    %cst_14 = arith.constant dense<0.000000e+00> : vector<384xf32>
    %21 = vector.multi_reduction <add>, %20, %cst_14 [0] : vector<128x384xf32> to vector<384xf32>
    %22 = vector.shape_cast %21 : vector<384xf32> to vector<1x384xf32>
    %c0_15 = arith.constant 0 : index
    %c1 = arith.constant 1 : index
    %c0_16 = arith.constant 0 : index
    %23 = vector.load %arg6[%c0_15, %c1, %c0_16] : memref<1x2x384xf32, #tpu.memory_space<vmem>>, vector<1x1x384xf32>
    %24 = vector.shape_cast %23 : vector<1x1x384xf32> to vector<1x384xf32>
    %25 = vector.shape_cast %22 : vector<1x384xf32> to vector<1x1x384xf32>
    tpu.vector_store %arg6[%c0_15, %c1, %c0_16], %25 {strides = array<i32>} : memref<1x2x384xf32, #tpu.memory_space<vmem>>, vector<1x1x384xf32>,
    return
  }
  func.func @transform_0(%arg0: i32) -> (i32, i32) {
    %c0_i32 = arith.constant 0 : i32
    %c0_i32_0 = arith.constant 0 : i32
    return %arg0, %c0_i32 : i32, i32
  }
  func.func @transform_1(%arg0: i32) -> (i32, i32) {
    %c0_i32 = arith.constant 0 : i32
    %c0_i32_0 = arith.constant 0 : i32
    %c0_i32_1 = arith.constant 0 : i32
    return %c0_i32, %c0_i32_0 : i32, i32
  }
  func.func @transform_2(%arg0: i32) -> (i32, i32) {
    %c0_i32 = arith.constant 0 : i32
    %c0_i32_0 = arith.constant 0 : i32
    %c0_i32_1 = arith.constant 0 : i32
    return %c0_i32, %c0_i32_0 : i32, i32
  }
  func.func @transform_3(%arg0: i32) -> (i32, i32) {
    %c0_i32 = arith.constant 0 : i32
    %c0_i32_0 = arith.constant 0 : i32
    %c0_i32_1 = arith.constant 0 : i32
    return %c0_i32, %c0_i32_0 : i32, i32
  }
  func.func @transform_4(%arg0: i32) -> (i32, i32) {
    %c0_i32 = arith.constant 0 : i32
    %c0_i32_0 = arith.constant 0 : i32
    return %arg0, %c0_i32 : i32, i32
  }
  func.func @transform_5(%arg0: i32) -> (i32, i32, i32) {
    %c0_i32 = arith.constant 0 : i32
    %c0_i32_0 = arith.constant 0 : i32
    %c0_i32_1 = arith.constant 0 : i32
    return %arg0, %c0_i32, %c0_i32_0 : i32, i32, i32
  }
}

module attributes {stable_mosaic.version = 11 : i64} {
  func.func @_fused_layer_kernel(%arg0: i32, %arg1: memref<512x96xbf16, #tpu.memory_space<vmem>>, %arg2: memref<1x96xf32, #tpu.memory_space<vmem>>, %arg3: memref<1x96xf32, #tpu.memory_space<vmem>>, %arg4: memref<96x384xbf16, #tpu.memory_space<vmem>>, %arg5: memref<512x384xbf16, #tpu.memory_space<vmem>>, %arg6: memref<1x2x384xf32, #tpu.memory_space<vmem>>) attributes {dimension_semantics = [#tpu.dimension_semantics<parallel>], iteration_bounds = array<i64: 1>, scalar_prefetch = 0 : i64, scratch_operands = 0 : i64, tpu.core_type = #tpu.core_type<tc>, window_params = [{transform_indices = @transform_0, window_bounds = array<i64: 512, 96>}, {pipeline_mode = #tpu.pipeline_mode<synchronous>, transform_indices = @transform_1, window_bounds = array<i64: 1, 96>}, {pipeline_mode = #tpu.pipeline_mode<synchronous>, transform_indices = @transform_2, window_bounds = array<i64: 1, 96>}, {pipeline_mode = #tpu.pipeline_mode<synchronous>, transform_indices = @transform_3, window_bounds = array<i64: 96, 384>}, {transform_indices = @transform_4, window_bounds = array<i64: 512, 384>}, {transform_indices = @transform_5, window_bounds = array<i64: 1, 2, 384>}]} {
    %c0 = arith.constant 0 : index
    %c0_0 = arith.constant 0 : index
    %0 = vector.load %arg1[%c0, %c0_0] : memref<512x96xbf16, #tpu.memory_space<vmem>>, vector<512x96xbf16>
    %1 = arith.extf %0 : vector<512x96xbf16> to vector<512x96xf32>
    %c0_1 = arith.constant 0 : index
    %c0_2 = arith.constant 0 : index
    %2 = vector.load %arg2[%c0_1, %c0_2] : memref<1x96xf32, #tpu.memory_space<vmem>>, vector<1x96xf32>
    %3 = vector.broadcast %2 : vector<1x96xf32> to vector<512x96xf32>
    %4 = arith.mulf %1, %3 : vector<512x96xf32>
    %c0_3 = arith.constant 0 : index
    %c0_4 = arith.constant 0 : index
    %5 = vector.load %arg3[%c0_3, %c0_4] : memref<1x96xf32, #tpu.memory_space<vmem>>, vector<1x96xf32>
    %6 = vector.broadcast %5 : vector<1x96xf32> to vector<512x96xf32>
    %7 = arith.addf %4, %6 : vector<512x96xf32>
    %cst = arith.constant 0.000000e+00 : f32
    %8 = vector.broadcast %cst : f32 to vector<512x96xf32>
    %9 = arith.maximumf %7, %8 : vector<512x96xf32>
    %10 = arith.truncf %9 : vector<512x96xf32> to vector<512x96xbf16>
    %c0_5 = arith.constant 0 : index
    %c0_6 = arith.constant 0 : index
    %11 = vector.load %arg4[%c0_5, %c0_6] : memref<96x384xbf16, #tpu.memory_space<vmem>>, vector<96x384xbf16>
    %cst_7 = arith.constant dense<0.000000e+00> : vector<512x384xf32>
    %12 = tpu.matmul %10, %11, %cst_7 {dimension_numbers = #tpu.dot_dimension_numbers<[1], [0], [0], [1], [0, 0, 1, 1], [], []>} : vector<512x96xbf16>, vector<96x384xbf16>, vector<512x384xf32> -> vector<512x384xf32>
    %13 = arith.truncf %12 : vector<512x384xf32> to vector<512x384xbf16>
    %c0_8 = arith.constant 0 : index
    %c0_9 = arith.constant 0 : index
    %14 = vector.load %arg5[%c0_8, %c0_9] : memref<512x384xbf16, #tpu.memory_space<vmem>>, vector<512x384xbf16>
    tpu.vector_store %arg5[%c0_8, %c0_9], %13 {strides = array<i32>} : memref<512x384xbf16, #tpu.memory_space<vmem>>, vector<512x384xbf16>,
    %cst_10 = arith.constant dense<0.000000e+00> : vector<384xf32>
    %15 = vector.multi_reduction <add>, %12, %cst_10 [0] : vector<512x384xf32> to vector<384xf32>
    %16 = vector.shape_cast %15 : vector<384xf32> to vector<1x384xf32>
    %c0_11 = arith.constant 0 : index
    %c0_12 = arith.constant 0 : index
    %c0_13 = arith.constant 0 : index
    %17 = vector.load %arg6[%c0_11, %c0_12, %c0_13] : memref<1x2x384xf32, #tpu.memory_space<vmem>>, vector<1x1x384xf32>
    %18 = vector.shape_cast %17 : vector<1x1x384xf32> to vector<1x384xf32>
    %19 = vector.shape_cast %16 : vector<1x384xf32> to vector<1x1x384xf32>
    tpu.vector_store %arg6[%c0_11, %c0_12, %c0_13], %19 {strides = array<i32>} : memref<1x2x384xf32, #tpu.memory_space<vmem>>, vector<1x1x384xf32>,
    %20 = arith.mulf %12, %12 : vector<512x384xf32>
    %cst_14 = arith.constant dense<0.000000e+00> : vector<384xf32>
    %21 = vector.multi_reduction <add>, %20, %cst_14 [0] : vector<512x384xf32> to vector<384xf32>
    %22 = vector.shape_cast %21 : vector<384xf32> to vector<1x384xf32>
    %c0_15 = arith.constant 0 : index
    %c1 = arith.constant 1 : index
    %c0_16 = arith.constant 0 : index
    %23 = vector.load %arg6[%c0_15, %c1, %c0_16] : memref<1x2x384xf32, #tpu.memory_space<vmem>>, vector<1x1x384xf32>
    %24 = vector.shape_cast %23 : vector<1x1x384xf32> to vector<1x384xf32>
    %25 = vector.shape_cast %22 : vector<1x384xf32> to vector<1x1x384xf32>
    tpu.vector_store %arg6[%c0_15, %c1, %c0_16], %25 {strides = array<i32>} : memref<1x2x384xf32, #tpu.memory_space<vmem>>, vector<1x1x384xf32>,
    return
  }
  func.func @transform_0(%arg0: i32) -> (i32, i32) {
    %c0_i32 = arith.constant 0 : i32
    %c0_i32_0 = arith.constant 0 : i32
    return %arg0, %c0_i32 : i32, i32
  }
  func.func @transform_1(%arg0: i32) -> (i32, i32) {
    %c0_i32 = arith.constant 0 : i32
    %c0_i32_0 = arith.constant 0 : i32
    %c0_i32_1 = arith.constant 0 : i32
    return %c0_i32, %c0_i32_0 : i32, i32
  }
  func.func @transform_2(%arg0: i32) -> (i32, i32) {
    %c0_i32 = arith.constant 0 : i32
    %c0_i32_0 = arith.constant 0 : i32
    %c0_i32_1 = arith.constant 0 : i32
    return %c0_i32, %c0_i32_0 : i32, i32
  }
  func.func @transform_3(%arg0: i32) -> (i32, i32) {
    %c0_i32 = arith.constant 0 : i32
    %c0_i32_0 = arith.constant 0 : i32
    %c0_i32_1 = arith.constant 0 : i32
    return %c0_i32, %c0_i32_0 : i32, i32
  }
  func.func @transform_4(%arg0: i32) -> (i32, i32) {
    %c0_i32 = arith.constant 0 : i32
    %c0_i32_0 = arith.constant 0 : i32
    return %arg0, %c0_i32 : i32, i32
  }
  func.func @transform_5(%arg0: i32) -> (i32, i32, i32) {
    %c0_i32 = arith.constant 0 : i32
    %c0_i32_0 = arith.constant 0 : i32
    %c0_i32_1 = arith.constant 0 : i32
    return %arg0, %c0_i32, %c0_i32_0 : i32, i32, i32
  }
}

module attributes {stable_mosaic.version = 11 : i64} {
  func.func @_fused_layer_kernel(%arg0: i32, %arg1: memref<2048x96xbf16, #tpu.memory_space<vmem>>, %arg2: memref<1x96xf32, #tpu.memory_space<vmem>>, %arg3: memref<1x96xf32, #tpu.memory_space<vmem>>, %arg4: memref<96x256xbf16, #tpu.memory_space<vmem>>, %arg5: memref<1x256xf32, #tpu.memory_space<vmem>>, %arg6: memref<2048x256xf32, #tpu.memory_space<vmem>>) attributes {dimension_semantics = [#tpu.dimension_semantics<parallel>], iteration_bounds = array<i64: 1>, scalar_prefetch = 0 : i64, scratch_operands = 0 : i64, tpu.core_type = #tpu.core_type<tc>, window_params = [{transform_indices = @transform_0, window_bounds = array<i64: 2048, 96>}, {pipeline_mode = #tpu.pipeline_mode<synchronous>, transform_indices = @transform_1, window_bounds = array<i64: 1, 96>}, {pipeline_mode = #tpu.pipeline_mode<synchronous>, transform_indices = @transform_2, window_bounds = array<i64: 1, 96>}, {pipeline_mode = #tpu.pipeline_mode<synchronous>, transform_indices = @transform_3, window_bounds = array<i64: 96, 256>}, {pipeline_mode = #tpu.pipeline_mode<synchronous>, transform_indices = @transform_4, window_bounds = array<i64: 1, 256>}, {transform_indices = @transform_5, window_bounds = array<i64: 2048, 256>}]} {
    %c0 = arith.constant 0 : index
    %c0_0 = arith.constant 0 : index
    %0 = vector.load %arg1[%c0, %c0_0] : memref<2048x96xbf16, #tpu.memory_space<vmem>>, vector<2048x96xbf16>
    %1 = arith.extf %0 : vector<2048x96xbf16> to vector<2048x96xf32>
    %c0_1 = arith.constant 0 : index
    %c0_2 = arith.constant 0 : index
    %2 = vector.load %arg2[%c0_1, %c0_2] : memref<1x96xf32, #tpu.memory_space<vmem>>, vector<1x96xf32>
    %3 = vector.broadcast %2 : vector<1x96xf32> to vector<2048x96xf32>
    %4 = arith.mulf %1, %3 : vector<2048x96xf32>
    %c0_3 = arith.constant 0 : index
    %c0_4 = arith.constant 0 : index
    %5 = vector.load %arg3[%c0_3, %c0_4] : memref<1x96xf32, #tpu.memory_space<vmem>>, vector<1x96xf32>
    %6 = vector.broadcast %5 : vector<1x96xf32> to vector<2048x96xf32>
    %7 = arith.addf %4, %6 : vector<2048x96xf32>
    %cst = arith.constant 0.000000e+00 : f32
    %8 = vector.broadcast %cst : f32 to vector<2048x96xf32>
    %9 = arith.maximumf %7, %8 : vector<2048x96xf32>
    %10 = arith.truncf %9 : vector<2048x96xf32> to vector<2048x96xbf16>
    %c0_5 = arith.constant 0 : index
    %c0_6 = arith.constant 0 : index
    %11 = vector.load %arg4[%c0_5, %c0_6] : memref<96x256xbf16, #tpu.memory_space<vmem>>, vector<96x256xbf16>
    %cst_7 = arith.constant dense<0.000000e+00> : vector<2048x256xf32>
    %12 = tpu.matmul %10, %11, %cst_7 {dimension_numbers = #tpu.dot_dimension_numbers<[1], [0], [0], [1], [0, 0, 1, 1], [], []>} : vector<2048x96xbf16>, vector<96x256xbf16>, vector<2048x256xf32> -> vector<2048x256xf32>
    %c0_8 = arith.constant 0 : index
    %c0_9 = arith.constant 0 : index
    %13 = vector.load %arg5[%c0_8, %c0_9] : memref<1x256xf32, #tpu.memory_space<vmem>>, vector<1x256xf32>
    %14 = vector.broadcast %13 : vector<1x256xf32> to vector<2048x256xf32>
    %15 = arith.addf %12, %14 : vector<2048x256xf32>
    %c0_10 = arith.constant 0 : index
    %c0_11 = arith.constant 0 : index
    %16 = vector.load %arg6[%c0_10, %c0_11] : memref<2048x256xf32, #tpu.memory_space<vmem>>, vector<2048x256xf32>
    tpu.vector_store %arg6[%c0_10, %c0_11], %15 {strides = array<i32>} : memref<2048x256xf32, #tpu.memory_space<vmem>>, vector<2048x256xf32>,
    return
  }
  func.func @transform_0(%arg0: i32) -> (i32, i32) {
    %c0_i32 = arith.constant 0 : i32
    %c0_i32_0 = arith.constant 0 : i32
    return %arg0, %c0_i32 : i32, i32
  }
  func.func @transform_1(%arg0: i32) -> (i32, i32) {
    %c0_i32 = arith.constant 0 : i32
    %c0_i32_0 = arith.constant 0 : i32
    %c0_i32_1 = arith.constant 0 : i32
    return %c0_i32, %c0_i32_0 : i32, i32
  }
  func.func @transform_2(%arg0: i32) -> (i32, i32) {
    %c0_i32 = arith.constant 0 : i32
    %c0_i32_0 = arith.constant 0 : i32
    %c0_i32_1 = arith.constant 0 : i32
    return %c0_i32, %c0_i32_0 : i32, i32
  }
  func.func @transform_3(%arg0: i32) -> (i32, i32) {
    %c0_i32 = arith.constant 0 : i32
    %c0_i32_0 = arith.constant 0 : i32
    %c0_i32_1 = arith.constant 0 : i32
    return %c0_i32, %c0_i32_0 : i32, i32
  }
  func.func @transform_4(%arg0: i32) -> (i32, i32) {
    %c0_i32 = arith.constant 0 : i32
    %c0_i32_0 = arith.constant 0 : i32
    %c0_i32_1 = arith.constant 0 : i32
    return %c0_i32, %c0_i32_0 : i32, i32
  }
  func.func @transform_5(%arg0: i32) -> (i32, i32) {
    %c0_i32 = arith.constant 0 : i32
    %c0_i32_0 = arith.constant 0 : i32
    return %arg0, %c0_i32 : i32, i32
  }
}

</mosaic_0001>

<llo_original>
// kernel: tile.9
$region0: #{tile.9}
  %s0 = inlined_call_operand.vmem [shape: f32[4,64], index: 0, kind: input, shape index: {}]
  %s1 = inlined_call_operand.vmem [shape: f32[1,256], index: 1, kind: output, shape index: {}]
  $region1: #{tile.9} parent=0
    #allocation0 [shape = 'u8[8192]{0}', space=vmem, size = 0x2000, scoped, tag = 'scoped mem for output reshape']
    #allocation1 [shape = 'u8[4096]{0}', space=vmem, size = 0x1000, scoped, tag = 'scoped mem for input reshape']
    %s3 = sshllo.u32 0, 4
    %v4 = vld [vmem:[%s0] sm:%s3]
    %5 = vst [vmem:[#allocation1] sm:%s3] %v4
    %s6 = smov 3
    %v7 = vld [vmem:[#allocation1] ss:$2 sm:%s6]
    %vm8 = vcmask 523264
    %9 = vst.msk [vmem:[#allocation0] ss:$8 sm:$0x3] %vm8, %v7
    %s10 = scalar_lea.vmem [#allocation1], 1
    %s11 = smov 3
    %v12 = vld [vmem:[%s10] ss:$2 sm:%s11]
    %13 = vrot.lane.b32.xlu0 %v12, 64
    %v14 = vpop.permute.xlu0 %13
    %vm15 = vcmask 1048064
    %16 = vst.msk [vmem:[#allocation0] ss:$8 sm:$0x3] %vm15, %v14
    %s18 = sshllo.u32 0, 1
    %v20 = vld [vmem:[#allocation0] sm:%s18]
    %s21 = sshllo.u32 0, 1
    %22 = vst [vmem:[%s1] sm:%s21] %v20
    %s23 = scalar_lea.vmem [#allocation0], 8
    %v24 = vld [vmem:[%s23] sm:%s18]
    %s25 = sshllo.u32 0, 1
    %s26 = scalar_lea.vmem %s1, 1
    %27 = vst [vmem:[%s26] sm:%s25] %v24

// kernel: tile.8
$region0: #{tile.8}
  #allocation2 [shape = 's32[1]{0}', space=sflag, size = 0x4, scoped, tag = 'scoped memory for tile.8']
  %s0 = inlined_call_operand.hbm [shape: f32[64], index: 0, kind: input, shape index: {}]
  %s1 = inlined_call_operand.vmem [shape: f32[4,64], index: 1, kind: output, shape index: {}]
  $region1: #{tile.8} parent=0
    #allocation0 [shape = 'u8[512]{0}', space=vmem, size = 0x400, scoped, tag = 'operand span for operand 0']
    #allocation1 [shape = 's32[1]{0}', space=sflag, size = 0x4, scoped, tag = 'scoped memory for tile.8']
    %2 = vsyncpa [#allocation1], 0
    // Predicated region
    $region2: #{tile.8} parent=1 // pred_check
      _
    $region3: #{tile.8} parent=1 // pred_check_branch
      %4 = sbr.rel (0) target = $region5
    $region4: #{tile.8} parent=1 // pred_region
      %s6 = ssub.s32 16, 16
      %7 = vsyncadd [#allocation1], %s6
      %s9 = sshll.u32 [#allocation0], 4
      %s10 = int_to_ptr.vmem [resolvable:$true] %s9
      %12 = dma.hbm_to_vmem [thread:$0]  %s0, 16, %s10, [#allocation1]
    $region5: #{tile.8} parent=1 // pred_fallthru
      _
    // Predicated region
    $region6: #{tile.8} parent=1 // pred_check
      _
    $region7: #{tile.8} parent=1 // pred_check_branch
      %14 = sbr.rel (0) target = $region9
    $region8: #{tile.8} parent=1 // pred_region
      %15 = dma.done [#allocation1], 16
    $region9: #{tile.8} parent=1 // pred_fallthru
      _
    %v16 = vld [vmem:[#allocation0] ss:$0 sm:$0xff]
    %17 = vst [vmem:[%s1] sm:$0xf] %v16
    %18 = vsyncpa [#allocation1], 1

// kernel: stcae_decoder_forward.6
$region0: #{stcae_decoder_forward.6}
  #allocation0 [shape = 'u32[]', space=smem, size = 0x4, offset = 0x4, fixed_abs, tag = 'smem constant byte address 0x4 - core index']
  #allocation1 [shape = 'u32[144,128]{1,0:T(1,128)}', space=vmem, size = 0x12000, scoped, tag = 'internal scratch']
  %s0 = inlined_call_operand.vmem [shape: bf16[32,128], index: 0, kind: input, shape index: {}]
  %s1 = inlined_call_operand.vmem [shape: f32[1,128], index: 1, kind: input, shape index: {}]
  %s2 = inlined_call_operand.vmem [shape: f32[1,128], index: 2, kind: input, shape index: {}]
  %s3 = inlined_call_operand.vmem [shape: bf16[128,512], index: 3, kind: input, shape index: {}]
  %s4 = inlined_call_operand.vmem [shape: bf16[32,512], index: 4, kind: output, shape index: {0}]
  %s5 = inlined_call_operand.vmem [shape: f32[1,2,512], index: 5, kind: output, shape index: {1}]
  %6 = xla_tuple %s4, %s5
  %s7 = sld [smem:[#allocation0]]
  $region34: #{stcae_decoder_forward.6} parent=0
    _
  %s9 = ssub.s32 1, %s7
  %s10 = scalar_select 0, %s9, %s7
  // Predicated region
  $region2: #{stcae_decoder_forward.6} parent=0 // pred_check
    _
  $region3: #{stcae_decoder_forward.6} parent=0 // pred_check_branch
    %12 = sbr.rel (0) target = $region5
  $region4: #{stcae_decoder_forward.6} parent=0 // pred_region
    _
  $region5: #{stcae_decoder_forward.6} parent=0 // pred_fallthru
    _
  // Predicated region
  $region6: #{stcae_decoder_forward.6} parent=0 // pred_check
    _
  $region7: #{stcae_decoder_forward.6} parent=0 // pred_check_branch
    %14 = sbr.rel (0) target = $region9
  $region8: #{stcae_decoder_forward.6} parent=0 // pred_region
    _
  $region9: #{stcae_decoder_forward.6} parent=0 // pred_fallthru
    _
  // Predicated region
  $region10: #{stcae_decoder_forward.6} parent=0 // pred_check
    _
  $region11: #{stcae_decoder_forward.6} parent=0 // pred_check_branch
    %16 = sbr.rel (0) target = $region13
  $region12: #{stcae_decoder_forward.6} parent=0 // pred_region
    _
  $region13: #{stcae_decoder_forward.6} parent=0 // pred_fallthru
    _
  // Predicated region
  $region14: #{stcae_decoder_forward.6} parent=0 // pred_check
    _
  $region15: #{stcae_decoder_forward.6} parent=0 // pred_check_branch
    %18 = sbr.rel (0) target = $region17
  $region16: #{stcae_decoder_forward.6} parent=0 // pred_region
    _
  $region17: #{stcae_decoder_forward.6} parent=0 // pred_fallthru
    _
  %v20 = vld [vmem:[%s0] sm:$0xf]
  %v21 = vld [vmem:[%s0 + $0x4] sm:$0xf]
  %v22 = vld [vmem:[%s0 + $0x8] sm:$0xf]
  %v23 = vld [vmem:[%s0 + $0xc] sm:$0xf]
  %v24 = vunpack.c.l.bf16 %v20
  %v25 = vunpack.c.l.bf16 %v21
  %v26 = vunpack.c.l.bf16 %v22
  %v27 = vunpack.c.l.bf16 %v23
  %v28 = vld [vmem:[%s1] sm:$0x1]
  %v30 = vlaneseq
  %v31 = vshrl.u32 %v30, 7
  %v32 = vsub.s32 0, %v31
  %v33 = vrot.slane %v28, %v32
  %v35 = vmul.f32 %v24, %v33
  %v36 = vmul.f32 %v25, %v33
  %v37 = vmul.f32 %v26, %v33
  %v38 = vmul.f32 %v27, %v33
  %v39 = vld [vmem:[%s2] sm:$0x1]
  %v41 = vlaneseq
  %v42 = vshrl.u32 %v41, 7
  %v43 = vsub.s32 0, %v42
  %v44 = vrot.slane %v39, %v43
  %v46 = vadd.f32 %v35, %v44
  %v47 = vadd.f32 %v36, %v44
  %v48 = vadd.f32 %v37, %v44
  %v49 = vadd.f32 %v38, %v44
  %v50 = vmax.f32 %v46, 0.0
  %v51 = vmax.f32 %v47, 0.0
  %v52 = vmax.f32 %v48, 0.0
  %v53 = vmax.f32 %v49, 0.0
  %v54 = vpack.c.bf16 %v51, %v50
  %v55 = vpack.c.bf16 %v53, %v52
  %v56 = vld [vmem:[%s3] sm:$0xff]
  %v57 = vld [vmem:[%s3 + $0x8] sm:$0xff]
  %v58 = vld [vmem:[%s3 + $0x10] sm:$0xff]
  %v59 = vld [vmem:[%s3 + $0x18] sm:$0xff]
  %v60 = vld [vmem:[%s3 + $0x20] sm:$0xff]
  %v61 = vld [vmem:[%s3 + $0x28] sm:$0xff]
  %v62 = vld [vmem:[%s3 + $0x30] sm:$0xff]
  %v63 = vld [vmem:[%s3 + $0x38] sm:$0xff]
  %v64 = vld [vmem:[%s3 + $0x40] sm:$0xff]
  %v65 = vld [vmem:[%s3 + $0x48] sm:$0xff]
  %v66 = vld [vmem:[%s3 + $0x50] sm:$0xff]
  %v67 = vld [vmem:[%s3 + $0x58] sm:$0xff]
  %v68 = vld [vmem:[%s3 + $0x60] sm:$0xff]
  %v69 = vld [vmem:[%s3 + $0x68] sm:$0xff]
  %v70 = vld [vmem:[%s3 + $0x70] sm:$0xff]
  %v71 = vld [vmem:[%s3 + $0x78] sm:$0xff]
  %v72 = vld [vmem:[%s3 + $0x80] sm:$0xff]
  %v73 = vld [vmem:[%s3 + $0x88] sm:$0xff]
  %v74 = vld [vmem:[%s3 + $0x90] sm:$0xff]
  %v75 = vld [vmem:[%s3 + $0x98] sm:$0xff]
  %v76 = vld [vmem:[%s3 + $0xa0] sm:$0xff]
  %v77 = vld [vmem:[%s3 + $0xa8] sm:$0xff]
  %v78 = vld [vmem:[%s3 + $0xb0] sm:$0xff]
  %v79 = vld [vmem:[%s3 + $0xb8] sm:$0xff]
  %v80 = vld [vmem:[%s3 + $0xc0] sm:$0xff]
  %v81 = vld [vmem:[%s3 + $0xc8] sm:$0xff]
  %v82 = vld [vmem:[%s3 + $0xd0] sm:$0xff]
  %v83 = vld [vmem:[%s3 + $0xd8] sm:$0xff]
  %v84 = vld [vmem:[%s3 + $0xe0] sm:$0xff]
  %v85 = vld [vmem:[%s3 + $0xe8] sm:$0xff]
  %v86 = vld [vmem:[%s3 + $0xf0] sm:$0xff]
  %v87 = vld [vmem:[%s3 + $0xf8] sm:$0xff]
  %v120 = vunpack.c.l.b16 %v56
  %v121 = vunpack.c.h.b16 %v56
  %v122 = vunpack.c.l.b16 %v57
  %v123 = vunpack.c.h.b16 %v57
  %v124 = vunpack.c.l.b16 %v58
  %v125 = vunpack.c.h.b16 %v58
  %v126 = vunpack.c.l.b16 %v59
  %v127 = vunpack.c.h.b16 %v59
  %v128 = vunpack.c.l.b16 %v60
  %v129 = vunpack.c.h.b16 %v60
  %v130 = vunpack.c.l.b16 %v61
  %v131 = vunpack.c.h.b16 %v61
  %v132 = vunpack.c.l.b16 %v62
  %v133 = vunpack.c.h.b16 %v62
  %v134 = vunpack.c.l.b16 %v63
  %v135 = vunpack.c.h.b16 %v63
  %v136 = vunpack.c.l.b16 %v64
  %v137 = vunpack.c.h.b16 %v64
  %v138 = vunpack.c.l.b16 %v65
  %v139 = vunpack.c.h.b16 %v65
  %v140 = vunpack.c.l.b16 %v66
  %v141 = vunpack.c.h.b16 %v66
  %v142 = vunpack.c.l.b16 %v67
  %v143 = vunpack.c.h.b16 %v67
  %v144 = vunpack.c.l.b16 %v68
  %v145 = vunpack.c.h.b16 %v68
  %v146 = vunpack.c.l.b16 %v69
  %v147 = vunpack.c.h.b16 %v69
  %v148 = vunpack.c.l.b16 %v70
  %v149 = vunpack.c.h.b16 %v70
  %v150 = vunpack.c.l.b16 %v71
  %v151 = vunpack.c.h.b16 %v71
  %v152 = vunpack.c.l.b16 %v72
  %v153 = vunpack.c.h.b16 %v72
  %v154 = vunpack.c.l.b16 %v73
  %v155 = vunpack.c.h.b16 %v73
  %v156 = vunpack.c.l.b16 %v74
  %v157 = vunpack.c.h.b16 %v74
  %v158 = vunpack.c.l.b16 %v75
  %v159 = vunpack.c.h.b16 %v75
  %v160 = vunpack.c.l.b16 %v76
  %v161 = vunpack.c.h.b16 %v76
  %v162 = vunpack.c.l.b16 %v77
  %v163 = vunpack.c.h.b16 %v77
  %v164 = vunpack.c.l.b16 %v78
  %v165 = vunpack.c.h.b16 %v78
  %v166 = vunpack.c.l.b16 %v79
  %v167 = vunpack.c.h.b16 %v79
  %v168 = vunpack.c.l.b16 %v80
  %v169 = vunpack.c.h.b16 %v80
  %v170 = vunpack.c.l.b16 %v81
  %v171 = vunpack.c.h.b16 %v81
  %v172 = vunpack.c.l.b16 %v82
  %v173 = vunpack.c.h.b16 %v82
  %v174 = vunpack.c.l.b16 %v83
  %v175 = vunpack.c.h.b16 %v83
  %v176 = vunpack.c.l.b16 %v84
  %v177 = vunpack.c.h.b16 %v84
  %v178 = vunpack.c.l.b16 %v85
  %v179 = vunpack.c.h.b16 %v85
  %v180 = vunpack.c.l.b16 %v86
  %v181 = vunpack.c.h.b16 %v86
  %v182 = vunpack.c.l.b16 %v87
  %v183 = vunpack.c.h.b16 %v87
  %v184 = vpack.c.b16 %v124, %v120
  %v185 = vpack.c.b16 %v125, %v121
  %v186 = vpack.c.b16 %v126, %v122
  %v187 = vpack.c.b16 %v127, %v123
  %v188 = vpack.c.b16 %v132, %v128
  %v189 = vpack.c.b16 %v133, %v129
  %v190 = vpack.c.b16 %v134, %v130
  %v191 = vpack.c.b16 %v135, %v131
  %v192 = vpack.c.b16 %v140, %v136
  %v193 = vpack.c.b16 %v141, %v137
  %v194 = vpack.c.b16 %v142, %v138
  %v195 = vpack.c.b16 %v143, %v139
  %v196 = vpack.c.b16 %v148, %v144
  %v197 = vpack.c.b16 %v149, %v145
  %v198 = vpack.c.b16 %v150, %v146
  %v199 = vpack.c.b16 %v151, %v147
  %v200 = vpack.c.b16 %v156, %v152
  %v201 = vpack.c.b16 %v157, %v153
  %v202 = vpack.c.b16 %v158, %v154
  %v203 = vpack.c.b16 %v159, %v155
  %v204 = vpack.c.b16 %v164, %v160
  %v205 = vpack.c.b16 %v165, %v161
  %v206 = vpack.c.b16 %v166, %v162
  %v207 = vpack.c.b16 %v167, %v163
  %v208 = vpack.c.b16 %v172, %v168
  %v209 = vpack.c.b16 %v173, %v169
  %v210 = vpack.c.b16 %v174, %v170
  %v211 = vpack.c.b16 %v175, %v171
  %v212 = vpack.c.b16 %v180, %v176
  %v213 = vpack.c.b16 %v181, %v177
  %v214 = vpack.c.b16 %v182, %v178
  %v215 = vpack.c.b16 %v183, %v179
  %248 = vmatprep.subr.bf16.mxu0 %v185
  %249 = vmatpush1.bf16.msra.mxu0 %v184
  %250 = vmatprep.subr.bf16.mxu0 %v189
  %251 = vmatpush1.bf16.msra.mxu0 %v188
  %252 = vmatprep.subr.bf16.mxu0 %v193
  %253 = vmatpush1.bf16.msra.mxu0 %v192
  %254 = vmatprep.subr.bf16.mxu0 %v197
  %255 = vmatpush1.bf16.msra.mxu0 %v196
  %256 = vmatprep.subr.bf16.mxu0 %v201
  %257 = vmatpush1.bf16.msra.mxu0 %v200
  %258 = vmatprep.subr.bf16.mxu0 %v205
  %259 = vmatpush1.bf16.msra.mxu0 %v204
  %260 = vmatprep.subr.bf16.mxu0 %v209
  %261 = vmatpush1.bf16.msra.mxu0 %v208
  %262 = vmatprep.subr.bf16.mxu0 %v213
  %263 = vmatpush1.bf16.msra.mxu0 %v212
  %264 = vmatprep.subr.bf16.mxu0 0
  %265 = vmatpush1.bf16.msra.mxu0 0
  %266 = vmatprep.subr.bf16.mxu0 0
  %267 = vmatpush1.bf16.msra.mxu0 0
  %268 = vmatprep.subr.bf16.mxu0 0
  %269 = vmatpush1.bf16.msra.mxu0 0
  %270 = vmatprep.subr.bf16.mxu0 0
  %271 = vmatpush1.bf16.msra.mxu0 0
  %272 = vmatprep.subr.bf16.mxu0 0
  %273 = vmatpush1.bf16.msra.mxu0 0
  %274 = vmatprep.subr.bf16.mxu0 0
  %275 = vmatpush1.bf16.msra.mxu0 0
  %276 = vmatprep.subr.bf16.mxu0 0
  %277 = vmatpush1.bf16.msra.mxu0 0
  %278 = vmatprep.subr.bf16.mxu0 0
  %279 = vmatpush1.bf16.msra.mxu0 0
  %280 = vmatprep.mubr.bf16.mxu0 0
  %281 = vmatmul.mubr.bf16.gmra.mrb[0].mxu0 %v54
  %v282 = vpop.f32.mrb[0].mxu0
  %v283 = vadd.f32 0.0, %v282
  %v284 = vpop.f32.mrb[0].mxu0
  %v285 = vadd.f32 0.0, %v284
  %v286 = vpop.f32.mrb[0].mxu0
  %v287 = vadd.f32 0.0, %v286
  %v288 = vpop.f32.mrb[0].mxu0
  %v289 = vadd.f32 0.0, %v288
  %290 = vmatprep.mubr.bf16.mxu0 0
  %291 = vmatmul.mubr.bf16.gmra.mrb[0].mxu0 %v55
  %v292 = vpop.f32.mrb[0].mxu0
  %v293 = vadd.f32 0.0, %v292
  %v294 = vpop.f32.mrb[0].mxu0
  %v295 = vadd.f32 0.0, %v294
  %v296 = vpop.f32.mrb[0].mxu0
  %v297 = vadd.f32 0.0, %v296
  %v298 = vpop.f32.mrb[0].mxu0
  %v299 = vadd.f32 0.0, %v298
  %300 = vdwg.mxu0
  %301 = vmatprep.subr.bf16.mxu0 %v187
  %302 = vmatpush1.bf16.msra.mxu0 %v186
  %303 = vmatprep.subr.bf16.mxu0 %v191
  %304 = vmatpush1.bf16.msra.mxu0 %v190
  %305 = vmatprep.subr.bf16.mxu0 %v195
  %306 = vmatpush1.bf16.msra.mxu0 %v194
  %307 = vmatprep.subr.bf16.mxu0 %v199
  %308 = vmatpush1.bf16.msra.mxu0 %v198
  %309 = vmatprep.subr.bf16.mxu0 %v203
  %310 = vmatpush1.bf16.msra.mxu0 %v202
  %311 = vmatprep.subr.bf16.mxu0 %v207
  %312 = vmatpush1.bf16.msra.mxu0 %v206
  %313 = vmatprep.subr.bf16.mxu0 %v211
  %314 = vmatpush1.bf16.msra.mxu0 %v210
  %315 = vmatprep.subr.bf16.mxu0 %v215
  %316 = vmatpush1.bf16.msra.mxu0 %v214
  %317 = vmatprep.subr.bf16.mxu0 0
  %318 = vmatpush1.bf16.msra.mxu0 0
  %319 = vmatprep.subr.bf16.mxu0 0
  %320 = vmatpush1.bf16.msra.mxu0 0
  %321 = vmatprep.subr.bf16.mxu0 0
  %322 = vmatpush1.bf16.msra.mxu0 0
  %323 = vmatprep.subr.bf16.mxu0 0
  %324 = vmatpush1.bf16.msra.mxu0 0
  %325 = vmatprep.subr.bf16.mxu0 0
  %326 = vmatpush1.bf16.msra.mxu0 0
  %327 = vmatprep.subr.bf16.mxu0 0
  %328 = vmatpush1.bf16.msra.mxu0 0
  %329 = vmatprep.subr.bf16.mxu0 0
  %330 = vmatpush1.bf16.msra.mxu0 0
  %331 = vmatprep.subr.bf16.mxu0 0
  %332 = vmatpush1.bf16.msra.mxu0 0
  %333 = vmatprep.mubr.bf16.mxu0 0
  %334 = vmatmul.mubr.bf16.gmra.mrb[0].mxu0 %v54
  %v335 = vpop.f32.mrb[0].mxu0
  %v336 = vadd.f32 0.0, %v335
  %v337 = vpop.f32.mrb[0].mxu0
  %v338 = vadd.f32 0.0, %v337
  %v339 = vpop.f32.mrb[0].mxu0
  %v340 = vadd.f32 0.0, %v339
  %v341 = vpop.f32.mrb[0].mxu0
  %v342 = vadd.f32 0.0, %v341
  %343 = vmatprep.mubr.bf16.mxu0 0
  %344 = vmatmul.mubr.bf16.gmra.mrb[0].mxu0 %v55
  %v345 = vpop.f32.mrb[0].mxu0
  %v346 = vadd.f32 0.0, %v345
  %v347 = vpop.f32.mrb[0].mxu0
  %v348 = vadd.f32 0.0, %v347
  %v349 = vpop.f32.mrb[0].mxu0
  %v350 = vadd.f32 0.0, %v349
  %v351 = vpop.f32.mrb[0].mxu0
  %v352 = vadd.f32 0.0, %v351
  %353 = vdwg.mxu0
  %v354 = vpack.c.bf16 %v287, %v283
  %v355 = vpack.c.bf16 %v289, %v285
  %v356 = vpack.c.bf16 %v340, %v336
  %v357 = vpack.c.bf16 %v342, %v338
  %v358 = vpack.c.bf16 %v297, %v293
  %v359 = vpack.c.bf16 %v299, %v295
  %v360 = vpack.c.bf16 %v350, %v346
  %v361 = vpack.c.bf16 %v352, %v348
  %v370 = vunpack.c.l.b16 %v354
  %v371 = vunpack.c.l.b16 %v355
  %v372 = vunpack.c.l.b16 %v356
  %v373 = vunpack.c.l.b16 %v357
  %v374 = vunpack.c.h.b16 %v354
  %v375 = vunpack.c.h.b16 %v355
  %v376 = vunpack.c.h.b16 %v356
  %v377 = vunpack.c.h.b16 %v357
  %v378 = vunpack.c.l.b16 %v358
  %v379 = vunpack.c.l.b16 %v359
  %v380 = vunpack.c.l.b16 %v360
  %v381 = vunpack.c.l.b16 %v361
  %v382 = vunpack.c.h.b16 %v358
  %v383 = vunpack.c.h.b16 %v359
  %v384 = vunpack.c.h.b16 %v360
  %v385 = vunpack.c.h.b16 %v361
  %v386 = vpack.c.b16 %v371, %v370
  %v387 = vpack.c.b16 %v373, %v372
  %v388 = vpack.c.b16 %v375, %v374
  %v389 = vpack.c.b16 %v377, %v376
  %v390 = vpack.c.b16 %v379, %v378
  %v391 = vpack.c.b16 %v381, %v380
  %v392 = vpack.c.b16 %v383, %v382
  %v393 = vpack.c.b16 %v385, %v384
  %402 = vst [vmem:[%s4] sm:$0xff] %v386
  %403 = vst [vmem:[%s4 + $0x8] sm:$0xff] %v387
  %404 = vst [vmem:[%s4 + $0x10] sm:$0xff] %v388
  %405 = vst [vmem:[%s4 + $0x18] sm:$0xff] %v389
  %406 = vst [vmem:[%s4 + $0x20] sm:$0xff] %v390
  %407 = vst [vmem:[%s4 + $0x28] sm:$0xff] %v391
  %408 = vst [vmem:[%s4 + $0x30] sm:$0xff] %v392
  %409 = vst [vmem:[%s4 + $0x38] sm:$0xff] %v393
  %v410 = vadd.f32 %v283, %v287
  %v411 = vadd.f32 %v410, %v293
  %v412 = vadd.f32 %v411, %v297
  %v413 = vrot.slane %v412, 4
  %v414 = vadd.f32 %v412, %v413
  %v415 = vrot.slane %v414, 2
  %v416 = vadd.f32 %v414, %v415
  %v417 = vrot.slane %v416, 1
  %v418 = vadd.f32 %v416, %v417
  %v419 = vadd.f32 %v285, %v289
  %v420 = vadd.f32 %v419, %v295
  %v421 = vadd.f32 %v420, %v299
  %v422 = vrot.slane %v421, 4
  %v423 = vadd.f32 %v421, %v422
  %v424 = vrot.slane %v423, 2
  %v425 = vadd.f32 %v423, %v424
  %v426 = vrot.slane %v425, 1
  %v427 = vadd.f32 %v425, %v426
  %v428 = vadd.f32 %v336, %v340
  %v429 = vadd.f32 %v428, %v346
  %v430 = vadd.f32 %v429, %v350
  %v431 = vrot.slane %v430, 4
  %v432 = vadd.f32 %v430, %v431
  %v433 = vrot.slane %v432, 2
  %v434 = vadd.f32 %v432, %v433
  %v435 = vrot.slane %v434, 1
  %v436 = vadd.f32 %v434, %v435
  %v437 = vadd.f32 %v338, %v342
  %v438 = vadd.f32 %v437, %v348
  %v439 = vadd.f32 %v438, %v352
  %v440 = vrot.slane %v439, 4
  %v441 = vadd.f32 %v439, %v440
  %v442 = vrot.slane %v441, 2
  %v443 = vadd.f32 %v441, %v442
  %v444 = vrot.slane %v443, 1
  %v445 = vadd.f32 %v443, %v444
  %v450 = vcombine.low %v418, %v427
  %v451 = vcombine.low %v436, %v445
  %v453 = vunpack.c.l.s4 1966171168
  %v454 = vunpack.c.0.s8 %v453
  %v455 = vlaneseq
  %v456 = vshrl.u32 %v455, 7
  %v457 = vsub.s32 %v454, %v456
  %v458 = vrot.slane %v450, %v457
  %v460 = vunpack.c.l.s4 1966171168
  %v461 = vunpack.c.0.s8 %v460
  %v462 = vlaneseq
  %v463 = vshrl.u32 %v462, 7
  %v464 = vsub.s32 %v461, %v463
  %v465 = vrot.slane %v451, %v464
  %v466 = vcombine.low %v458, %v465
  %v468 = vunpack.c.l.s4 1966171168
  %v469 = vunpack.c.0.s8 %v468
  %v470 = vlaneseq
  %v471 = vshrl.u32 %v470, 7
  %v472 = vsub.s32 %v469, %v471
  %v473 = vrot.slane %v466, %v472
  %v475 = vlaneseq
  %vm476 = vcmp.ge.s32.totalorder %v475, 0
  %vm477 = vcmp.lt.s32.totalorder %v475, 512
  %vm478 = vmand %vm476, %vm477
  %479 = vst.msk [vmem:[%s5] ss:$2 sm:$0xf] %vm478, %v473
  %v480 = vmul.f32 %v283, %v283
  %v481 = vmul.f32 %v285, %v285
  %v482 = vmul.f32 %v336, %v336
  %v483 = vmul.f32 %v338, %v338
  %v484 = vmul.f32 %v287, %v287
  %v485 = vmul.f32 %v289, %v289
  %v486 = vmul.f32 %v340, %v340
  %v487 = vmul.f32 %v342, %v342
  %v488 = vmul.f32 %v293, %v293
  %v489 = vmul.f32 %v295, %v295
  %v490 = vmul.f32 %v346, %v346
  %v491 = vmul.f32 %v348, %v348
  %v492 = vmul.f32 %v297, %v297
  %v493 = vmul.f32 %v299, %v299
  %v494 = vmul.f32 %v350, %v350
  %v495 = vmul.f32 %v352, %v352
  %v496 = vadd.f32 %v480, %v484
  %v497 = vadd.f32 %v496, %v488
  %v498 = vadd.f32 %v497, %v492
  %v499 = vrot.slane %v498, 4
  %v500 = vadd.f32 %v498, %v499
  %v501 = vrot.slane %v500, 2
  %v502 = vadd.f32 %v500, %v501
  %v503 = vrot.slane %v502, 1
  %v504 = vadd.f32 %v502, %v503
  %v505 = vadd.f32 %v481, %v485
  %v506 = vadd.f32 %v505, %v489
  %v507 = vadd.f32 %v506, %v493
  %v508 = vrot.slane %v507, 4
  %v509 = vadd.f32 %v507, %v508
  %v510 = vrot.slane %v509, 2
  %v511 = vadd.f32 %v509, %v510
  %v512 = vrot.slane %v511, 1
  %v513 = vadd.f32 %v511, %v512
  %v514 = vadd.f32 %v482, %v486
  %v515 = vadd.f32 %v514, %v490
  %v516 = vadd.f32 %v515, %v494
  %v517 = vrot.slane %v516, 4
  %v518 = vadd.f32 %v516, %v517
  %v519 = vrot.slane %v518, 2
  %v520 = vadd.f32 %v518, %v519
  %v521 = vrot.slane %v520, 1
  %v522 = vadd.f32 %v520, %v521
  %v523 = vadd.f32 %v483, %v487
  %v524 = vadd.f32 %v523, %v491
  %v525 = vadd.f32 %v524, %v495
  %v526 = vrot.slane %v525, 4
  %v527 = vadd.f32 %v525, %v526
  %v528 = vrot.slane %v527, 2
  %v529 = vadd.f32 %v527, %v528
  %v530 = vrot.slane %v529, 1
  %v531 = vadd.f32 %v529, %v530
  %v536 = vcombine.low %v504, %v513
  %v537 = vcombine.low %v522, %v531
  %v539 = vunpack.c.l.s4 1966171168
  %v540 = vunpack.c.0.s8 %v539
  %v541 = vlaneseq
  %v542 = vshrl.u32 %v541, 7
  %v543 = vsub.s32 %v540, %v542
  %v544 = vrot.slane %v536, %v543
  %v546 = vunpack.c.l.s4 1966171168
  %v547 = vunpack.c.0.s8 %v546
  %v548 = vlaneseq
  %v549 = vshrl.u32 %v548, 7
  %v550 = vsub.s32 %v547, %v549
  %v551 = vrot.slane %v537, %v550
  %v552 = vcombine.low %v544, %v551
  %v554 = vunpack.c.l.s4 1966171168
  %v555 = vunpack.c.0.s8 %v554
  %v556 = vlaneseq
  %v557 = vshrl.u32 %v556, 7
  %v558 = vsub.s32 %v555, %v557
  %v559 = vrot.slane %v552, %v558
  %s561 = scalar_lea.vmem %s5, 1
  %562 = vst.msk [vmem:[%s561] ss:$2 sm:$0xf] %vm478, %v559
  // Predicated region
  $region18: #{stcae_decoder_forward.6} parent=0 // pred_check
    _
  $region19: #{stcae_decoder_forward.6} parent=0 // pred_check_branch
    %564 = sbr.rel (0) target = $region21
  $region20: #{stcae_decoder_forward.6} parent=0 // pred_region
    _
  $region21: #{stcae_decoder_forward.6} parent=0 // pred_fallthru
    _
  // Predicated region
  $region22: #{stcae_decoder_forward.6} parent=0 // pred_check
    _
  $region23: #{stcae_decoder_forward.6} parent=0 // pred_check_branch
    %566 = sbr.rel (0) target = $region25
  $region24: #{stcae_decoder_forward.6} parent=0 // pred_region
    _
  $region25: #{stcae_decoder_forward.6} parent=0 // pred_fallthru
    _
  // Predicated region
  $region26: #{stcae_decoder_forward.6} parent=0 // pred_check
    _
  $region27: #{stcae_decoder_forward.6} parent=0 // pred_check_branch
    %568 = sbr.rel (0) target = $region29
  $region28: #{stcae_decoder_forward.6} parent=0 // pred_region
    _
  $region29: #{stcae_decoder_forward.6} parent=0 // pred_fallthru
    _
  // Predicated region
  $region30: #{stcae_decoder_forward.6} parent=0 // pred_check
    _
  $region31: #{stcae_decoder_forward.6} parent=0 // pred_check_branch
    %570 = sbr.rel (0) target = $region33
  $region32: #{stcae_decoder_forward.6} parent=0 // pred_region
    _
  $region33: #{stcae_decoder_forward.6} parent=0 // pred_fallthru
    _

// kernel: stcae_decoder_forward.5
$region0: #{stcae_decoder_forward.5}
  #allocation0 [shape = 'u32[]', space=smem, size = 0x4, offset = 0x4, fixed_abs, tag = 'smem constant byte address 0x4 - core index']
  #allocation1 [shape = 'u32[144,128]{1,0:T(1,128)}', space=vmem, size = 0x12000, scoped, tag = 'internal scratch']
  %s0 = inlined_call_operand.vmem [shape: f32[2,36,128], index: 0, kind: input, shape index: {}]
  %s1 = inlined_call_operand.vmem [shape: bf16[1152,128], index: 1, kind: input, shape index: {}]
  %s2 = inlined_call_operand.vmem [shape: bf16[2,16,128], index: 2, kind: output, shape index: {0}]
  %s3 = inlined_call_operand.vmem [shape: f32[2,2,128], index: 3, kind: output, shape index: {1}]
  %4 = xla_tuple %s2, %s3
  %s5 = sld [smem:[#allocation0]]
  $region49: #{stcae_decoder_forward.5} parent=0
    _
  %s7 = ssub.s32 1, %s5
  %s8 = scalar_select 0, %s7, %s5
  loop: start=0, step=1, limit=4
  $region2: #{stcae_decoder_forward.5} parent=0 // loop_pre_header
    _
  $region3: #{stcae_decoder_forward.5} parent=0 // loop_header
    %s10 = sphi 0, %s14
    %p11 = scmp.ge.s32.totalorder %s10, 4
    %s20 = sphi 0, %s22
    %s23 = sphi 0, %s20
    %s24 = sphi 0, %s23
    %s40 = sphi 0, %s24
    %s44 = sphi 0, %s44
    %s46 = sphi 0, %s44
    %s47 = sphi 0, %s46
    %s61 = sphi 0, %s47
    %s67 = sphi 0, %s69
    %s70 = sphi 0, %s67
    %s71 = sphi 0, %s70
    %s87 = sphi 0, %s71
    %s93 = sphi 0, %s95
    %s96 = sphi 0, %s93
    %s97 = sphi 0, %s96
    %s113 = sphi 0, %s97
  $region4: #{stcae_decoder_forward.5} parent=0 // loop_header_branch
    %13 = sbr.rel (%p11) target = $region8
  $region5: #{stcae_decoder_forward.5} parent=0 // loop_body
    %s15 = ssub.s32 %s10, 1
    %s16 = ssub.s32 %s10, 2
    %s17 = sadd.s32 %s10, 1
    %s18 = ssub.s32 %s10, %s17
    %p19 = scmp.eq.s32.totalorder %s18, 0
    %s21 = sadd.s32 %s20, 1
    %s22 = scalar_select %p19, %s20, %s21
    %p25 = pneg %p19
    %p26 = scmp.eq.s32.totalorder %s10, 1
    %p27 = por %p25, %p26
    %p28 = scmp.ne.s32.totalorder %s20, %s23
    %p29 = scmp.eq.s32.totalorder %s10, 0
    %p30 = por %p28, %p29
    %p31 = scmp.ne.s32.totalorder %s20, %s23
    %p32 = scmp.eq.s32.totalorder %s15, 1
    %p33 = por %p31, %p32
    %p34 = scmp.ne.s32.totalorder %s23, %s24
    %p35 = scmp.eq.s32.totalorder %s15, 0
    %p36 = por %p34, %p35
    %p37 = scmp.ne.s32.totalorder %s23, %s24
    %p38 = scmp.eq.s32.totalorder %s16, 1
    %p39 = por %p37, %p38
    %p41 = scmp.ne.s32.totalorder %s24, %s40
    %p42 = scmp.eq.s32.totalorder %s16, 0
    %p43 = por %p41, %p42
    %s45 = sadd.s32 %s44, 1
    %p48 = scmp.eq.s32.totalorder %s10, 1
    %p49 = scmp.ne.s32.totalorder %s44, %s46
    %p50 = scmp.eq.s32.totalorder %s10, 0
    %p51 = por %p49, %p50
    %p52 = scmp.ne.s32.totalorder %s44, %s46
    %p53 = scmp.eq.s32.totalorder %s15, 1
    %p54 = por %p52, %p53
    %p55 = scmp.ne.s32.totalorder %s46, %s47
    %p56 = scmp.eq.s32.totalorder %s15, 0
    %p57 = por %p55, %p56
    %p58 = scmp.ne.s32.totalorder %s46, %s47
    %p59 = scmp.eq.s32.totalorder %s16, 1
    %p60 = por %p58, %p59
    %p62 = scmp.ne.s32.totalorder %s47, %s61
    %p63 = scmp.eq.s32.totalorder %s16, 0
    %p64 = por %p62, %p63
    %s65 = ssub.s32 %s10, %s17
    %p66 = scmp.eq.s32.totalorder %s65, 0
    %s68 = sadd.s32 %s67, 1
    %s69 = scalar_select %p66, %s67, %s68
    %p72 = pneg %p66
    %p73 = scmp.eq.s32.totalorder %s10, 1
    %p74 = por %p72, %p73
    %p75 = scmp.ne.s32.totalorder %s67, %s70
    %p76 = scmp.eq.s32.totalorder %s10, 0
    %p77 = por %p75, %p76
    %p78 = scmp.ne.s32.totalorder %s67, %s70
    %p79 = scmp.eq.s32.totalorder %s15, 1
    %p80 = por %p78, %p79
    %p81 = scmp.ne.s32.totalorder %s70, %s71
    %p82 = scmp.eq.s32.totalorder %s15, 0
    %p83 = por %p81, %p82
    %p84 = scmp.ne.s32.totalorder %s70, %s71
    %p85 = scmp.eq.s32.totalorder %s16, 1
    %p86 = por %p84, %p85
    %p88 = scmp.ne.s32.totalorder %s71, %s87
    %p89 = scmp.eq.s32.totalorder %s16, 0
    %p90 = por %p88, %p89
    %s91 = ssub.s32 %s10, %s17
    %p92 = scmp.eq.s32.totalorder %s91, 0
    %s94 = sadd.s32 %s93, 1
    %s95 = scalar_select %p92, %s93, %s94
    %p98 = pneg %p92
    %p99 = scmp.eq.s32.totalorder %s10, 1
    %p100 = por %p98, %p99
    %p101 = scmp.ne.s32.totalorder %s93, %s96
    %p102 = scmp.eq.s32.totalorder %s10, 0
    %p103 = por %p101, %p102
    %p104 = scmp.ne.s32.totalorder %s93, %s96
    %p105 = scmp.eq.s32.totalorder %s15, 1
    %p106 = por %p104, %p105
    %p107 = scmp.ne.s32.totalorder %s96, %s97
    %p108 = scmp.eq.s32.totalorder %s15, 0
    %p109 = por %p107, %p108
    %p110 = scmp.ne.s32.totalorder %s96, %s97
    %p111 = scmp.eq.s32.totalorder %s16, 1
    %p112 = por %p110, %p111
    %p114 = scmp.ne.s32.totalorder %s97, %s113
    %p115 = scmp.eq.s32.totalorder %s16, 0
    %p116 = por %p114, %p115
    %p117 = scmp.le.s32.totalorder 1, %s10
    %p118 = scmp.lt.s32.totalorder %s10, 3
    %p119 = pnand %p117, %p118
    %p120 = pneg %p119
    // Predicated region
    $region9: #{stcae_decoder_forward.5} parent=5 // pred_check
      _
    $region10: #{stcae_decoder_forward.5} parent=5 // pred_check_branch
      %122 = sbr.rel (%p119) target = $region12
    $region11: #{stcae_decoder_forward.5} parent=5 // pred_region
      %s123 = ssub.s32 %s10, 1
      // Predicated region
      $region13: #{stcae_decoder_forward.5} parent=11 // pred_check
        %p124 = pneg %p57
      $region14: #{stcae_decoder_forward.5} parent=11 // pred_check_branch
        %126 = sbr.rel (%p124) target = $region16
      $region15: #{stcae_decoder_forward.5} parent=11 // pred_region
        _
      $region16: #{stcae_decoder_forward.5} parent=11 // pred_fallthru
        _
    $region12: #{stcae_decoder_forward.5} parent=5 // pred_fallthru
      _
    %p127 = scmp.lt.s32.totalorder %s10, 2
    // Predicated region
    $region17: #{stcae_decoder_forward.5} parent=5 // pred_check
      %p128 = pneg %p127
    $region18: #{stcae_decoder_forward.5} parent=5 // pred_check_branch
      %130 = sbr.rel (%p128) target = $region20
    $region19: #{stcae_decoder_forward.5} parent=5 // pred_region
      // Predicated region
      $region21: #{stcae_decoder_forward.5} parent=19 // pred_check
        %p131 = pneg %p30
      $region22: #{stcae_decoder_forward.5} parent=19 // pred_check_branch
        %133 = sbr.rel (%p131) target = $region24
      $region23: #{stcae_decoder_forward.5} parent=19 // pred_region
        %p134 = scmp.lt.s32.totalorder %s10, 1
        %s135 = scalar_select %p134, %s10, 1
        %s136 = smul.addr %s135, 5
        %s137 = smul.addr %s136, 8
        %s138 = scalar_lea.vmem %s0, %s137
      $region24: #{stcae_decoder_forward.5} parent=19 // pred_fallthru
        _
    $region20: #{stcae_decoder_forward.5} parent=5 // pred_fallthru
      _
    %p139 = scmp.le.s32.totalorder 1, %s10
    %p140 = scmp.lt.s32.totalorder %s10, 3
    %p141 = pnand %p139, %p140
    %p142 = pneg %p141
    // Predicated region
    $region25: #{stcae_decoder_forward.5} parent=5 // pred_check
      _
    $region26: #{stcae_decoder_forward.5} parent=5 // pred_check_branch
      %144 = sbr.rel (%p141) target = $region28
    $region27: #{stcae_decoder_forward.5} parent=5 // pred_region
      %s145 = ssub.s32 %s10, 1
      %p146 = scmp.lt.s32.totalorder %s15, 1
      %s147 = scalar_select %p146, %s15, 1
      %s148 = smul.addr %s147, 5
      %s149 = smul.addr %s148, 8
      %s150 = scalar_lea.vmem %s0, %s149
      %p151 = pneg %p36
      %p152 = pneg %p33
      %p153 = pneg %p57
      %p154 = pneg %p54
      %p155 = pneg %p83
      %p156 = pneg %p80
      %p157 = scmp.lt.s32.totalorder %s15, 1
      %s158 = scalar_select %p157, %s15, 1
      %s159 = smul.addr %s158, 2
      %s160 = smul.addr %s159, 4
      %s161 = scalar_lea.vmem %s2, %s160
      %p162 = pneg %p109
      %p163 = pneg %p106
      %p164 = scmp.lt.s32.totalorder %s15, 1
      %s165 = scalar_select %p164, %s15, 1
      %s166 = smul.addr %s165, 2
      %s167 = scalar_lea.vmem %s3, %s166
      %p168 = scmp.lt.s32.totalorder %s15, 1
      %s169 = scalar_select %p168, %s15, 1
      %s170 = smul.addr %s169, 5
      %s171 = smul.addr %s170, 8
      %s172 = scalar_lea.vmem %s0, %s171
      %p173 = scmp.lt.s32.totalorder %s15, 1
      %s174 = scalar_select %p173, %s15, 1
      %s175 = smul.addr %s174, 2
      %s176 = smul.addr %s175, 4
      %s177 = scalar_lea.vmem %s2, %s176
      %p178 = scmp.lt.s32.totalorder %s15, 1
      %s179 = scalar_select %p178, %s15, 1
      %s180 = smul.addr %s179, 2
      %s181 = scalar_lea.vmem %s3, %s180
      %v183 = vld [vmem:[%s172] sm:$0xff]
      %v184 = vld [vmem:[%s172 + $0x8] sm:$0xff]
      %v185 = vld [vmem:[%s172 + $0x10] sm:$0x3f]
      %v186 = vpack.c.bf16 %v184, %v183
      %v187 = vpack.c.bf16 %v185, %v185
      %v188 = vld [vmem:[%s1] sm:$0xf]
      %v189 = vld [vmem:[%s1 + $0x4] sm:$0xf]
      %v190 = vld [vmem:[%s1 + $0x8] sm:$0xf]
      %v191 = vld [vmem:[%s1 + $0xc] sm:$0xf]
      %v192 = vld [vmem:[%s1 + $0x10] sm:$0xf]
      %v193 = vld [vmem:[%s1 + $0x14] sm:$0xf]
      %v194 = vld [vmem:[%s1 + $0x18] sm:$0xf]
      %v195 = vld [vmem:[%s1 + $0x1c] sm:$0xf]
      %v196 = vld [vmem:[%s1 + $0x20] sm:$0xf]
      %v197 = vld [vmem:[%s1 + $0x24] sm:$0xf]
      %v198 = vld [vmem:[%s1 + $0x28] sm:$0xf]
      %v199 = vld [vmem:[%s1 + $0x2c] sm:$0xf]
      %v200 = vld [vmem:[%s1 + $0x30] sm:$0xf]
      %v201 = vld [vmem:[%s1 + $0x34] sm:$0xf]
      %v202 = vld [vmem:[%s1 + $0x38] sm:$0xf]
      %v203 = vld [vmem:[%s1 + $0x3c] sm:$0xf]
      %v204 = vld [vmem:[%s172 + $0x1] sm:$0xff]
      %v205 = vld [vmem:[%s172 + $0x9] sm:$0xff]
      %v206 = vld [vmem:[%s172 + $0x11] sm:$0x3f]
      %v207 = vpack.c.bf16 %v205, %v204
      %v208 = vpack.c.bf16 %v206, %v206
      %v209 = vld [vmem:[%s1 + $0x40] sm:$0xf]
      %v210 = vld [vmem:[%s1 + $0x44] sm:$0xf]
      %v211 = vld [vmem:[%s1 + $0x48] sm:$0xf]
      %v212 = vld [vmem:[%s1 + $0x4c] sm:$0xf]
      %v213 = vld [vmem:[%s1 + $0x50] sm:$0xf]
      %v214 = vld [vmem:[%s1 + $0x54] sm:$0xf]
      %v215 = vld [vmem:[%s1 + $0x58] sm:$0xf]
      %v216 = vld [vmem:[%s1 + $0x5c] sm:$0xf]
      %v217 = vld [vmem:[%s1 + $0x60] sm:$0xf]
      %v218 = vld [vmem:[%s1 + $0x64] sm:$0xf]
      %v219 = vld [vmem:[%s1 + $0x68] sm:$0xf]
      %v220 = vld [vmem:[%s1 + $0x6c] sm:$0xf]
      %v221 = vld [vmem:[%s1 + $0x70] sm:$0xf]
      %v222 = vld [vmem:[%s1 + $0x74] sm:$0xf]
      %v223 = vld [vmem:[%s1 + $0x78] sm:$0xf]
      %v224 = vld [vmem:[%s1 + $0x7c] sm:$0xf]
      %v241 = vunpack.c.l.b16 %v209
      %v242 = vunpack.c.l.b16 %v210
      %v243 = vunpack.c.l.b16 %v211
      %v244 = vunpack.c.l.b16 %v212
      %v245 = vunpack.c.l.b16 %v213
      %v246 = vunpack.c.l.b16 %v214
      %v247 = vunpack.c.l.b16 %v215
      %v248 = vunpack.c.l.b16 %v216
      %v249 = vunpack.c.l.b16 %v217
      %v250 = vunpack.c.l.b16 %v218
      %v251 = vunpack.c.l.b16 %v219
      %v252 = vunpack.c.l.b16 %v220
      %v253 = vunpack.c.l.b16 %v221
      %v254 = vunpack.c.l.b16 %v222
      %v255 = vunpack.c.l.b16 %v223
      %v256 = vunpack.c.l.b16 %v224
      %v257 = vpack.c.b16 %v242, %v241
      %v258 = vpack.c.b16 %v244, %v243
      %v259 = vpack.c.b16 %v246, %v245
      %v260 = vpack.c.b16 %v248, %v247
      %v261 = vpack.c.b16 %v250, %v249
      %v262 = vpack.c.b16 %v252, %v251
      %v263 = vpack.c.b16 %v254, %v253
      %v264 = vpack.c.b16 %v256, %v255
      %273 = vmatprep.subr.bf16.mxu0 0
      %274 = vmatpush1.bf16.msra.mxu0 %v257
      %275 = vmatprep.subr.bf16.mxu0 0
      %276 = vmatpush1.bf16.msra.mxu0 %v258
      %277 = vmatprep.subr.bf16.mxu0 0
      %278 = vmatpush1.bf16.msra.mxu0 %v259
      %279 = vmatprep.subr.bf16.mxu0 0
      %280 = vmatpush1.bf16.msra.mxu0 %v260
      %281 = vmatprep.subr.bf16.mxu0 0
      %282 = vmatpush1.bf16.msra.mxu0 %v261
      %283 = vmatprep.subr.bf16.mxu0 0
      %284 = vmatpush1.bf16.msra.mxu0 %v262
      %285 = vmatprep.subr.bf16.mxu0 0
      %286 = vmatpush1.bf16.msra.mxu0 %v263
      %287 = vmatprep.subr.bf16.mxu0 0
      %288 = vmatpush1.bf16.msra.mxu0 %v264
      %289 = vmatprep.subr.bf16.mxu0 0
      %290 = vmatpush1.bf16.msra.mxu0 0
      %291 = vmatprep.subr.bf16.mxu0 0
      %292 = vmatpush1.bf16.msra.mxu0 0
      %293 = vmatprep.subr.bf16.mxu0 0
      %294 = vmatpush1.bf16.msra.mxu0 0
      %295 = vmatprep.subr.bf16.mxu0 0
      %296 = vmatpush1.bf16.msra.mxu0 0
      %297 = vmatprep.subr.bf16.mxu0 0
      %298 = vmatpush1.bf16.msra.mxu0 0
      %299 = vmatprep.subr.bf16.mxu0 0
      %300 = vmatpush1.bf16.msra.mxu0 0
      %301 = vmatprep.subr.bf16.mxu0 0
      %302 = vmatpush1.bf16.msra.mxu0 0
      %303 = vmatprep.subr.bf16.mxu0 0
      %304 = vmatpush1.bf16.msra.mxu0 0
      %305 = vmatprep.mubr.bf16.mxu0 0
      %306 = vmatmul.mubr.bf16.gmra.mrb[0].mxu0 %v207
      %v307 = vpop.f32.mrb[0].mxu0
      %v308 = vadd.f32 0.0, %v307
      %v309 = vpop.f32.mrb[0].mxu0
      %v310 = vpop.f32.mrb[0].mxu0
      %v311 = vadd.f32 0.0, %v310
      %v312 = vpop.f32.mrb[0].mxu0
      %313 = vmatprep.mubr.bf16.mxu0 0
      %314 = vmatmul.mubr.bf16.gmra.mrb[0].mxu0 %v208
      %v315 = vpop.f32.mrb[0].mxu0
      %v316 = vadd.f32 0.0, %v315
      %v317 = vpop.f32.mrb[0].mxu0
      %v318 = vpop.f32.mrb[0].mxu0
      %v319 = vpop.f32.mrb[0].mxu0
      %320 = vdwg.mxu0
      %v337 = vunpack.c.l.b16 %v188
      %v338 = vunpack.c.l.b16 %v189
      %v339 = vunpack.c.l.b16 %v190
      %v340 = vunpack.c.l.b16 %v191
      %v341 = vunpack.c.l.b16 %v192
      %v342 = vunpack.c.l.b16 %v193
      %v343 = vunpack.c.l.b16 %v194
      %v344 = vunpack.c.l.b16 %v195
      %v345 = vunpack.c.l.b16 %v196
      %v346 = vunpack.c.l.b16 %v197
      %v347 = vunpack.c.l.b16 %v198
      %v348 = vunpack.c.l.b16 %v199
      %v349 = vunpack.c.l.b16 %v200
      %v350 = vunpack.c.l.b16 %v201
      %v351 = vunpack.c.l.b16 %v202
      %v352 = vunpack.c.l.b16 %v203
      %v353 = vpack.c.b16 %v338, %v337
      %v354 = vpack.c.b16 %v340, %v339
      %v355 = vpack.c.b16 %v342, %v341
      %v356 = vpack.c.b16 %v344, %v343
      %v357 = vpack.c.b16 %v346, %v345
      %v358 = vpack.c.b16 %v348, %v347
      %v359 = vpack.c.b16 %v350, %v349
      %v360 = vpack.c.b16 %v352, %v351
      %369 = vmatprep.subr.bf16.mxu0 0
      %370 = vmatpush1.bf16.msra.mxu0 %v353
      %371 = vmatprep.subr.bf16.mxu0 0
      %372 = vmatpush1.bf16.msra.mxu0 %v354
      %373 = vmatprep.subr.bf16.mxu0 0
      %374 = vmatpush1.bf16.msra.mxu0 %v355
      %375 = vmatprep.subr.bf16.mxu0 0
      %376 = vmatpush1.bf16.msra.mxu0 %v356
      %377 = vmatprep.subr.bf16.mxu0 0
      %378 = vmatpush1.bf16.msra.mxu0 %v357
      %379 = vmatprep.subr.bf16.mxu0 0
      %380 = vmatpush1.bf16.msra.mxu0 %v358
      %381 = vmatprep.subr.bf16.mxu0 0
      %382 = vmatpush1.bf16.msra.mxu0 %v359
      %383 = vmatprep.subr.bf16.mxu0 0
      %384 = vmatpush1.bf16.msra.mxu0 %v360
      %385 = vmatprep.subr.bf16.mxu0 0
      %386 = vmatpush1.bf16.msra.mxu0 0
      %387 = vmatprep.subr.bf16.mxu0 0
      %388 = vmatpush1.bf16.msra.mxu0 0
      %389 = vmatprep.subr.bf16.mxu0 0
      %390 = vmatpush1.bf16.msra.mxu0 0
      %391 = vmatprep.subr.bf16.mxu0 0
      %392 = vmatpush1.bf16.msra.mxu0 0
      %393 = vmatprep.subr.bf16.mxu0 0
      %394 = vmatpush1.bf16.msra.mxu0 0
      %395 = vmatprep.subr.bf16.mxu0 0
      %396 = vmatpush1.bf16.msra.mxu0 0
      %397 = vmatprep.subr.bf16.mxu0 0
      %398 = vmatpush1.bf16.msra.mxu0 0
      %399 = vmatprep.subr.bf16.mxu0 0
      %400 = vmatpush1.bf16.msra.mxu0 0
      %401 = vmatprep.mubr.bf16.mxu0 0
      %402 = vmatmul.mubr.bf16.gmra.mrb[0].mxu0 %v186
      %v403 = vpop.f32.mrb[0].mxu0
      %v404 = vadd.f32 %v308, %v403
      %v405 = vpop.f32.mrb[0].mxu0
      %v406 = vpop.f32.mrb[0].mxu0
      %v407 = vadd.f32 %v311, %v406
      %v408 = vpop.f32.mrb[0].mxu0
      %409 = vmatprep.mubr.bf16.mxu0 0
      %410 = vmatmul.mubr.bf16.gmra.mrb[0].mxu0 %v187
      %v411 = vpop.f32.mrb[0].mxu0
      %v412 = vadd.f32 %v316, %v411
      %v413 = vpop.f32.mrb[0].mxu0
      %v414 = vpop.f32.mrb[0].mxu0
      %v415 = vpop.f32.mrb[0].mxu0
      %416 = vdwg.mxu0
      %v417 = vld [vmem:[%s172 + $0x2] sm:$0xff]
      %v418 = vld [vmem:[%s172 + $0xa] sm:$0xff]
      %v419 = vld [vmem:[%s172 + $0x12] sm:$0x3f]
      %v420 = vpack.c.bf16 %v418, %v417
      %v421 = vpack.c.bf16 %v419, %v419
      %v422 = vld [vmem:[%s1 + $0x80] sm:$0xf]
      %v423 = vld [vmem:[%s1 + $0x84] sm:$0xf]
      %v424 = vld [vmem:[%s1 + $0x88] sm:$0xf]
      %v425 = vld [vmem:[%s1 + $0x8c] sm:$0xf]
      %v426 = vld [vmem:[%s1 + $0x90] sm:$0xf]
      %v427 = vld [vmem:[%s1 + $0x94] sm:$0xf]
      %v428 = vld [vmem:[%s1 + $0x98] sm:$0xf]
      %v429 = vld [vmem:[%s1 + $0x9c] sm:$0xf]
      %v430 = vld [vmem:[%s1 + $0xa0] sm:$0xf]
      %v431 = vld [vmem:[%s1 + $0xa4] sm:$0xf]
      %v432 = vld [vmem:[%s1 + $0xa8] sm:$0xf]
      %v433 = vld [vmem:[%s1 + $0xac] sm:$0xf]
      %v434 = vld [vmem:[%s1 + $0xb0] sm:$0xf]
      %v435 = vld [vmem:[%s1 + $0xb4] sm:$0xf]
      %v436 = vld [vmem:[%s1 + $0xb8] sm:$0xf]
      %v437 = vld [vmem:[%s1 + $0xbc] sm:$0xf]
      %v454 = vunpack.c.l.b16 %v422
      %v455 = vunpack.c.l.b16 %v423
      %v456 = vunpack.c.l.b16 %v424
      %v457 = vunpack.c.l.b16 %v425
      %v458 = vunpack.c.l.b16 %v426
      %v459 = vunpack.c.l.b16 %v427
      %v460 = vunpack.c.l.b16 %v428
      %v461 = vunpack.c.l.b16 %v429
      %v462 = vunpack.c.l.b16 %v430
      %v463 = vunpack.c.l.b16 %v431
      %v464 = vunpack.c.l.b16 %v432
      %v465 = vunpack.c.l.b16 %v433
      %v466 = vunpack.c.l.b16 %v434
      %v467 = vunpack.c.l.b16 %v435
      %v468 = vunpack.c.l.b16 %v436
      %v469 = vunpack.c.l.b16 %v437
      %v470 = vpack.c.b16 %v455, %v454
      %v471 = vpack.c.b16 %v457, %v456
      %v472 = vpack.c.b16 %v459, %v458
      %v473 = vpack.c.b16 %v461, %v460
      %v474 = vpack.c.b16 %v463, %v462
      %v475 = vpack.c.b16 %v465, %v464
      %v476 = vpack.c.b16 %v467, %v466
      %v477 = vpack.c.b16 %v469, %v468
      %486 = vmatprep.subr.bf16.mxu0 0
      %487 = vmatpush1.bf16.msra.mxu0 %v470
      %488 = vmatprep.subr.bf16.mxu0 0
      %489 = vmatpush1.bf16.msra.mxu0 %v471
      %490 = vmatprep.subr.bf16.mxu0 0
      %491 = vmatpush1.bf16.msra.mxu0 %v472
      %492 = vmatprep.subr.bf16.mxu0 0
      %493 = vmatpush1.bf16.msra.mxu0 %v473
      %494 = vmatprep.subr.bf16.mxu0 0
      %495 = vmatpush1.bf16.msra.mxu0 %v474
      %496 = vmatprep.subr.bf16.mxu0 0
      %497 = vmatpush1.bf16.msra.mxu0 %v475
      %498 = vmatprep.subr.bf16.mxu0 0
      %499 = vmatpush1.bf16.msra.mxu0 %v476
      %500 = vmatprep.subr.bf16.mxu0 0
      %501 = vmatpush1.bf16.msra.mxu0 %v477
      %502 = vmatprep.subr.bf16.mxu0 0
      %503 = vmatpush1.bf16.msra.mxu0 0
      %504 = vmatprep.subr.bf16.mxu0 0
      %505 = vmatpush1.bf16.msra.mxu0 0
      %506 = vmatprep.subr.bf16.mxu0 0
      %507 = vmatpush1.bf16.msra.mxu0 0
      %508 = vmatprep.subr.bf16.mxu0 0
      %509 = vmatpush1.bf16.msra.mxu0 0
      %510 = vmatprep.subr.bf16.mxu0 0
      %511 = vmatpush1.bf16.msra.mxu0 0
      %512 = vmatprep.subr.bf16.mxu0 0
      %513 = vmatpush1.bf16.msra.mxu0 0
      %514 = vmatprep.subr.bf16.mxu0 0
      %515 = vmatpush1.bf16.msra.mxu0 0
      %516 = vmatprep.subr.bf16.mxu0 0
      %517 = vmatpush1.bf16.msra.mxu0 0
      %518 = vmatprep.mubr.bf16.mxu0 0
      %519 = vmatmul.mubr.bf16.gmra.mrb[0].mxu0 %v420
      %v520 = vpop.f32.mrb[0].mxu0
      %v521 = vadd.f32 0.0, %v520
      %v522 = vpop.f32.mrb[0].mxu0
      %v523 = vpop.f32.mrb[0].mxu0
      %v524 = vadd.f32 0.0, %v523
      %v525 = vpop.f32.mrb[0].mxu0
      %526 = vmatprep.mubr.bf16.mxu0 0
      %527 = vmatmul.mubr.bf16.gmra.mrb[0].mxu0 %v421
      %v528 = vpop.f32.mrb[0].mxu0
      %v529 = vadd.f32 0.0, %v528
      %v530 = vpop.f32.mrb[0].mxu0
      %v531 = vpop.f32.mrb[0].mxu0
      %v532 = vpop.f32.mrb[0].mxu0
      %533 = vdwg.mxu0
      %v534 = vadd.f32 %v404, %v521
      %v535 = vadd.f32 %v407, %v524
      %v536 = vadd.f32 %v412, %v529
      %v537 = vld [vmem:[%s172 + $0x6] sm:$0xff]
      %v538 = vld [vmem:[%s172 + $0xe] sm:$0xff]
      %v539 = vld [vmem:[%s172 + $0x16] sm:$0x3f]
      %v540 = vpack.c.bf16 %v538, %v537
      %v541 = vpack.c.bf16 %v539, %v539
      %v542 = vld [vmem:[%s1 + $0xc0] sm:$0xf]
      %v543 = vld [vmem:[%s1 + $0xc4] sm:$0xf]
      %v544 = vld [vmem:[%s1 + $0xc8] sm:$0xf]
      %v545 = vld [vmem:[%s1 + $0xcc] sm:$0xf]
      %v546 = vld [vmem:[%s1 + $0xd0] sm:$0xf]
      %v547 = vld [vmem:[%s1 + $0xd4] sm:$0xf]
      %v548 = vld [vmem:[%s1 + $0xd8] sm:$0xf]
      %v549 = vld [vmem:[%s1 + $0xdc] sm:$0xf]
      %v550 = vld [vmem:[%s1 + $0xe0] sm:$0xf]
      %v551 = vld [vmem:[%s1 + $0xe4] sm:$0xf]
      %v552 = vld [vmem:[%s1 + $0xe8] sm:$0xf]
      %v553 = vld [vmem:[%s1 + $0xec] sm:$0xf]
      %v554 = vld [vmem:[%s1 + $0xf0] sm:$0xf]
      %v555 = vld [vmem:[%s1 + $0xf4] sm:$0xf]
      %v556 = vld [vmem:[%s1 + $0xf8] sm:$0xf]
      %v557 = vld [vmem:[%s1 + $0xfc] sm:$0xf]
      %v574 = vunpack.c.l.b16 %v542
      %v575 = vunpack.c.l.b16 %v543
      %v576 = vunpack.c.l.b16 %v544
      %v577 = vunpack.c.l.b16 %v545
      %v578 = vunpack.c.l.b16 %v546
      %v579 = vunpack.c.l.b16 %v547
      %v580 = vunpack.c.l.b16 %v548
      %v581 = vunpack.c.l.b16 %v549
      %v582 = vunpack.c.l.b16 %v550
      %v583 = vunpack.c.l.b16 %v551
      %v584 = vunpack.c.l.b16 %v552
      %v585 = vunpack.c.l.b16 %v553
      %v586 = vunpack.c.l.b16 %v554
      %v587 = vunpack.c.l.b16 %v555
      %v588 = vunpack.c.l.b16 %v556
      %v589 = vunpack.c.l.b16 %v557
      %v590 = vpack.c.b16 %v575, %v574
      %v591 = vpack.c.b16 %v577, %v576
      %v592 = vpack.c.b16 %v579, %v578
      %v593 = vpack.c.b16 %v581, %v580
      %v594 = vpack.c.b16 %v583, %v582
      %v595 = vpack.c.b16 %v585, %v584
      %v596 = vpack.c.b16 %v587, %v586
      %v597 = vpack.c.b16 %v589, %v588
      %606 = vmatprep.subr.bf16.mxu0 0
      %607 = vmatpush1.bf16.msra.mxu0 %v590
      %608 = vmatprep.subr.bf16.mxu0 0
      %609 = vmatpush1.bf16.msra.mxu0 %v591
      %610 = vmatprep.subr.bf16.mxu0 0
      %611 = vmatpush1.bf16.msra.mxu0 %v592
      %612 = vmatprep.subr.bf16.mxu0 0
      %613 = vmatpush1.bf16.msra.mxu0 %v593
      %614 = vmatprep.subr.bf16.mxu0 0
      %615 = vmatpush1.bf16.msra.mxu0 %v594
      %616 = vmatprep.subr.bf16.mxu0 0
      %617 = vmatpush1.bf16.msra.mxu0 %v595
      %618 = vmatprep.subr.bf16.mxu0 0
      %619 = vmatpush1.bf16.msra.mxu0 %v596
      %620 = vmatprep.subr.bf16.mxu0 0
      %621 = vmatpush1.bf16.msra.mxu0 %v597
      %622 = vmatprep.subr.bf16.mxu0 0
      %623 = vmatpush1.bf16.msra.mxu0 0
      %624 = vmatprep.subr.bf16.mxu0 0
      %625 = vmatpush1.bf16.msra.mxu0 0
      %626 = vmatprep.subr.bf16.mxu0 0
      %627 = vmatpush1.bf16.msra.mxu0 0
      %628 = vmatprep.subr.bf16.mxu0 0
      %629 = vmatpush1.bf16.msra.mxu0 0
      %630 = vmatprep.subr.bf16.mxu0 0
      %631 = vmatpush1.bf16.msra.mxu0 0
      %632 = vmatprep.subr.bf16.mxu0 0
      %633 = vmatpush1.bf16.msra.mxu0 0
      %634 = vmatprep.subr.bf16.mxu0 0
      %635 = vmatpush1.bf16.msra.mxu0 0
      %636 = vmatprep.subr.bf16.mxu0 0
      %637 = vmatpush1.bf16.msra.mxu0 0
      %638 = vmatprep.mubr.bf16.mxu0 0
      %639 = vmatmul.mubr.bf16.gmra.mrb[0].mxu0 %v540
      %v640 = vpop.f32.mrb[0].mxu0
      %v641 = vadd.f32 0.0, %v640
      %v642 = vpop.f32.mrb[0].mxu0
      %v643 = vpop.f32.mrb[0].mxu0
      %v644 = vadd.f32 0.0, %v643
      %v645 = vpop.f32.mrb[0].mxu0
      %646 = vmatprep.mubr.bf16.mxu0 0
      %647 = vmatmul.mubr.bf16.gmra.mrb[0].mxu0 %v541
      %v648 = vpop.f32.mrb[0].mxu0
      %v649 = vadd.f32 0.0, %v648
      %v650 = vpop.f32.mrb[0].mxu0
      %v651 = vpop.f32.mrb[0].mxu0
      %v652 = vpop.f32.mrb[0].mxu0
      %653 = vdwg.mxu0
      %v654 = vadd.f32 %v534, %v641
      %v655 = vadd.f32 %v535, %v644
      %v656 = vadd.f32 %v536, %v649
      %v657 = vld [vmem:[%s172 + $0x7] sm:$0xff]
      %v658 = vld [vmem:[%s172 + $0xf] sm:$0xff]
      %v659 = vld [vmem:[%s172 + $0x17] sm:$0x3f]
      %v660 = vpack.c.bf16 %v658, %v657
      %v661 = vpack.c.bf16 %v659, %v659
      %v662 = vld [vmem:[%s1 + $0x100] sm:$0xf]
      %v663 = vld [vmem:[%s1 + $0x104] sm:$0xf]
      %v664 = vld [vmem:[%s1 + $0x108] sm:$0xf]
      %v665 = vld [vmem:[%s1 + $0x10c] sm:$0xf]
      %v666 = vld [vmem:[%s1 + $0x110] sm:$0xf]
      %v667 = vld [vmem:[%s1 + $0x114] sm:$0xf]
      %v668 = vld [vmem:[%s1 + $0x118] sm:$0xf]
      %v669 = vld [vmem:[%s1 + $0x11c] sm:$0xf]
      %v670 = vld [vmem:[%s1 + $0x120] sm:$0xf]
      %v671 = vld [vmem:[%s1 + $0x124] sm:$0xf]
      %v672 = vld [vmem:[%s1 + $0x128] sm:$0xf]
      %v673 = vld [vmem:[%s1 + $0x12c] sm:$0xf]
      %v674 = vld [vmem:[%s1 + $0x130] sm:$0xf]
      %v675 = vld [vmem:[%s1 + $0x134] sm:$0xf]
      %v676 = vld [vmem:[%s1 + $0x138] sm:$0xf]
      %v677 = vld [vmem:[%s1 + $0x13c] sm:$0xf]
      %v694 = vunpack.c.l.b16 %v662
      %v695 = vunpack.c.l.b16 %v663
      %v696 = vunpack.c.l.b16 %v664
      %v697 = vunpack.c.l.b16 %v665
      %v698 = vunpack.c.l.b16 %v666
      %v699 = vunpack.c.l.b16 %v667
      %v700 = vunpack.c.l.b16 %v668
      %v701 = vunpack.c.l.b16 %v669
      %v702 = vunpack.c.l.b16 %v670
      %v703 = vunpack.c.l.b16 %v671
      %v704 = vunpack.c.l.b16 %v672
      %v705 = vunpack.c.l.b16 %v673
      %v706 = vunpack.c.l.b16 %v674
      %v707 = vunpack.c.l.b16 %v675
      %v708 = vunpack.c.l.b16 %v676
      %v709 = vunpack.c.l.b16 %v677
      %v710 = vpack.c.b16 %v695, %v694
      %v711 = vpack.c.b16 %v697, %v696
      %v712 = vpack.c.b16 %v699, %v698
      %v713 = vpack.c.b16 %v701, %v700
      %v714 = vpack.c.b16 %v703, %v702
      %v715 = vpack.c.b16 %v705, %v704
      %v716 = vpack.c.b16 %v707, %v706
      %v717 = vpack.c.b16 %v709, %v708
      %726 = vmatprep.subr.bf16.mxu0 0
      %727 = vmatpush1.bf16.msra.mxu0 %v710
      %728 = vmatprep.subr.bf16.mxu0 0
      %729 = vmatpush1.bf16.msra.mxu0 %v711
      %730 = vmatprep.subr.bf16.mxu0 0
      %731 = vmatpush1.bf16.msra.mxu0 %v712
      %732 = vmatprep.subr.bf16.mxu0 0
      %733 = vmatpush1.bf16.msra.mxu0 %v713
      %734 = vmatprep.subr.bf16.mxu0 0
      %735 = vmatpush1.bf16.msra.mxu0 %v714
      %736 = vmatprep.subr.bf16.mxu0 0
      %737 = vmatpush1.bf16.msra.mxu0 %v715
      %738 = vmatprep.subr.bf16.mxu0 0
      %739 = vmatpush1.bf16.msra.mxu0 %v716
      %740 = vmatprep.subr.bf16.mxu0 0
      %741 = vmatpush1.bf16.msra.mxu0 %v717
      %742 = vmatprep.subr.bf16.mxu0 0
      %743 = vmatpush1.bf16.msra.mxu0 0
      %744 = vmatprep.subr.bf16.mxu0 0
      %745 = vmatpush1.bf16.msra.mxu0 0
      %746 = vmatprep.subr.bf16.mxu0 0
      %747 = vmatpush1.bf16.msra.mxu0 0
      %748 = vmatprep.subr.bf16.mxu0 0
      %749 = vmatpush1.bf16.msra.mxu0 0
      %750 = vmatprep.subr.bf16.mxu0 0
      %751 = vmatpush1.bf16.msra.mxu0 0
      %752 = vmatprep.subr.bf16.mxu0 0
      %753 = vmatpush1.bf16.msra.mxu0 0
      %754 = vmatprep.subr.bf16.mxu0 0
      %755 = vmatpush1.bf16.msra.mxu0 0
      %756 = vmatprep.subr.bf16.mxu0 0
      %757 = vmatpush1.bf16.msra.mxu0 0
      %758 = vmatprep.mubr.bf16.mxu0 0
      %759 = vmatmul.mubr.bf16.gmra.mrb[0].mxu0 %v660
      %v760 = vpop.f32.mrb[0].mxu0
      %v761 = vadd.f32 0.0, %v760
      %v762 = vpop.f32.mrb[0].mxu0
      %v763 = vpop.f32.mrb[0].mxu0
      %v764 = vadd.f32 0.0, %v763
      %v765 = vpop.f32.mrb[0].mxu0
      %766 = vmatprep.mubr.bf16.mxu0 0
      %767 = vmatmul.mubr.bf16.gmra.mrb[0].mxu0 %v661
      %v768 = vpop.f32.mrb[0].mxu0
      %v769 = vadd.f32 0.0, %v768
      %v770 = vpop.f32.mrb[0].mxu0
      %v771 = vpop.f32.mrb[0].mxu0
      %v772 = vpop.f32.mrb[0].mxu0
      %773 = vdwg.mxu0
      %v774 = vadd.f32 %v654, %v761
      %v775 = vadd.f32 %v655, %v764
      %v776 = vadd.f32 %v656, %v769
      %v777 = vld [vmem:[%s172 + $0x8] sm:$0xff]
      %v778 = vld [vmem:[%s172 + $0x10] sm:$0xff]
      %v779 = vld [vmem:[%s172 + $0x18] sm:$0x3f]
      %v780 = vpack.c.bf16 %v778, %v777
      %v781 = vpack.c.bf16 %v779, %v779
      %v782 = vld [vmem:[%s1 + $0x140] sm:$0xf]
      %v783 = vld [vmem:[%s1 + $0x144] sm:$0xf]
      %v784 = vld [vmem:[%s1 + $0x148] sm:$0xf]
      %v785 = vld [vmem:[%s1 + $0x14c] sm:$0xf]
      %v786 = vld [vmem:[%s1 + $0x150] sm:$0xf]
      %v787 = vld [vmem:[%s1 + $0x154] sm:$0xf]
      %v788 = vld [vmem:[%s1 + $0x158] sm:$0xf]
      %v789 = vld [vmem:[%s1 + $0x15c] sm:$0xf]
      %v790 = vld [vmem:[%s1 + $0x160] sm:$0xf]
      %v791 = vld [vmem:[%s1 + $0x164] sm:$0xf]
      %v792 = vld [vmem:[%s1 + $0x168] sm:$0xf]
      %v793 = vld [vmem:[%s1 + $0x16c] sm:$0xf]
      %v794 = vld [vmem:[%s1 + $0x170] sm:$0xf]
      %v795 = vld [vmem:[%s1 + $0x174] sm:$0xf]
      %v796 = vld [vmem:[%s1 + $0x178] sm:$0xf]
      %v797 = vld [vmem:[%s1 + $0x17c] sm:$0xf]
      %v814 = vunpack.c.l.b16 %v782
      %v815 = vunpack.c.l.b16 %v783
      %v816 = vunpack.c.l.b16 %v784
      %v817 = vunpack.c.l.b16 %v785
      %v818 = vunpack.c.l.b16 %v786
      %v819 = vunpack.c.l.b16 %v787
      %v820 = vunpack.c.l.b16 %v788
      %v821 = vunpack.c.l.b16 %v789
      %v822 = vunpack.c.l.b16 %v790
      %v823 = vunpack.c.l.b16 %v791
      %v824 = vunpack.c.l.b16 %v792
      %v825 = vunpack.c.l.b16 %v793
      %v826 = vunpack.c.l.b16 %v794
      %v827 = vunpack.c.l.b16 %v795
      %v828 = vunpack.c.l.b16 %v796
      %v829 = vunpack.c.l.b16 %v797
      %v830 = vpack.c.b16 %v815, %v814
      %v831 = vpack.c.b16 %v817, %v816
      %v832 = vpack.c.b16 %v819, %v818
      %v833 = vpack.c.b16 %v821, %v820
      %v834 = vpack.c.b16 %v823, %v822
      %v835 = vpack.c.b16 %v825, %v824
      %v836 = vpack.c.b16 %v827, %v826
      %v837 = vpack.c.b16 %v829, %v828
      %846 = vmatprep.subr.bf16.mxu0 0
      %847 = vmatpush1.bf16.msra.mxu0 %v830
      %848 = vmatprep.subr.bf16.mxu0 0
      %849 = vmatpush1.bf16.msra.mxu0 %v831
      %850 = vmatprep.subr.bf16.mxu0 0
      %851 = vmatpush1.bf16.msra.mxu0 %v832
      %852 = vmatprep.subr.bf16.mxu0 0
      %853 = vmatpush1.bf16.msra.mxu0 %v833
      %854 = vmatprep.subr.bf16.mxu0 0
      %855 = vmatpush1.bf16.msra.mxu0 %v834
      %856 = vmatprep.subr.bf16.mxu0 0
      %857 = vmatpush1.bf16.msra.mxu0 %v835
      %858 = vmatprep.subr.bf16.mxu0 0
      %859 = vmatpush1.bf16.msra.mxu0 %v836
      %860 = vmatprep.subr.bf16.mxu0 0
      %861 = vmatpush1.bf16.msra.mxu0 %v837
      %862 = vmatprep.subr.bf16.mxu0 0
      %863 = vmatpush1.bf16.msra.mxu0 0
      %864 = vmatprep.subr.bf16.mxu0 0
      %865 = vmatpush1.bf16.msra.mxu0 0
      %866 = vmatprep.subr.bf16.mxu0 0
      %867 = vmatpush1.bf16.msra.mxu0 0
      %868 = vmatprep.subr.bf16.mxu0 0
      %869 = vmatpush1.bf16.msra.mxu0 0
      %870 = vmatprep.subr.bf16.mxu0 0
      %871 = vmatpush1.bf16.msra.mxu0 0
      %872 = vmatprep.subr.bf16.mxu0 0
      %873 = vmatpush1.bf16.msra.mxu0 0
      %874 = vmatprep.subr.bf16.mxu0 0
      %875 = vmatpush1.bf16.msra.mxu0 0
      %876 = vmatprep.subr.bf16.mxu0 0
      %877 = vmatpush1.bf16.msra.mxu0 0
      %878 = vmatprep.mubr.bf16.mxu0 0
      %879 = vmatmul.mubr.bf16.gmra.mrb[0].mxu0 %v780
      %v880 = vpop.f32.mrb[0].mxu0
      %v881 = vadd.f32 0.0, %v880
      %v882 = vpop.f32.mrb[0].mxu0
      %v883 = vpop.f32.mrb[0].mxu0
      %v884 = vadd.f32 0.0, %v883
      %v885 = vpop.f32.mrb[0].mxu0
      %886 = vmatprep.mubr.bf16.mxu0 0
      %887 = vmatmul.mubr.bf16.gmra.mrb[0].mxu0 %v781
      %v888 = vpop.f32.mrb[0].mxu0
      %v889 = vadd.f32 0.0, %v888
      %v890 = vpop.f32.mrb[0].mxu0
      %v891 = vpop.f32.mrb[0].mxu0
      %v892 = vpop.f32.mrb[0].mxu0
      %893 = vdwg.mxu0
      %v894 = vadd.f32 %v774, %v881
      %v895 = vadd.f32 %v775, %v884
      %v896 = vadd.f32 %v776, %v889
      %v897 = vld [vmem:[%s172 + $0xc] sm:$0xff]
      %v898 = vld [vmem:[%s172 + $0x14] sm:$0xff]
      %v899 = vld [vmem:[%s172 + $0x1c] sm:$0x3f]
      %v900 = vpack.c.bf16 %v898, %v897
      %v901 = vpack.c.bf16 %v899, %v899
      %v902 = vld [vmem:[%s1 + $0x180] sm:$0xf]
      %v903 = vld [vmem:[%s1 + $0x184] sm:$0xf]
      %v904 = vld [vmem:[%s1 + $0x188] sm:$0xf]
      %v905 = vld [vmem:[%s1 + $0x18c] sm:$0xf]
      %v906 = vld [vmem:[%s1 + $0x190] sm:$0xf]
      %v907 = vld [vmem:[%s1 + $0x194] sm:$0xf]
      %v908 = vld [vmem:[%s1 + $0x198] sm:$0xf]
      %v909 = vld [vmem:[%s1 + $0x19c] sm:$0xf]
      %v910 = vld [vmem:[%s1 + $0x1a0] sm:$0xf]
      %v911 = vld [vmem:[%s1 + $0x1a4] sm:$0xf]
      %v912 = vld [vmem:[%s1 + $0x1a8] sm:$0xf]
      %v913 = vld [vmem:[%s1 + $0x1ac] sm:$0xf]
      %v914 = vld [vmem:[%s1 + $0x1b0] sm:$0xf]
      %v915 = vld [vmem:[%s1 + $0x1b4] sm:$0xf]
      %v916 = vld [vmem:[%s1 + $0x1b8] sm:$0xf]
      %v917 = vld [vmem:[%s1 + $0x1bc] sm:$0xf]
      %v934 = vunpack.c.l.b16 %v902
      %v935 = vunpack.c.l.b16 %v903
      %v936 = vunpack.c.l.b16 %v904
      %v937 = vunpack.c.l.b16 %v905
      %v938 = vunpack.c.l.b16 %v906
      %v939 = vunpack.c.l.b16 %v907
      %v940 = vunpack.c.l.b16 %v908
      %v941 = vunpack.c.l.b16 %v909
      %v942 = vunpack.c.l.b16 %v910
      %v943 = vunpack.c.l.b16 %v911
      %v944 = vunpack.c.l.b16 %v912
      %v945 = vunpack.c.l.b16 %v913
      %v946 = vunpack.c.l.b16 %v914
      %v947 = vunpack.c.l.b16 %v915
      %v948 = vunpack.c.l.b16 %v916
      %v949 = vunpack.c.l.b16 %v917
      %v950 = vpack.c.b16 %v935, %v934
      %v951 = vpack.c.b16 %v937, %v936
      %v952 = vpack.c.b16 %v939, %v938
      %v953 = vpack.c.b16 %v941, %v940
      %v954 = vpack.c.b16 %v943, %v942
      %v955 = vpack.c.b16 %v945, %v944
      %v956 = vpack.c.b16 %v947, %v946
      %v957 = vpack.c.b16 %v949, %v948
      %966 = vmatprep.subr.bf16.mxu0 0
      %967 = vmatpush1.bf16.msra.mxu0 %v950
      %968 = vmatprep.subr.bf16.mxu0 0
      %969 = vmatpush1.bf16.msra.mxu0 %v951
      %970 = vmatprep.subr.bf16.mxu0 0
      %971 = vmatpush1.bf16.msra.mxu0 %v952
      %972 = vmatprep.subr.bf16.mxu0 0
      %973 = vmatpush1.bf16.msra.mxu0 %v953
      %974 = vmatprep.subr.bf16.mxu0 0
      %975 = vmatpush1.bf16.msra.mxu0 %v954
      %976 = vmatprep.subr.bf16.mxu0 0
      %977 = vmatpush1.bf16.msra.mxu0 %v955
      %978 = vmatprep.subr.bf16.mxu0 0
      %979 = vmatpush1.bf16.msra.mxu0 %v956
      %980 = vmatprep.subr.bf16.mxu0 0
      %981 = vmatpush1.bf16.msra.mxu0 %v957
      %982 = vmatprep.subr.bf16.mxu0 0
      %983 = vmatpush1.bf16.msra.mxu0 0
      %984 = vmatprep.subr.bf16.mxu0 0
      %985 = vmatpush1.bf16.msra.mxu0 0
      %986 = vmatprep.subr.bf16.mxu0 0
      %987 = vmatpush1.bf16.msra.mxu0 0
      %988 = vmatprep.subr.bf16.mxu0 0
      %989 = vmatpush1.bf16.msra.mxu0 0
      %990 = vmatprep.subr.bf16.mxu0 0
      %991 = vmatpush1.bf16.msra.mxu0 0
      %992 = vmatprep.subr.bf16.mxu0 0
      %993 = vmatpush1.bf16.msra.mxu0 0
      %994 = vmatprep.subr.bf16.mxu0 0
      %995 = vmatpush1.bf16.msra.mxu0 0
      %996 = vmatprep.subr.bf16.mxu0 0
      %997 = vmatpush1.bf16.msra.mxu0 0
      %998 = vmatprep.mubr.bf16.mxu0 0
      %999 = vmatmul.mubr.bf16.gmra.mrb[0].mxu0 %v900
      %v1000 = vpop.f32.mrb[0].mxu0
      %v1001 = vadd.f32 0.0, %v1000
      %v1002 = vpop.f32.mrb[0].mxu0
      %v1003 = vpop.f32.mrb[0].mxu0
      %v1004 = vadd.f32 0.0, %v1003
      %v1005 = vpop.f32.mrb[0].mxu0
      %1006 = vmatprep.mubr.bf16.mxu0 0
      %1007 = vmatmul.mubr.bf16.gmra.mrb[0].mxu0 %v901
      %v1008 = vpop.f32.mrb[0].mxu0
      %v1009 = vadd.f32 0.0, %v1008
      %v1010 = vpop.f32.mrb[0].mxu0
      %v1011 = vpop.f32.mrb[0].mxu0
      %v1012 = vpop.f32.mrb[0].mxu0
      %1013 = vdwg.mxu0
      %v1014 = vadd.f32 %v894, %v1001
      %v1015 = vadd.f32 %v895, %v1004
      %v1016 = vadd.f32 %v896, %v1009
      %v1017 = vld [vmem:[%s172 + $0xd] sm:$0xff]
      %v1018 = vld [vmem:[%s172 + $0x15] sm:$0xff]
      %v1019 = vld [vmem:[%s172 + $0x1d] sm:$0x3f]
      %v1020 = vpack.c.bf16 %v1018, %v1017
      %v1021 = vpack.c.bf16 %v1019, %v1019
      %v1022 = vld [vmem:[%s1 + $0x1c0] sm:$0xf]
      %v1023 = vld [vmem:[%s1 + $0x1c4] sm:$0xf]
      %v1024 = vld [vmem:[%s1 + $0x1c8] sm:$0xf]
      %v1025 = vld [vmem:[%s1 + $0x1cc] sm:$0xf]
      %v1026 = vld [vmem:[%s1 + $0x1d0] sm:$0xf]
      %v1027 = vld [vmem:[%s1 + $0x1d4] sm:$0xf]
      %v1028 = vld [vmem:[%s1 + $0x1d8] sm:$0xf]
      %v1029 = vld [vmem:[%s1 + $0x1dc] sm:$0xf]
      %v1030 = vld [vmem:[%s1 + $0x1e0] sm:$0xf]
      %v1031 = vld [vmem:[%s1 + $0x1e4] sm:$0xf]
      %v1032 = vld [vmem:[%s1 + $0x1e8] sm:$0xf]
      %v1033 = vld [vmem:[%s1 + $0x1ec] sm:$0xf]
      %v1034 = vld [vmem:[%s1 + $0x1f0] sm:$0xf]
      %v1035 = vld [vmem:[%s1 + $0x1f4] sm:$0xf]
      %v1036 = vld [vmem:[%s1 + $0x1f8] sm:$0xf]
      %v1037 = vld [vmem:[%s1 + $0x1fc] sm:$0xf]
      %v1054 = vunpack.c.l.b16 %v1022
      %v1055 = vunpack.c.l.b16 %v1023
      %v1056 = vunpack.c.l.b16 %v1024
      %v1057 = vunpack.c.l.b16 %v1025
      %v1058 = vunpack.c.l.b16 %v1026
      %v1059 = vunpack.c.l.b16 %v1027
      %v1060 = vunpack.c.l.b16 %v1028
      %v1061 = vunpack.c.l.b16 %v1029
      %v1062 = vunpack.c.l.b16 %v1030
      %v1063 = vunpack.c.l.b16 %v1031
      %v1064 = vunpack.c.l.b16 %v1032
      %v1065 = vunpack.c.l.b16 %v1033
      %v1066 = vunpack.c.l.b16 %v1034
      %v1067 = vunpack.c.l.b16 %v1035
      %v1068 = vunpack.c.l.b16 %v1036
      %v1069 = vunpack.c.l.b16 %v1037
      %v1070 = vpack.c.b16 %v1055, %v1054
      %v1071 = vpack.c.b16 %v1057, %v1056
      %v1072 = vpack.c.b16 %v1059, %v1058
      %v1073 = vpack.c.b16 %v1061, %v1060
      %v1074 = vpack.c.b16 %v1063, %v1062
      %v1075 = vpack.c.b16 %v1065, %v1064
      %v1076 = vpack.c.b16 %v1067, %v1066
      %v1077 = vpack.c.b16 %v1069, %v1068
      %1086 = vmatprep.subr.bf16.mxu0 0
      %1087 = vmatpush1.bf16.msra.mxu0 %v1070
      %1088 = vmatprep.subr.bf16.mxu0 0
      %1089 = vmatpush1.bf16.msra.mxu0 %v1071
      %1090 = vmatprep.subr.bf16.mxu0 0
      %1091 = vmatpush1.bf16.msra.mxu0 %v1072
      %1092 = vmatprep.subr.bf16.mxu0 0
      %1093 = vmatpush1.bf16.msra.mxu0 %v1073
      %1094 = vmatprep.subr.bf16.mxu0 0
      %1095 = vmatpush1.bf16.msra.mxu0 %v1074
      %1096 = vmatprep.subr.bf16.mxu0 0
      %1097 = vmatpush1.bf16.msra.mxu0 %v1075
      %1098 = vmatprep.subr.bf16.mxu0 0
      %1099 = vmatpush1.bf16.msra.mxu0 %v1076
      %1100 = vmatprep.subr.bf16.mxu0 0
      %1101 = vmatpush1.bf16.msra.mxu0 %v1077
      %1102 = vmatprep.subr.bf16.mxu0 0
      %1103 = vmatpush1.bf16.msra.mxu0 0
      %1104 = vmatprep.subr.bf16.mxu0 0
      %1105 = vmatpush1.bf16.msra.mxu0 0
      %1106 = vmatprep.subr.bf16.mxu0 0
      %1107 = vmatpush1.bf16.msra.mxu0 0
      %1108 = vmatprep.subr.bf16.mxu0 0
      %1109 = vmatpush1.bf16.msra.mxu0 0
      %1110 = vmatprep.subr.bf16.mxu0 0
      %1111 = vmatpush1.bf16.msra.mxu0 0
      %1112 = vmatprep.subr.bf16.mxu0 0
      %1113 = vmatpush1.bf16.msra.mxu0 0
      %1114 = vmatprep.subr.bf16.mxu0 0
      %1115 = vmatpush1.bf16.msra.mxu0 0
      %1116 = vmatprep.subr.bf16.mxu0 0
      %1117 = vmatpush1.bf16.msra.mxu0 0
      %1118 = vmatprep.mubr.bf16.mxu0 0
      %1119 = vmatmul.mubr.bf16.gmra.mrb[0].mxu0 %v1020
      %v1120 = vpop.f32.mrb[0].mxu0
      %v1121 = vadd.f32 0.0, %v1120
      %v1122 = vpop.f32.mrb[0].mxu0
      %v1123 = vpop.f32.mrb[0].mxu0
      %v1124 = vadd.f32 0.0, %v1123
      %v1125 = vpop.f32.mrb[0].mxu0
      %1126 = vmatprep.mubr.bf16.mxu0 0
      %1127 = vmatmul.mubr.bf16.gmra.mrb[0].mxu0 %v1021
      %v1128 = vpop.f32.mrb[0].mxu0
      %v1129 = vadd.f32 0.0, %v1128
      %v1130 = vpop.f32.mrb[0].mxu0
      %v1131 = vpop.f32.mrb[0].mxu0
      %v1132 = vpop.f32.mrb[0].mxu0
      %1133 = vdwg.mxu0
      %v1134 = vadd.f32 %v1014, %v1121
      %v1135 = vadd.f32 %v1015, %v1124
      %v1136 = vadd.f32 %v1016, %v1129
      %v1137 = vld [vmem:[%s172 + $0xe] sm:$0xff]
      %v1138 = vld [vmem:[%s172 + $0x16] sm:$0xff]
      %v1139 = vld [vmem:[%s172 + $0x1e] sm:$0x3f]
      %v1140 = vpack.c.bf16 %v1138, %v1137
      %v1141 = vpack.c.bf16 %v1139, %v1139
      %v1142 = vld [vmem:[%s1 + $0x200] sm:$0xf]
      %v1143 = vld [vmem:[%s1 + $0x204] sm:$0xf]
      %v1144 = vld [vmem:[%s1 + $0x208] sm:$0xf]
      %v1145 = vld [vmem:[%s1 + $0x20c] sm:$0xf]
      %v1146 = vld [vmem:[%s1 + $0x210] sm:$0xf]
      %v1147 = vld [vmem:[%s1 + $0x214] sm:$0xf]
      %v1148 = vld [vmem:[%s1 + $0x218] sm:$0xf]
      %v1149 = vld [vmem:[%s1 + $0x21c] sm:$0xf]
      %v1150 = vld [vmem:[%s1 + $0x220] sm:$0xf]
      %v1151 = vld [vmem:[%s1 + $0x224] sm:$0xf]
      %v1152 = vld [vmem:[%s1 + $0x228] sm:$0xf]
      %v1153 = vld [vmem:[%s1 + $0x22c] sm:$0xf]
      %v1154 = vld [vmem:[%s1 + $0x230] sm:$0xf]
      %v1155 = vld [vmem:[%s1 + $0x234] sm:$0xf]
      %v1156 = vld [vmem:[%s1 + $0x238] sm:$0xf]
      %v1157 = vld [vmem:[%s1 + $0x23c] sm:$0xf]
      %v1174 = vunpack.c.l.b16 %v1142
      %v1175 = vunpack.c.l.b16 %v1143
      %v1176 = vunpack.c.l.b16 %v1144
      %v1177 = vunpack.c.l.b16 %v1145
      %v1178 = vunpack.c.l.b16 %v1146
      %v1179 = vunpack.c.l.b16 %v1147
      %v1180 = vunpack.c.l.b16 %v1148
      %v1181 = vunpack.c.l.b16 %v1149
      %v1182 = vunpack.c.l.b16 %v1150
      %v1183 = vunpack.c.l.b16 %v1151
      %v1184 = vunpack.c.l.b16 %v1152
      %v1185 = vunpack.c.l.b16 %v1153
      %v1186 = vunpack.c.l.b16 %v1154
      %v1187 = vunpack.c.l.b16 %v1155
      %v1188 = vunpack.c.l.b16 %v1156
      %v1189 = vunpack.c.l.b16 %v1157
      %v1190 = vpack.c.b16 %v1175, %v1174
      %v1191 = vpack.c.b16 %v1177, %v1176
      %v1192 = vpack.c.b16 %v1179, %v1178
      %v1193 = vpack.c.b16 %v1181, %v1180
      %v1194 = vpack.c.b16 %v1183, %v1182
      %v1195 = vpack.c.b16 %v1185, %v1184
      %v1196 = vpack.c.b16 %v1187, %v1186
      %v1197 = vpack.c.b16 %v1189, %v1188
      %1206 = vmatprep.subr.bf16.mxu0 0
      %1207 = vmatpush1.bf16.msra.mxu0 %v1190
      %1208 = vmatprep.subr.bf16.mxu0 0
      %1209 = vmatpush1.bf16.msra.mxu0 %v1191
      %1210 = vmatprep.subr.bf16.mxu0 0
      %1211 = vmatpush1.bf16.msra.mxu0 %v1192
      %1212 = vmatprep.subr.bf16.mxu0 0
      %1213 = vmatpush1.bf16.msra.mxu0 %v1193
      %1214 = vmatprep.subr.bf16.mxu0 0
      %1215 = vmatpush1.bf16.msra.mxu0 %v1194
      %1216 = vmatprep.subr.bf16.mxu0 0
      %1217 = vmatpush1.bf16.msra.mxu0 %v1195
      %1218 = vmatprep.subr.bf16.mxu0 0
      %1219 = vmatpush1.bf16.msra.mxu0 %v1196
      %1220 = vmatprep.subr.bf16.mxu0 0
      %1221 = vmatpush1.bf16.msra.mxu0 %v1197
      %1222 = vmatprep.subr.bf16.mxu0 0
      %1223 = vmatpush1.bf16.msra.mxu0 0
      %1224 = vmatprep.subr.bf16.mxu0 0
      %1225 = vmatpush1.bf16.msra.mxu0 0
      %1226 = vmatprep.subr.bf16.mxu0 0
      %1227 = vmatpush1.bf16.msra.mxu0 0
      %1228 = vmatprep.subr.bf16.mxu0 0
      %1229 = vmatpush1.bf16.msra.mxu0 0
      %1230 = vmatprep.subr.bf16.mxu0 0
      %1231 = vmatpush1.bf16.msra.mxu0 0
      %1232 = vmatprep.subr.bf16.mxu0 0
      %1233 = vmatpush1.bf16.msra.mxu0 0
      %1234 = vmatprep.subr.bf16.mxu0 0
      %1235 = vmatpush1.bf16.msra.mxu0 0
      %1236 = vmatprep.subr.bf16.mxu0 0
      %1237 = vmatpush1.bf16.msra.mxu0 0
      %1238 = vmatprep.mubr.bf16.mxu0 0
      %1239 = vmatmul.mubr.bf16.gmra.mrb[0].mxu0 %v1140
      %v1240 = vpop.f32.mrb[0].mxu0
      %v1241 = vadd.f32 0.0, %v1240
      %v1242 = vpop.f32.mrb[0].mxu0
      %v1243 = vpop.f32.mrb[0].mxu0
      %v1244 = vadd.f32 0.0, %v1243
      %v1245 = vpop.f32.mrb[0].mxu0
      %1246 = vmatprep.mubr.bf16.mxu0 0
      %1247 = vmatmul.mubr.bf16.gmra.mrb[0].mxu0 %v1141
      %v1248 = vpop.f32.mrb[0].mxu0
      %v1249 = vadd.f32 0.0, %v1248
      %v1250 = vpop.f32.mrb[0].mxu0
      %v1251 = vpop.f32.mrb[0].mxu0
      %v1252 = vpop.f32.mrb[0].mxu0
      %1253 = vdwg.mxu0
      %v1254 = vadd.f32 %v1134, %v1241
      %v1255 = vadd.f32 %v1135, %v1244
      %v1256 = vadd.f32 %v1136, %v1249
      %v1257 = vlaneseq
      %v1258 = vshrl.u32 %v1257, 7
      %v1259 = vadd.s32 %v1258, 8
      %v1260 = vadd.s32 %v1258, 16
      %vm1261 = vcmp.lt.s32.totalorder %v1258, 0
      %v1262 = vsub.s32 0, %v1258
      %v1263 = vsel %vm1261, %v1262, %v1258
      %v1264 = vmul.u32.u64.compose %v1263, 2863311531
      %v1265 = vextract.low.u32 %v1264
      %v1266 = vextract.high.u32 %v1264
      %v1267 = vshrl.u32 %v1266, 2
      %v1268 = vmul.u32 %v1267, 6
      %v1269 = vsub.s32 %v1263, %v1268
      %v1270 = vsub.s32 0, %v1269
      %v1271 = vsel %vm1261, %v1270, %v1269
      %vm1272 = vcmp.lt.s32.totalorder %v1259, 0
      %v1273 = vsub.s32 0, %v1259
      %v1274 = vsel %vm1272, %v1273, %v1259
      %v1275 = vmul.u32.u64.compose %v1274, 2863311531
      %v1276 = vextract.low.u32 %v1275
      %v1277 = vextract.high.u32 %v1275
      %v1278 = vshrl.u32 %v1277, 2
      %v1279 = vmul.u32 %v1278, 6
      %v1280 = vsub.s32 %v1274, %v1279
      %v1281 = vsub.s32 0, %v1280
      %v1282 = vsel %vm1272, %v1281, %v1280
      %vm1283 = vcmp.lt.s32.totalorder %v1260, 0
      %v1284 = vsub.s32 0, %v1260
      %v1285 = vsel %vm1283, %v1284, %v1260
      %v1286 = vmul.u32.u64.compose %v1285, 2863311531
      %v1287 = vextract.low.u32 %v1286
      %v1288 = vextract.high.u32 %v1286
      %v1289 = vshrl.u32 %v1288, 2
      %v1290 = vmul.u32 %v1289, 6
      %v1291 = vsub.s32 %v1285, %v1290
      %v1292 = vsub.s32 0, %v1291
      %v1293 = vsel %vm1283, %v1292, %v1291
      %vm1294 = vcmp.ne.s32.totalorder %v1271, 0
      %vm1295 = vcmp.ne.s32.totalorder %v1282, 0
      %vm1296 = vcmp.ne.s32.totalorder %v1293, 0
      %vm1297 = vcmp.lt.s32.totalorder %v1271, 0
      %vm1298 = vcmp.lt.s32.totalorder %v1282, 0
      %vm1299 = vcmp.lt.s32.totalorder %v1293, 0
      %vm1300 = vmand %vm1297, %vm1294
      %vm1301 = vmand %vm1298, %vm1295
      %vm1302 = vmand %vm1299, %vm1296
      %v1303 = vadd.s32 %v1271, 6
      %v1304 = vadd.s32 %v1282, 6
      %v1305 = vadd.s32 %v1293, 6
      %v1306 = vsel %vm1300, %v1303, %v1271
      %v1307 = vsel %vm1301, %v1304, %v1282
      %v1308 = vsel %vm1302, %v1305, %v1293
      %vm1309 = vcmp.lt.s32.totalorder %v1306, 4
      %vm1310 = vcmp.lt.s32.totalorder %v1307, 4
      %vm1311 = vcmp.lt.s32.totalorder %v1308, 4
      %v1312 = vsel %vm1309, 1, 0
      %v1313 = vsel %vm1310, 1, 0
      %v1314 = vsel %vm1311, 1, 0
      %vm1315 = vcmp.eq.s32.totalorder %v1312, 1
      %vm1316 = vcmp.eq.s32.totalorder %v1313, 1
      %vm1317 = vcmp.eq.s32.totalorder %v1314, 1
      %v1318 = vsel %vm1315, %v1254, 0.0
      %v1319 = vsel %vm1316, %v1255, 0.0
      %v1320 = vsel %vm1317, %v1256, 0.0
      %v1321 = vadd.f32 %v1318, %v1319
      %vm1322 = vcmask 1045504
      %v1323 = vsel %vm1322, %v1320, 0.0
      %v1324 = vadd.f32 %v1321, %v1323
      %v1325 = vrot.slane %v1324, 4
      %v1326 = vadd.f32 %v1324, %v1325
      %v1327 = vrot.slane %v1326, 2
      %v1328 = vadd.f32 %v1326, %v1327
      %v1329 = vrot.slane %v1328, 1
      %v1330 = vadd.f32 %v1328, %v1329
      %1331 = vst [vmem:[%s181] sm:$0x1] %v1330
      %v1332 = vmul.f32 %v1318, %v1318
      %v1333 = vmul.f32 %v1319, %v1319
      %v1334 = vmul.f32 %v1320, %v1320
      %v1335 = vadd.f32 %v1332, %v1333
      %v1336 = vsel %vm1322, %v1334, 0.0
      %v1337 = vadd.f32 %v1335, %v1336
      %v1338 = vrot.slane %v1337, 4
      %v1339 = vadd.f32 %v1337, %v1338
      %v1340 = vrot.slane %v1339, 2
      %v1341 = vadd.f32 %v1339, %v1340
      %v1342 = vrot.slane %v1341, 1
      %v1343 = vadd.f32 %v1341, %v1342
      %1344 = vst [vmem:[%s181 + $0x1] sm:$0x1] %v1343
      %v1345 = vpack.c.bf16 %v1254, %v1254
      %1346 = vst [vmem:[%s177] sm:$0x3] %v1345
      %v1347 = vpack.c.bf16 %v1255, %v1254
      %v1349 = vunpack.c.l.b16 %v1347
      %v1350 = vunpack.c.h.b16 %v1347
      %v1351 = vpack.c.b16 %v1349, %v1349
      %v1352 = vpack.c.b16 %v1350, %v1350
      %vm1353 = vcmask 1042432
      %vm1354 = vcmask 1046532
      %vm1355 = vmor %vm1353, %vm1354
      %v1356 = vrot.slane %v1351, 5
      %v1357 = vrot.slane %v1356, 4
      %v1358 = vrot.slane %v1352, 5
      %v1359 = vsel %vm1355, %v1357, %v1358
      %1361 = vst [vmem:[%s177] sm:$0xc] %v1359
      %v1362 = vpack.c.bf16 %v1255, %v1255
      %v1364 = vunpack.c.l.b16 %v1362
      %v1365 = vpack.c.b16 %v1364, %v1364
      %v1366 = vrot.slane %v1365, 6
      %v1367 = vrot.slane %v1366, 4
      %1369 = vst [vmem:[%s177 + $0x4] sm:$0x3] %v1367
      %v1370 = vpack.c.bf16 %v1256, %v1256
      %v1372 = vunpack.c.l.b16 %v1370
      %v1373 = vpack.c.b16 %v1372, %v1372
      %v1374 = vrot.slane %v1373, 7
      %1376 = vst [vmem:[%s177 + $0x4] sm:$0xc] %v1374
      %p1377 = scmp.lt.s32.totalorder %s15, 1
      %s1378 = scalar_select %p1377, %s15, 1
      %s1379 = smul.addr %s1378, 2
      %s1380 = smul.addr %s1379, 4
      %s1381 = scalar_lea.vmem %s2, %s1380
      %p1382 = scmp.lt.s32.totalorder %s15, 1
      %s1383 = scalar_select %p1382, %s15, 1
      %s1384 = smul.addr %s1383, 2
      %s1385 = scalar_lea.vmem %s3, %s1384
      // Predicated region
      $region29: #{stcae_decoder_forward.5} parent=27 // pred_check
        %p1386 = pneg %p80
      $region30: #{stcae_decoder_forward.5} parent=27 // pred_check_branch
        %1388 = sbr.rel (%p1386) target = $region32
      $region31: #{stcae_decoder_forward.5} parent=27 // pred_region
        _
      $region32: #{stcae_decoder_forward.5} parent=27 // pred_fallthru
        _
      // Predicated region
      $region33: #{stcae_decoder_forward.5} parent=27 // pred_check
        %p1389 = pneg %p106
      $region34: #{stcae_decoder_forward.5} parent=27 // pred_check_branch
        %1391 = sbr.rel (%p1389) target = $region36
      $region35: #{stcae_decoder_forward.5} parent=27 // pred_region
        _
      $region36: #{stcae_decoder_forward.5} parent=27 // pred_fallthru
        _
    $region28: #{stcae_decoder_forward.5} parent=5 // pred_fallthru
      _
    %p1392 = scmp.le.s32.totalorder 2, %s10
    // Predicated region
    $region37: #{stcae_decoder_forward.5} parent=5 // pred_check
      %p1393 = pneg %p1392
    $region38: #{stcae_decoder_forward.5} parent=5 // pred_check_branch
      %1395 = sbr.rel (%p1393) target = $region40
    $region39: #{stcae_decoder_forward.5} parent=5 // pred_region
      %s1396 = ssub.s32 %s10, 2
      // Predicated region
      $region41: #{stcae_decoder_forward.5} parent=39 // pred_check
        %p1397 = pneg %p86
      $region42: #{stcae_decoder_forward.5} parent=39 // pred_check_branch
        %1399 = sbr.rel (%p1397) target = $region44
      $region43: #{stcae_decoder_forward.5} parent=39 // pred_region
        %p1400 = scmp.lt.s32.totalorder %s16, 1
        %s1401 = scalar_select %p1400, %s16, 1
        %s1402 = smul.addr %s1401, 2
        %s1403 = smul.addr %s1402, 4
        %s1404 = scalar_lea.vmem %s2, %s1403
      $region44: #{stcae_decoder_forward.5} parent=39 // pred_fallthru
        _
      // Predicated region
      $region45: #{stcae_decoder_forward.5} parent=39 // pred_check
        %p1405 = pneg %p112
      $region46: #{stcae_decoder_forward.5} parent=39 // pred_check_branch
        %1407 = sbr.rel (%p1405) target = $region48
      $region47: #{stcae_decoder_forward.5} parent=39 // pred_region
        %p1408 = scmp.lt.s32.totalorder %s16, 1
        %s1409 = scalar_select %p1408, %s16, 1
        %s1410 = smul.addr %s1409, 2
        %s1411 = scalar_lea.vmem %s3, %s1410
      $region48: #{stcae_decoder_forward.5} parent=39 // pred_fallthru
        _
    $region40: #{stcae_decoder_forward.5} parent=5 // pred_fallthru
      _
  $region6: #{stcae_decoder_forward.5} parent=0 // loop_footer
    %s14 = sadd.s32 1, %s10
  $region7: #{stcae_decoder_forward.5} parent=0 // loop_footer_branch
    %9 = sbr.rel target = $region3
  $region8: #{stcae_decoder_forward.5} parent=0 // loop_exit
    _

// kernel: stcae_decoder_forward.7
$region0: #{stcae_decoder_forward.7}
  #allocation0 [shape = 'u32[]', space=smem, size = 0x4, offset = 0x4, fixed_abs, tag = 'smem constant byte address 0x4 - core index']
  #allocation1 [shape = 'u32[144,128]{1,0:T(1,128)}', space=vmem, size = 0x12000, scoped, tag = 'internal scratch']
  %s0 = inlined_call_operand.vmem [shape: bf16[128,128], index: 0, kind: input, shape index: {}]
  %s1 = inlined_call_operand.vmem [shape: f32[1,128], index: 1, kind: input, shape index: {}]
  %s2 = inlined_call_operand.vmem [shape: f32[1,128], index: 2, kind: input, shape index: {}]
  %s3 = inlined_call_operand.vmem [shape: bf16[128,384], index: 3, kind: input, shape index: {}]
  %s4 = inlined_call_operand.vmem [shape: bf16[128,384], index: 4, kind: output, shape index: {0}]
  %s5 = inlined_call_operand.vmem [shape: f32[1,2,384], index: 5, kind: output, shape index: {1}]
  %6 = xla_tuple %s4, %s5
  %s7 = sld [smem:[#allocation0]]
  $region34: #{stcae_decoder_forward.7} parent=0
    _
  %s9 = ssub.s32 1, %s7
  %s10 = scalar_select 0, %s9, %s7
  // Predicated region
  $region2: #{stcae_decoder_forward.7} parent=0 // pred_check
    _
  $region3: #{stcae_decoder_forward.7} parent=0 // pred_check_branch
    %12 = sbr.rel (0) target = $region5
  $region4: #{stcae_decoder_forward.7} parent=0 // pred_region
    _
  $region5: #{stcae_decoder_forward.7} parent=0 // pred_fallthru
    _
  // Predicated region
  $region6: #{stcae_decoder_forward.7} parent=0 // pred_check
    _
  $region7: #{stcae_decoder_forward.7} parent=0 // pred_check_branch
    %14 = sbr.rel (0) target = $region9
  $region8: #{stcae_decoder_forward.7} parent=0 // pred_region
    _
  $region9: #{stcae_decoder_forward.7} parent=0 // pred_fallthru
    _
  // Predicated region
  $region10: #{stcae_decoder_forward.7} parent=0 // pred_check
    _
  $region11: #{stcae_decoder_forward.7} parent=0 // pred_check_branch
    %16 = sbr.rel (0) target = $region13
  $region12: #{stcae_decoder_forward.7} parent=0 // pred_region
    _
  $region13: #{stcae_decoder_forward.7} parent=0 // pred_fallthru
    _
  // Predicated region
  $region14: #{stcae_decoder_forward.7} parent=0 // pred_check
    _
  $region15: #{stcae_decoder_forward.7} parent=0 // pred_check_branch
    %18 = sbr.rel (0) target = $region17
  $region16: #{stcae_decoder_forward.7} parent=0 // pred_region
    _
  $region17: #{stcae_decoder_forward.7} parent=0 // pred_fallthru
    _
  %v20 = vld [vmem:[%s0] sm:$0xf]
  %v21 = vld [vmem:[%s0 + $0x4] sm:$0xf]
  %v22 = vld [vmem:[%s0 + $0x8] sm:$0xf]
  %v23 = vld [vmem:[%s0 + $0xc] sm:$0xf]
  %v24 = vld [vmem:[%s0 + $0x10] sm:$0xf]
  %v25 = vld [vmem:[%s0 + $0x14] sm:$0xf]
  %v26 = vld [vmem:[%s0 + $0x18] sm:$0xf]
  %v27 = vld [vmem:[%s0 + $0x1c] sm:$0xf]
  %v28 = vld [vmem:[%s0 + $0x20] sm:$0xf]
  %v29 = vld [vmem:[%s0 + $0x24] sm:$0xf]
  %v30 = vld [vmem:[%s0 + $0x28] sm:$0xf]
  %v31 = vld [vmem:[%s0 + $0x2c] sm:$0xf]
  %v32 = vld [vmem:[%s0 + $0x30] sm:$0xf]
  %v33 = vld [vmem:[%s0 + $0x34] sm:$0xf]
  %v34 = vld [vmem:[%s0 + $0x38] sm:$0xf]
  %v35 = vld [vmem:[%s0 + $0x3c] sm:$0xf]
  %v36 = vunpack.c.l.bf16 %v20
  %v37 = vunpack.c.l.bf16 %v21
  %v38 = vunpack.c.l.bf16 %v22
  %v39 = vunpack.c.l.bf16 %v23
  %v40 = vunpack.c.l.bf16 %v24
  %v41 = vunpack.c.l.bf16 %v25
  %v42 = vunpack.c.l.bf16 %v26
  %v43 = vunpack.c.l.bf16 %v27
  %v44 = vunpack.c.l.bf16 %v28
  %v45 = vunpack.c.l.bf16 %v29
  %v46 = vunpack.c.l.bf16 %v30
  %v47 = vunpack.c.l.bf16 %v31
  %v48 = vunpack.c.l.bf16 %v32
  %v49 = vunpack.c.l.bf16 %v33
  %v50 = vunpack.c.l.bf16 %v34
  %v51 = vunpack.c.l.bf16 %v35
  %v52 = vld [vmem:[%s1] sm:$0x1]
  %v54 = vlaneseq
  %v55 = vshrl.u32 %v54, 7
  %v56 = vsub.s32 0, %v55
  %v57 = vrot.slane %v52, %v56
  %v59 = vmul.f32 %v36, %v57
  %v60 = vmul.f32 %v37, %v57
  %v61 = vmul.f32 %v38, %v57
  %v62 = vmul.f32 %v39, %v57
  %v63 = vmul.f32 %v40, %v57
  %v64 = vmul.f32 %v41, %v57
  %v65 = vmul.f32 %v42, %v57
  %v66 = vmul.f32 %v43, %v57
  %v67 = vmul.f32 %v44, %v57
  %v68 = vmul.f32 %v45, %v57
  %v69 = vmul.f32 %v46, %v57
  %v70 = vmul.f32 %v47, %v57
  %v71 = vmul.f32 %v48, %v57
  %v72 = vmul.f32 %v49, %v57
  %v73 = vmul.f32 %v50, %v57
  %v74 = vmul.f32 %v51, %v57
  %v75 = vld [vmem:[%s2] sm:$0x1]
  %v77 = vlaneseq
  %v78 = vshrl.u32 %v77, 7
  %v79 = vsub.s32 0, %v78
  %v80 = vrot.slane %v75, %v79
  %v82 = vadd.f32 %v59, %v80
  %v83 = vadd.f32 %v60, %v80
  %v84 = vadd.f32 %v61, %v80
  %v85 = vadd.f32 %v62, %v80
  %v86 = vadd.f32 %v63, %v80
  %v87 = vadd.f32 %v64, %v80
  %v88 = vadd.f32 %v65, %v80
  %v89 = vadd.f32 %v66, %v80
  %v90 = vadd.f32 %v67, %v80
  %v91 = vadd.f32 %v68, %v80
  %v92 = vadd.f32 %v69, %v80
  %v93 = vadd.f32 %v70, %v80
  %v94 = vadd.f32 %v71, %v80
  %v95 = vadd.f32 %v72, %v80
  %v96 = vadd.f32 %v73, %v80
  %v97 = vadd.f32 %v74, %v80
  %v98 = vmax.f32 %v82, 0.0
  %v99 = vmax.f32 %v83, 0.0
  %v100 = vmax.f32 %v84, 0.0
  %v101 = vmax.f32 %v85, 0.0
  %v102 = vmax.f32 %v86, 0.0
  %v103 = vmax.f32 %v87, 0.0
  %v104 = vmax.f32 %v88, 0.0
  %v105 = vmax.f32 %v89, 0.0
  %v106 = vmax.f32 %v90, 0.0
  %v107 = vmax.f32 %v91, 0.0
  %v108 = vmax.f32 %v92, 0.0
  %v109 = vmax.f32 %v93, 0.0
  %v110 = vmax.f32 %v94, 0.0
  %v111 = vmax.f32 %v95, 0.0
  %v112 = vmax.f32 %v96, 0.0
  %v113 = vmax.f32 %v97, 0.0
  %v114 = vpack.c.bf16 %v99, %v98
  %v115 = vpack.c.bf16 %v101, %v100
  %v116 = vpack.c.bf16 %v103, %v102
  %v117 = vpack.c.bf16 %v105, %v104
  %v118 = vpack.c.bf16 %v107, %v106
  %v119 = vpack.c.bf16 %v109, %v108
  %v120 = vpack.c.bf16 %v111, %v110
  %v121 = vpack.c.bf16 %v113, %v112
  %v122 = vld [vmem:[%s3] sm:$0xff]
  %v123 = vld [vmem:[%s3 + $0x8] sm:$0xf]
  %v124 = vld [vmem:[%s3 + $0xc] sm:$0xff]
  %v125 = vld [vmem:[%s3 + $0x14] sm:$0xf]
  %v126 = vld [vmem:[%s3 + $0x18] sm:$0xff]
  %v127 = vld [vmem:[%s3 + $0x20] sm:$0xf]
  %v128 = vld [vmem:[%s3 + $0x24] sm:$0xff]
  %v129 = vld [vmem:[%s3 + $0x2c] sm:$0xf]
  %v130 = vld [vmem:[%s3 + $0x30] sm:$0xff]
  %v131 = vld [vmem:[%s3 + $0x38] sm:$0xf]
  %v132 = vld [vmem:[%s3 + $0x3c] sm:$0xff]
  %v133 = vld [vmem:[%s3 + $0x44] sm:$0xf]
  %v134 = vld [vmem:[%s3 + $0x48] sm:$0xff]
  %v135 = vld [vmem:[%s3 + $0x50] sm:$0xf]
  %v136 = vld [vmem:[%s3 + $0x54] sm:$0xff]
  %v137 = vld [vmem:[%s3 + $0x5c] sm:$0xf]
  %v138 = vld [vmem:[%s3 + $0x60] sm:$0xff]
  %v139 = vld [vmem:[%s3 + $0x68] sm:$0xf]
  %v140 = vld [vmem:[%s3 + $0x6c] sm:$0xff]
  %v141 = vld [vmem:[%s3 + $0x74] sm:$0xf]
  %v142 = vld [vmem:[%s3 + $0x78] sm:$0xff]
  %v143 = vld [vmem:[%s3 + $0x80] sm:$0xf]
  %v144 = vld [vmem:[%s3 + $0x84] sm:$0xff]
  %v145 = vld [vmem:[%s3 + $0x8c] sm:$0xf]
  %v146 = vld [vmem:[%s3 + $0x90] sm:$0xff]
  %v147 = vld [vmem:[%s3 + $0x98] sm:$0xf]
  %v148 = vld [vmem:[%s3 + $0x9c] sm:$0xff]
  %v149 = vld [vmem:[%s3 + $0xa4] sm:$0xf]
  %v150 = vld [vmem:[%s3 + $0xa8] sm:$0xff]
  %v151 = vld [vmem:[%s3 + $0xb0] sm:$0xf]
  %v152 = vld [vmem:[%s3 + $0xb4] sm:$0xff]
  %v153 = vld [vmem:[%s3 + $0xbc] sm:$0xf]
  %v186 = vunpack.c.l.b16 %v122
  %v187 = vunpack.c.h.b16 %v122
  %v188 = vunpack.c.l.b16 %v123
  %v189 = vunpack.c.l.b16 %v124
  %v190 = vunpack.c.h.b16 %v124
  %v191 = vunpack.c.l.b16 %v125
  %v192 = vunpack.c.l.b16 %v126
  %v193 = vunpack.c.h.b16 %v126
  %v194 = vunpack.c.l.b16 %v127
  %v195 = vunpack.c.l.b16 %v128
  %v196 = vunpack.c.h.b16 %v128
  %v197 = vunpack.c.l.b16 %v129
  %v198 = vunpack.c.l.b16 %v130
  %v199 = vunpack.c.h.b16 %v130
  %v200 = vunpack.c.l.b16 %v131
  %v201 = vunpack.c.l.b16 %v132
  %v202 = vunpack.c.h.b16 %v132
  %v203 = vunpack.c.l.b16 %v133
  %v204 = vunpack.c.l.b16 %v134
  %v205 = vunpack.c.h.b16 %v134
  %v206 = vunpack.c.l.b16 %v135
  %v207 = vunpack.c.l.b16 %v136
  %v208 = vunpack.c.h.b16 %v136
  %v209 = vunpack.c.l.b16 %v137
  %v210 = vunpack.c.l.b16 %v138
  %v211 = vunpack.c.h.b16 %v138
  %v212 = vunpack.c.l.b16 %v139
  %v213 = vunpack.c.l.b16 %v140
  %v214 = vunpack.c.h.b16 %v140
  %v215 = vunpack.c.l.b16 %v141
  %v216 = vunpack.c.l.b16 %v142
  %v217 = vunpack.c.h.b16 %v142
  %v218 = vunpack.c.l.b16 %v143
  %v219 = vunpack.c.l.b16 %v144
  %v220 = vunpack.c.h.b16 %v144
  %v221 = vunpack.c.l.b16 %v145
  %v222 = vunpack.c.l.b16 %v146
  %v223 = vunpack.c.h.b16 %v146
  %v224 = vunpack.c.l.b16 %v147
  %v225 = vunpack.c.l.b16 %v148
  %v226 = vunpack.c.h.b16 %v148
  %v227 = vunpack.c.l.b16 %v149
  %v228 = vunpack.c.l.b16 %v150
  %v229 = vunpack.c.h.b16 %v150
  %v230 = vunpack.c.l.b16 %v151
  %v231 = vunpack.c.l.b16 %v152
  %v232 = vunpack.c.h.b16 %v152
  %v233 = vunpack.c.l.b16 %v153
  %v234 = vpack.c.b16 %v189, %v186
  %v235 = vpack.c.b16 %v190, %v187
  %v236 = vpack.c.b16 %v191, %v188
  %v237 = vpack.c.b16 %v195, %v192
  %v238 = vpack.c.b16 %v196, %v193
  %v239 = vpack.c.b16 %v197, %v194
  %v240 = vpack.c.b16 %v201, %v198
  %v241 = vpack.c.b16 %v202, %v199
  %v242 = vpack.c.b16 %v203, %v200
  %v243 = vpack.c.b16 %v207, %v204
  %v244 = vpack.c.b16 %v208, %v205
  %v245 = vpack.c.b16 %v209, %v206
  %v246 = vpack.c.b16 %v213, %v210
  %v247 = vpack.c.b16 %v214, %v211
  %v248 = vpack.c.b16 %v215, %v212
  %v249 = vpack.c.b16 %v219, %v216
  %v250 = vpack.c.b16 %v220, %v217
  %v251 = vpack.c.b16 %v221, %v218
  %v252 = vpack.c.b16 %v225, %v222
  %v253 = vpack.c.b16 %v226, %v223
  %v254 = vpack.c.b16 %v227, %v224
  %v255 = vpack.c.b16 %v231, %v228
  %v256 = vpack.c.b16 %v232, %v229
  %v257 = vpack.c.b16 %v233, %v230
  %282 = vmatprep.subr.bf16.mxu0 %v235
  %283 = vmatpush1.bf16.msra.mxu0 %v234
  %284 = vmatprep.subr.bf16.mxu0 %v238
  %285 = vmatpush1.bf16.msra.mxu0 %v237
  %286 = vmatprep.subr.bf16.mxu0 %v241
  %287 = vmatpush1.bf16.msra.mxu0 %v240
  %288 = vmatprep.subr.bf16.mxu0 %v244
  %289 = vmatpush1.bf16.msra.mxu0 %v243
  %290 = vmatprep.subr.bf16.mxu0 %v247
  %291 = vmatpush1.bf16.msra.mxu0 %v246
  %292 = vmatprep.subr.bf16.mxu0 %v250
  %293 = vmatpush1.bf16.msra.mxu0 %v249
  %294 = vmatprep.subr.bf16.mxu0 %v253
  %295 = vmatpush1.bf16.msra.mxu0 %v252
  %296 = vmatprep.subr.bf16.mxu0 %v256
  %297 = vmatpush1.bf16.msra.mxu0 %v255
  %298 = vmatprep.subr.bf16.mxu0 0
  %299 = vmatpush1.bf16.msra.mxu0 0
  %300 = vmatprep.subr.bf16.mxu0 0
  %301 = vmatpush1.bf16.msra.mxu0 0
  %302 = vmatprep.subr.bf16.mxu0 0
  %303 = vmatpush1.bf16.msra.mxu0 0
  %304 = vmatprep.subr.bf16.mxu0 0
  %305 = vmatpush1.bf16.msra.mxu0 0
  %306 = vmatprep.subr.bf16.mxu0 0
  %307 = vmatpush1.bf16.msra.mxu0 0
  %308 = vmatprep.subr.bf16.mxu0 0
  %309 = vmatpush1.bf16.msra.mxu0 0
  %310 = vmatprep.subr.bf16.mxu0 0
  %311 = vmatpush1.bf16.msra.mxu0 0
  %312 = vmatprep.subr.bf16.mxu0 0
  %313 = vmatpush1.bf16.msra.mxu0 0
  %314 = vmatprep.mubr.bf16.mxu0 0
  %315 = vmatmul.mubr.bf16.gmra.mrb[0].mxu0 %v114
  %v316 = vpop.f32.mrb[0].mxu0
  %v317 = vadd.f32 0.0, %v316
  %v318 = vpop.f32.mrb[0].mxu0
  %v319 = vadd.f32 0.0, %v318
  %v320 = vpop.f32.mrb[0].mxu0
  %v321 = vadd.f32 0.0, %v320
  %v322 = vpop.f32.mrb[0].mxu0
  %v323 = vadd.f32 0.0, %v322
  %324 = vmatprep.mubr.bf16.mxu0 0
  %325 = vmatmul.mubr.bf16.gmra.mrb[0].mxu0 %v115
  %v326 = vpop.f32.mrb[0].mxu0
  %v327 = vadd.f32 0.0, %v326
  %v328 = vpop.f32.mrb[0].mxu0
  %v329 = vadd.f32 0.0, %v328
  %v330 = vpop.f32.mrb[0].mxu0
  %v331 = vadd.f32 0.0, %v330
  %v332 = vpop.f32.mrb[0].mxu0
  %v333 = vadd.f32 0.0, %v332
  %334 = vmatprep.mubr.bf16.mxu0 0
  %335 = vmatmul.mubr.bf16.gmra.mrb[0].mxu0 %v116
  %v336 = vpop.f32.mrb[0].mxu0
  %v337 = vadd.f32 0.0, %v336
  %v338 = vpop.f32.mrb[0].mxu0
  %v339 = vadd.f32 0.0, %v338
  %v340 = vpop.f32.mrb[0].mxu0
  %v341 = vadd.f32 0.0, %v340
  %v342 = vpop.f32.mrb[0].mxu0
  %v343 = vadd.f32 0.0, %v342
  %344 = vmatprep.mubr.bf16.mxu0 0
  %345 = vmatmul.mubr.bf16.gmra.mrb[0].mxu0 %v117
  %v346 = vpop.f32.mrb[0].mxu0
  %v347 = vadd.f32 0.0, %v346
  %v348 = vpop.f32.mrb[0].mxu0
  %v349 = vadd.f32 0.0, %v348
  %v350 = vpop.f32.mrb[0].mxu0
  %v351 = vadd.f32 0.0, %v350
  %v352 = vpop.f32.mrb[0].mxu0
  %v353 = vadd.f32 0.0, %v352
  %354 = vmatprep.mubr.bf16.mxu0 0
  %355 = vmatmul.mubr.bf16.gmra.mrb[0].mxu0 %v118
  %v356 = vpop.f32.mrb[0].mxu0
  %v357 = vadd.f32 0.0, %v356
  %v358 = vpop.f32.mrb[0].mxu0
  %v359 = vadd.f32 0.0, %v358
  %v360 = vpop.f32.mrb[0].mxu0
  %v361 = vadd.f32 0.0, %v360
  %v362 = vpop.f32.mrb[0].mxu0
  %v363 = vadd.f32 0.0, %v362
  %364 = vmatprep.mubr.bf16.mxu0 0
  %365 = vmatmul.mubr.bf16.gmra.mrb[0].mxu0 %v119
  %v366 = vpop.f32.mrb[0].mxu0
  %v367 = vadd.f32 0.0, %v366
  %v368 = vpop.f32.mrb[0].mxu0
  %v369 = vadd.f32 0.0, %v368
  %v370 = vpop.f32.mrb[0].mxu0
  %v371 = vadd.f32 0.0, %v370
  %v372 = vpop.f32.mrb[0].mxu0
  %v373 = vadd.f32 0.0, %v372
  %374 = vmatprep.mubr.bf16.mxu0 0
  %375 = vmatmul.mubr.bf16.gmra.mrb[0].mxu0 %v120
  %v376 = vpop.f32.mrb[0].mxu0
  %v377 = vadd.f32 0.0, %v376
  %v378 = vpop.f32.mrb[0].mxu0
  %v379 = vadd.f32 0.0, %v378
  %v380 = vpop.f32.mrb[0].mxu0
  %v381 = vadd.f32 0.0, %v380
  %v382 = vpop.f32.mrb[0].mxu0
  %v383 = vadd.f32 0.0, %v382
  %384 = vmatprep.mubr.bf16.mxu0 0
  %385 = vmatmul.mubr.bf16.gmra.mrb[0].mxu0 %v121
  %v386 = vpop.f32.mrb[0].mxu0
  %v387 = vadd.f32 0.0, %v386
  %v388 = vpop.f32.mrb[0].mxu0
  %v389 = vadd.f32 0.0, %v388
  %v390 = vpop.f32.mrb[0].mxu0
  %v391 = vadd.f32 0.0, %v390
  %v392 = vpop.f32.mrb[0].mxu0
  %v393 = vadd.f32 0.0, %v392
  %394 = vdwg.mxu0
  %395 = vmatprep.subr.bf16.mxu0 0
  %396 = vmatpush1.bf16.msra.mxu0 %v236
  %397 = vmatprep.subr.bf16.mxu0 0
  %398 = vmatpush1.bf16.msra.mxu0 %v239
  %399 = vmatprep.subr.bf16.mxu0 0
  %400 = vmatpush1.bf16.msra.mxu0 %v242
  %401 = vmatprep.subr.bf16.mxu0 0
  %402 = vmatpush1.bf16.msra.mxu0 %v245
  %403 = vmatprep.subr.bf16.mxu0 0
  %404 = vmatpush1.bf16.msra.mxu0 %v248
  %405 = vmatprep.subr.bf16.mxu0 0
  %406 = vmatpush1.bf16.msra.mxu0 %v251
  %407 = vmatprep.subr.bf16.mxu0 0
  %408 = vmatpush1.bf16.msra.mxu0 %v254
  %409 = vmatprep.subr.bf16.mxu0 0
  %410 = vmatpush1.bf16.msra.mxu0 %v257
  %411 = vmatprep.subr.bf16.mxu0 0
  %412 = vmatpush1.bf16.msra.mxu0 0
  %413 = vmatprep.subr.bf16.mxu0 0
  %414 = vmatpush1.bf16.msra.mxu0 0
  %415 = vmatprep.subr.bf16.mxu0 0
  %416 = vmatpush1.bf16.msra.mxu0 0
  %417 = vmatprep.subr.bf16.mxu0 0
  %418 = vmatpush1.bf16.msra.mxu0 0
  %419 = vmatprep.subr.bf16.mxu0 0
  %420 = vmatpush1.bf16.msra.mxu0 0
  %421 = vmatprep.subr.bf16.mxu0 0
  %422 = vmatpush1.bf16.msra.mxu0 0
  %423 = vmatprep.subr.bf16.mxu0 0
  %424 = vmatpush1.bf16.msra.mxu0 0
  %425 = vmatprep.subr.bf16.mxu0 0
  %426 = vmatpush1.bf16.msra.mxu0 0
  %427 = vmatprep.mubr.bf16.mxu0 0
  %428 = vmatmul.mubr.bf16.gmra.mrb[0].mxu0 %v114
  %v429 = vpop.f32.mrb[0].mxu0
  %v430 = vadd.f32 0.0, %v429
  %v431 = vpop.f32.mrb[0].mxu0
  %v432 = vpop.f32.mrb[0].mxu0
  %v433 = vadd.f32 0.0, %v432
  %v434 = vpop.f32.mrb[0].mxu0
  %435 = vmatprep.mubr.bf16.mxu0 0
  %436 = vmatmul.mubr.bf16.gmra.mrb[0].mxu0 %v115
  %v437 = vpop.f32.mrb[0].mxu0
  %v438 = vadd.f32 0.0, %v437
  %v439 = vpop.f32.mrb[0].mxu0
  %v440 = vpop.f32.mrb[0].mxu0
  %v441 = vadd.f32 0.0, %v440
  %v442 = vpop.f32.mrb[0].mxu0
  %443 = vmatprep.mubr.bf16.mxu0 0
  %444 = vmatmul.mubr.bf16.gmra.mrb[0].mxu0 %v116
  %v445 = vpop.f32.mrb[0].mxu0
  %v446 = vadd.f32 0.0, %v445
  %v447 = vpop.f32.mrb[0].mxu0
  %v448 = vpop.f32.mrb[0].mxu0
  %v449 = vadd.f32 0.0, %v448
  %v450 = vpop.f32.mrb[0].mxu0
  %451 = vmatprep.mubr.bf16.mxu0 0
  %452 = vmatmul.mubr.bf16.gmra.mrb[0].mxu0 %v117
  %v453 = vpop.f32.mrb[0].mxu0
  %v454 = vadd.f32 0.0, %v453
  %v455 = vpop.f32.mrb[0].mxu0
  %v456 = vpop.f32.mrb[0].mxu0
  %v457 = vadd.f32 0.0, %v456
  %v458 = vpop.f32.mrb[0].mxu0
  %459 = vmatprep.mubr.bf16.mxu0 0
  %460 = vmatmul.mubr.bf16.gmra.mrb[0].mxu0 %v118
  %v461 = vpop.f32.mrb[0].mxu0
  %v462 = vadd.f32 0.0, %v461
  %v463 = vpop.f32.mrb[0].mxu0
  %v464 = vpop.f32.mrb[0].mxu0
  %v465 = vadd.f32 0.0, %v464
  %v466 = vpop.f32.mrb[0].mxu0
  %467 = vmatprep.mubr.bf16.mxu0 0
  %468 = vmatmul.mubr.bf16.gmra.mrb[0].mxu0 %v119
  %v469 = vpop.f32.mrb[0].mxu0
  %v470 = vadd.f32 0.0, %v469
  %v471 = vpop.f32.mrb[0].mxu0
  %v472 = vpop.f32.mrb[0].mxu0
  %v473 = vadd.f32 0.0, %v472
  %v474 = vpop.f32.mrb[0].mxu0
  %475 = vmatprep.mubr.bf16.mxu0 0
  %476 = vmatmul.mubr.bf16.gmra.mrb[0].mxu0 %v120
  %v477 = vpop.f32.mrb[0].mxu0
  %v478 = vadd.f32 0.0, %v477
  %v479 = vpop.f32.mrb[0].mxu0
  %v480 = vpop.f32.mrb[0].mxu0
  %v481 = vadd.f32 0.0, %v480
  %v482 = vpop.f32.mrb[0].mxu0
  %483 = vmatprep.mubr.bf16.mxu0 0
  %484 = vmatmul.mubr.bf16.gmra.mrb[0].mxu0 %v121
  %v485 = vpop.f32.mrb[0].mxu0
  %v486 = vadd.f32 0.0, %v485
  %v487 = vpop.f32.mrb[0].mxu0
  %v488 = vpop.f32.mrb[0].mxu0
  %v489 = vadd.f32 0.0, %v488
  %v490 = vpop.f32.mrb[0].mxu0
  %491 = vdwg.mxu0
  %v492 = vpack.c.bf16 %v321, %v317
  %v493 = vpack.c.bf16 %v323, %v319
  %v494 = vpack.c.bf16 %v433, %v430
  %v495 = vpack.c.bf16 %v331, %v327
  %v496 = vpack.c.bf16 %v333, %v329
  %v497 = vpack.c.bf16 %v441, %v438
  %v498 = vpack.c.bf16 %v341, %v337
  %v499 = vpack.c.bf16 %v343, %v339
  %v500 = vpack.c.bf16 %v449, %v446
  %v501 = vpack.c.bf16 %v351, %v347
  %v502 = vpack.c.bf16 %v353, %v349
  %v503 = vpack.c.bf16 %v457, %v454
  %v504 = vpack.c.bf16 %v361, %v357
  %v505 = vpack.c.bf16 %v363, %v359
  %v506 = vpack.c.bf16 %v465, %v462
  %v507 = vpack.c.bf16 %v371, %v367
  %v508 = vpack.c.bf16 %v373, %v369
  %v509 = vpack.c.bf16 %v473, %v470
  %v510 = vpack.c.bf16 %v381, %v377
  %v511 = vpack.c.bf16 %v383, %v379
  %v512 = vpack.c.bf16 %v481, %v478
  %v513 = vpack.c.bf16 %v391, %v387
  %v514 = vpack.c.bf16 %v393, %v389
  %v515 = vpack.c.bf16 %v489, %v486
  %v540 = vunpack.c.l.b16 %v492
  %v541 = vunpack.c.l.b16 %v493
  %v542 = vunpack.c.l.b16 %v494
  %v543 = vunpack.c.h.b16 %v492
  %v544 = vunpack.c.h.b16 %v493
  %v545 = vunpack.c.h.b16 %v494
  %v546 = vunpack.c.l.b16 %v495
  %v547 = vunpack.c.l.b16 %v496
  %v548 = vunpack.c.l.b16 %v497
  %v549 = vunpack.c.h.b16 %v495
  %v550 = vunpack.c.h.b16 %v496
  %v551 = vunpack.c.h.b16 %v497
  %v552 = vunpack.c.l.b16 %v498
  %v553 = vunpack.c.l.b16 %v499
  %v554 = vunpack.c.l.b16 %v500
  %v555 = vunpack.c.h.b16 %v498
  %v556 = vunpack.c.h.b16 %v499
  %v557 = vunpack.c.h.b16 %v500
  %v558 = vunpack.c.l.b16 %v501
  %v559 = vunpack.c.l.b16 %v502
  %v560 = vunpack.c.l.b16 %v503
  %v561 = vunpack.c.h.b16 %v501
  %v562 = vunpack.c.h.b16 %v502
  %v563 = vunpack.c.h.b16 %v503
  %v564 = vunpack.c.l.b16 %v504
  %v565 = vunpack.c.l.b16 %v505
  %v566 = vunpack.c.l.b16 %v506
  %v567 = vunpack.c.h.b16 %v504
  %v568 = vunpack.c.h.b16 %v505
  %v569 = vunpack.c.h.b16 %v506
  %v570 = vunpack.c.l.b16 %v507
  %v571 = vunpack.c.l.b16 %v508
  %v572 = vunpack.c.l.b16 %v509
  %v573 = vunpack.c.h.b16 %v507
  %v574 = vunpack.c.h.b16 %v508
  %v575 = vunpack.c.h.b16 %v509
  %v576 = vunpack.c.l.b16 %v510
  %v577 = vunpack.c.l.b16 %v511
  %v578 = vunpack.c.l.b16 %v512
  %v579 = vunpack.c.h.b16 %v510
  %v580 = vunpack.c.h.b16 %v511
  %v581 = vunpack.c.h.b16 %v512
  %v582 = vunpack.c.l.b16 %v513
  %v583 = vunpack.c.l.b16 %v514
  %v584 = vunpack.c.l.b16 %v515
  %v585 = vunpack.c.h.b16 %v513
  %v586 = vunpack.c.h.b16 %v514
  %v587 = vunpack.c.h.b16 %v515
  %v588 = vpack.c.b16 %v541, %v540
  %v589 = vpack.c.b16 %v542, %v542
  %v590 = vpack.c.b16 %v544, %v543
  %v591 = vpack.c.b16 %v545, %v545
  %v592 = vpack.c.b16 %v547, %v546
  %v593 = vpack.c.b16 %v548, %v548
  %v594 = vpack.c.b16 %v550, %v549
  %v595 = vpack.c.b16 %v551, %v551
  %v596 = vpack.c.b16 %v553, %v552
  %v597 = vpack.c.b16 %v554, %v554
  %v598 = vpack.c.b16 %v556, %v555
  %v599 = vpack.c.b16 %v557, %v557
  %v600 = vpack.c.b16 %v559, %v558
  %v601 = vpack.c.b16 %v560, %v560
  %v602 = vpack.c.b16 %v562, %v561
  %v603 = vpack.c.b16 %v563, %v563
  %v604 = vpack.c.b16 %v565, %v564
  %v605 = vpack.c.b16 %v566, %v566
  %v606 = vpack.c.b16 %v568, %v567
  %v607 = vpack.c.b16 %v569, %v569
  %v608 = vpack.c.b16 %v571, %v570
  %v609 = vpack.c.b16 %v572, %v572
  %v610 = vpack.c.b16 %v574, %v573
  %v611 = vpack.c.b16 %v575, %v575
  %v612 = vpack.c.b16 %v577, %v576
  %v613 = vpack.c.b16 %v578, %v578
  %v614 = vpack.c.b16 %v580, %v579
  %v615 = vpack.c.b16 %v581, %v581
  %v616 = vpack.c.b16 %v583, %v582
  %v617 = vpack.c.b16 %v584, %v584
  %v618 = vpack.c.b16 %v586, %v585
  %v619 = vpack.c.b16 %v587, %v587
  %652 = vst [vmem:[%s4] sm:$0xff] %v588
  %653 = vst [vmem:[%s4 + $0x8] sm:$0xf] %v589
  %654 = vst [vmem:[%s4 + $0xc] sm:$0xff] %v590
  %655 = vst [vmem:[%s4 + $0x14] sm:$0xf] %v591
  %656 = vst [vmem:[%s4 + $0x18] sm:$0xff] %v592
  %657 = vst [vmem:[%s4 + $0x20] sm:$0xf] %v593
  %658 = vst [vmem:[%s4 + $0x24] sm:$0xff] %v594
  %659 = vst [vmem:[%s4 + $0x2c] sm:$0xf] %v595
  %660 = vst [vmem:[%s4 + $0x30] sm:$0xff] %v596
  %661 = vst [vmem:[%s4 + $0x38] sm:$0xf] %v597
  %662 = vst [vmem:[%s4 + $0x3c] sm:$0xff] %v598
  %663 = vst [vmem:[%s4 + $0x44] sm:$0xf] %v599
  %664 = vst [vmem:[%s4 + $0x48] sm:$0xff] %v600
  %665 = vst [vmem:[%s4 + $0x50] sm:$0xf] %v601
  %666 = vst [vmem:[%s4 + $0x54] sm:$0xff] %v602
  %667 = vst [vmem:[%s4 + $0x5c] sm:$0xf] %v603
  %668 = vst [vmem:[%s4 + $0x60] sm:$0xff] %v604
  %669 = vst [vmem:[%s4 + $0x68] sm:$0xf] %v605
  %670 = vst [vmem:[%s4 + $0x6c] sm:$0xff] %v606
  %671 = vst [vmem:[%s4 + $0x74] sm:$0xf] %v607
  %672 = vst [vmem:[%s4 + $0x78] sm:$0xff] %v608
  %673 = vst [vmem:[%s4 + $0x80] sm:$0xf] %v609
  %674 = vst [vmem:[%s4 + $0x84] sm:$0xff] %v610
  %675 = vst [vmem:[%s4 + $0x8c] sm:$0xf] %v611
  %676 = vst [vmem:[%s4 + $0x90] sm:$0xff] %v612
  %677 = vst [vmem:[%s4 + $0x98] sm:$0xf] %v613
  %678 = vst [vmem:[%s4 + $0x9c] sm:$0xff] %v614
  %679 = vst [vmem:[%s4 + $0xa4] sm:$0xf] %v615
  %680 = vst [vmem:[%s4 + $0xa8] sm:$0xff] %v616
  %681 = vst [vmem:[%s4 + $0xb0] sm:$0xf] %v617
  %682 = vst [vmem:[%s4 + $0xb4] sm:$0xff] %v618
  %683 = vst [vmem:[%s4 + $0xbc] sm:$0xf] %v619
  %v684 = vadd.f32 %v317, %v321
  %v685 = vadd.f32 %v684, %v327
  %v686 = vadd.f32 %v685, %v331
  %v687 = vadd.f32 %v686, %v337
  %v688 = vadd.f32 %v687, %v341
  %v689 = vadd.f32 %v688, %v347
  %v690 = vadd.f32 %v689, %v351
  %v691 = vadd.f32 %v690, %v357
  %v692 = vadd.f32 %v691, %v361
  %v693 = vadd.f32 %v692, %v367
  %v694 = vadd.f32 %v693, %v371
  %v695 = vadd.f32 %v694, %v377
  %v696 = vadd.f32 %v695, %v381
  %v697 = vadd.f32 %v696, %v387
  %v698 = vadd.f32 %v697, %v391
  %v699 = vrot.slane %v698, 4
  %v700 = vadd.f32 %v698, %v699
  %v701 = vrot.slane %v700, 2
  %v702 = vadd.f32 %v700, %v701
  %v703 = vrot.slane %v702, 1
  %v704 = vadd.f32 %v702, %v703
  %v705 = vadd.f32 %v319, %v323
  %v706 = vadd.f32 %v705, %v329
  %v707 = vadd.f32 %v706, %v333
  %v708 = vadd.f32 %v707, %v339
  %v709 = vadd.f32 %v708, %v343
  %v710 = vadd.f32 %v709, %v349
  %v711 = vadd.f32 %v710, %v353
  %v712 = vadd.f32 %v711, %v359
  %v713 = vadd.f32 %v712, %v363
  %v714 = vadd.f32 %v713, %v369
  %v715 = vadd.f32 %v714, %v373
  %v716 = vadd.f32 %v715, %v379
  %v717 = vadd.f32 %v716, %v383
  %v718 = vadd.f32 %v717, %v389
  %v719 = vadd.f32 %v718, %v393
  %v720 = vrot.slane %v719, 4
  %v721 = vadd.f32 %v719, %v720
  %v722 = vrot.slane %v721, 2
  %v723 = vadd.f32 %v721, %v722
  %v724 = vrot.slane %v723, 1
  %v725 = vadd.f32 %v723, %v724
  %v726 = vadd.f32 %v430, %v433
  %v727 = vadd.f32 %v726, %v438
  %v728 = vadd.f32 %v727, %v441
  %v729 = vadd.f32 %v728, %v446
  %v730 = vadd.f32 %v729, %v449
  %v731 = vadd.f32 %v730, %v454
  %v732 = vadd.f32 %v731, %v457
  %v733 = vadd.f32 %v732, %v462
  %v734 = vadd.f32 %v733, %v465
  %v735 = vadd.f32 %v734, %v470
  %v736 = vadd.f32 %v735, %v473
  %v737 = vadd.f32 %v736, %v478
  %v738 = vadd.f32 %v737, %v481
  %v739 = vadd.f32 %v738, %v486
  %v740 = vadd.f32 %v739, %v489
  %v741 = vrot.slane %v740, 4
  %v742 = vadd.f32 %v740, %v741
  %v743 = vrot.slane %v742, 2
  %v744 = vadd.f32 %v742, %v743
  %v745 = vrot.slane %v744, 1
  %v746 = vadd.f32 %v744, %v745
  %v750 = vcombine.low %v704, %v725
  %v752 = vunpack.c.l.s4 1966171168
  %v753 = vunpack.c.0.s8 %v752
  %v754 = vlaneseq
  %v755 = vshrl.u32 %v754, 7
  %v756 = vsub.s32 %v753, %v755
  %v757 = vrot.slane %v750, %v756
  %v759 = vunpack.c.l.s4 1966171168
  %v760 = vunpack.c.0.s8 %v759
  %v761 = vlaneseq
  %v762 = vshrl.u32 %v761, 7
  %v763 = vsub.s32 %v760, %v762
  %v764 = vrot.slane %v746, %v763
  %v765 = vcombine.low %v757, %v764
  %v767 = vunpack.c.l.s4 1966171168
  %v768 = vunpack.c.0.s8 %v767
  %v769 = vlaneseq
  %v770 = vshrl.u32 %v769, 7
  %v771 = vsub.s32 %v768, %v770
  %v772 = vrot.slane %v765, %v771
  %v774 = vlaneseq
  %vm775 = vcmp.ge.s32.totalorder %v774, 0
  %vm776 = vcmp.lt.s32.totalorder %v774, 384
  %vm777 = vmand %vm775, %vm776
  %778 = vst.msk [vmem:[%s5] ss:$2 sm:$0x7] %vm777, %v772
  %v779 = vmul.f32 %v317, %v317
  %v780 = vmul.f32 %v319, %v319
  %v781 = vmul.f32 %v430, %v430
  %v782 = vmul.f32 %v321, %v321
  %v783 = vmul.f32 %v323, %v323
  %v784 = vmul.f32 %v433, %v433
  %v785 = vmul.f32 %v327, %v327
  %v786 = vmul.f32 %v329, %v329
  %v787 = vmul.f32 %v438, %v438
  %v788 = vmul.f32 %v331, %v331
  %v789 = vmul.f32 %v333, %v333
  %v790 = vmul.f32 %v441, %v441
  %v791 = vmul.f32 %v337, %v337
  %v792 = vmul.f32 %v339, %v339
  %v793 = vmul.f32 %v446, %v446
  %v794 = vmul.f32 %v341, %v341
  %v795 = vmul.f32 %v343, %v343
  %v796 = vmul.f32 %v449, %v449
  %v797 = vmul.f32 %v347, %v347
  %v798 = vmul.f32 %v349, %v349
  %v799 = vmul.f32 %v454, %v454
  %v800 = vmul.f32 %v351, %v351
  %v801 = vmul.f32 %v353, %v353
  %v802 = vmul.f32 %v457, %v457
  %v803 = vmul.f32 %v357, %v357
  %v804 = vmul.f32 %v359, %v359
  %v805 = vmul.f32 %v462, %v462
  %v806 = vmul.f32 %v361, %v361
  %v807 = vmul.f32 %v363, %v363
  %v808 = vmul.f32 %v465, %v465
  %v809 = vmul.f32 %v367, %v367
  %v810 = vmul.f32 %v369, %v369
  %v811 = vmul.f32 %v470, %v470
  %v812 = vmul.f32 %v371, %v371
  %v813 = vmul.f32 %v373, %v373
  %v814 = vmul.f32 %v473, %v473
  %v815 = vmul.f32 %v377, %v377
  %v816 = vmul.f32 %v379, %v379
  %v817 = vmul.f32 %v478, %v478
  %v818 = vmul.f32 %v381, %v381
  %v819 = vmul.f32 %v383, %v383
  %v820 = vmul.f32 %v481, %v481
  %v821 = vmul.f32 %v387, %v387
  %v822 = vmul.f32 %v389, %v389
  %v823 = vmul.f32 %v486, %v486
  %v824 = vmul.f32 %v391, %v391
  %v825 = vmul.f32 %v393, %v393
  %v826 = vmul.f32 %v489, %v489
  %v827 = vadd.f32 %v779, %v782
  %v828 = vadd.f32 %v827, %v785
  %v829 = vadd.f32 %v828, %v788
  %v830 = vadd.f32 %v829, %v791
  %v831 = vadd.f32 %v830, %v794
  %v832 = vadd.f32 %v831, %v797
  %v833 = vadd.f32 %v832, %v800
  %v834 = vadd.f32 %v833, %v803
  %v835 = vadd.f32 %v834, %v806
  %v836 = vadd.f32 %v835, %v809
  %v837 = vadd.f32 %v836, %v812
  %v838 = vadd.f32 %v837, %v815
  %v839 = vadd.f32 %v838, %v818
  %v840 = vadd.f32 %v839, %v821
  %v841 = vadd.f32 %v840, %v824
  %v842 = vrot.slane %v841, 4
  %v843 = vadd.f32 %v841, %v842
  %v844 = vrot.slane %v843, 2
  %v845 = vadd.f32 %v843, %v844
  %v846 = vrot.slane %v845, 1
  %v847 = vadd.f32 %v845, %v846
  %v848 = vadd.f32 %v780, %v783
  %v849 = vadd.f32 %v848, %v786
  %v850 = vadd.f32 %v849, %v789
  %v851 = vadd.f32 %v850, %v792
  %v852 = vadd.f32 %v851, %v795
  %v853 = vadd.f32 %v852, %v798
  %v854 = vadd.f32 %v853, %v801
  %v855 = vadd.f32 %v854, %v804
  %v856 = vadd.f32 %v855, %v807
  %v857 = vadd.f32 %v856, %v810
  %v858 = vadd.f32 %v857, %v813
  %v859 = vadd.f32 %v858, %v816
  %v860 = vadd.f32 %v859, %v819
  %v861 = vadd.f32 %v860, %v822
  %v862 = vadd.f32 %v861, %v825
  %v863 = vrot.slane %v862, 4
  %v864 = vadd.f32 %v862, %v863
  %v865 = vrot.slane %v864, 2
  %v866 = vadd.f32 %v864, %v865
  %v867 = vrot.slane %v866, 1
  %v868 = vadd.f32 %v866, %v867
  %v869 = vadd.f32 %v781, %v784
  %v870 = vadd.f32 %v869, %v787
  %v871 = vadd.f32 %v870, %v790
  %v872 = vadd.f32 %v871, %v793
  %v873 = vadd.f32 %v872, %v796
  %v874 = vadd.f32 %v873, %v799
  %v875 = vadd.f32 %v874, %v802
  %v876 = vadd.f32 %v875, %v805
  %v877 = vadd.f32 %v876, %v808
  %v878 = vadd.f32 %v877, %v811
  %v879 = vadd.f32 %v878, %v814
  %v880 = vadd.f32 %v879, %v817
  %v881 = vadd.f32 %v880, %v820
  %v882 = vadd.f32 %v881, %v823
  %v883 = vadd.f32 %v882, %v826
  %v884 = vrot.slane %v883, 4
  %v885 = vadd.f32 %v883, %v884
  %v886 = vrot.slane %v885, 2
  %v887 = vadd.f32 %v885, %v886
  %v888 = vrot.slane %v887, 1
  %v889 = vadd.f32 %v887, %v888
  %v893 = vcombine.low %v847, %v868
  %v895 = vunpack.c.l.s4 1966171168
  %v896 = vunpack.c.0.s8 %v895
  %v897 = vlaneseq
  %v898 = vshrl.u32 %v897, 7
  %v899 = vsub.s32 %v896, %v898
  %v900 = vrot.slane %v893, %v899
  %v902 = vunpack.c.l.s4 1966171168
  %v903 = vunpack.c.0.s8 %v902
  %v904 = vlaneseq
  %v905 = vshrl.u32 %v904, 7
  %v906 = vsub.s32 %v903, %v905
  %v907 = vrot.slane %v889, %v906
  %v908 = vcombine.low %v900, %v907
  %v910 = vunpack.c.l.s4 1966171168
  %v911 = vunpack.c.0.s8 %v910
  %v912 = vlaneseq
  %v913 = vshrl.u32 %v912, 7
  %v914 = vsub.s32 %v911, %v913
  %v915 = vrot.slane %v908, %v914
  %s917 = scalar_lea.vmem %s5, 1
  %918 = vst.msk [vmem:[%s917] ss:$2 sm:$0x7] %vm777, %v915
  // Predicated region
  $region18: #{stcae_decoder_forward.7} parent=0 // pred_check
    _
  $region19: #{stcae_decoder_forward.7} parent=0 // pred_check_branch
    %920 = sbr.rel (0) target = $region21
  $region20: #{stcae_decoder_forward.7} parent=0 // pred_region
    _
  $region21: #{stcae_decoder_forward.7} parent=0 // pred_fallthru
    _
  // Predicated region
  $region22: #{stcae_decoder_forward.7} parent=0 // pred_check
    _
  $region23: #{stcae_decoder_forward.7} parent=0 // pred_check_branch
    %922 = sbr.rel (0) target = $region25
  $region24: #{stcae_decoder_forward.7} parent=0 // pred_region
    _
  $region25: #{stcae_decoder_forward.7} parent=0 // pred_fallthru
    _
  // Predicated region
  $region26: #{stcae_decoder_forward.7} parent=0 // pred_check
    _
  $region27: #{stcae_decoder_forward.7} parent=0 // pred_check_branch
    %924 = sbr.rel (0) target = $region29
  $region28: #{stcae_decoder_forward.7} parent=0 // pred_region
    _
  $region29: #{stcae_decoder_forward.7} parent=0 // pred_fallthru
    _
  // Predicated region
  $region30: #{stcae_decoder_forward.7} parent=0 // pred_check
    _
  $region31: #{stcae_decoder_forward.7} parent=0 // pred_check_branch
    %926 = sbr.rel (0) target = $region33
  $region32: #{stcae_decoder_forward.7} parent=0 // pred_region
    _
  $region33: #{stcae_decoder_forward.7} parent=0 // pred_fallthru
    _

// kernel: stcae_decoder_forward.8
$region0: #{stcae_decoder_forward.8}
  #allocation0 [shape = 'u32[]', space=smem, size = 0x4, offset = 0x4, fixed_abs, tag = 'smem constant byte address 0x4 - core index']
  #allocation1 [shape = 'u32[144,128]{1,0:T(1,128)}', space=vmem, size = 0x12000, scoped, tag = 'internal scratch']
  %s0 = inlined_call_operand.vmem [shape: bf16[512,96], index: 0, kind: input, shape index: {}]
  %s1 = inlined_call_operand.vmem [shape: f32[1,96], index: 1, kind: input, shape index: {}]
  %s2 = inlined_call_operand.vmem [shape: f32[1,96], index: 2, kind: input, shape index: {}]
  %s3 = inlined_call_operand.vmem [shape: bf16[96,384], index: 3, kind: input, shape index: {}]
  %s4 = inlined_call_operand.vmem [shape: bf16[512,384], index: 4, kind: output, shape index: {0}]
  %s5 = inlined_call_operand.vmem [shape: f32[1,2,384], index: 5, kind: output, shape index: {1}]
  %6 = xla_tuple %s4, %s5
  %s7 = sld [smem:[#allocation0]]
  $region34: #{stcae_decoder_forward.8} parent=0
    _
  %s9 = ssub.s32 1, %s7
  %s10 = scalar_select 0, %s9, %s7
  // Predicated region
  $region2: #{stcae_decoder_forward.8} parent=0 // pred_check
    _
  $region3: #{stcae_decoder_forward.8} parent=0 // pred_check_branch
    %12 = sbr.rel (0) target = $region5
  $region4: #{stcae_decoder_forward.8} parent=0 // pred_region
    _
  $region5: #{stcae_decoder_forward.8} parent=0 // pred_fallthru
    _
  // Predicated region
  $region6: #{stcae_decoder_forward.8} parent=0 // pred_check
    _
  $region7: #{stcae_decoder_forward.8} parent=0 // pred_check_branch
    %14 = sbr.rel (0) target = $region9
  $region8: #{stcae_decoder_forward.8} parent=0 // pred_region
    _
  $region9: #{stcae_decoder_forward.8} parent=0 // pred_fallthru
    _
  // Predicated region
  $region10: #{stcae_decoder_forward.8} parent=0 // pred_check
    _
  $region11: #{stcae_decoder_forward.8} parent=0 // pred_check_branch
    %16 = sbr.rel (0) target = $region13
  $region12: #{stcae_decoder_forward.8} parent=0 // pred_region
    _
  $region13: #{stcae_decoder_forward.8} parent=0 // pred_fallthru
    _
  // Predicated region
  $region14: #{stcae_decoder_forward.8} parent=0 // pred_check
    _
  $region15: #{stcae_decoder_forward.8} parent=0 // pred_check_branch
    %18 = sbr.rel (0) target = $region17
  $region16: #{stcae_decoder_forward.8} parent=0 // pred_region
    _
  $region17: #{stcae_decoder_forward.8} parent=0 // pred_fallthru
    _
  %v20 = vld [vmem:[%s0] sm:$0xf]
  %v21 = vld [vmem:[%s0 + $0x4] sm:$0xf]
  %v22 = vld [vmem:[%s0 + $0x8] sm:$0xf]
  %v23 = vld [vmem:[%s0 + $0xc] sm:$0xf]
  %v24 = vld [vmem:[%s0 + $0x10] sm:$0xf]
  %v25 = vld [vmem:[%s0 + $0x14] sm:$0xf]
  %v26 = vld [vmem:[%s0 + $0x18] sm:$0xf]
  %v27 = vld [vmem:[%s0 + $0x1c] sm:$0xf]
  %v28 = vld [vmem:[%s0 + $0x20] sm:$0xf]
  %v29 = vld [vmem:[%s0 + $0x24] sm:$0xf]
  %v30 = vld [vmem:[%s0 + $0x28] sm:$0xf]
  %v31 = vld [vmem:[%s0 + $0x2c] sm:$0xf]
  %v32 = vld [vmem:[%s0 + $0x30] sm:$0xf]
  %v33 = vld [vmem:[%s0 + $0x34] sm:$0xf]
  %v34 = vld [vmem:[%s0 + $0x38] sm:$0xf]
  %v35 = vld [vmem:[%s0 + $0x3c] sm:$0xf]
  %v36 = vld [vmem:[%s0 + $0x40] sm:$0xf]
  %v37 = vld [vmem:[%s0 + $0x44] sm:$0xf]
  %v38 = vld [vmem:[%s0 + $0x48] sm:$0xf]
  %v39 = vld [vmem:[%s0 + $0x4c] sm:$0xf]
  %v40 = vld [vmem:[%s0 + $0x50] sm:$0xf]
  %v41 = vld [vmem:[%s0 + $0x54] sm:$0xf]
  %v42 = vld [vmem:[%s0 + $0x58] sm:$0xf]
  %v43 = vld [vmem:[%s0 + $0x5c] sm:$0xf]
  %v44 = vld [vmem:[%s0 + $0x60] sm:$0xf]
  %v45 = vld [vmem:[%s0 + $0x64] sm:$0xf]
  %v46 = vld [vmem:[%s0 + $0x68] sm:$0xf]
  %v47 = vld [vmem:[%s0 + $0x6c] sm:$0xf]
  %v48 = vld [vmem:[%s0 + $0x70] sm:$0xf]
  %v49 = vld [vmem:[%s0 + $0x74] sm:$0xf]
  %v50 = vld [vmem:[%s0 + $0x78] sm:$0xf]
  %v51 = vld [vmem:[%s0 + $0x7c] sm:$0xf]
  %v52 = vld [vmem:[%s0 + $0x80] sm:$0xf]
  %v53 = vld [vmem:[%s0 + $0x84] sm:$0xf]
  %v54 = vld [vmem:[%s0 + $0x88] sm:$0xf]
  %v55 = vld [vmem:[%s0 + $0x8c] sm:$0xf]
  %v56 = vld [vmem:[%s0 + $0x90] sm:$0xf]
  %v57 = vld [vmem:[%s0 + $0x94] sm:$0xf]
  %v58 = vld [vmem:[%s0 + $0x98] sm:$0xf]
  %v59 = vld [vmem:[%s0 + $0x9c] sm:$0xf]
  %v60 = vld [vmem:[%s0 + $0xa0] sm:$0xf]
  %v61 = vld [vmem:[%s0 + $0xa4] sm:$0xf]
  %v62 = vld [vmem:[%s0 + $0xa8] sm:$0xf]
  %v63 = vld [vmem:[%s0 + $0xac] sm:$0xf]
  %v64 = vld [vmem:[%s0 + $0xb0] sm:$0xf]
  %v65 = vld [vmem:[%s0 + $0xb4] sm:$0xf]
  %v66 = vld [vmem:[%s0 + $0xb8] sm:$0xf]
  %v67 = vld [vmem:[%s0 + $0xbc] sm:$0xf]
  %v68 = vld [vmem:[%s0 + $0xc0] sm:$0xf]
  %v69 = vld [vmem:[%s0 + $0xc4] sm:$0xf]
  %v70 = vld [vmem:[%s0 + $0xc8] sm:$0xf]
  %v71 = vld [vmem:[%s0 + $0xcc] sm:$0xf]
  %v72 = vld [vmem:[%s0 + $0xd0] sm:$0xf]
  %v73 = vld [vmem:[%s0 + $0xd4] sm:$0xf]
  %v74 = vld [vmem:[%s0 + $0xd8] sm:$0xf]
  %v75 = vld [vmem:[%s0 + $0xdc] sm:$0xf]
  %v76 = vld [vmem:[%s0 + $0xe0] sm:$0xf]
  %v77 = vld [vmem:[%s0 + $0xe4] sm:$0xf]
  %v78 = vld [vmem:[%s0 + $0xe8] sm:$0xf]
  %v79 = vld [vmem:[%s0 + $0xec] sm:$0xf]
  %v80 = vld [vmem:[%s0 + $0xf0] sm:$0xf]
  %v81 = vld [vmem:[%s0 + $0xf4] sm:$0xf]
  %v82 = vld [vmem:[%s0 + $0xf8] sm:$0xf]
  %v83 = vld [vmem:[%s0 + $0xfc] sm:$0xf]
  %v84 = vunpack.c.l.bf16 %v20
  %v85 = vunpack.c.l.bf16 %v21
  %v86 = vunpack.c.l.bf16 %v22
  %v87 = vunpack.c.l.bf16 %v23
  %v88 = vunpack.c.l.bf16 %v24
  %v89 = vunpack.c.l.bf16 %v25
  %v90 = vunpack.c.l.bf16 %v26
  %v91 = vunpack.c.l.bf16 %v27
  %v92 = vunpack.c.l.bf16 %v28
  %v93 = vunpack.c.l.bf16 %v29
  %v94 = vunpack.c.l.bf16 %v30
  %v95 = vunpack.c.l.bf16 %v31
  %v96 = vunpack.c.l.bf16 %v32
  %v97 = vunpack.c.l.bf16 %v33
  %v98 = vunpack.c.l.bf16 %v34
  %v99 = vunpack.c.l.bf16 %v35
  %v100 = vunpack.c.l.bf16 %v36
  %v101 = vunpack.c.l.bf16 %v37
  %v102 = vunpack.c.l.bf16 %v38
  %v103 = vunpack.c.l.bf16 %v39
  %v104 = vunpack.c.l.bf16 %v40
  %v105 = vunpack.c.l.bf16 %v41
  %v106 = vunpack.c.l.bf16 %v42
  %v107 = vunpack.c.l.bf16 %v43
  %v108 = vunpack.c.l.bf16 %v44
  %v109 = vunpack.c.l.bf16 %v45
  %v110 = vunpack.c.l.bf16 %v46
  %v111 = vunpack.c.l.bf16 %v47
  %v112 = vunpack.c.l.bf16 %v48
  %v113 = vunpack.c.l.bf16 %v49
  %v114 = vunpack.c.l.bf16 %v50
  %v115 = vunpack.c.l.bf16 %v51
  %v116 = vunpack.c.l.bf16 %v52
  %v117 = vunpack.c.l.bf16 %v53
  %v118 = vunpack.c.l.bf16 %v54
  %v119 = vunpack.c.l.bf16 %v55
  %v120 = vunpack.c.l.bf16 %v56
  %v121 = vunpack.c.l.bf16 %v57
  %v122 = vunpack.c.l.bf16 %v58
  %v123 = vunpack.c.l.bf16 %v59
  %v124 = vunpack.c.l.bf16 %v60
  %v125 = vunpack.c.l.bf16 %v61
  %v126 = vunpack.c.l.bf16 %v62
  %v127 = vunpack.c.l.bf16 %v63
  %v128 = vunpack.c.l.bf16 %v64
  %v129 = vunpack.c.l.bf16 %v65
  %v130 = vunpack.c.l.bf16 %v66
  %v131 = vunpack.c.l.bf16 %v67
  %v132 = vunpack.c.l.bf16 %v68
  %v133 = vunpack.c.l.bf16 %v69
  %v134 = vunpack.c.l.bf16 %v70
  %v135 = vunpack.c.l.bf16 %v71
  %v136 = vunpack.c.l.bf16 %v72
  %v137 = vunpack.c.l.bf16 %v73
  %v138 = vunpack.c.l.bf16 %v74
  %v139 = vunpack.c.l.bf16 %v75
  %v140 = vunpack.c.l.bf16 %v76
  %v141 = vunpack.c.l.bf16 %v77
  %v142 = vunpack.c.l.bf16 %v78
  %v143 = vunpack.c.l.bf16 %v79
  %v144 = vunpack.c.l.bf16 %v80
  %v145 = vunpack.c.l.bf16 %v81
  %v146 = vunpack.c.l.bf16 %v82
  %v147 = vunpack.c.l.bf16 %v83
  %v148 = vld [vmem:[%s1] sm:$0x1]
  %v150 = vlaneseq
  %v151 = vshrl.u32 %v150, 7
  %v152 = vsub.s32 0, %v151
  %v153 = vrot.slane %v148, %v152
  %v155 = vmul.f32 %v84, %v153
  %v156 = vmul.f32 %v85, %v153
  %v157 = vmul.f32 %v86, %v153
  %v158 = vmul.f32 %v87, %v153
  %v159 = vmul.f32 %v88, %v153
  %v160 = vmul.f32 %v89, %v153
  %v161 = vmul.f32 %v90, %v153
  %v162 = vmul.f32 %v91, %v153
  %v163 = vmul.f32 %v92, %v153
  %v164 = vmul.f32 %v93, %v153
  %v165 = vmul.f32 %v94, %v153
  %v166 = vmul.f32 %v95, %v153
  %v167 = vmul.f32 %v96, %v153
  %v168 = vmul.f32 %v97, %v153
  %v169 = vmul.f32 %v98, %v153
  %v170 = vmul.f32 %v99, %v153
  %v171 = vmul.f32 %v100, %v153
  %v172 = vmul.f32 %v101, %v153
  %v173 = vmul.f32 %v102, %v153
  %v174 = vmul.f32 %v103, %v153
  %v175 = vmul.f32 %v104, %v153
  %v176 = vmul.f32 %v105, %v153
  %v177 = vmul.f32 %v106, %v153
  %v178 = vmul.f32 %v107, %v153
  %v179 = vmul.f32 %v108, %v153
  %v180 = vmul.f32 %v109, %v153
  %v181 = vmul.f32 %v110, %v153
  %v182 = vmul.f32 %v111, %v153
  %v183 = vmul.f32 %v112, %v153
  %v184 = vmul.f32 %v113, %v153
  %v185 = vmul.f32 %v114, %v153
  %v186 = vmul.f32 %v115, %v153
  %v187 = vmul.f32 %v116, %v153
  %v188 = vmul.f32 %v117, %v153
  %v189 = vmul.f32 %v118, %v153
  %v190 = vmul.f32 %v119, %v153
  %v191 = vmul.f32 %v120, %v153
  %v192 = vmul.f32 %v121, %v153
  %v193 = vmul.f32 %v122, %v153
  %v194 = vmul.f32 %v123, %v153
  %v195 = vmul.f32 %v124, %v153
  %v196 = vmul.f32 %v125, %v153
  %v197 = vmul.f32 %v126, %v153
  %v198 = vmul.f32 %v127, %v153
  %v199 = vmul.f32 %v128, %v153
  %v200 = vmul.f32 %v129, %v153
  %v201 = vmul.f32 %v130, %v153
  %v202 = vmul.f32 %v131, %v153
  %v203 = vmul.f32 %v132, %v153
  %v204 = vmul.f32 %v133, %v153
  %v205 = vmul.f32 %v134, %v153
  %v206 = vmul.f32 %v135, %v153
  %v207 = vmul.f32 %v136, %v153
  %v208 = vmul.f32 %v137, %v153
  %v209 = vmul.f32 %v138, %v153
  %v210 = vmul.f32 %v139, %v153
  %v211 = vmul.f32 %v140, %v153
  %v212 = vmul.f32 %v141, %v153
  %v213 = vmul.f32 %v142, %v153
  %v214 = vmul.f32 %v143, %v153
  %v215 = vmul.f32 %v144, %v153
  %v216 = vmul.f32 %v145, %v153
  %v217 = vmul.f32 %v146, %v153
  %v218 = vmul.f32 %v147, %v153
  %v219 = vld [vmem:[%s2] sm:$0x1]
  %v221 = vlaneseq
  %v222 = vshrl.u32 %v221, 7
  %v223 = vsub.s32 0, %v222
  %v224 = vrot.slane %v219, %v223
  %v226 = vadd.f32 %v155, %v224
  %v227 = vadd.f32 %v156, %v224
  %v228 = vadd.f32 %v157, %v224
  %v229 = vadd.f32 %v158, %v224
  %v230 = vadd.f32 %v159, %v224
  %v231 = vadd.f32 %v160, %v224
  %v232 = vadd.f32 %v161, %v224
  %v233 = vadd.f32 %v162, %v224
  %v234 = vadd.f32 %v163, %v224
  %v235 = vadd.f32 %v164, %v224
  %v236 = vadd.f32 %v165, %v224
  %v237 = vadd.f32 %v166, %v224
  %v238 = vadd.f32 %v167, %v224
  %v239 = vadd.f32 %v168, %v224
  %v240 = vadd.f32 %v169, %v224
  %v241 = vadd.f32 %v170, %v224
  %v242 = vadd.f32 %v171, %v224
  %v243 = vadd.f32 %v172, %v224
  %v244 = vadd.f32 %v173, %v224
  %v245 = vadd.f32 %v174, %v224
  %v246 = vadd.f32 %v175, %v224
  %v247 = vadd.f32 %v176, %v224
  %v248 = vadd.f32 %v177, %v224
  %v249 = vadd.f32 %v178, %v224
  %v250 = vadd.f32 %v179, %v224
  %v251 = vadd.f32 %v180, %v224
  %v252 = vadd.f32 %v181, %v224
  %v253 = vadd.f32 %v182, %v224
  %v254 = vadd.f32 %v183, %v224
  %v255 = vadd.f32 %v184, %v224
  %v256 = vadd.f32 %v185, %v224
  %v257 = vadd.f32 %v186, %v224
  %v258 = vadd.f32 %v187, %v224
  %v259 = vadd.f32 %v188, %v224
  %v260 = vadd.f32 %v189, %v224
  %v261 = vadd.f32 %v190, %v224
  %v262 = vadd.f32 %v191, %v224
  %v263 = vadd.f32 %v192, %v224
  %v264 = vadd.f32 %v193, %v224
  %v265 = vadd.f32 %v194, %v224
  %v266 = vadd.f32 %v195, %v224
  %v267 = vadd.f32 %v196, %v224
  %v268 = vadd.f32 %v197, %v224
  %v269 = vadd.f32 %v198, %v224
  %v270 = vadd.f32 %v199, %v224
  %v271 = vadd.f32 %v200, %v224
  %v272 = vadd.f32 %v201, %v224
  %v273 = vadd.f32 %v202, %v224
  %v274 = vadd.f32 %v203, %v224
  %v275 = vadd.f32 %v204, %v224
  %v276 = vadd.f32 %v205, %v224
  %v277 = vadd.f32 %v206, %v224
  %v278 = vadd.f32 %v207, %v224
  %v279 = vadd.f32 %v208, %v224
  %v280 = vadd.f32 %v209, %v224
  %v281 = vadd.f32 %v210, %v224
  %v282 = vadd.f32 %v211, %v224
  %v283 = vadd.f32 %v212, %v224
  %v284 = vadd.f32 %v213, %v224
  %v285 = vadd.f32 %v214, %v224
  %v286 = vadd.f32 %v215, %v224
  %v287 = vadd.f32 %v216, %v224
  %v288 = vadd.f32 %v217, %v224
  %v289 = vadd.f32 %v218, %v224
  %v290 = vmax.f32 %v226, 0.0
  %v291 = vmax.f32 %v227, 0.0
  %v292 = vmax.f32 %v228, 0.0
  %v293 = vmax.f32 %v229, 0.0
  %v294 = vmax.f32 %v230, 0.0
  %v295 = vmax.f32 %v231, 0.0
  %v296 = vmax.f32 %v232, 0.0
  %v297 = vmax.f32 %v233, 0.0
  %v298 = vmax.f32 %v234, 0.0
  %v299 = vmax.f32 %v235, 0.0
  %v300 = vmax.f32 %v236, 0.0
  %v301 = vmax.f32 %v237, 0.0
  %v302 = vmax.f32 %v238, 0.0
  %v303 = vmax.f32 %v239, 0.0
  %v304 = vmax.f32 %v240, 0.0
  %v305 = vmax.f32 %v241, 0.0
  %v306 = vmax.f32 %v242, 0.0
  %v307 = vmax.f32 %v243, 0.0
  %v308 = vmax.f32 %v244, 0.0
  %v309 = vmax.f32 %v245, 0.0
  %v310 = vmax.f32 %v246, 0.0
  %v311 = vmax.f32 %v247, 0.0
  %v312 = vmax.f32 %v248, 0.0
  %v313 = vmax.f32 %v249, 0.0
  %v314 = vmax.f32 %v250, 0.0
  %v315 = vmax.f32 %v251, 0.0
  %v316 = vmax.f32 %v252, 0.0
  %v317 = vmax.f32 %v253, 0.0
  %v318 = vmax.f32 %v254, 0.0
  %v319 = vmax.f32 %v255, 0.0
  %v320 = vmax.f32 %v256, 0.0
  %v321 = vmax.f32 %v257, 0.0
  %v322 = vmax.f32 %v258, 0.0
  %v323 = vmax.f32 %v259, 0.0
  %v324 = vmax.f32 %v260, 0.0
  %v325 = vmax.f32 %v261, 0.0
  %v326 = vmax.f32 %v262, 0.0
  %v327 = vmax.f32 %v263, 0.0
  %v328 = vmax.f32 %v264, 0.0
  %v329 = vmax.f32 %v265, 0.0
  %v330 = vmax.f32 %v266, 0.0
  %v331 = vmax.f32 %v267, 0.0
  %v332 = vmax.f32 %v268, 0.0
  %v333 = vmax.f32 %v269, 0.0
  %v334 = vmax.f32 %v270, 0.0
  %v335 = vmax.f32 %v271, 0.0
  %v336 = vmax.f32 %v272, 0.0
  %v337 = vmax.f32 %v273, 0.0
  %v338 = vmax.f32 %v274, 0.0
  %v339 = vmax.f32 %v275, 0.0
  %v340 = vmax.f32 %v276, 0.0
  %v341 = vmax.f32 %v277, 0.0
  %v342 = vmax.f32 %v278, 0.0
  %v343 = vmax.f32 %v279, 0.0
  %v344 = vmax.f32 %v280, 0.0
  %v345 = vmax.f32 %v281, 0.0
  %v346 = vmax.f32 %v282, 0.0
  %v347 = vmax.f32 %v283, 0.0
  %v348 = vmax.f32 %v284, 0.0
  %v349 = vmax.f32 %v285, 0.0
  %v350 = vmax.f32 %v286, 0.0
  %v351 = vmax.f32 %v287, 0.0
  %v352 = vmax.f32 %v288, 0.0
  %v353 = vmax.f32 %v289, 0.0
  %v354 = vpack.c.bf16 %v291, %v290
  %v355 = vpack.c.bf16 %v293, %v292
  %v356 = vpack.c.bf16 %v295, %v294
  %v357 = vpack.c.bf16 %v297, %v296
  %v358 = vpack.c.bf16 %v299, %v298
  %v359 = vpack.c.bf16 %v301, %v300
  %v360 = vpack.c.bf16 %v303, %v302
  %v361 = vpack.c.bf16 %v305, %v304
  %v362 = vpack.c.bf16 %v307, %v306
  %v363 = vpack.c.bf16 %v309, %v308
  %v364 = vpack.c.bf16 %v311, %v310
  %v365 = vpack.c.bf16 %v313, %v312
  %v366 = vpack.c.bf16 %v315, %v314
  %v367 = vpack.c.bf16 %v317, %v316
  %v368 = vpack.c.bf16 %v319, %v318
  %v369 = vpack.c.bf16 %v321, %v320
  %v370 = vpack.c.bf16 %v323, %v322
  %v371 = vpack.c.bf16 %v325, %v324
  %v372 = vpack.c.bf16 %v327, %v326
  %v373 = vpack.c.bf16 %v329, %v328
  %v374 = vpack.c.bf16 %v331, %v330
  %v375 = vpack.c.bf16 %v333, %v332
  %v376 = vpack.c.bf16 %v335, %v334
  %v377 = vpack.c.bf16 %v337, %v336
  %v378 = vpack.c.bf16 %v339, %v338
  %v379 = vpack.c.bf16 %v341, %v340
  %v380 = vpack.c.bf16 %v343, %v342
  %v381 = vpack.c.bf16 %v345, %v344
  %v382 = vpack.c.bf16 %v347, %v346
  %v383 = vpack.c.bf16 %v349, %v348
  %v384 = vpack.c.bf16 %v351, %v350
  %v385 = vpack.c.bf16 %v353, %v352
  %v386 = vld [vmem:[%s3] sm:$0xff]
  %v387 = vld [vmem:[%s3 + $0x8] sm:$0xf]
  %v388 = vld [vmem:[%s3 + $0xc] sm:$0xff]
  %v389 = vld [vmem:[%s3 + $0x14] sm:$0xf]
  %v390 = vld [vmem:[%s3 + $0x18] sm:$0xff]
  %v391 = vld [vmem:[%s3 + $0x20] sm:$0xf]
  %v392 = vld [vmem:[%s3 + $0x24] sm:$0xff]
  %v393 = vld [vmem:[%s3 + $0x2c] sm:$0xf]
  %v394 = vld [vmem:[%s3 + $0x30] sm:$0xff]
  %v395 = vld [vmem:[%s3 + $0x38] sm:$0xf]
  %v396 = vld [vmem:[%s3 + $0x3c] sm:$0xff]
  %v397 = vld [vmem:[%s3 + $0x44] sm:$0xf]
  %v398 = vld [vmem:[%s3 + $0x48] sm:$0xff]
  %v399 = vld [vmem:[%s3 + $0x50] sm:$0xf]
  %v400 = vld [vmem:[%s3 + $0x54] sm:$0xff]
  %v401 = vld [vmem:[%s3 + $0x5c] sm:$0xf]
  %v402 = vld [vmem:[%s3 + $0x60] sm:$0xff]
  %v403 = vld [vmem:[%s3 + $0x68] sm:$0xf]
  %v404 = vld [vmem:[%s3 + $0x6c] sm:$0xff]
  %v405 = vld [vmem:[%s3 + $0x74] sm:$0xf]
  %v406 = vld [vmem:[%s3 + $0x78] sm:$0xff]
  %v407 = vld [vmem:[%s3 + $0x80] sm:$0xf]
  %v408 = vld [vmem:[%s3 + $0x84] sm:$0xff]
  %v409 = vld [vmem:[%s3 + $0x8c] sm:$0xf]
  %v434 = vunpack.c.l.b16 %v386
  %v435 = vunpack.c.h.b16 %v386
  %v436 = vunpack.c.l.b16 %v387
  %v437 = vunpack.c.l.b16 %v388
  %v438 = vunpack.c.h.b16 %v388
  %v439 = vunpack.c.l.b16 %v389
  %v440 = vunpack.c.l.b16 %v390
  %v441 = vunpack.c.h.b16 %v390
  %v442 = vunpack.c.l.b16 %v391
  %v443 = vunpack.c.l.b16 %v392
  %v444 = vunpack.c.h.b16 %v392
  %v445 = vunpack.c.l.b16 %v393
  %v446 = vunpack.c.l.b16 %v394
  %v447 = vunpack.c.h.b16 %v394
  %v448 = vunpack.c.l.b16 %v395
  %v449 = vunpack.c.l.b16 %v396
  %v450 = vunpack.c.h.b16 %v396
  %v451 = vunpack.c.l.b16 %v397
  %v452 = vunpack.c.l.b16 %v398
  %v453 = vunpack.c.h.b16 %v398
  %v454 = vunpack.c.l.b16 %v399
  %v455 = vunpack.c.l.b16 %v400
  %v456 = vunpack.c.h.b16 %v400
  %v457 = vunpack.c.l.b16 %v401
  %v458 = vunpack.c.l.b16 %v402
  %v459 = vunpack.c.h.b16 %v402
  %v460 = vunpack.c.l.b16 %v403
  %v461 = vunpack.c.l.b16 %v404
  %v462 = vunpack.c.h.b16 %v404
  %v463 = vunpack.c.l.b16 %v405
  %v464 = vunpack.c.l.b16 %v406
  %v465 = vunpack.c.h.b16 %v406
  %v466 = vunpack.c.l.b16 %v407
  %v467 = vunpack.c.l.b16 %v408
  %v468 = vunpack.c.h.b16 %v408
  %v469 = vunpack.c.l.b16 %v409
  %v470 = vpack.c.b16 %v437, %v434
  %v471 = vpack.c.b16 %v438, %v435
  %v472 = vpack.c.b16 %v439, %v436
  %v473 = vpack.c.b16 %v443, %v440
  %v474 = vpack.c.b16 %v444, %v441
  %v475 = vpack.c.b16 %v445, %v442
  %v476 = vpack.c.b16 %v449, %v446
  %v477 = vpack.c.b16 %v450, %v447
  %v478 = vpack.c.b16 %v451, %v448
  %v479 = vpack.c.b16 %v455, %v452
  %v480 = vpack.c.b16 %v456, %v453
  %v481 = vpack.c.b16 %v457, %v454
  %v482 = vpack.c.b16 %v461, %v458
  %v483 = vpack.c.b16 %v462, %v459
  %v484 = vpack.c.b16 %v463, %v460
  %v485 = vpack.c.b16 %v467, %v464
  %v486 = vpack.c.b16 %v468, %v465
  %v487 = vpack.c.b16 %v469, %v466
  %vm506 = vcmask 785408
  %v508 = vsel %vm506, %v354, 0
  %v511 = vsel %vm506, %v355, 0
  %v514 = vsel %vm506, %v356, 0
  %v517 = vsel %vm506, %v357, 0
  %v520 = vsel %vm506, %v358, 0
  %v523 = vsel %vm506, %v359, 0
  %v526 = vsel %vm506, %v360, 0
  %v529 = vsel %vm506, %v361, 0
  %v532 = vsel %vm506, %v362, 0
  %v535 = vsel %vm506, %v363, 0
  %v538 = vsel %vm506, %v364, 0
  %v541 = vsel %vm506, %v365, 0
  %v544 = vsel %vm506, %v366, 0
  %v547 = vsel %vm506, %v367, 0
  %v550 = vsel %vm506, %v368, 0
  %v553 = vsel %vm506, %v369, 0
  %v556 = vsel %vm506, %v370, 0
  %v559 = vsel %vm506, %v371, 0
  %v562 = vsel %vm506, %v372, 0
  %v565 = vsel %vm506, %v373, 0
  %v568 = vsel %vm506, %v374, 0
  %v571 = vsel %vm506, %v375, 0
  %v574 = vsel %vm506, %v376, 0
  %v577 = vsel %vm506, %v377, 0
  %v580 = vsel %vm506, %v378, 0
  %v583 = vsel %vm506, %v379, 0
  %v586 = vsel %vm506, %v380, 0
  %v589 = vsel %vm506, %v381, 0
  %v592 = vsel %vm506, %v382, 0
  %v595 = vsel %vm506, %v383, 0
  %v598 = vsel %vm506, %v384, 0
  %v601 = vsel %vm506, %v385, 0
  %603 = vmatprep.subr.bf16.mxu0 %v471
  %604 = vmatpush1.bf16.msra.mxu0 %v470
  %605 = vmatprep.subr.bf16.mxu0 %v474
  %606 = vmatpush1.bf16.msra.mxu0 %v473
  %607 = vmatprep.subr.bf16.mxu0 %v477
  %608 = vmatpush1.bf16.msra.mxu0 %v476
  %609 = vmatprep.subr.bf16.mxu0 %v480
  %610 = vmatpush1.bf16.msra.mxu0 %v479
  %611 = vmatprep.subr.bf16.mxu0 %v483
  %612 = vmatpush1.bf16.msra.mxu0 %v482
  %613 = vmatprep.subr.bf16.mxu0 %v486
  %614 = vmatpush1.bf16.msra.mxu0 %v485
  %615 = vmatprep.subr.bf16.mxu0 0
  %616 = vmatpush1.bf16.msra.mxu0 0
  %617 = vmatprep.subr.bf16.mxu0 0
  %618 = vmatpush1.bf16.msra.mxu0 0
  %619 = vmatprep.subr.bf16.mxu0 0
  %620 = vmatpush1.bf16.msra.mxu0 0
  %621 = vmatprep.subr.bf16.mxu0 0
  %622 = vmatpush1.bf16.msra.mxu0 0
  %623 = vmatprep.subr.bf16.mxu0 0
  %624 = vmatpush1.bf16.msra.mxu0 0
  %625 = vmatprep.subr.bf16.mxu0 0
  %626 = vmatpush1.bf16.msra.mxu0 0
  %627 = vmatprep.subr.bf16.mxu0 0
  %628 = vmatpush1.bf16.msra.mxu0 0
  %629 = vmatprep.subr.bf16.mxu0 0
  %630 = vmatpush1.bf16.msra.mxu0 0
  %631 = vmatprep.subr.bf16.mxu0 0
  %632 = vmatpush1.bf16.msra.mxu0 0
  %633 = vmatprep.subr.bf16.mxu0 0
  %634 = vmatpush1.bf16.msra.mxu0 0
  %635 = vmatprep.mubr.bf16.mxu0 0
  %636 = vmatmul.mubr.bf16.gmra.mrb[0].mxu0 %v508
  %v637 = vpop.f32.mrb[0].mxu0
  %v638 = vadd.f32 0.0, %v637
  %v639 = vpop.f32.mrb[0].mxu0
  %v640 = vadd.f32 0.0, %v639
  %v641 = vpop.f32.mrb[0].mxu0
  %v642 = vadd.f32 0.0, %v641
  %v643 = vpop.f32.mrb[0].mxu0
  %v644 = vadd.f32 0.0, %v643
  %645 = vmatprep.mubr.bf16.mxu0 0
  %646 = vmatmul.mubr.bf16.gmra.mrb[0].mxu0 %v511
  %v647 = vpop.f32.mrb[0].mxu0
  %v648 = vadd.f32 0.0, %v647
  %v649 = vpop.f32.mrb[0].mxu0
  %v650 = vadd.f32 0.0, %v649
  %v651 = vpop.f32.mrb[0].mxu0
  %v652 = vadd.f32 0.0, %v651
  %v653 = vpop.f32.mrb[0].mxu0
  %v654 = vadd.f32 0.0, %v653
  %655 = vmatprep.mubr.bf16.mxu0 0
  %656 = vmatmul.mubr.bf16.gmra.mrb[0].mxu0 %v514
  %v657 = vpop.f32.mrb[0].mxu0
  %v658 = vadd.f32 0.0, %v657
  %v659 = vpop.f32.mrb[0].mxu0
  %v660 = vadd.f32 0.0, %v659
  %v661 = vpop.f32.mrb[0].mxu0
  %v662 = vadd.f32 0.0, %v661
  %v663 = vpop.f32.mrb[0].mxu0
  %v664 = vadd.f32 0.0, %v663
  %665 = vmatprep.mubr.bf16.mxu0 0
  %666 = vmatmul.mubr.bf16.gmra.mrb[0].mxu0 %v517
  %v667 = vpop.f32.mrb[0].mxu0
  %v668 = vadd.f32 0.0, %v667
  %v669 = vpop.f32.mrb[0].mxu0
  %v670 = vadd.f32 0.0, %v669
  %v671 = vpop.f32.mrb[0].mxu0
  %v672 = vadd.f32 0.0, %v671
  %v673 = vpop.f32.mrb[0].mxu0
  %v674 = vadd.f32 0.0, %v673
  %675 = vmatprep.mubr.bf16.mxu0 0
  %676 = vmatmul.mubr.bf16.gmra.mrb[0].mxu0 %v520
  %v677 = vpop.f32.mrb[0].mxu0
  %v678 = vadd.f32 0.0, %v677
  %v679 = vpop.f32.mrb[0].mxu0
  %v680 = vadd.f32 0.0, %v679
  %v681 = vpop.f32.mrb[0].mxu0
  %v682 = vadd.f32 0.0, %v681
  %v683 = vpop.f32.mrb[0].mxu0
  %v684 = vadd.f32 0.0, %v683
  %685 = vmatprep.mubr.bf16.mxu0 0
  %686 = vmatmul.mubr.bf16.gmra.mrb[0].mxu0 %v523
  %v687 = vpop.f32.mrb[0].mxu0
  %v688 = vadd.f32 0.0, %v687
  %v689 = vpop.f32.mrb[0].mxu0
  %v690 = vadd.f32 0.0, %v689
  %v691 = vpop.f32.mrb[0].mxu0
  %v692 = vadd.f32 0.0, %v691
  %v693 = vpop.f32.mrb[0].mxu0
  %v694 = vadd.f32 0.0, %v693
  %695 = vmatprep.mubr.bf16.mxu0 0
  %696 = vmatmul.mubr.bf16.gmra.mrb[0].mxu0 %v526
  %v697 = vpop.f32.mrb[0].mxu0
  %v698 = vadd.f32 0.0, %v697
  %v699 = vpop.f32.mrb[0].mxu0
  %v700 = vadd.f32 0.0, %v699
  %v701 = vpop.f32.mrb[0].mxu0
  %v702 = vadd.f32 0.0, %v701
  %v703 = vpop.f32.mrb[0].mxu0
  %v704 = vadd.f32 0.0, %v703
  %705 = vmatprep.mubr.bf16.mxu0 0
  %706 = vmatmul.mubr.bf16.gmra.mrb[0].mxu0 %v529
  %v707 = vpop.f32.mrb[0].mxu0
  %v708 = vadd.f32 0.0, %v707
  %v709 = vpop.f32.mrb[0].mxu0
  %v710 = vadd.f32 0.0, %v709
  %v711 = vpop.f32.mrb[0].mxu0
  %v712 = vadd.f32 0.0, %v711
  %v713 = vpop.f32.mrb[0].mxu0
  %v714 = vadd.f32 0.0, %v713
  %715 = vmatprep.mubr.bf16.mxu0 0
  %716 = vmatmul.mubr.bf16.gmra.mrb[0].mxu0 %v532
  %v717 = vpop.f32.mrb[0].mxu0
  %v718 = vadd.f32 0.0, %v717
  %v719 = vpop.f32.mrb[0].mxu0
  %v720 = vadd.f32 0.0, %v719
  %v721 = vpop.f32.mrb[0].mxu0
  %v722 = vadd.f32 0.0, %v721
  %v723 = vpop.f32.mrb[0].mxu0
  %v724 = vadd.f32 0.0, %v723
  %725 = vmatprep.mubr.bf16.mxu0 0
  %726 = vmatmul.mubr.bf16.gmra.mrb[0].mxu0 %v535
  %v727 = vpop.f32.mrb[0].mxu0
  %v728 = vadd.f32 0.0, %v727
  %v729 = vpop.f32.mrb[0].mxu0
  %v730 = vadd.f32 0.0, %v729
  %v731 = vpop.f32.mrb[0].mxu0
  %v732 = vadd.f32 0.0, %v731
  %v733 = vpop.f32.mrb[0].mxu0
  %v734 = vadd.f32 0.0, %v733
  %735 = vmatprep.mubr.bf16.mxu0 0
  %736 = vmatmul.mubr.bf16.gmra.mrb[0].mxu0 %v538
  %v737 = vpop.f32.mrb[0].mxu0
  %v738 = vadd.f32 0.0, %v737
  %v739 = vpop.f32.mrb[0].mxu0
  %v740 = vadd.f32 0.0, %v739
  %v741 = vpop.f32.mrb[0].mxu0
  %v742 = vadd.f32 0.0, %v741
  %v743 = vpop.f32.mrb[0].mxu0
  %v744 = vadd.f32 0.0, %v743
  %745 = vmatprep.mubr.bf16.mxu0 0
  %746 = vmatmul.mubr.bf16.gmra.mrb[0].mxu0 %v541
  %v747 = vpop.f32.mrb[0].mxu0
  %v748 = vadd.f32 0.0, %v747
  %v749 = vpop.f32.mrb[0].mxu0
  %v750 = vadd.f32 0.0, %v749
  %v751 = vpop.f32.mrb[0].mxu0
  %v752 = vadd.f32 0.0, %v751
  %v753 = vpop.f32.mrb[0].mxu0
  %v754 = vadd.f32 0.0, %v753
  %755 = vmatprep.mubr.bf16.mxu0 0
  %756 = vmatmul.mubr.bf16.gmra.mrb[0].mxu0 %v544
  %v757 = vpop.f32.mrb[0].mxu0
  %v758 = vadd.f32 0.0, %v757
  %v759 = vpop.f32.mrb[0].mxu0
  %v760 = vadd.f32 0.0, %v759
  %v761 = vpop.f32.mrb[0].mxu0
  %v762 = vadd.f32 0.0, %v761
  %v763 = vpop.f32.mrb[0].mxu0
  %v764 = vadd.f32 0.0, %v763
  %765 = vmatprep.mubr.bf16.mxu0 0
  %766 = vmatmul.mubr.bf16.gmra.mrb[0].mxu0 %v547
  %v767 = vpop.f32.mrb[0].mxu0
  %v768 = vadd.f32 0.0, %v767
  %v769 = vpop.f32.mrb[0].mxu0
  %v770 = vadd.f32 0.0, %v769
  %v771 = vpop.f32.mrb[0].mxu0
  %v772 = vadd.f32 0.0, %v771
  %v773 = vpop.f32.mrb[0].mxu0
  %v774 = vadd.f32 0.0, %v773
  %775 = vmatprep.mubr.bf16.mxu0 0
  %776 = vmatmul.mubr.bf16.gmra.mrb[0].mxu0 %v550
  %v777 = vpop.f32.mrb[0].mxu0
  %v778 = vadd.f32 0.0, %v777
  %v779 = vpop.f32.mrb[0].mxu0
  %v780 = vadd.f32 0.0, %v779
  %v781 = vpop.f32.mrb[0].mxu0
  %v782 = vadd.f32 0.0, %v781
  %v783 = vpop.f32.mrb[0].mxu0
  %v784 = vadd.f32 0.0, %v783
  %785 = vmatprep.mubr.bf16.mxu0 0
  %786 = vmatmul.mubr.bf16.gmra.mrb[0].mxu0 %v553
  %v787 = vpop.f32.mrb[0].mxu0
  %v788 = vadd.f32 0.0, %v787
  %v789 = vpop.f32.mrb[0].mxu0
  %v790 = vadd.f32 0.0, %v789
  %v791 = vpop.f32.mrb[0].mxu0
  %v792 = vadd.f32 0.0, %v791
  %v793 = vpop.f32.mrb[0].mxu0
  %v794 = vadd.f32 0.0, %v793
  %795 = vmatprep.mubr.bf16.mxu0 0
  %796 = vmatmul.mubr.bf16.gmra.mrb[0].mxu0 %v556
  %v797 = vpop.f32.mrb[0].mxu0
  %v798 = vadd.f32 0.0, %v797
  %v799 = vpop.f32.mrb[0].mxu0
  %v800 = vadd.f32 0.0, %v799
  %v801 = vpop.f32.mrb[0].mxu0
  %v802 = vadd.f32 0.0, %v801
  %v803 = vpop.f32.mrb[0].mxu0
  %v804 = vadd.f32 0.0, %v803
  %805 = vmatprep.mubr.bf16.mxu0 0
  %806 = vmatmul.mubr.bf16.gmra.mrb[0].mxu0 %v559
  %v807 = vpop.f32.mrb[0].mxu0
  %v808 = vadd.f32 0.0, %v807
  %v809 = vpop.f32.mrb[0].mxu0
  %v810 = vadd.f32 0.0, %v809
  %v811 = vpop.f32.mrb[0].mxu0
  %v812 = vadd.f32 0.0, %v811
  %v813 = vpop.f32.mrb[0].mxu0
  %v814 = vadd.f32 0.0, %v813
  %815 = vmatprep.mubr.bf16.mxu0 0
  %816 = vmatmul.mubr.bf16.gmra.mrb[0].mxu0 %v562
  %v817 = vpop.f32.mrb[0].mxu0
  %v818 = vadd.f32 0.0, %v817
  %v819 = vpop.f32.mrb[0].mxu0
  %v820 = vadd.f32 0.0, %v819
  %v821 = vpop.f32.mrb[0].mxu0
  %v822 = vadd.f32 0.0, %v821
  %v823 = vpop.f32.mrb[0].mxu0
  %v824 = vadd.f32 0.0, %v823
  %825 = vmatprep.mubr.bf16.mxu0 0
  %826 = vmatmul.mubr.bf16.gmra.mrb[0].mxu0 %v565
  %v827 = vpop.f32.mrb[0].mxu0
  %v828 = vadd.f32 0.0, %v827
  %v829 = vpop.f32.mrb[0].mxu0
  %v830 = vadd.f32 0.0, %v829
  %v831 = vpop.f32.mrb[0].mxu0
  %v832 = vadd.f32 0.0, %v831
  %v833 = vpop.f32.mrb[0].mxu0
  %v834 = vadd.f32 0.0, %v833
  %835 = vmatprep.mubr.bf16.mxu0 0
  %836 = vmatmul.mubr.bf16.gmra.mrb[0].mxu0 %v568
  %v837 = vpop.f32.mrb[0].mxu0
  %v838 = vadd.f32 0.0, %v837
  %v839 = vpop.f32.mrb[0].mxu0
  %v840 = vadd.f32 0.0, %v839
  %v841 = vpop.f32.mrb[0].mxu0
  %v842 = vadd.f32 0.0, %v841
  %v843 = vpop.f32.mrb[0].mxu0
  %v844 = vadd.f32 0.0, %v843
  %845 = vmatprep.mubr.bf16.mxu0 0
  %846 = vmatmul.mubr.bf16.gmra.mrb[0].mxu0 %v571
  %v847 = vpop.f32.mrb[0].mxu0
  %v848 = vadd.f32 0.0, %v847
  %v849 = vpop.f32.mrb[0].mxu0
  %v850 = vadd.f32 0.0, %v849
  %v851 = vpop.f32.mrb[0].mxu0
  %v852 = vadd.f32 0.0, %v851
  %v853 = vpop.f32.mrb[0].mxu0
  %v854 = vadd.f32 0.0, %v853
  %855 = vmatprep.mubr.bf16.mxu0 0
  %856 = vmatmul.mubr.bf16.gmra.mrb[0].mxu0 %v574
  %v857 = vpop.f32.mrb[0].mxu0
  %v858 = vadd.f32 0.0, %v857
  %v859 = vpop.f32.mrb[0].mxu0
  %v860 = vadd.f32 0.0, %v859
  %v861 = vpop.f32.mrb[0].mxu0
  %v862 = vadd.f32 0.0, %v861
  %v863 = vpop.f32.mrb[0].mxu0
  %v864 = vadd.f32 0.0, %v863
  %865 = vmatprep.mubr.bf16.mxu0 0
  %866 = vmatmul.mubr.bf16.gmra.mrb[0].mxu0 %v577
  %v867 = vpop.f32.mrb[0].mxu0
  %v868 = vadd.f32 0.0, %v867
  %v869 = vpop.f32.mrb[0].mxu0
  %v870 = vadd.f32 0.0, %v869
  %v871 = vpop.f32.mrb[0].mxu0
  %v872 = vadd.f32 0.0, %v871
  %v873 = vpop.f32.mrb[0].mxu0
  %v874 = vadd.f32 0.0, %v873
  %875 = vmatprep.mubr.bf16.mxu0 0
  %876 = vmatmul.mubr.bf16.gmra.mrb[0].mxu0 %v580
  %v877 = vpop.f32.mrb[0].mxu0
  %v878 = vadd.f32 0.0, %v877
  %v879 = vpop.f32.mrb[0].mxu0
  %v880 = vadd.f32 0.0, %v879
  %v881 = vpop.f32.mrb[0].mxu0
  %v882 = vadd.f32 0.0, %v881
  %v883 = vpop.f32.mrb[0].mxu0
  %v884 = vadd.f32 0.0, %v883
  %885 = vmatprep.mubr.bf16.mxu0 0
  %886 = vmatmul.mubr.bf16.gmra.mrb[0].mxu0 %v583
  %v887 = vpop.f32.mrb[0].mxu0
  %v888 = vadd.f32 0.0, %v887
  %v889 = vpop.f32.mrb[0].mxu0
  %v890 = vadd.f32 0.0, %v889
  %v891 = vpop.f32.mrb[0].mxu0
  %v892 = vadd.f32 0.0, %v891
  %v893 = vpop.f32.mrb[0].mxu0
  %v894 = vadd.f32 0.0, %v893
  %895 = vmatprep.mubr.bf16.mxu0 0
  %896 = vmatmul.mubr.bf16.gmra.mrb[0].mxu0 %v586
  %v897 = vpop.f32.mrb[0].mxu0
  %v898 = vadd.f32 0.0, %v897
  %v899 = vpop.f32.mrb[0].mxu0
  %v900 = vadd.f32 0.0, %v899
  %v901 = vpop.f32.mrb[0].mxu0
  %v902 = vadd.f32 0.0, %v901
  %v903 = vpop.f32.mrb[0].mxu0
  %v904 = vadd.f32 0.0, %v903
  %905 = vmatprep.mubr.bf16.mxu0 0
  %906 = vmatmul.mubr.bf16.gmra.mrb[0].mxu0 %v589
  %v907 = vpop.f32.mrb[0].mxu0
  %v908 = vadd.f32 0.0, %v907
  %v909 = vpop.f32.mrb[0].mxu0
  %v910 = vadd.f32 0.0, %v909
  %v911 = vpop.f32.mrb[0].mxu0
  %v912 = vadd.f32 0.0, %v911
  %v913 = vpop.f32.mrb[0].mxu0
  %v914 = vadd.f32 0.0, %v913
  %915 = vmatprep.mubr.bf16.mxu0 0
  %916 = vmatmul.mubr.bf16.gmra.mrb[0].mxu0 %v592
  %v917 = vpop.f32.mrb[0].mxu0
  %v918 = vadd.f32 0.0, %v917
  %v919 = vpop.f32.mrb[0].mxu0
  %v920 = vadd.f32 0.0, %v919
  %v921 = vpop.f32.mrb[0].mxu0
  %v922 = vadd.f32 0.0, %v921
  %v923 = vpop.f32.mrb[0].mxu0
  %v924 = vadd.f32 0.0, %v923
  %925 = vmatprep.mubr.bf16.mxu0 0
  %926 = vmatmul.mubr.bf16.gmra.mrb[0].mxu0 %v595
  %v927 = vpop.f32.mrb[0].mxu0
  %v928 = vadd.f32 0.0, %v927
  %v929 = vpop.f32.mrb[0].mxu0
  %v930 = vadd.f32 0.0, %v929
  %v931 = vpop.f32.mrb[0].mxu0
  %v932 = vadd.f32 0.0, %v931
  %v933 = vpop.f32.mrb[0].mxu0
  %v934 = vadd.f32 0.0, %v933
  %935 = vmatprep.mubr.bf16.mxu0 0
  %936 = vmatmul.mubr.bf16.gmra.mrb[0].mxu0 %v598
  %v937 = vpop.f32.mrb[0].mxu0
  %v938 = vadd.f32 0.0, %v937
  %v939 = vpop.f32.mrb[0].mxu0
  %v940 = vadd.f32 0.0, %v939
  %v941 = vpop.f32.mrb[0].mxu0
  %v942 = vadd.f32 0.0, %v941
  %v943 = vpop.f32.mrb[0].mxu0
  %v944 = vadd.f32 0.0, %v943
  %945 = vmatprep.mubr.bf16.mxu0 0
  %946 = vmatmul.mubr.bf16.gmra.mrb[0].mxu0 %v601
  %v947 = vpop.f32.mrb[0].mxu0
  %v948 = vadd.f32 0.0, %v947
  %v949 = vpop.f32.mrb[0].mxu0
  %v950 = vadd.f32 0.0, %v949
  %v951 = vpop.f32.mrb[0].mxu0
  %v952 = vadd.f32 0.0, %v951
  %v953 = vpop.f32.mrb[0].mxu0
  %v954 = vadd.f32 0.0, %v953
  %955 = vdwg.mxu0
  %956 = vmatprep.subr.bf16.mxu0 0
  %957 = vmatpush1.bf16.msra.mxu0 %v472
  %958 = vmatprep.subr.bf16.mxu0 0
  %959 = vmatpush1.bf16.msra.mxu0 %v475
  %960 = vmatprep.subr.bf16.mxu0 0
  %961 = vmatpush1.bf16.msra.mxu0 %v478
  %962 = vmatprep.subr.bf16.mxu0 0
  %963 = vmatpush1.bf16.msra.mxu0 %v481
  %964 = vmatprep.subr.bf16.mxu0 0
  %965 = vmatpush1.bf16.msra.mxu0 %v484
  %966 = vmatprep.subr.bf16.mxu0 0
  %967 = vmatpush1.bf16.msra.mxu0 %v487
  %968 = vmatprep.subr.bf16.mxu0 0
  %969 = vmatpush1.bf16.msra.mxu0 0
  %970 = vmatprep.subr.bf16.mxu0 0
  %971 = vmatpush1.bf16.msra.mxu0 0
  %972 = vmatprep.subr.bf16.mxu0 0
  %973 = vmatpush1.bf16.msra.mxu0 0
  %974 = vmatprep.subr.bf16.mxu0 0
  %975 = vmatpush1.bf16.msra.mxu0 0
  %976 = vmatprep.subr.bf16.mxu0 0
  %977 = vmatpush1.bf16.msra.mxu0 0
  %978 = vmatprep.subr.bf16.mxu0 0
  %979 = vmatpush1.bf16.msra.mxu0 0
  %980 = vmatprep.subr.bf16.mxu0 0
  %981 = vmatpush1.bf16.msra.mxu0 0
  %982 = vmatprep.subr.bf16.mxu0 0
  %983 = vmatpush1.bf16.msra.mxu0 0
  %984 = vmatprep.subr.bf16.mxu0 0
  %985 = vmatpush1.bf16.msra.mxu0 0
  %986 = vmatprep.subr.bf16.mxu0 0
  %987 = vmatpush1.bf16.msra.mxu0 0
  %988 = vmatprep.mubr.bf16.mxu0 0
  %989 = vmatmul.mubr.bf16.gmra.mrb[0].mxu0 %v508
  %v990 = vpop.f32.mrb[0].mxu0
  %v991 = vadd.f32 0.0, %v990
  %v992 = vpop.f32.mrb[0].mxu0
  %v993 = vpop.f32.mrb[0].mxu0
  %v994 = vadd.f32 0.0, %v993
  %v995 = vpop.f32.mrb[0].mxu0
  %996 = vmatprep.mubr.bf16.mxu0 0
  %997 = vmatmul.mubr.bf16.gmra.mrb[0].mxu0 %v511
  %v998 = vpop.f32.mrb[0].mxu0
  %v999 = vadd.f32 0.0, %v998
  %v1000 = vpop.f32.mrb[0].mxu0
  %v1001 = vpop.f32.mrb[0].mxu0
  %v1002 = vadd.f32 0.0, %v1001
  %v1003 = vpop.f32.mrb[0].mxu0
  %1004 = vmatprep.mubr.bf16.mxu0 0
  %1005 = vmatmul.mubr.bf16.gmra.mrb[0].mxu0 %v514
  %v1006 = vpop.f32.mrb[0].mxu0
  %v1007 = vadd.f32 0.0, %v1006
  %v1008 = vpop.f32.mrb[0].mxu0
  %v1009 = vpop.f32.mrb[0].mxu0
  %v1010 = vadd.f32 0.0, %v1009
  %v1011 = vpop.f32.mrb[0].mxu0
  %1012 = vmatprep.mubr.bf16.mxu0 0
  %1013 = vmatmul.mubr.bf16.gmra.mrb[0].mxu0 %v517
  %v1014 = vpop.f32.mrb[0].mxu0
  %v1015 = vadd.f32 0.0, %v1014
  %v1016 = vpop.f32.mrb[0].mxu0
  %v1017 = vpop.f32.mrb[0].mxu0
  %v1018 = vadd.f32 0.0, %v1017
  %v1019 = vpop.f32.mrb[0].mxu0
  %1020 = vmatprep.mubr.bf16.mxu0 0
  %1021 = vmatmul.mubr.bf16.gmra.mrb[0].mxu0 %v520
  %v1022 = vpop.f32.mrb[0].mxu0
  %v1023 = vadd.f32 0.0, %v1022
  %v1024 = vpop.f32.mrb[0].mxu0
  %v1025 = vpop.f32.mrb[0].mxu0
  %v1026 = vadd.f32 0.0, %v1025
  %v1027 = vpop.f32.mrb[0].mxu0
  %1028 = vmatprep.mubr.bf16.mxu0 0
  %1029 = vmatmul.mubr.bf16.gmra.mrb[0].mxu0 %v523
  %v1030 = vpop.f32.mrb[0].mxu0
  %v1031 = vadd.f32 0.0, %v1030
  %v1032 = vpop.f32.mrb[0].mxu0
  %v1033 = vpop.f32.mrb[0].mxu0
  %v1034 = vadd.f32 0.0, %v1033
  %v1035 = vpop.f32.mrb[0].mxu0
  %1036 = vmatprep.mubr.bf16.mxu0 0
  %1037 = vmatmul.mubr.bf16.gmra.mrb[0].mxu0 %v526
  %v1038 = vpop.f32.mrb[0].mxu0
  %v1039 = vadd.f32 0.0, %v1038
  %v1040 = vpop.f32.mrb[0].mxu0
  %v1041 = vpop.f32.mrb[0].mxu0
  %v1042 = vadd.f32 0.0, %v1041
  %v1043 = vpop.f32.mrb[0].mxu0
  %1044 = vmatprep.mubr.bf16.mxu0 0
  %1045 = vmatmul.mubr.bf16.gmra.mrb[0].mxu0 %v529
  %v1046 = vpop.f32.mrb[0].mxu0
  %v1047 = vadd.f32 0.0, %v1046
  %v1048 = vpop.f32.mrb[0].mxu0
  %v1049 = vpop.f32.mrb[0].mxu0
  %v1050 = vadd.f32 0.0, %v1049
  %v1051 = vpop.f32.mrb[0].mxu0
  %1052 = vmatprep.mubr.bf16.mxu0 0
  %1053 = vmatmul.mubr.bf16.gmra.mrb[0].mxu0 %v532
  %v1054 = vpop.f32.mrb[0].mxu0
  %v1055 = vadd.f32 0.0, %v1054
  %v1056 = vpop.f32.mrb[0].mxu0
  %v1057 = vpop.f32.mrb[0].mxu0
  %v1058 = vadd.f32 0.0, %v1057
  %v1059 = vpop.f32.mrb[0].mxu0
  %1060 = vmatprep.mubr.bf16.mxu0 0
  %1061 = vmatmul.mubr.bf16.gmra.mrb[0].mxu0 %v535
  %v1062 = vpop.f32.mrb[0].mxu0
  %v1063 = vadd.f32 0.0, %v1062
  %v1064 = vpop.f32.mrb[0].mxu0
  %v1065 = vpop.f32.mrb[0].mxu0
  %v1066 = vadd.f32 0.0, %v1065
  %v1067 = vpop.f32.mrb[0].mxu0
  %1068 = vmatprep.mubr.bf16.mxu0 0
  %1069 = vmatmul.mubr.bf16.gmra.mrb[0].mxu0 %v538
  %v1070 = vpop.f32.mrb[0].mxu0
  %v1071 = vadd.f32 0.0, %v1070
  %v1072 = vpop.f32.mrb[0].mxu0
  %v1073 = vpop.f32.mrb[0].mxu0
  %v1074 = vadd.f32 0.0, %v1073
  %v1075 = vpop.f32.mrb[0].mxu0
  %1076 = vmatprep.mubr.bf16.mxu0 0
  %1077 = vmatmul.mubr.bf16.gmra.mrb[0].mxu0 %v541
  %v1078 = vpop.f32.mrb[0].mxu0
  %v1079 = vadd.f32 0.0, %v1078
  %v1080 = vpop.f32.mrb[0].mxu0
  %v1081 = vpop.f32.mrb[0].mxu0
  %v1082 = vadd.f32 0.0, %v1081
  %v1083 = vpop.f32.mrb[0].mxu0
  %1084 = vmatprep.mubr.bf16.mxu0 0
  %1085 = vmatmul.mubr.bf16.gmra.mrb[0].mxu0 %v544
  %v1086 = vpop.f32.mrb[0].mxu0
  %v1087 = vadd.f32 0.0, %v1086
  %v1088 = vpop.f32.mrb[0].mxu0
  %v1089 = vpop.f32.mrb[0].mxu0
  %v1090 = vadd.f32 0.0, %v1089
  %v1091 = vpop.f32.mrb[0].mxu0
  %1092 = vmatprep.mubr.bf16.mxu0 0
  %1093 = vmatmul.mubr.bf16.gmra.mrb[0].mxu0 %v547
  %v1094 = vpop.f32.mrb[0].mxu0
  %v1095 = vadd.f32 0.0, %v1094
  %v1096 = vpop.f32.mrb[0].mxu0
  %v1097 = vpop.f32.mrb[0].mxu0
  %v1098 = vadd.f32 0.0, %v1097
  %v1099 = vpop.f32.mrb[0].mxu0
  %1100 = vmatprep.mubr.bf16.mxu0 0
  %1101 = vmatmul.mubr.bf16.gmra.mrb[0].mxu0 %v550
  %v1102 = vpop.f32.mrb[0].mxu0
  %v1103 = vadd.f32 0.0, %v1102
  %v1104 = vpop.f32.mrb[0].mxu0
  %v1105 = vpop.f32.mrb[0].mxu0
  %v1106 = vadd.f32 0.0, %v1105
  %v1107 = vpop.f32.mrb[0].mxu0
  %1108 = vmatprep.mubr.bf16.mxu0 0
  %1109 = vmatmul.mubr.bf16.gmra.mrb[0].mxu0 %v553
  %v1110 = vpop.f32.mrb[0].mxu0
  %v1111 = vadd.f32 0.0, %v1110
  %v1112 = vpop.f32.mrb[0].mxu0
  %v1113 = vpop.f32.mrb[0].mxu0
  %v1114 = vadd.f32 0.0, %v1113
  %v1115 = vpop.f32.mrb[0].mxu0
  %1116 = vmatprep.mubr.bf16.mxu0 0
  %1117 = vmatmul.mubr.bf16.gmra.mrb[0].mxu0 %v556
  %v1118 = vpop.f32.mrb[0].mxu0
  %v1119 = vadd.f32 0.0, %v1118
  %v1120 = vpop.f32.mrb[0].mxu0
  %v1121 = vpop.f32.mrb[0].mxu0
  %v1122 = vadd.f32 0.0, %v1121
  %v1123 = vpop.f32.mrb[0].mxu0
  %1124 = vmatprep.mubr.bf16.mxu0 0
  %1125 = vmatmul.mubr.bf16.gmra.mrb[0].mxu0 %v559
  %v1126 = vpop.f32.mrb[0].mxu0
  %v1127 = vadd.f32 0.0, %v1126
  %v1128 = vpop.f32.mrb[0].mxu0
  %v1129 = vpop.f32.mrb[0].mxu0
  %v1130 = vadd.f32 0.0, %v1129
  %v1131 = vpop.f32.mrb[0].mxu0
  %1132 = vmatprep.mubr.bf16.mxu0 0
  %1133 = vmatmul.mubr.bf16.gmra.mrb[0].mxu0 %v562
  %v1134 = vpop.f32.mrb[0].mxu0
  %v1135 = vadd.f32 0.0, %v1134
  %v1136 = vpop.f32.mrb[0].mxu0
  %v1137 = vpop.f32.mrb[0].mxu0
  %v1138 = vadd.f32 0.0, %v1137
  %v1139 = vpop.f32.mrb[0].mxu0
  %1140 = vmatprep.mubr.bf16.mxu0 0
  %1141 = vmatmul.mubr.bf16.gmra.mrb[0].mxu0 %v565
  %v1142 = vpop.f32.mrb[0].mxu0
  %v1143 = vadd.f32 0.0, %v1142
  %v1144 = vpop.f32.mrb[0].mxu0
  %v1145 = vpop.f32.mrb[0].mxu0
  %v1146 = vadd.f32 0.0, %v1145
  %v1147 = vpop.f32.mrb[0].mxu0
  %1148 = vmatprep.mubr.bf16.mxu0 0
  %1149 = vmatmul.mubr.bf16.gmra.mrb[0].mxu0 %v568
  %v1150 = vpop.f32.mrb[0].mxu0
  %v1151 = vadd.f32 0.0, %v1150
  %v1152 = vpop.f32.mrb[0].mxu0
  %v1153 = vpop.f32.mrb[0].mxu0
  %v1154 = vadd.f32 0.0, %v1153
  %v1155 = vpop.f32.mrb[0].mxu0
  %1156 = vmatprep.mubr.bf16.mxu0 0
  %1157 = vmatmul.mubr.bf16.gmra.mrb[0].mxu0 %v571
  %v1158 = vpop.f32.mrb[0].mxu0
  %v1159 = vadd.f32 0.0, %v1158
  %v1160 = vpop.f32.mrb[0].mxu0
  %v1161 = vpop.f32.mrb[0].mxu0
  %v1162 = vadd.f32 0.0, %v1161
  %v1163 = vpop.f32.mrb[0].mxu0
  %1164 = vmatprep.mubr.bf16.mxu0 0
  %1165 = vmatmul.mubr.bf16.gmra.mrb[0].mxu0 %v574
  %v1166 = vpop.f32.mrb[0].mxu0
  %v1167 = vadd.f32 0.0, %v1166
  %v1168 = vpop.f32.mrb[0].mxu0
  %v1169 = vpop.f32.mrb[0].mxu0
  %v1170 = vadd.f32 0.0, %v1169
  %v1171 = vpop.f32.mrb[0].mxu0
  %1172 = vmatprep.mubr.bf16.mxu0 0
  %1173 = vmatmul.mubr.bf16.gmra.mrb[0].mxu0 %v577
  %v1174 = vpop.f32.mrb[0].mxu0
  %v1175 = vadd.f32 0.0, %v1174
  %v1176 = vpop.f32.mrb[0].mxu0
  %v1177 = vpop.f32.mrb[0].mxu0
  %v1178 = vadd.f32 0.0, %v1177
  %v1179 = vpop.f32.mrb[0].mxu0
  %1180 = vmatprep.mubr.bf16.mxu0 0
  %1181 = vmatmul.mubr.bf16.gmra.mrb[0].mxu0 %v580
  %v1182 = vpop.f32.mrb[0].mxu0
  %v1183 = vadd.f32 0.0, %v1182
  %v1184 = vpop.f32.mrb[0].mxu0
  %v1185 = vpop.f32.mrb[0].mxu0
  %v1186 = vadd.f32 0.0, %v1185
  %v1187 = vpop.f32.mrb[0].mxu0
  %1188 = vmatprep.mubr.bf16.mxu0 0
  %1189 = vmatmul.mubr.bf16.gmra.mrb[0].mxu0 %v583
  %v1190 = vpop.f32.mrb[0].mxu0
  %v1191 = vadd.f32 0.0, %v1190
  %v1192 = vpop.f32.mrb[0].mxu0
  %v1193 = vpop.f32.mrb[0].mxu0
  %v1194 = vadd.f32 0.0, %v1193
  %v1195 = vpop.f32.mrb[0].mxu0
  %1196 = vmatprep.mubr.bf16.mxu0 0
  %1197 = vmatmul.mubr.bf16.gmra.mrb[0].mxu0 %v586
  %v1198 = vpop.f32.mrb[0].mxu0
  %v1199 = vadd.f32 0.0, %v1198
  %v1200 = vpop.f32.mrb[0].mxu0
  %v1201 = vpop.f32.mrb[0].mxu0
  %v1202 = vadd.f32 0.0, %v1201
  %v1203 = vpop.f32.mrb[0].mxu0
  %1204 = vmatprep.mubr.bf16.mxu0 0
  %1205 = vmatmul.mubr.bf16.gmra.mrb[0].mxu0 %v589
  %v1206 = vpop.f32.mrb[0].mxu0
  %v1207 = vadd.f32 0.0, %v1206
  %v1208 = vpop.f32.mrb[0].mxu0
  %v1209 = vpop.f32.mrb[0].mxu0
  %v1210 = vadd.f32 0.0, %v1209
  %v1211 = vpop.f32.mrb[0].mxu0
  %1212 = vmatprep.mubr.bf16.mxu0 0
  %1213 = vmatmul.mubr.bf16.gmra.mrb[0].mxu0 %v592
  %v1214 = vpop.f32.mrb[0].mxu0
  %v1215 = vadd.f32 0.0, %v1214
  %v1216 = vpop.f32.mrb[0].mxu0
  %v1217 = vpop.f32.mrb[0].mxu0
  %v1218 = vadd.f32 0.0, %v1217
  %v1219 = vpop.f32.mrb[0].mxu0
  %1220 = vmatprep.mubr.bf16.mxu0 0
  %1221 = vmatmul.mubr.bf16.gmra.mrb[0].mxu0 %v595
  %v1222 = vpop.f32.mrb[0].mxu0
  %v1223 = vadd.f32 0.0, %v1222
  %v1224 = vpop.f32.mrb[0].mxu0
  %v1225 = vpop.f32.mrb[0].mxu0
  %v1226 = vadd.f32 0.0, %v1225
  %v1227 = vpop.f32.mrb[0].mxu0
  %1228 = vmatprep.mubr.bf16.mxu0 0
  %1229 = vmatmul.mubr.bf16.gmra.mrb[0].mxu0 %v598
  %v1230 = vpop.f32.mrb[0].mxu0
  %v1231 = vadd.f32 0.0, %v1230
  %v1232 = vpop.f32.mrb[0].mxu0
  %v1233 = vpop.f32.mrb[0].mxu0
  %v1234 = vadd.f32 0.0, %v1233
  %v1235 = vpop.f32.mrb[0].mxu0
  %1236 = vmatprep.mubr.bf16.mxu0 0
  %1237 = vmatmul.mubr.bf16.gmra.mrb[0].mxu0 %v601
  %v1238 = vpop.f32.mrb[0].mxu0
  %v1239 = vadd.f32 0.0, %v1238
  %v1240 = vpop.f32.mrb[0].mxu0
  %v1241 = vpop.f32.mrb[0].mxu0
  %v1242 = vadd.f32 0.0, %v1241
  %v1243 = vpop.f32.mrb[0].mxu0
  %1244 = vdwg.mxu0
  %v1245 = vpack.c.bf16 %v642, %v638
  %v1246 = vpack.c.bf16 %v644, %v640
  %v1247 = vpack.c.bf16 %v994, %v991
  %v1248 = vpack.c.bf16 %v652, %v648
  %v1249 = vpack.c.bf16 %v654, %v650
  %v1250 = vpack.c.bf16 %v1002, %v999
  %v1251 = vpack.c.bf16 %v662, %v658
  %v1252 = vpack.c.bf16 %v664, %v660
  %v1253 = vpack.c.bf16 %v1010, %v1007
  %v1254 = vpack.c.bf16 %v672, %v668
  %v1255 = vpack.c.bf16 %v674, %v670
  %v1256 = vpack.c.bf16 %v1018, %v1015
  %v1257 = vpack.c.bf16 %v682, %v678
  %v1258 = vpack.c.bf16 %v684, %v680
  %v1259 = vpack.c.bf16 %v1026, %v1023
  %v1260 = vpack.c.bf16 %v692, %v688
  %v1261 = vpack.c.bf16 %v694, %v690
  %v1262 = vpack.c.bf16 %v1034, %v1031
  %v1263 = vpack.c.bf16 %v702, %v698
  %v1264 = vpack.c.bf16 %v704, %v700
  %v1265 = vpack.c.bf16 %v1042, %v1039
  %v1266 = vpack.c.bf16 %v712, %v708
  %v1267 = vpack.c.bf16 %v714, %v710
  %v1268 = vpack.c.bf16 %v1050, %v1047
  %v1269 = vpack.c.bf16 %v722, %v718
  %v1270 = vpack.c.bf16 %v724, %v720
  %v1271 = vpack.c.bf16 %v1058, %v1055
  %v1272 = vpack.c.bf16 %v732, %v728
  %v1273 = vpack.c.bf16 %v734, %v730
  %v1274 = vpack.c.bf16 %v1066, %v1063
  %v1275 = vpack.c.bf16 %v742, %v738
  %v1276 = vpack.c.bf16 %v744, %v740
  %v1277 = vpack.c.bf16 %v1074, %v1071
  %v1278 = vpack.c.bf16 %v752, %v748
  %v1279 = vpack.c.bf16 %v754, %v750
  %v1280 = vpack.c.bf16 %v1082, %v1079
  %v1281 = vpack.c.bf16 %v762, %v758
  %v1282 = vpack.c.bf16 %v764, %v760
  %v1283 = vpack.c.bf16 %v1090, %v1087
  %v1284 = vpack.c.bf16 %v772, %v768
  %v1285 = vpack.c.bf16 %v774, %v770
  %v1286 = vpack.c.bf16 %v1098, %v1095
  %v1287 = vpack.c.bf16 %v782, %v778
  %v1288 = vpack.c.bf16 %v784, %v780
  %v1289 = vpack.c.bf16 %v1106, %v1103
  %v1290 = vpack.c.bf16 %v792, %v788
  %v1291 = vpack.c.bf16 %v794, %v790
  %v1292 = vpack.c.bf16 %v1114, %v1111
  %v1293 = vpack.c.bf16 %v802, %v798
  %v1294 = vpack.c.bf16 %v804, %v800
  %v1295 = vpack.c.bf16 %v1122, %v1119
  %v1296 = vpack.c.bf16 %v812, %v808
  %v1297 = vpack.c.bf16 %v814, %v810
  %v1298 = vpack.c.bf16 %v1130, %v1127
  %v1299 = vpack.c.bf16 %v822, %v818
  %v1300 = vpack.c.bf16 %v824, %v820
  %v1301 = vpack.c.bf16 %v1138, %v1135
  %v1302 = vpack.c.bf16 %v832, %v828
  %v1303 = vpack.c.bf16 %v834, %v830
  %v1304 = vpack.c.bf16 %v1146, %v1143
  %v1305 = vpack.c.bf16 %v842, %v838
  %v1306 = vpack.c.bf16 %v844, %v840
  %v1307 = vpack.c.bf16 %v1154, %v1151
  %v1308 = vpack.c.bf16 %v852, %v848
  %v1309 = vpack.c.bf16 %v854, %v850
  %v1310 = vpack.c.bf16 %v1162, %v1159
  %v1311 = vpack.c.bf16 %v862, %v858
  %v1312 = vpack.c.bf16 %v864, %v860
  %v1313 = vpack.c.bf16 %v1170, %v1167
  %v1314 = vpack.c.bf16 %v872, %v868
  %v1315 = vpack.c.bf16 %v874, %v870
  %v1316 = vpack.c.bf16 %v1178, %v1175
  %v1317 = vpack.c.bf16 %v882, %v878
  %v1318 = vpack.c.bf16 %v884, %v880
  %v1319 = vpack.c.bf16 %v1186, %v1183
  %v1320 = vpack.c.bf16 %v892, %v888
  %v1321 = vpack.c.bf16 %v894, %v890
  %v1322 = vpack.c.bf16 %v1194, %v1191
  %v1323 = vpack.c.bf16 %v902, %v898
  %v1324 = vpack.c.bf16 %v904, %v900
  %v1325 = vpack.c.bf16 %v1202, %v1199
  %v1326 = vpack.c.bf16 %v912, %v908
  %v1327 = vpack.c.bf16 %v914, %v910
  %v1328 = vpack.c.bf16 %v1210, %v1207
  %v1329 = vpack.c.bf16 %v922, %v918
  %v1330 = vpack.c.bf16 %v924, %v920
  %v1331 = vpack.c.bf16 %v1218, %v1215
  %v1332 = vpack.c.bf16 %v932, %v928
  %v1333 = vpack.c.bf16 %v934, %v930
  %v1334 = vpack.c.bf16 %v1226, %v1223
  %v1335 = vpack.c.bf16 %v942, %v938
  %v1336 = vpack.c.bf16 %v944, %v940
  %v1337 = vpack.c.bf16 %v1234, %v1231
  %v1338 = vpack.c.bf16 %v952, %v948
  %v1339 = vpack.c.bf16 %v954, %v950
  %v1340 = vpack.c.bf16 %v1242, %v1239
  %v1437 = vunpack.c.l.b16 %v1245
  %v1438 = vunpack.c.l.b16 %v1246
  %v1439 = vunpack.c.l.b16 %v1247
  %v1440 = vunpack.c.h.b16 %v1245
  %v1441 = vunpack.c.h.b16 %v1246
  %v1442 = vunpack.c.h.b16 %v1247
  %v1443 = vunpack.c.l.b16 %v1248
  %v1444 = vunpack.c.l.b16 %v1249
  %v1445 = vunpack.c.l.b16 %v1250
  %v1446 = vunpack.c.h.b16 %v1248
  %v1447 = vunpack.c.h.b16 %v1249
  %v1448 = vunpack.c.h.b16 %v1250
  %v1449 = vunpack.c.l.b16 %v1251
  %v1450 = vunpack.c.l.b16 %v1252
  %v1451 = vunpack.c.l.b16 %v1253
  %v1452 = vunpack.c.h.b16 %v1251
  %v1453 = vunpack.c.h.b16 %v1252
  %v1454 = vunpack.c.h.b16 %v1253
  %v1455 = vunpack.c.l.b16 %v1254
  %v1456 = vunpack.c.l.b16 %v1255
  %v1457 = vunpack.c.l.b16 %v1256
  %v1458 = vunpack.c.h.b16 %v1254
  %v1459 = vunpack.c.h.b16 %v1255
  %v1460 = vunpack.c.h.b16 %v1256
  %v1461 = vunpack.c.l.b16 %v1257
  %v1462 = vunpack.c.l.b16 %v1258
  %v1463 = vunpack.c.l.b16 %v1259
  %v1464 = vunpack.c.h.b16 %v1257
  %v1465 = vunpack.c.h.b16 %v1258
  %v1466 = vunpack.c.h.b16 %v1259
  %v1467 = vunpack.c.l.b16 %v1260
  %v1468 = vunpack.c.l.b16 %v1261
  %v1469 = vunpack.c.l.b16 %v1262
  %v1470 = vunpack.c.h.b16 %v1260
  %v1471 = vunpack.c.h.b16 %v1261
  %v1472 = vunpack.c.h.b16 %v1262
  %v1473 = vunpack.c.l.b16 %v1263
  %v1474 = vunpack.c.l.b16 %v1264
  %v1475 = vunpack.c.l.b16 %v1265
  %v1476 = vunpack.c.h.b16 %v1263
  %v1477 = vunpack.c.h.b16 %v1264
  %v1478 = vunpack.c.h.b16 %v1265
  %v1479 = vunpack.c.l.b16 %v1266
  %v1480 = vunpack.c.l.b16 %v1267
  %v1481 = vunpack.c.l.b16 %v1268
  %v1482 = vunpack.c.h.b16 %v1266
  %v1483 = vunpack.c.h.b16 %v1267
  %v1484 = vunpack.c.h.b16 %v1268
  %v1485 = vunpack.c.l.b16 %v1269
  %v1486 = vunpack.c.l.b16 %v1270
  %v1487 = vunpack.c.l.b16 %v1271
  %v1488 = vunpack.c.h.b16 %v1269
  %v1489 = vunpack.c.h.b16 %v1270
  %v1490 = vunpack.c.h.b16 %v1271
  %v1491 = vunpack.c.l.b16 %v1272
  %v1492 = vunpack.c.l.b16 %v1273
  %v1493 = vunpack.c.l.b16 %v1274
  %v1494 = vunpack.c.h.b16 %v1272
  %v1495 = vunpack.c.h.b16 %v1273
  %v1496 = vunpack.c.h.b16 %v1274
  %v1497 = vunpack.c.l.b16 %v1275
  %v1498 = vunpack.c.l.b16 %v1276
  %v1499 = vunpack.c.l.b16 %v1277
  %v1500 = vunpack.c.h.b16 %v1275
  %v1501 = vunpack.c.h.b16 %v1276
  %v1502 = vunpack.c.h.b16 %v1277
  %v1503 = vunpack.c.l.b16 %v1278
  %v1504 = vunpack.c.l.b16 %v1279
  %v1505 = vunpack.c.l.b16 %v1280
  %v1506 = vunpack.c.h.b16 %v1278
  %v1507 = vunpack.c.h.b16 %v1279
  %v1508 = vunpack.c.h.b16 %v1280
  %v1509 = vunpack.c.l.b16 %v1281
  %v1510 = vunpack.c.l.b16 %v1282
  %v1511 = vunpack.c.l.b16 %v1283
  %v1512 = vunpack.c.h.b16 %v1281
  %v1513 = vunpack.c.h.b16 %v1282
  %v1514 = vunpack.c.h.b16 %v1283
  %v1515 = vunpack.c.l.b16 %v1284
  %v1516 = vunpack.c.l.b16 %v1285
  %v1517 = vunpack.c.l.b16 %v1286
  %v1518 = vunpack.c.h.b16 %v1284
  %v1519 = vunpack.c.h.b16 %v1285
  %v1520 = vunpack.c.h.b16 %v1286
  %v1521 = vunpack.c.l.b16 %v1287
  %v1522 = vunpack.c.l.b16 %v1288
  %v1523 = vunpack.c.l.b16 %v1289
  %v1524 = vunpack.c.h.b16 %v1287
  %v1525 = vunpack.c.h.b16 %v1288
  %v1526 = vunpack.c.h.b16 %v1289
  %v1527 = vunpack.c.l.b16 %v1290
  %v1528 = vunpack.c.l.b16 %v1291
  %v1529 = vunpack.c.l.b16 %v1292
  %v1530 = vunpack.c.h.b16 %v1290
  %v1531 = vunpack.c.h.b16 %v1291
  %v1532 = vunpack.c.h.b16 %v1292
  %v1533 = vunpack.c.l.b16 %v1293
  %v1534 = vunpack.c.l.b16 %v1294
  %v1535 = vunpack.c.l.b16 %v1295
  %v1536 = vunpack.c.h.b16 %v1293
  %v1537 = vunpack.c.h.b16 %v1294
  %v1538 = vunpack.c.h.b16 %v1295
  %v1539 = vunpack.c.l.b16 %v1296
  %v1540 = vunpack.c.l.b16 %v1297
  %v1541 = vunpack.c.l.b16 %v1298
  %v1542 = vunpack.c.h.b16 %v1296
  %v1543 = vunpack.c.h.b16 %v1297
  %v1544 = vunpack.c.h.b16 %v1298
  %v1545 = vunpack.c.l.b16 %v1299
  %v1546 = vunpack.c.l.b16 %v1300
  %v1547 = vunpack.c.l.b16 %v1301
  %v1548 = vunpack.c.h.b16 %v1299
  %v1549 = vunpack.c.h.b16 %v1300
  %v1550 = vunpack.c.h.b16 %v1301
  %v1551 = vunpack.c.l.b16 %v1302
  %v1552 = vunpack.c.l.b16 %v1303
  %v1553 = vunpack.c.l.b16 %v1304
  %v1554 = vunpack.c.h.b16 %v1302
  %v1555 = vunpack.c.h.b16 %v1303
  %v1556 = vunpack.c.h.b16 %v1304
  %v1557 = vunpack.c.l.b16 %v1305
  %v1558 = vunpack.c.l.b16 %v1306
  %v1559 = vunpack.c.l.b16 %v1307
  %v1560 = vunpack.c.h.b16 %v1305
  %v1561 = vunpack.c.h.b16 %v1306
  %v1562 = vunpack.c.h.b16 %v1307
  %v1563 = vunpack.c.l.b16 %v1308
  %v1564 = vunpack.c.l.b16 %v1309
  %v1565 = vunpack.c.l.b16 %v1310
  %v1566 = vunpack.c.h.b16 %v1308
  %v1567 = vunpack.c.h.b16 %v1309
  %v1568 = vunpack.c.h.b16 %v1310
  %v1569 = vunpack.c.l.b16 %v1311
  %v1570 = vunpack.c.l.b16 %v1312
  %v1571 = vunpack.c.l.b16 %v1313
  %v1572 = vunpack.c.h.b16 %v1311
  %v1573 = vunpack.c.h.b16 %v1312
  %v1574 = vunpack.c.h.b16 %v1313
  %v1575 = vunpack.c.l.b16 %v1314
  %v1576 = vunpack.c.l.b16 %v1315
  %v1577 = vunpack.c.l.b16 %v1316
  %v1578 = vunpack.c.h.b16 %v1314
  %v1579 = vunpack.c.h.b16 %v1315
  %v1580 = vunpack.c.h.b16 %v1316
  %v1581 = vunpack.c.l.b16 %v1317
  %v1582 = vunpack.c.l.b16 %v1318
  %v1583 = vunpack.c.l.b16 %v1319
  %v1584 = vunpack.c.h.b16 %v1317
  %v1585 = vunpack.c.h.b16 %v1318
  %v1586 = vunpack.c.h.b16 %v1319
  %v1587 = vunpack.c.l.b16 %v1320
  %v1588 = vunpack.c.l.b16 %v1321
  %v1589 = vunpack.c.l.b16 %v1322
  %v1590 = vunpack.c.h.b16 %v1320
  %v1591 = vunpack.c.h.b16 %v1321
  %v1592 = vunpack.c.h.b16 %v1322
  %v1593 = vunpack.c.l.b16 %v1323
  %v1594 = vunpack.c.l.b16 %v1324
  %v1595 = vunpack.c.l.b16 %v1325
  %v1596 = vunpack.c.h.b16 %v1323
  %v1597 = vunpack.c.h.b16 %v1324
  %v1598 = vunpack.c.h.b16 %v1325
  %v1599 = vunpack.c.l.b16 %v1326
  %v1600 = vunpack.c.l.b16 %v1327
  %v1601 = vunpack.c.l.b16 %v1328
  %v1602 = vunpack.c.h.b16 %v1326
  %v1603 = vunpack.c.h.b16 %v1327
  %v1604 = vunpack.c.h.b16 %v1328
  %v1605 = vunpack.c.l.b16 %v1329
  %v1606 = vunpack.c.l.b16 %v1330
  %v1607 = vunpack.c.l.b16 %v1331
  %v1608 = vunpack.c.h.b16 %v1329
  %v1609 = vunpack.c.h.b16 %v1330
  %v1610 = vunpack.c.h.b16 %v1331
  %v1611 = vunpack.c.l.b16 %v1332
  %v1612 = vunpack.c.l.b16 %v1333
  %v1613 = vunpack.c.l.b16 %v1334
  %v1614 = vunpack.c.h.b16 %v1332
  %v1615 = vunpack.c.h.b16 %v1333
  %v1616 = vunpack.c.h.b16 %v1334
  %v1617 = vunpack.c.l.b16 %v1335
  %v1618 = vunpack.c.l.b16 %v1336
  %v1619 = vunpack.c.l.b16 %v1337
  %v1620 = vunpack.c.h.b16 %v1335
  %v1621 = vunpack.c.h.b16 %v1336
  %v1622 = vunpack.c.h.b16 %v1337
  %v1623 = vunpack.c.l.b16 %v1338
  %v1624 = vunpack.c.l.b16 %v1339
  %v1625 = vunpack.c.l.b16 %v1340
  %v1626 = vunpack.c.h.b16 %v1338
  %v1627 = vunpack.c.h.b16 %v1339
  %v1628 = vunpack.c.h.b16 %v1340
  %v1629 = vpack.c.b16 %v1438, %v1437
  %v1630 = vpack.c.b16 %v1439, %v1439
  %v1631 = vpack.c.b16 %v1441, %v1440
  %v1632 = vpack.c.b16 %v1442, %v1442
  %v1633 = vpack.c.b16 %v1444, %v1443
  %v1634 = vpack.c.b16 %v1445, %v1445
  %v1635 = vpack.c.b16 %v1447, %v1446
  %v1636 = vpack.c.b16 %v1448, %v1448
  %v1637 = vpack.c.b16 %v1450, %v1449
  %v1638 = vpack.c.b16 %v1451, %v1451
  %v1639 = vpack.c.b16 %v1453, %v1452
  %v1640 = vpack.c.b16 %v1454, %v1454
  %v1641 = vpack.c.b16 %v1456, %v1455
  %v1642 = vpack.c.b16 %v1457, %v1457
  %v1643 = vpack.c.b16 %v1459, %v1458
  %v1644 = vpack.c.b16 %v1460, %v1460
  %v1645 = vpack.c.b16 %v1462, %v1461
  %v1646 = vpack.c.b16 %v1463, %v1463
  %v1647 = vpack.c.b16 %v1465, %v1464
  %v1648 = vpack.c.b16 %v1466, %v1466
  %v1649 = vpack.c.b16 %v1468, %v1467
  %v1650 = vpack.c.b16 %v1469, %v1469
  %v1651 = vpack.c.b16 %v1471, %v1470
  %v1652 = vpack.c.b16 %v1472, %v1472
  %v1653 = vpack.c.b16 %v1474, %v1473
  %v1654 = vpack.c.b16 %v1475, %v1475
  %v1655 = vpack.c.b16 %v1477, %v1476
  %v1656 = vpack.c.b16 %v1478, %v1478
  %v1657 = vpack.c.b16 %v1480, %v1479
  %v1658 = vpack.c.b16 %v1481, %v1481
  %v1659 = vpack.c.b16 %v1483, %v1482
  %v1660 = vpack.c.b16 %v1484, %v1484
  %v1661 = vpack.c.b16 %v1486, %v1485
  %v1662 = vpack.c.b16 %v1487, %v1487
  %v1663 = vpack.c.b16 %v1489, %v1488
  %v1664 = vpack.c.b16 %v1490, %v1490
  %v1665 = vpack.c.b16 %v1492, %v1491
  %v1666 = vpack.c.b16 %v1493, %v1493
  %v1667 = vpack.c.b16 %v1495, %v1494
  %v1668 = vpack.c.b16 %v1496, %v1496
  %v1669 = vpack.c.b16 %v1498, %v1497
  %v1670 = vpack.c.b16 %v1499, %v1499
  %v1671 = vpack.c.b16 %v1501, %v1500
  %v1672 = vpack.c.b16 %v1502, %v1502
  %v1673 = vpack.c.b16 %v1504, %v1503
  %v1674 = vpack.c.b16 %v1505, %v1505
  %v1675 = vpack.c.b16 %v1507, %v1506
  %v1676 = vpack.c.b16 %v1508, %v1508
  %v1677 = vpack.c.b16 %v1510, %v1509
  %v1678 = vpack.c.b16 %v1511, %v1511
  %v1679 = vpack.c.b16 %v1513, %v1512
  %v1680 = vpack.c.b16 %v1514, %v1514
  %v1681 = vpack.c.b16 %v1516, %v1515
  %v1682 = vpack.c.b16 %v1517, %v1517
  %v1683 = vpack.c.b16 %v1519, %v1518
  %v1684 = vpack.c.b16 %v1520, %v1520
  %v1685 = vpack.c.b16 %v1522, %v1521
  %v1686 = vpack.c.b16 %v1523, %v1523
  %v1687 = vpack.c.b16 %v1525, %v1524
  %v1688 = vpack.c.b16 %v1526, %v1526
  %v1689 = vpack.c.b16 %v1528, %v1527
  %v1690 = vpack.c.b16 %v1529, %v1529
  %v1691 = vpack.c.b16 %v1531, %v1530
  %v1692 = vpack.c.b16 %v1532, %v1532
  %v1693 = vpack.c.b16 %v1534, %v1533
  %v1694 = vpack.c.b16 %v1535, %v1535
  %v1695 = vpack.c.b16 %v1537, %v1536
  %v1696 = vpack.c.b16 %v1538, %v1538
  %v1697 = vpack.c.b16 %v1540, %v1539
  %v1698 = vpack.c.b16 %v1541, %v1541
  %v1699 = vpack.c.b16 %v1543, %v1542
  %v1700 = vpack.c.b16 %v1544, %v1544
  %v1701 = vpack.c.b16 %v1546, %v1545
  %v1702 = vpack.c.b16 %v1547, %v1547
  %v1703 = vpack.c.b16 %v1549, %v1548
  %v1704 = vpack.c.b16 %v1550, %v1550
  %v1705 = vpack.c.b16 %v1552, %v1551
  %v1706 = vpack.c.b16 %v1553, %v1553
  %v1707 = vpack.c.b16 %v1555, %v1554
  %v1708 = vpack.c.b16 %v1556, %v1556
  %v1709 = vpack.c.b16 %v1558, %v1557
  %v1710 = vpack.c.b16 %v1559, %v1559
  %v1711 = vpack.c.b16 %v1561, %v1560
  %v1712 = vpack.c.b16 %v1562, %v1562
  %v1713 = vpack.c.b16 %v1564, %v1563
  %v1714 = vpack.c.b16 %v1565, %v1565
  %v1715 = vpack.c.b16 %v1567, %v1566
  %v1716 = vpack.c.b16 %v1568, %v1568
  %v1717 = vpack.c.b16 %v1570, %v1569
  %v1718 = vpack.c.b16 %v1571, %v1571
  %v1719 = vpack.c.b16 %v1573, %v1572
  %v1720 = vpack.c.b16 %v1574, %v1574
  %v1721 = vpack.c.b16 %v1576, %v1575
  %v1722 = vpack.c.b16 %v1577, %v1577
  %v1723 = vpack.c.b16 %v1579, %v1578
  %v1724 = vpack.c.b16 %v1580, %v1580
  %v1725 = vpack.c.b16 %v1582, %v1581
  %v1726 = vpack.c.b16 %v1583, %v1583
  %v1727 = vpack.c.b16 %v1585, %v1584
  %v1728 = vpack.c.b16 %v1586, %v1586
  %v1729 = vpack.c.b16 %v1588, %v1587
  %v1730 = vpack.c.b16 %v1589, %v1589
  %v1731 = vpack.c.b16 %v1591, %v1590
  %v1732 = vpack.c.b16 %v1592, %v1592
  %v1733 = vpack.c.b16 %v1594, %v1593
  %v1734 = vpack.c.b16 %v1595, %v1595
  %v1735 = vpack.c.b16 %v1597, %v1596
  %v1736 = vpack.c.b16 %v1598, %v1598
  %v1737 = vpack.c.b16 %v1600, %v1599
  %v1738 = vpack.c.b16 %v1601, %v1601
  %v1739 = vpack.c.b16 %v1603, %v1602
  %v1740 = vpack.c.b16 %v1604, %v1604
  %v1741 = vpack.c.b16 %v1606, %v1605
  %v1742 = vpack.c.b16 %v1607, %v1607
  %v1743 = vpack.c.b16 %v1609, %v1608
  %v1744 = vpack.c.b16 %v1610, %v1610
  %v1745 = vpack.c.b16 %v1612, %v1611
  %v1746 = vpack.c.b16 %v1613, %v1613
  %v1747 = vpack.c.b16 %v1615, %v1614
  %v1748 = vpack.c.b16 %v1616, %v1616
  %v1749 = vpack.c.b16 %v1618, %v1617
  %v1750 = vpack.c.b16 %v1619, %v1619
  %v1751 = vpack.c.b16 %v1621, %v1620
  %v1752 = vpack.c.b16 %v1622, %v1622
  %v1753 = vpack.c.b16 %v1624, %v1623
  %v1754 = vpack.c.b16 %v1625, %v1625
  %v1755 = vpack.c.b16 %v1627, %v1626
  %v1756 = vpack.c.b16 %v1628, %v1628
  %1885 = vst [vmem:[%s4] sm:$0xff] %v1629
  %1886 = vst [vmem:[%s4 + $0x8] sm:$0xf] %v1630
  %1887 = vst [vmem:[%s4 + $0xc] sm:$0xff] %v1631
  %1888 = vst [vmem:[%s4 + $0x14] sm:$0xf] %v1632
  %1889 = vst [vmem:[%s4 + $0x18] sm:$0xff] %v1633
  %1890 = vst [vmem:[%s4 + $0x20] sm:$0xf] %v1634
  %1891 = vst [vmem:[%s4 + $0x24] sm:$0xff] %v1635
  %1892 = vst [vmem:[%s4 + $0x2c] sm:$0xf] %v1636
  %1893 = vst [vmem:[%s4 + $0x30] sm:$0xff] %v1637
  %1894 = vst [vmem:[%s4 + $0x38] sm:$0xf] %v1638
  %1895 = vst [vmem:[%s4 + $0x3c] sm:$0xff] %v1639
  %1896 = vst [vmem:[%s4 + $0x44] sm:$0xf] %v1640
  %1897 = vst [vmem:[%s4 + $0x48] sm:$0xff] %v1641
  %1898 = vst [vmem:[%s4 + $0x50] sm:$0xf] %v1642
  %1899 = vst [vmem:[%s4 + $0x54] sm:$0xff] %v1643
  %1900 = vst [vmem:[%s4 + $0x5c] sm:$0xf] %v1644
  %1901 = vst [vmem:[%s4 + $0x60] sm:$0xff] %v1645
  %1902 = vst [vmem:[%s4 + $0x68] sm:$0xf] %v1646
  %1903 = vst [vmem:[%s4 + $0x6c] sm:$0xff] %v1647
  %1904 = vst [vmem:[%s4 + $0x74] sm:$0xf] %v1648
  %1905 = vst [vmem:[%s4 + $0x78] sm:$0xff] %v1649
  %1906 = vst [vmem:[%s4 + $0x80] sm:$0xf] %v1650
  %1907 = vst [vmem:[%s4 + $0x84] sm:$0xff] %v1651
  %1908 = vst [vmem:[%s4 + $0x8c] sm:$0xf] %v1652
  %1909 = vst [vmem:[%s4 + $0x90] sm:$0xff] %v1653
  %1910 = vst [vmem:[%s4 + $0x98] sm:$0xf] %v1654
  %1911 = vst [vmem:[%s4 + $0x9c] sm:$0xff] %v1655
  %1912 = vst [vmem:[%s4 + $0xa4] sm:$0xf] %v1656
  %1913 = vst [vmem:[%s4 + $0xa8] sm:$0xff] %v1657
  %1914 = vst [vmem:[%s4 + $0xb0] sm:$0xf] %v1658
  %1915 = vst [vmem:[%s4 + $0xb4] sm:$0xff] %v1659
  %1916 = vst [vmem:[%s4 + $0xbc] sm:$0xf] %v1660
  %1917 = vst [vmem:[%s4 + $0xc0] sm:$0xff] %v1661
  %1918 = vst [vmem:[%s4 + $0xc8] sm:$0xf] %v1662
  %1919 = vst [vmem:[%s4 + $0xcc] sm:$0xff] %v1663
  %1920 = vst [vmem:[%s4 + $0xd4] sm:$0xf] %v1664
  %1921 = vst [vmem:[%s4 + $0xd8] sm:$0xff] %v1665
  %1922 = vst [vmem:[%s4 + $0xe0] sm:$0xf] %v1666
  %1923 = vst [vmem:[%s4 + $0xe4] sm:$0xff] %v1667
  %1924 = vst [vmem:[%s4 + $0xec] sm:$0xf] %v1668
  %1925 = vst [vmem:[%s4 + $0xf0] sm:$0xff] %v1669
  %1926 = vst [vmem:[%s4 + $0xf8] sm:$0xf] %v1670
  %1927 = vst [vmem:[%s4 + $0xfc] sm:$0xff] %v1671
  %1928 = vst [vmem:[%s4 + $0x104] sm:$0xf] %v1672
  %1929 = vst [vmem:[%s4 + $0x108] sm:$0xff] %v1673
  %1930 = vst [vmem:[%s4 + $0x110] sm:$0xf] %v1674
  %1931 = vst [vmem:[%s4 + $0x114] sm:$0xff] %v1675
  %1932 = vst [vmem:[%s4 + $0x11c] sm:$0xf] %v1676
  %1933 = vst [vmem:[%s4 + $0x120] sm:$0xff] %v1677
  %1934 = vst [vmem:[%s4 + $0x128] sm:$0xf] %v1678
  %1935 = vst [vmem:[%s4 + $0x12c] sm:$0xff] %v1679
  %1936 = vst [vmem:[%s4 + $0x134] sm:$0xf] %v1680
  %1937 = vst [vmem:[%s4 + $0x138] sm:$0xff] %v1681
  %1938 = vst [vmem:[%s4 + $0x140] sm:$0xf] %v1682
  %1939 = vst [vmem:[%s4 + $0x144] sm:$0xff] %v1683
  %1940 = vst [vmem:[%s4 + $0x14c] sm:$0xf] %v1684
  %1941 = vst [vmem:[%s4 + $0x150] sm:$0xff] %v1685
  %1942 = vst [vmem:[%s4 + $0x158] sm:$0xf] %v1686
  %1943 = vst [vmem:[%s4 + $0x15c] sm:$0xff] %v1687
  %1944 = vst [vmem:[%s4 + $0x164] sm:$0xf] %v1688
  %1945 = vst [vmem:[%s4 + $0x168] sm:$0xff] %v1689
  %1946 = vst [vmem:[%s4 + $0x170] sm:$0xf] %v1690
  %1947 = vst [vmem:[%s4 + $0x174] sm:$0xff] %v1691
  %1948 = vst [vmem:[%s4 + $0x17c] sm:$0xf] %v1692
  %1949 = vst [vmem:[%s4 + $0x180] sm:$0xff] %v1693
  %1950 = vst [vmem:[%s4 + $0x188] sm:$0xf] %v1694
  %1951 = vst [vmem:[%s4 + $0x18c] sm:$0xff] %v1695
  %1952 = vst [vmem:[%s4 + $0x194] sm:$0xf] %v1696
  %1953 = vst [vmem:[%s4 + $0x198] sm:$0xff] %v1697
  %1954 = vst [vmem:[%s4 + $0x1a0] sm:$0xf] %v1698
  %1955 = vst [vmem:[%s4 + $0x1a4] sm:$0xff] %v1699
  %1956 = vst [vmem:[%s4 + $0x1ac] sm:$0xf] %v1700
  %1957 = vst [vmem:[%s4 + $0x1b0] sm:$0xff] %v1701
  %1958 = vst [vmem:[%s4 + $0x1b8] sm:$0xf] %v1702
  %1959 = vst [vmem:[%s4 + $0x1bc] sm:$0xff] %v1703
  %1960 = vst [vmem:[%s4 + $0x1c4] sm:$0xf] %v1704
  %1961 = vst [vmem:[%s4 + $0x1c8] sm:$0xff] %v1705
  %1962 = vst [vmem:[%s4 + $0x1d0] sm:$0xf] %v1706
  %1963 = vst [vmem:[%s4 + $0x1d4] sm:$0xff] %v1707
  %1964 = vst [vmem:[%s4 + $0x1dc] sm:$0xf] %v1708
  %1965 = vst [vmem:[%s4 + $0x1e0] sm:$0xff] %v1709
  %1966 = vst [vmem:[%s4 + $0x1e8] sm:$0xf] %v1710
  %1967 = vst [vmem:[%s4 + $0x1ec] sm:$0xff] %v1711
  %1968 = vst [vmem:[%s4 + $0x1f4] sm:$0xf] %v1712
  %1969 = vst [vmem:[%s4 + $0x1f8] sm:$0xff] %v1713
  %1970 = vst [vmem:[%s4 + $0x200] sm:$0xf] %v1714
  %1971 = vst [vmem:[%s4 + $0x204] sm:$0xff] %v1715
  %1972 = vst [vmem:[%s4 + $0x20c] sm:$0xf] %v1716
  %1973 = vst [vmem:[%s4 + $0x210] sm:$0xff] %v1717
  %1974 = vst [vmem:[%s4 + $0x218] sm:$0xf] %v1718
  %1975 = vst [vmem:[%s4 + $0x21c] sm:$0xff] %v1719
  %1976 = vst [vmem:[%s4 + $0x224] sm:$0xf] %v1720
  %1977 = vst [vmem:[%s4 + $0x228] sm:$0xff] %v1721
  %1978 = vst [vmem:[%s4 + $0x230] sm:$0xf] %v1722
  %1979 = vst [vmem:[%s4 + $0x234] sm:$0xff] %v1723
  %1980 = vst [vmem:[%s4 + $0x23c] sm:$0xf] %v1724
  %1981 = vst [vmem:[%s4 + $0x240] sm:$0xff] %v1725
  %1982 = vst [vmem:[%s4 + $0x248] sm:$0xf] %v1726
  %1983 = vst [vmem:[%s4 + $0x24c] sm:$0xff] %v1727
  %1984 = vst [vmem:[%s4 + $0x254] sm:$0xf] %v1728
  %1985 = vst [vmem:[%s4 + $0x258] sm:$0xff] %v1729
  %1986 = vst [vmem:[%s4 + $0x260] sm:$0xf] %v1730
  %1987 = vst [vmem:[%s4 + $0x264] sm:$0xff] %v1731
  %1988 = vst [vmem:[%s4 + $0x26c] sm:$0xf] %v1732
  %1989 = vst [vmem:[%s4 + $0x270] sm:$0xff] %v1733
  %1990 = vst [vmem:[%s4 + $0x278] sm:$0xf] %v1734
  %1991 = vst [vmem:[%s4 + $0x27c] sm:$0xff] %v1735
  %1992 = vst [vmem:[%s4 + $0x284] sm:$0xf] %v1736
  %1993 = vst [vmem:[%s4 + $0x288] sm:$0xff] %v1737
  %1994 = vst [vmem:[%s4 + $0x290] sm:$0xf] %v1738
  %1995 = vst [vmem:[%s4 + $0x294] sm:$0xff] %v1739
  %1996 = vst [vmem:[%s4 + $0x29c] sm:$0xf] %v1740
  %1997 = vst [vmem:[%s4 + $0x2a0] sm:$0xff] %v1741
  %1998 = vst [vmem:[%s4 + $0x2a8] sm:$0xf] %v1742
  %1999 = vst [vmem:[%s4 + $0x2ac] sm:$0xff] %v1743
  %2000 = vst [vmem:[%s4 + $0x2b4] sm:$0xf] %v1744
  %2001 = vst [vmem:[%s4 + $0x2b8] sm:$0xff] %v1745
  %2002 = vst [vmem:[%s4 + $0x2c0] sm:$0xf] %v1746
  %2003 = vst [vmem:[%s4 + $0x2c4] sm:$0xff] %v1747
  %2004 = vst [vmem:[%s4 + $0x2cc] sm:$0xf] %v1748
  %2005 = vst [vmem:[%s4 + $0x2d0] sm:$0xff] %v1749
  %2006 = vst [vmem:[%s4 + $0x2d8] sm:$0xf] %v1750
  %2007 = vst [vmem:[%s4 + $0x2dc] sm:$0xff] %v1751
  %2008 = vst [vmem:[%s4 + $0x2e4] sm:$0xf] %v1752
  %2009 = vst [vmem:[%s4 + $0x2e8] sm:$0xff] %v1753
  %2010 = vst [vmem:[%s4 + $0x2f0] sm:$0xf] %v1754
  %2011 = vst [vmem:[%s4 + $0x2f4] sm:$0xff] %v1755
  %2012 = vst [vmem:[%s4 + $0x2fc] sm:$0xf] %v1756
  %v2013 = vadd.f32 %v638, %v642
  %v2014 = vadd.f32 %v2013, %v648
  %v2015 = vadd.f32 %v2014, %v652
  %v2016 = vadd.f32 %v2015, %v658
  %v2017 = vadd.f32 %v2016, %v662
  %v2018 = vadd.f32 %v2017, %v668
  %v2019 = vadd.f32 %v2018, %v672
  %v2020 = vadd.f32 %v2019, %v678
  %v2021 = vadd.f32 %v2020, %v682
  %v2022 = vadd.f32 %v2021, %v688
  %v2023 = vadd.f32 %v2022, %v692
  %v2024 = vadd.f32 %v2023, %v698
  %v2025 = vadd.f32 %v2024, %v702
  %v2026 = vadd.f32 %v2025, %v708
  %v2027 = vadd.f32 %v2026, %v712
  %v2028 = vadd.f32 %v2027, %v718
  %v2029 = vadd.f32 %v2028, %v722
  %v2030 = vadd.f32 %v2029, %v728
  %v2031 = vadd.f32 %v2030, %v732
  %v2032 = vadd.f32 %v2031, %v738
  %v2033 = vadd.f32 %v2032, %v742
  %v2034 = vadd.f32 %v2033, %v748
  %v2035 = vadd.f32 %v2034, %v752
  %v2036 = vadd.f32 %v2035, %v758
  %v2037 = vadd.f32 %v2036, %v762
  %v2038 = vadd.f32 %v2037, %v768
  %v2039 = vadd.f32 %v2038, %v772
  %v2040 = vadd.f32 %v2039, %v778
  %v2041 = vadd.f32 %v2040, %v782
  %v2042 = vadd.f32 %v2041, %v788
  %v2043 = vadd.f32 %v2042, %v792
  %v2044 = vadd.f32 %v2043, %v798
  %v2045 = vadd.f32 %v2044, %v802
  %v2046 = vadd.f32 %v2045, %v808
  %v2047 = vadd.f32 %v2046, %v812
  %v2048 = vadd.f32 %v2047, %v818
  %v2049 = vadd.f32 %v2048, %v822
  %v2050 = vadd.f32 %v2049, %v828
  %v2051 = vadd.f32 %v2050, %v832
  %v2052 = vadd.f32 %v2051, %v838
  %v2053 = vadd.f32 %v2052, %v842
  %v2054 = vadd.f32 %v2053, %v848
  %v2055 = vadd.f32 %v2054, %v852
  %v2056 = vadd.f32 %v2055, %v858
  %v2057 = vadd.f32 %v2056, %v862
  %v2058 = vadd.f32 %v2057, %v868
  %v2059 = vadd.f32 %v2058, %v872
  %v2060 = vadd.f32 %v2059, %v878
  %v2061 = vadd.f32 %v2060, %v882
  %v2062 = vadd.f32 %v2061, %v888
  %v2063 = vadd.f32 %v2062, %v892
  %v2064 = vadd.f32 %v2063, %v898
  %v2065 = vadd.f32 %v2064, %v902
  %v2066 = vadd.f32 %v2065, %v908
  %v2067 = vadd.f32 %v2066, %v912
  %v2068 = vadd.f32 %v2067, %v918
  %v2069 = vadd.f32 %v2068, %v922
  %v2070 = vadd.f32 %v2069, %v928
  %v2071 = vadd.f32 %v2070, %v932
  %v2072 = vadd.f32 %v2071, %v938
  %v2073 = vadd.f32 %v2072, %v942
  %v2074 = vadd.f32 %v2073, %v948
  %v2075 = vadd.f32 %v2074, %v952
  %v2076 = vrot.slane %v2075, 4
  %v2077 = vadd.f32 %v2075, %v2076
  %v2078 = vrot.slane %v2077, 2
  %v2079 = vadd.f32 %v2077, %v2078
  %v2080 = vrot.slane %v2079, 1
  %v2081 = vadd.f32 %v2079, %v2080
  %v2082 = vadd.f32 %v640, %v644
  %v2083 = vadd.f32 %v2082, %v650
  %v2084 = vadd.f32 %v2083, %v654
  %v2085 = vadd.f32 %v2084, %v660
  %v2086 = vadd.f32 %v2085, %v664
  %v2087 = vadd.f32 %v2086, %v670
  %v2088 = vadd.f32 %v2087, %v674
  %v2089 = vadd.f32 %v2088, %v680
  %v2090 = vadd.f32 %v2089, %v684
  %v2091 = vadd.f32 %v2090, %v690
  %v2092 = vadd.f32 %v2091, %v694
  %v2093 = vadd.f32 %v2092, %v700
  %v2094 = vadd.f32 %v2093, %v704
  %v2095 = vadd.f32 %v2094, %v710
  %v2096 = vadd.f32 %v2095, %v714
  %v2097 = vadd.f32 %v2096, %v720
  %v2098 = vadd.f32 %v2097, %v724
  %v2099 = vadd.f32 %v2098, %v730
  %v2100 = vadd.f32 %v2099, %v734
  %v2101 = vadd.f32 %v2100, %v740
  %v2102 = vadd.f32 %v2101, %v744
  %v2103 = vadd.f32 %v2102, %v750
  %v2104 = vadd.f32 %v2103, %v754
  %v2105 = vadd.f32 %v2104, %v760
  %v2106 = vadd.f32 %v2105, %v764
  %v2107 = vadd.f32 %v2106, %v770
  %v2108 = vadd.f32 %v2107, %v774
  %v2109 = vadd.f32 %v2108, %v780
  %v2110 = vadd.f32 %v2109, %v784
  %v2111 = vadd.f32 %v2110, %v790
  %v2112 = vadd.f32 %v2111, %v794
  %v2113 = vadd.f32 %v2112, %v800
  %v2114 = vadd.f32 %v2113, %v804
  %v2115 = vadd.f32 %v2114, %v810
  %v2116 = vadd.f32 %v2115, %v814
  %v2117 = vadd.f32 %v2116, %v820
  %v2118 = vadd.f32 %v2117, %v824
  %v2119 = vadd.f32 %v2118, %v830
  %v2120 = vadd.f32 %v2119, %v834
  %v2121 = vadd.f32 %v2120, %v840
  %v2122 = vadd.f32 %v2121, %v844
  %v2123 = vadd.f32 %v2122, %v850
  %v2124 = vadd.f32 %v2123, %v854
  %v2125 = vadd.f32 %v2124, %v860
  %v2126 = vadd.f32 %v2125, %v864
  %v2127 = vadd.f32 %v2126, %v870
  %v2128 = vadd.f32 %v2127, %v874
  %v2129 = vadd.f32 %v2128, %v880
  %v2130 = vadd.f32 %v2129, %v884
  %v2131 = vadd.f32 %v2130, %v890
  %v2132 = vadd.f32 %v2131, %v894
  %v2133 = vadd.f32 %v2132, %v900
  %v2134 = vadd.f32 %v2133, %v904
  %v2135 = vadd.f32 %v2134, %v910
  %v2136 = vadd.f32 %v2135, %v914
  %v2137 = vadd.f32 %v2136, %v920
  %v2138 = vadd.f32 %v2137, %v924
  %v2139 = vadd.f32 %v2138, %v930
  %v2140 = vadd.f32 %v2139, %v934
  %v2141 = vadd.f32 %v2140, %v940
  %v2142 = vadd.f32 %v2141, %v944
  %v2143 = vadd.f32 %v2142, %v950
  %v2144 = vadd.f32 %v2143, %v954
  %v2145 = vrot.slane %v2144, 4
  %v2146 = vadd.f32 %v2144, %v2145
  %v2147 = vrot.slane %v2146, 2
  %v2148 = vadd.f32 %v2146, %v2147
  %v2149 = vrot.slane %v2148, 1
  %v2150 = vadd.f32 %v2148, %v2149
  %v2151 = vadd.f32 %v991, %v994
  %v2152 = vadd.f32 %v2151, %v999
  %v2153 = vadd.f32 %v2152, %v1002
  %v2154 = vadd.f32 %v2153, %v1007
  %v2155 = vadd.f32 %v2154, %v1010
  %v2156 = vadd.f32 %v2155, %v1015
  %v2157 = vadd.f32 %v2156, %v1018
  %v2158 = vadd.f32 %v2157, %v1023
  %v2159 = vadd.f32 %v2158, %v1026
  %v2160 = vadd.f32 %v2159, %v1031
  %v2161 = vadd.f32 %v2160, %v1034
  %v2162 = vadd.f32 %v2161, %v1039
  %v2163 = vadd.f32 %v2162, %v1042
  %v2164 = vadd.f32 %v2163, %v1047
  %v2165 = vadd.f32 %v2164, %v1050
  %v2166 = vadd.f32 %v2165, %v1055
  %v2167 = vadd.f32 %v2166, %v1058
  %v2168 = vadd.f32 %v2167, %v1063
  %v2169 = vadd.f32 %v2168, %v1066
  %v2170 = vadd.f32 %v2169, %v1071
  %v2171 = vadd.f32 %v2170, %v1074
  %v2172 = vadd.f32 %v2171, %v1079
  %v2173 = vadd.f32 %v2172, %v1082
  %v2174 = vadd.f32 %v2173, %v1087
  %v2175 = vadd.f32 %v2174, %v1090
  %v2176 = vadd.f32 %v2175, %v1095
  %v2177 = vadd.f32 %v2176, %v1098
  %v2178 = vadd.f32 %v2177, %v1103
  %v2179 = vadd.f32 %v2178, %v1106
  %v2180 = vadd.f32 %v2179, %v1111
  %v2181 = vadd.f32 %v2180, %v1114
  %v2182 = vadd.f32 %v2181, %v1119
  %v2183 = vadd.f32 %v2182, %v1122
  %v2184 = vadd.f32 %v2183, %v1127
  %v2185 = vadd.f32 %v2184, %v1130
  %v2186 = vadd.f32 %v2185, %v1135
  %v2187 = vadd.f32 %v2186, %v1138
  %v2188 = vadd.f32 %v2187, %v1143
  %v2189 = vadd.f32 %v2188, %v1146
  %v2190 = vadd.f32 %v2189, %v1151
  %v2191 = vadd.f32 %v2190, %v1154
  %v2192 = vadd.f32 %v2191, %v1159
  %v2193 = vadd.f32 %v2192, %v1162
  %v2194 = vadd.f32 %v2193, %v1167
  %v2195 = vadd.f32 %v2194, %v1170
  %v2196 = vadd.f32 %v2195, %v1175
  %v2197 = vadd.f32 %v2196, %v1178
  %v2198 = vadd.f32 %v2197, %v1183
  %v2199 = vadd.f32 %v2198, %v1186
  %v2200 = vadd.f32 %v2199, %v1191
  %v2201 = vadd.f32 %v2200, %v1194
  %v2202 = vadd.f32 %v2201, %v1199
  %v2203 = vadd.f32 %v2202, %v1202
  %v2204 = vadd.f32 %v2203, %v1207
  %v2205 = vadd.f32 %v2204, %v1210
  %v2206 = vadd.f32 %v2205, %v1215
  %v2207 = vadd.f32 %v2206, %v1218
  %v2208 = vadd.f32 %v2207, %v1223
  %v2209 = vadd.f32 %v2208, %v1226
  %v2210 = vadd.f32 %v2209, %v1231
  %v2211 = vadd.f32 %v2210, %v1234
  %v2212 = vadd.f32 %v2211, %v1239
  %v2213 = vadd.f32 %v2212, %v1242
  %v2214 = vrot.slane %v2213, 4
  %v2215 = vadd.f32 %v2213, %v2214
  %v2216 = vrot.slane %v2215, 2
  %v2217 = vadd.f32 %v2215, %v2216
  %v2218 = vrot.slane %v2217, 1
  %v2219 = vadd.f32 %v2217, %v2218
  %v2223 = vcombine.low %v2081, %v2150
  %v2225 = vunpack.c.l.s4 1966171168
  %v2226 = vunpack.c.0.s8 %v2225
  %v2227 = vlaneseq
  %v2228 = vshrl.u32 %v2227, 7
  %v2229 = vsub.s32 %v2226, %v2228
  %v2230 = vrot.slane %v2223, %v2229
  %v2232 = vunpack.c.l.s4 1966171168
  %v2233 = vunpack.c.0.s8 %v2232
  %v2234 = vlaneseq
  %v2235 = vshrl.u32 %v2234, 7
  %v2236 = vsub.s32 %v2233, %v2235
  %v2237 = vrot.slane %v2219, %v2236
  %v2238 = vcombine.low %v2230, %v2237
  %v2240 = vunpack.c.l.s4 1966171168
  %v2241 = vunpack.c.0.s8 %v2240
  %v2242 = vlaneseq
  %v2243 = vshrl.u32 %v2242, 7
  %v2244 = vsub.s32 %v2241, %v2243
  %v2245 = vrot.slane %v2238, %v2244
  %v2247 = vlaneseq
  %vm2248 = vcmp.ge.s32.totalorder %v2247, 0
  %vm2249 = vcmp.lt.s32.totalorder %v2247, 384
  %vm2250 = vmand %vm2248, %vm2249
  %2251 = vst.msk [vmem:[%s5] ss:$2 sm:$0x7] %vm2250, %v2245
  %v2252 = vmul.f32 %v638, %v638
  %v2253 = vmul.f32 %v640, %v640
  %v2254 = vmul.f32 %v991, %v991
  %v2255 = vmul.f32 %v642, %v642
  %v2256 = vmul.f32 %v644, %v644
  %v2257 = vmul.f32 %v994, %v994
  %v2258 = vmul.f32 %v648, %v648
  %v2259 = vmul.f32 %v650, %v650
  %v2260 = vmul.f32 %v999, %v999
  %v2261 = vmul.f32 %v652, %v652
  %v2262 = vmul.f32 %v654, %v654
  %v2263 = vmul.f32 %v1002, %v1002
  %v2264 = vmul.f32 %v658, %v658
  %v2265 = vmul.f32 %v660, %v660
  %v2266 = vmul.f32 %v1007, %v1007
  %v2267 = vmul.f32 %v662, %v662
  %v2268 = vmul.f32 %v664, %v664
  %v2269 = vmul.f32 %v1010, %v1010
  %v2270 = vmul.f32 %v668, %v668
  %v2271 = vmul.f32 %v670, %v670
  %v2272 = vmul.f32 %v1015, %v1015
  %v2273 = vmul.f32 %v672, %v672
  %v2274 = vmul.f32 %v674, %v674
  %v2275 = vmul.f32 %v1018, %v1018
  %v2276 = vmul.f32 %v678, %v678
  %v2277 = vmul.f32 %v680, %v680
  %v2278 = vmul.f32 %v1023, %v1023
  %v2279 = vmul.f32 %v682, %v682
  %v2280 = vmul.f32 %v684, %v684
  %v2281 = vmul.f32 %v1026, %v1026
  %v2282 = vmul.f32 %v688, %v688
  %v2283 = vmul.f32 %v690, %v690
  %v2284 = vmul.f32 %v1031, %v1031
  %v2285 = vmul.f32 %v692, %v692
  %v2286 = vmul.f32 %v694, %v694
  %v2287 = vmul.f32 %v1034, %v1034
  %v2288 = vmul.f32 %v698, %v698
  %v2289 = vmul.f32 %v700, %v700
  %v2290 = vmul.f32 %v1039, %v1039
  %v2291 = vmul.f32 %v702, %v702
  %v2292 = vmul.f32 %v704, %v704
  %v2293 = vmul.f32 %v1042, %v1042
  %v2294 = vmul.f32 %v708, %v708
  %v2295 = vmul.f32 %v710, %v710
  %v2296 = vmul.f32 %v1047, %v1047
  %v2297 = vmul.f32 %v712, %v712
  %v2298 = vmul.f32 %v714, %v714
  %v2299 = vmul.f32 %v1050, %v1050
  %v2300 = vmul.f32 %v718, %v718
  %v2301 = vmul.f32 %v720, %v720
  %v2302 = vmul.f32 %v1055, %v1055
  %v2303 = vmul.f32 %v722, %v722
  %v2304 = vmul.f32 %v724, %v724
  %v2305 = vmul.f32 %v1058, %v1058
  %v2306 = vmul.f32 %v728, %v728
  %v2307 = vmul.f32 %v730, %v730
  %v2308 = vmul.f32 %v1063, %v1063
  %v2309 = vmul.f32 %v732, %v732
  %v2310 = vmul.f32 %v734, %v734
  %v2311 = vmul.f32 %v1066, %v1066
  %v2312 = vmul.f32 %v738, %v738
  %v2313 = vmul.f32 %v740, %v740
  %v2314 = vmul.f32 %v1071, %v1071
  %v2315 = vmul.f32 %v742, %v742
  %v2316 = vmul.f32 %v744, %v744
  %v2317 = vmul.f32 %v1074, %v1074
  %v2318 = vmul.f32 %v748, %v748
  %v2319 = vmul.f32 %v750, %v750
  %v2320 = vmul.f32 %v1079, %v1079
  %v2321 = vmul.f32 %v752, %v752
  %v2322 = vmul.f32 %v754, %v754
  %v2323 = vmul.f32 %v1082, %v1082
  %v2324 = vmul.f32 %v758, %v758
  %v2325 = vmul.f32 %v760, %v760
  %v2326 = vmul.f32 %v1087, %v1087
  %v2327 = vmul.f32 %v762, %v762
  %v2328 = vmul.f32 %v764, %v764
  %v2329 = vmul.f32 %v1090, %v1090
  %v2330 = vmul.f32 %v768, %v768
  %v2331 = vmul.f32 %v770, %v770
  %v2332 = vmul.f32 %v1095, %v1095
  %v2333 = vmul.f32 %v772, %v772
  %v2334 = vmul.f32 %v774, %v774
  %v2335 = vmul.f32 %v1098, %v1098
  %v2336 = vmul.f32 %v778, %v778
  %v2337 = vmul.f32 %v780, %v780
  %v2338 = vmul.f32 %v1103, %v1103
  %v2339 = vmul.f32 %v782, %v782
  %v2340 = vmul.f32 %v784, %v784
  %v2341 = vmul.f32 %v1106, %v1106
  %v2342 = vmul.f32 %v788, %v788
  %v2343 = vmul.f32 %v790, %v790
  %v2344 = vmul.f32 %v1111, %v1111
  %v2345 = vmul.f32 %v792, %v792
  %v2346 = vmul.f32 %v794, %v794
  %v2347 = vmul.f32 %v1114, %v1114
  %v2348 = vmul.f32 %v798, %v798
  %v2349 = vmul.f32 %v800, %v800
  %v2350 = vmul.f32 %v1119, %v1119
  %v2351 = vmul.f32 %v802, %v802
  %v2352 = vmul.f32 %v804, %v804
  %v2353 = vmul.f32 %v1122, %v1122
  %v2354 = vmul.f32 %v808, %v808
  %v2355 = vmul.f32 %v810, %v810
  %v2356 = vmul.f32 %v1127, %v1127
  %v2357 = vmul.f32 %v812, %v812
  %v2358 = vmul.f32 %v814, %v814
  %v2359 = vmul.f32 %v1130, %v1130
  %v2360 = vmul.f32 %v818, %v818
  %v2361 = vmul.f32 %v820, %v820
  %v2362 = vmul.f32 %v1135, %v1135
  %v2363 = vmul.f32 %v822, %v822
  %v2364 = vmul.f32 %v824, %v824
  %v2365 = vmul.f32 %v1138, %v1138
  %v2366 = vmul.f32 %v828, %v828
  %v2367 = vmul.f32 %v830, %v830
  %v2368 = vmul.f32 %v1143, %v1143
  %v2369 = vmul.f32 %v832, %v832
  %v2370 = vmul.f32 %v834, %v834
  %v2371 = vmul.f32 %v1146, %v1146
  %v2372 = vmul.f32 %v838, %v838
  %v2373 = vmul.f32 %v840, %v840
  %v2374 = vmul.f32 %v1151, %v1151
  %v2375 = vmul.f32 %v842, %v842
  %v2376 = vmul.f32 %v844, %v844
  %v2377 = vmul.f32 %v1154, %v1154
  %v2378 = vmul.f32 %v848, %v848
  %v2379 = vmul.f32 %v850, %v850
  %v2380 = vmul.f32 %v1159, %v1159
  %v2381 = vmul.f32 %v852, %v852
  %v2382 = vmul.f32 %v854, %v854
  %v2383 = vmul.f32 %v1162, %v1162
  %v2384 = vmul.f32 %v858, %v858
  %v2385 = vmul.f32 %v860, %v860
  %v2386 = vmul.f32 %v1167, %v1167
  %v2387 = vmul.f32 %v862, %v862
  %v2388 = vmul.f32 %v864, %v864
  %v2389 = vmul.f32 %v1170, %v1170
  %v2390 = vmul.f32 %v868, %v868
  %v2391 = vmul.f32 %v870, %v870
  %v2392 = vmul.f32 %v1175, %v1175
  %v2393 = vmul.f32 %v872, %v872
  %v2394 = vmul.f32 %v874, %v874
  %v2395 = vmul.f32 %v1178, %v1178
  %v2396 = vmul.f32 %v878, %v878
  %v2397 = vmul.f32 %v880, %v880
  %v2398 = vmul.f32 %v1183, %v1183
  %v2399 = vmul.f32 %v882, %v882
  %v2400 = vmul.f32 %v884, %v884
  %v2401 = vmul.f32 %v1186, %v1186
  %v2402 = vmul.f32 %v888, %v888
  %v2403 = vmul.f32 %v890, %v890
  %v2404 = vmul.f32 %v1191, %v1191
  %v2405 = vmul.f32 %v892, %v892
  %v2406 = vmul.f32 %v894, %v894
  %v2407 = vmul.f32 %v1194, %v1194
  %v2408 = vmul.f32 %v898, %v898
  %v2409 = vmul.f32 %v900, %v900
  %v2410 = vmul.f32 %v1199, %v1199
  %v2411 = vmul.f32 %v902, %v902
  %v2412 = vmul.f32 %v904, %v904
  %v2413 = vmul.f32 %v1202, %v1202
  %v2414 = vmul.f32 %v908, %v908
  %v2415 = vmul.f32 %v910, %v910
  %v2416 = vmul.f32 %v1207, %v1207
  %v2417 = vmul.f32 %v912, %v912
  %v2418 = vmul.f32 %v914, %v914
  %v2419 = vmul.f32 %v1210, %v1210
  %v2420 = vmul.f32 %v918, %v918
  %v2421 = vmul.f32 %v920, %v920
  %v2422 = vmul.f32 %v1215, %v1215
  %v2423 = vmul.f32 %v922, %v922
  %v2424 = vmul.f32 %v924, %v924
  %v2425 = vmul.f32 %v1218, %v1218
  %v2426 = vmul.f32 %v928, %v928
  %v2427 = vmul.f32 %v930, %v930
  %v2428 = vmul.f32 %v1223, %v1223
  %v2429 = vmul.f32 %v932, %v932
  %v2430 = vmul.f32 %v934, %v934
  %v2431 = vmul.f32 %v1226, %v1226
  %v2432 = vmul.f32 %v938, %v938
  %v2433 = vmul.f32 %v940, %v940
  %v2434 = vmul.f32 %v1231, %v1231
  %v2435 = vmul.f32 %v942, %v942
  %v2436 = vmul.f32 %v944, %v944
  %v2437 = vmul.f32 %v1234, %v1234
  %v2438 = vmul.f32 %v948, %v948
  %v2439 = vmul.f32 %v950, %v950
  %v2440 = vmul.f32 %v1239, %v1239
  %v2441 = vmul.f32 %v952, %v952
  %v2442 = vmul.f32 %v954, %v954
  %v2443 = vmul.f32 %v1242, %v1242
  %v2444 = vadd.f32 %v2252, %v2255
  %v2445 = vadd.f32 %v2444, %v2258
  %v2446 = vadd.f32 %v2445, %v2261
  %v2447 = vadd.f32 %v2446, %v2264
  %v2448 = vadd.f32 %v2447, %v2267
  %v2449 = vadd.f32 %v2448, %v2270
  %v2450 = vadd.f32 %v2449, %v2273
  %v2451 = vadd.f32 %v2450, %v2276
  %v2452 = vadd.f32 %v2451, %v2279
  %v2453 = vadd.f32 %v2452, %v2282
  %v2454 = vadd.f32 %v2453, %v2285
  %v2455 = vadd.f32 %v2454, %v2288
  %v2456 = vadd.f32 %v2455, %v2291
  %v2457 = vadd.f32 %v2456, %v2294
  %v2458 = vadd.f32 %v2457, %v2297
  %v2459 = vadd.f32 %v2458, %v2300
  %v2460 = vadd.f32 %v2459, %v2303
  %v2461 = vadd.f32 %v2460, %v2306
  %v2462 = vadd.f32 %v2461, %v2309
  %v2463 = vadd.f32 %v2462, %v2312
  %v2464 = vadd.f32 %v2463, %v2315
  %v2465 = vadd.f32 %v2464, %v2318
  %v2466 = vadd.f32 %v2465, %v2321
  %v2467 = vadd.f32 %v2466, %v2324
  %v2468 = vadd.f32 %v2467, %v2327
  %v2469 = vadd.f32 %v2468, %v2330
  %v2470 = vadd.f32 %v2469, %v2333
  %v2471 = vadd.f32 %v2470, %v2336
  %v2472 = vadd.f32 %v2471, %v2339
  %v2473 = vadd.f32 %v2472, %v2342
  %v2474 = vadd.f32 %v2473, %v2345
  %v2475 = vadd.f32 %v2474, %v2348
  %v2476 = vadd.f32 %v2475, %v2351
  %v2477 = vadd.f32 %v2476, %v2354
  %v2478 = vadd.f32 %v2477, %v2357
  %v2479 = vadd.f32 %v2478, %v2360
  %v2480 = vadd.f32 %v2479, %v2363
  %v2481 = vadd.f32 %v2480, %v2366
  %v2482 = vadd.f32 %v2481, %v2369
  %v2483 = vadd.f32 %v2482, %v2372
  %v2484 = vadd.f32 %v2483, %v2375
  %v2485 = vadd.f32 %v2484, %v2378
  %v2486 = vadd.f32 %v2485, %v2381
  %v2487 = vadd.f32 %v2486, %v2384
  %v2488 = vadd.f32 %v2487, %v2387
  %v2489 = vadd.f32 %v2488, %v2390
  %v2490 = vadd.f32 %v2489, %v2393
  %v2491 = vadd.f32 %v2490, %v2396
  %v2492 = vadd.f32 %v2491, %v2399
  %v2493 = vadd.f32 %v2492, %v2402
  %v2494 = vadd.f32 %v2493, %v2405
  %v2495 = vadd.f32 %v2494, %v2408
  %v2496 = vadd.f32 %v2495, %v2411
  %v2497 = vadd.f32 %v2496, %v2414
  %v2498 = vadd.f32 %v2497, %v2417
  %v2499 = vadd.f32 %v2498, %v2420
  %v2500 = vadd.f32 %v2499, %v2423
  %v2501 = vadd.f32 %v2500, %v2426
  %v2502 = vadd.f32 %v2501, %v2429
  %v2503 = vadd.f32 %v2502, %v2432
  %v2504 = vadd.f32 %v2503, %v2435
  %v2505 = vadd.f32 %v2504, %v2438
  %v2506 = vadd.f32 %v2505, %v2441
  %v2507 = vrot.slane %v2506, 4
  %v2508 = vadd.f32 %v2506, %v2507
  %v2509 = vrot.slane %v2508, 2
  %v2510 = vadd.f32 %v2508, %v2509
  %v2511 = vrot.slane %v2510, 1
  %v2512 = vadd.f32 %v2510, %v2511
  %v2513 = vadd.f32 %v2253, %v2256
  %v2514 = vadd.f32 %v2513, %v2259
  %v2515 = vadd.f32 %v2514, %v2262
  %v2516 = vadd.f32 %v2515, %v2265
  %v2517 = vadd.f32 %v2516, %v2268
  %v2518 = vadd.f32 %v2517, %v2271
  %v2519 = vadd.f32 %v2518, %v2274
  %v2520 = vadd.f32 %v2519, %v2277
  %v2521 = vadd.f32 %v2520, %v2280
  %v2522 = vadd.f32 %v2521, %v2283
  %v2523 = vadd.f32 %v2522, %v2286
  %v2524 = vadd.f32 %v2523, %v2289
  %v2525 = vadd.f32 %v2524, %v2292
  %v2526 = vadd.f32 %v2525, %v2295
  %v2527 = vadd.f32 %v2526, %v2298
  %v2528 = vadd.f32 %v2527, %v2301
  %v2529 = vadd.f32 %v2528, %v2304
  %v2530 = vadd.f32 %v2529, %v2307
  %v2531 = vadd.f32 %v2530, %v2310
  %v2532 = vadd.f32 %v2531, %v2313
  %v2533 = vadd.f32 %v2532, %v2316
  %v2534 = vadd.f32 %v2533, %v2319
  %v2535 = vadd.f32 %v2534, %v2322
  %v2536 = vadd.f32 %v2535, %v2325
  %v2537 = vadd.f32 %v2536, %v2328
  %v2538 = vadd.f32 %v2537, %v2331
  %v2539 = vadd.f32 %v2538, %v2334
  %v2540 = vadd.f32 %v2539, %v2337
  %v2541 = vadd.f32 %v2540, %v2340
  %v2542 = vadd.f32 %v2541, %v2343
  %v2543 = vadd.f32 %v2542, %v2346
  %v2544 = vadd.f32 %v2543, %v2349
  %v2545 = vadd.f32 %v2544, %v2352
  %v2546 = vadd.f32 %v2545, %v2355
  %v2547 = vadd.f32 %v2546, %v2358
  %v2548 = vadd.f32 %v2547, %v2361
  %v2549 = vadd.f32 %v2548, %v2364
  %v2550 = vadd.f32 %v2549, %v2367
  %v2551 = vadd.f32 %v2550, %v2370
  %v2552 = vadd.f32 %v2551, %v2373
  %v2553 = vadd.f32 %v2552, %v2376
  %v2554 = vadd.f32 %v2553, %v2379
  %v2555 = vadd.f32 %v2554, %v2382
  %v2556 = vadd.f32 %v2555, %v2385
  %v2557 = vadd.f32 %v2556, %v2388
  %v2558 = vadd.f32 %v2557, %v2391
  %v2559 = vadd.f32 %v2558, %v2394
  %v2560 = vadd.f32 %v2559, %v2397
  %v2561 = vadd.f32 %v2560, %v2400
  %v2562 = vadd.f32 %v2561, %v2403
  %v2563 = vadd.f32 %v2562, %v2406
  %v2564 = vadd.f32 %v2563, %v2409
  %v2565 = vadd.f32 %v2564, %v2412
  %v2566 = vadd.f32 %v2565, %v2415
  %v2567 = vadd.f32 %v2566, %v2418
  %v2568 = vadd.f32 %v2567, %v2421
  %v2569 = vadd.f32 %v2568, %v2424
  %v2570 = vadd.f32 %v2569, %v2427
  %v2571 = vadd.f32 %v2570, %v2430
  %v2572 = vadd.f32 %v2571, %v2433
  %v2573 = vadd.f32 %v2572, %v2436
  %v2574 = vadd.f32 %v2573, %v2439
  %v2575 = vadd.f32 %v2574, %v2442
  %v2576 = vrot.slane %v2575, 4
  %v2577 = vadd.f32 %v2575, %v2576
  %v2578 = vrot.slane %v2577, 2
  %v2579 = vadd.f32 %v2577, %v2578
  %v2580 = vrot.slane %v2579, 1
  %v2581 = vadd.f32 %v2579, %v2580
  %v2582 = vadd.f32 %v2254, %v2257
  %v2583 = vadd.f32 %v2582, %v2260
  %v2584 = vadd.f32 %v2583, %v2263
  %v2585 = vadd.f32 %v2584, %v2266
  %v2586 = vadd.f32 %v2585, %v2269
  %v2587 = vadd.f32 %v2586, %v2272
  %v2588 = vadd.f32 %v2587, %v2275
  %v2589 = vadd.f32 %v2588, %v2278
  %v2590 = vadd.f32 %v2589, %v2281
  %v2591 = vadd.f32 %v2590, %v2284
  %v2592 = vadd.f32 %v2591, %v2287
  %v2593 = vadd.f32 %v2592, %v2290
  %v2594 = vadd.f32 %v2593, %v2293
  %v2595 = vadd.f32 %v2594, %v2296
  %v2596 = vadd.f32 %v2595, %v2299
  %v2597 = vadd.f32 %v2596, %v2302
  %v2598 = vadd.f32 %v2597, %v2305
  %v2599 = vadd.f32 %v2598, %v2308
  %v2600 = vadd.f32 %v2599, %v2311
  %v2601 = vadd.f32 %v2600, %v2314
  %v2602 = vadd.f32 %v2601, %v2317
  %v2603 = vadd.f32 %v2602, %v2320
  %v2604 = vadd.f32 %v2603, %v2323
  %v2605 = vadd.f32 %v2604, %v2326
  %v2606 = vadd.f32 %v2605, %v2329
  %v2607 = vadd.f32 %v2606, %v2332
  %v2608 = vadd.f32 %v2607, %v2335
  %v2609 = vadd.f32 %v2608, %v2338
  %v2610 = vadd.f32 %v2609, %v2341
  %v2611 = vadd.f32 %v2610, %v2344
  %v2612 = vadd.f32 %v2611, %v2347
  %v2613 = vadd.f32 %v2612, %v2350
  %v2614 = vadd.f32 %v2613, %v2353
  %v2615 = vadd.f32 %v2614, %v2356
  %v2616 = vadd.f32 %v2615, %v2359
  %v2617 = vadd.f32 %v2616, %v2362
  %v2618 = vadd.f32 %v2617, %v2365
  %v2619 = vadd.f32 %v2618, %v2368
  %v2620 = vadd.f32 %v2619, %v2371
  %v2621 = vadd.f32 %v2620, %v2374
  %v2622 = vadd.f32 %v2621, %v2377
  %v2623 = vadd.f32 %v2622, %v2380
  %v2624 = vadd.f32 %v2623, %v2383
  %v2625 = vadd.f32 %v2624, %v2386
  %v2626 = vadd.f32 %v2625, %v2389
  %v2627 = vadd.f32 %v2626, %v2392
  %v2628 = vadd.f32 %v2627, %v2395
  %v2629 = vadd.f32 %v2628, %v2398
  %v2630 = vadd.f32 %v2629, %v2401
  %v2631 = vadd.f32 %v2630, %v2404
  %v2632 = vadd.f32 %v2631, %v2407
  %v2633 = vadd.f32 %v2632, %v2410
  %v2634 = vadd.f32 %v2633, %v2413
  %v2635 = vadd.f32 %v2634, %v2416
  %v2636 = vadd.f32 %v2635, %v2419
  %v2637 = vadd.f32 %v2636, %v2422
  %v2638 = vadd.f32 %v2637, %v2425
  %v2639 = vadd.f32 %v2638, %v2428
  %v2640 = vadd.f32 %v2639, %v2431
  %v2641 = vadd.f32 %v2640, %v2434
  %v2642 = vadd.f32 %v2641, %v2437
  %v2643 = vadd.f32 %v2642, %v2440
  %v2644 = vadd.f32 %v2643, %v2443
  %v2645 = vrot.slane %v2644, 4
  %v2646 = vadd.f32 %v2644, %v2645
  %v2647 = vrot.slane %v2646, 2
  %v2648 = vadd.f32 %v2646, %v2647
  %v2649 = vrot.slane %v2648, 1
  %v2650 = vadd.f32 %v2648, %v2649
  %v2654 = vcombine.low %v2512, %v2581
  %v2656 = vunpack.c.l.s4 1966171168
  %v2657 = vunpack.c.0.s8 %v2656
  %v2658 = vlaneseq
  %v2659 = vshrl.u32 %v2658, 7
  %v2660 = vsub.s32 %v2657, %v2659
  %v2661 = vrot.slane %v2654, %v2660
  %v2663 = vunpack.c.l.s4 1966171168
  %v2664 = vunpack.c.0.s8 %v2663
  %v2665 = vlaneseq
  %v2666 = vshrl.u32 %v2665, 7
  %v2667 = vsub.s32 %v2664, %v2666
  %v2668 = vrot.slane %v2650, %v2667
  %v2669 = vcombine.low %v2661, %v2668
  %v2671 = vunpack.c.l.s4 1966171168
  %v2672 = vunpack.c.0.s8 %v2671
  %v2673 = vlaneseq
  %v2674 = vshrl.u32 %v2673, 7
  %v2675 = vsub.s32 %v2672, %v2674
  %v2676 = vrot.slane %v2669, %v2675
  %s2678 = scalar_lea.vmem %s5, 1
  %2679 = vst.msk [vmem:[%s2678] ss:$2 sm:$0x7] %vm2250, %v2676
  // Predicated region
  $region18: #{stcae_decoder_forward.8} parent=0 // pred_check
    _
  $region19: #{stcae_decoder_forward.8} parent=0 // pred_check_branch
    %2681 = sbr.rel (0) target = $region21
  $region20: #{stcae_decoder_forward.8} parent=0 // pred_region
    _
  $region21: #{stcae_decoder_forward.8} parent=0 // pred_fallthru
    _
  // Predicated region
  $region22: #{stcae_decoder_forward.8} parent=0 // pred_check
    _
  $region23: #{stcae_decoder_forward.8} parent=0 // pred_check_branch
    %2683 = sbr.rel (0) target = $region25
  $region24: #{stcae_decoder_forward.8} parent=0 // pred_region
    _
  $region25: #{stcae_decoder_forward.8} parent=0 // pred_fallthru
    _
  // Predicated region
  $region26: #{stcae_decoder_forward.8} parent=0 // pred_check
    _
  $region27: #{stcae_decoder_forward.8} parent=0 // pred_check_branch
    %2685 = sbr.rel (0) target = $region29
  $region28: #{stcae_decoder_forward.8} parent=0 // pred_region
    _
  $region29: #{stcae_decoder_forward.8} parent=0 // pred_fallthru
    _
  // Predicated region
  $region30: #{stcae_decoder_forward.8} parent=0 // pred_check
    _
  $region31: #{stcae_decoder_forward.8} parent=0 // pred_check_branch
    %2687 = sbr.rel (0) target = $region33
  $region32: #{stcae_decoder_forward.8} parent=0 // pred_region
    _
  $region33: #{stcae_decoder_forward.8} parent=0 // pred_fallthru
    _

// kernel: stcae_decoder_forward.9
$region0: #{stcae_decoder_forward.9}
  #allocation0 [shape = 'u32[]', space=smem, size = 0x4, offset = 0x4, fixed_abs, tag = 'smem constant byte address 0x4 - core index']
  #allocation1 [shape = 'u32[144,128]{1,0:T(1,128)}', space=vmem, size = 0x12000, scoped, tag = 'internal scratch']
  %s0 = inlined_call_operand.vmem [shape: bf16[2048,96], index: 0, kind: input, shape index: {}]
  %s1 = inlined_call_operand.vmem [shape: f32[1,96], index: 1, kind: input, shape index: {}]
  %s2 = inlined_call_operand.vmem [shape: f32[1,96], index: 2, kind: input, shape index: {}]
  %s3 = inlined_call_operand.vmem [shape: bf16[96,256], index: 3, kind: input, shape index: {}]
  %s4 = inlined_call_operand.vmem [shape: f32[1,256], index: 4, kind: input, shape index: {}]
  %s5 = inlined_call_operand.vmem [shape: f32[2048,256], index: 5, kind: output, shape index: {}]
  %s6 = sld [smem:[#allocation0]]
  $region30: #{stcae_decoder_forward.9} parent=0
    _
  %s8 = ssub.s32 1, %s6
  %s9 = scalar_select 0, %s8, %s6
  // Predicated region
  $region2: #{stcae_decoder_forward.9} parent=0 // pred_check
    _
  $region3: #{stcae_decoder_forward.9} parent=0 // pred_check_branch
    %11 = sbr.rel (0) target = $region5
  $region4: #{stcae_decoder_forward.9} parent=0 // pred_region
    _
  $region5: #{stcae_decoder_forward.9} parent=0 // pred_fallthru
    _
  // Predicated region
  $region6: #{stcae_decoder_forward.9} parent=0 // pred_check
    _
  $region7: #{stcae_decoder_forward.9} parent=0 // pred_check_branch
    %13 = sbr.rel (0) target = $region9
  $region8: #{stcae_decoder_forward.9} parent=0 // pred_region
    _
  $region9: #{stcae_decoder_forward.9} parent=0 // pred_fallthru
    _
  // Predicated region
  $region10: #{stcae_decoder_forward.9} parent=0 // pred_check
    _
  $region11: #{stcae_decoder_forward.9} parent=0 // pred_check_branch
    %15 = sbr.rel (0) target = $region13
  $region12: #{stcae_decoder_forward.9} parent=0 // pred_region
    _
  $region13: #{stcae_decoder_forward.9} parent=0 // pred_fallthru
    _
  // Predicated region
  $region14: #{stcae_decoder_forward.9} parent=0 // pred_check
    _
  $region15: #{stcae_decoder_forward.9} parent=0 // pred_check_branch
    %17 = sbr.rel (0) target = $region17
  $region16: #{stcae_decoder_forward.9} parent=0 // pred_region
    _
  $region17: #{stcae_decoder_forward.9} parent=0 // pred_fallthru
    _
  // Predicated region
  $region18: #{stcae_decoder_forward.9} parent=0 // pred_check
    _
  $region19: #{stcae_decoder_forward.9} parent=0 // pred_check_branch
    %19 = sbr.rel (0) target = $region21
  $region20: #{stcae_decoder_forward.9} parent=0 // pred_region
    _
  $region21: #{stcae_decoder_forward.9} parent=0 // pred_fallthru
    _
  %v21 = vld [vmem:[%s0] sm:$0xf]
  %v22 = vld [vmem:[%s0 + $0x4] sm:$0xf]
  %v23 = vld [vmem:[%s0 + $0x8] sm:$0xf]
  %v24 = vld [vmem:[%s0 + $0xc] sm:$0xf]
  %v25 = vld [vmem:[%s0 + $0x10] sm:$0xf]
  %v26 = vld [vmem:[%s0 + $0x14] sm:$0xf]
  %v27 = vld [vmem:[%s0 + $0x18] sm:$0xf]
  %v28 = vld [vmem:[%s0 + $0x1c] sm:$0xf]
  %v29 = vld [vmem:[%s0 + $0x20] sm:$0xf]
  %v30 = vld [vmem:[%s0 + $0x24] sm:$0xf]
  %v31 = vld [vmem:[%s0 + $0x28] sm:$0xf]
  %v32 = vld [vmem:[%s0 + $0x2c] sm:$0xf]
  %v33 = vld [vmem:[%s0 + $0x30] sm:$0xf]
  %v34 = vld [vmem:[%s0 + $0x34] sm:$0xf]
  %v35 = vld [vmem:[%s0 + $0x38] sm:$0xf]
  %v36 = vld [vmem:[%s0 + $0x3c] sm:$0xf]
  %v37 = vld [vmem:[%s0 + $0x40] sm:$0xf]
  %v38 = vld [vmem:[%s0 + $0x44] sm:$0xf]
  %v39 = vld [vmem:[%s0 + $0x48] sm:$0xf]
  %v40 = vld [vmem:[%s0 + $0x4c] sm:$0xf]
  %v41 = vld [vmem:[%s0 + $0x50] sm:$0xf]
  %v42 = vld [vmem:[%s0 + $0x54] sm:$0xf]
  %v43 = vld [vmem:[%s0 + $0x58] sm:$0xf]
  %v44 = vld [vmem:[%s0 + $0x5c] sm:$0xf]
  %v45 = vld [vmem:[%s0 + $0x60] sm:$0xf]
  %v46 = vld [vmem:[%s0 + $0x64] sm:$0xf]
  %v47 = vld [vmem:[%s0 + $0x68] sm:$0xf]
  %v48 = vld [vmem:[%s0 + $0x6c] sm:$0xf]
  %v49 = vld [vmem:[%s0 + $0x70] sm:$0xf]
  %v50 = vld [vmem:[%s0 + $0x74] sm:$0xf]
  %v51 = vld [vmem:[%s0 + $0x78] sm:$0xf]
  %v52 = vld [vmem:[%s0 + $0x7c] sm:$0xf]
  %v53 = vld [vmem:[%s0 + $0x80] sm:$0xf]
  %v54 = vld [vmem:[%s0 + $0x84] sm:$0xf]
  %v55 = vld [vmem:[%s0 + $0x88] sm:$0xf]
  %v56 = vld [vmem:[%s0 + $0x8c] sm:$0xf]
  %v57 = vld [vmem:[%s0 + $0x90] sm:$0xf]
  %v58 = vld [vmem:[%s0 + $0x94] sm:$0xf]
  %v59 = vld [vmem:[%s0 + $0x98] sm:$0xf]
  %v60 = vld [vmem:[%s0 + $0x9c] sm:$0xf]
  %v61 = vld [vmem:[%s0 + $0xa0] sm:$0xf]
  %v62 = vld [vmem:[%s0 + $0xa4] sm:$0xf]
  %v63 = vld [vmem:[%s0 + $0xa8] sm:$0xf]
  %v64 = vld [vmem:[%s0 + $0xac] sm:$0xf]
  %v65 = vld [vmem:[%s0 + $0xb0] sm:$0xf]
  %v66 = vld [vmem:[%s0 + $0xb4] sm:$0xf]
  %v67 = vld [vmem:[%s0 + $0xb8] sm:$0xf]
  %v68 = vld [vmem:[%s0 + $0xbc] sm:$0xf]
  %v69 = vld [vmem:[%s0 + $0xc0] sm:$0xf]
  %v70 = vld [vmem:[%s0 + $0xc4] sm:$0xf]
  %v71 = vld [vmem:[%s0 + $0xc8] sm:$0xf]
  %v72 = vld [vmem:[%s0 + $0xcc] sm:$0xf]
  %v73 = vld [vmem:[%s0 + $0xd0] sm:$0xf]
  %v74 = vld [vmem:[%s0 + $0xd4] sm:$0xf]
  %v75 = vld [vmem:[%s0 + $0xd8] sm:$0xf]
  %v76 = vld [vmem:[%s0 + $0xdc] sm:$0xf]
  %v77 = vld [vmem:[%s0 + $0xe0] sm:$0xf]
  %v78 = vld [vmem:[%s0 + $0xe4] sm:$0xf]
  %v79 = vld [vmem:[%s0 + $0xe8] sm:$0xf]
  %v80 = vld [vmem:[%s0 + $0xec] sm:$0xf]
  %v81 = vld [vmem:[%s0 + $0xf0] sm:$0xf]
  %v82 = vld [vmem:[%s0 + $0xf4] sm:$0xf]
  %v83 = vld [vmem:[%s0 + $0xf8] sm:$0xf]
  %v84 = vld [vmem:[%s0 + $0xfc] sm:$0xf]
  %v85 = vld [vmem:[%s0 + $0x100] sm:$0xf]
  %v86 = vld [vmem:[%s0 + $0x104] sm:$0xf]
  %v87 = vld [vmem:[%s0 + $0x108] sm:$0xf]
  %v88 = vld [vmem:[%s0 + $0x10c] sm:$0xf]
  %v89 = vld [vmem:[%s0 + $0x110] sm:$0xf]
  %v90 = vld [vmem:[%s0 + $0x114] sm:$0xf]
  %v91 = vld [vmem:[%s0 + $0x118] sm:$0xf]
  %v92 = vld [vmem:[%s0 + $0x11c] sm:$0xf]
  %v93 = vld [vmem:[%s0 + $0x120] sm:$0xf]
  %v94 = vld [vmem:[%s0 + $0x124] sm:$0xf]
  %v95 = vld [vmem:[%s0 + $0x128] sm:$0xf]
  %v96 = vld [vmem:[%s0 + $0x12c] sm:$0xf]
  %v97 = vld [vmem:[%s0 + $0x130] sm:$0xf]
  %v98 = vld [vmem:[%s0 + $0x134] sm:$0xf]
  %v99 = vld [vmem:[%s0 + $0x138] sm:$0xf]
  %v100 = vld [vmem:[%s0 + $0x13c] sm:$0xf]
  %v101 = vld [vmem:[%s0 + $0x140] sm:$0xf]
  %v102 = vld [vmem:[%s0 + $0x144] sm:$0xf]
  %v103 = vld [vmem:[%s0 + $0x148] sm:$0xf]
  %v104 = vld [vmem:[%s0 + $0x14c] sm:$0xf]
  %v105 = vld [vmem:[%s0 + $0x150] sm:$0xf]
  %v106 = vld [vmem:[%s0 + $0x154] sm:$0xf]
  %v107 = vld [vmem:[%s0 + $0x158] sm:$0xf]
  %v108 = vld [vmem:[%s0 + $0x15c] sm:$0xf]
  %v109 = vld [vmem:[%s0 + $0x160] sm:$0xf]
  %v110 = vld [vmem:[%s0 + $0x164] sm:$0xf]
  %v111 = vld [vmem:[%s0 + $0x168] sm:$0xf]
  %v112 = vld [vmem:[%s0 + $0x16c] sm:$0xf]
  %v113 = vld [vmem:[%s0 + $0x170] sm:$0xf]
  %v114 = vld [vmem:[%s0 + $0x174] sm:$0xf]
  %v115 = vld [vmem:[%s0 + $0x178] sm:$0xf]
  %v116 = vld [vmem:[%s0 + $0x17c] sm:$0xf]
  %v117 = vld [vmem:[%s0 + $0x180] sm:$0xf]
  %v118 = vld [vmem:[%s0 + $0x184] sm:$0xf]
  %v119 = vld [vmem:[%s0 + $0x188] sm:$0xf]
  %v120 = vld [vmem:[%s0 + $0x18c] sm:$0xf]
  %v121 = vld [vmem:[%s0 + $0x190] sm:$0xf]
  %v122 = vld [vmem:[%s0 + $0x194] sm:$0xf]
  %v123 = vld [vmem:[%s0 + $0x198] sm:$0xf]
  %v124 = vld [vmem:[%s0 + $0x19c] sm:$0xf]
  %v125 = vld [vmem:[%s0 + $0x1a0] sm:$0xf]
  %v126 = vld [vmem:[%s0 + $0x1a4] sm:$0xf]
  %v127 = vld [vmem:[%s0 + $0x1a8] sm:$0xf]
  %v128 = vld [vmem:[%s0 + $0x1ac] sm:$0xf]
  %v129 = vld [vmem:[%s0 + $0x1b0] sm:$0xf]
  %v130 = vld [vmem:[%s0 + $0x1b4] sm:$0xf]
  %v131 = vld [vmem:[%s0 + $0x1b8] sm:$0xf]
  %v132 = vld [vmem:[%s0 + $0x1bc] sm:$0xf]
  %v133 = vld [vmem:[%s0 + $0x1c0] sm:$0xf]
  %v134 = vld [vmem:[%s0 + $0x1c4] sm:$0xf]
  %v135 = vld [vmem:[%s0 + $0x1c8] sm:$0xf]
  %v136 = vld [vmem:[%s0 + $0x1cc] sm:$0xf]
  %v137 = vld [vmem:[%s0 + $0x1d0] sm:$0xf]
  %v138 = vld [vmem:[%s0 + $0x1d4] sm:$0xf]
  %v139 = vld [vmem:[%s0 + $0x1d8] sm:$0xf]
  %v140 = vld [vmem:[%s0 + $0x1dc] sm:$0xf]
  %v141 = vld [vmem:[%s0 + $0x1e0] sm:$0xf]
  %v142 = vld [vmem:[%s0 + $0x1e4] sm:$0xf]
  %v143 = vld [vmem:[%s0 + $0x1e8] sm:$0xf]
  %v144 = vld [vmem:[%s0 + $0x1ec] sm:$0xf]
  %v145 = vld [vmem:[%s0 + $0x1f0] sm:$0xf]
  %v146 = vld [vmem:[%s0 + $0x1f4] sm:$0xf]
  %v147 = vld [vmem:[%s0 + $0x1f8] sm:$0xf]
  %v148 = vld [vmem:[%s0 + $0x1fc] sm:$0xf]
  %v149 = vld [vmem:[%s0 + $0x200] sm:$0xf]
  %v150 = vld [vmem:[%s0 + $0x204] sm:$0xf]
  %v151 = vld [vmem:[%s0 + $0x208] sm:$0xf]
  %v152 = vld [vmem:[%s0 + $0x20c] sm:$0xf]
  %v153 = vld [vmem:[%s0 + $0x210] sm:$0xf]
  %v154 = vld [vmem:[%s0 + $0x214] sm:$0xf]
  %v155 = vld [vmem:[%s0 + $0x218] sm:$0xf]
  %v156 = vld [vmem:[%s0 + $0x21c] sm:$0xf]
  %v157 = vld [vmem:[%s0 + $0x220] sm:$0xf]
  %v158 = vld [vmem:[%s0 + $0x224] sm:$0xf]
  %v159 = vld [vmem:[%s0 + $0x228] sm:$0xf]
  %v160 = vld [vmem:[%s0 + $0x22c] sm:$0xf]
  %v161 = vld [vmem:[%s0 + $0x230] sm:$0xf]
  %v162 = vld [vmem:[%s0 + $0x234] sm:$0xf]
  %v163 = vld [vmem:[%s0 + $0x238] sm:$0xf]
  %v164 = vld [vmem:[%s0 + $0x23c] sm:$0xf]
  %v165 = vld [vmem:[%s0 + $0x240] sm:$0xf]
  %v166 = vld [vmem:[%s0 + $0x244] sm:$0xf]
  %v167 = vld [vmem:[%s0 + $0x248] sm:$0xf]
  %v168 = vld [vmem:[%s0 + $0x24c] sm:$0xf]
  %v169 = vld [vmem:[%s0 + $0x250] sm:$0xf]
  %v170 = vld [vmem:[%s0 + $0x254] sm:$0xf]
  %v171 = vld [vmem:[%s0 + $0x258] sm:$0xf]
  %v172 = vld [vmem:[%s0 + $0x25c] sm:$0xf]
  %v173 = vld [vmem:[%s0 + $0x260] sm:$0xf]
  %v174 = vld [vmem:[%s0 + $0x264] sm:$0xf]
  %v175 = vld [vmem:[%s0 + $0x268] sm:$0xf]
  %v176 = vld [vmem:[%s0 + $0x26c] sm:$0xf]
  %v177 = vld [vmem:[%s0 + $0x270] sm:$0xf]
  %v178 = vld [vmem:[%s0 + $0x274] sm:$0xf]
  %v179 = vld [vmem:[%s0 + $0x278] sm:$0xf]
  %v180 = vld [vmem:[%s0 + $0x27c] sm:$0xf]
  %v181 = vld [vmem:[%s0 + $0x280] sm:$0xf]
  %v182 = vld [vmem:[%s0 + $0x284] sm:$0xf]
  %v183 = vld [vmem:[%s0 + $0x288] sm:$0xf]
  %v184 = vld [vmem:[%s0 + $0x28c] sm:$0xf]
  %v185 = vld [vmem:[%s0 + $0x290] sm:$0xf]
  %v186 = vld [vmem:[%s0 + $0x294] sm:$0xf]
  %v187 = vld [vmem:[%s0 + $0x298] sm:$0xf]
  %v188 = vld [vmem:[%s0 + $0x29c] sm:$0xf]
  %v189 = vld [vmem:[%s0 + $0x2a0] sm:$0xf]
  %v190 = vld [vmem:[%s0 + $0x2a4] sm:$0xf]
  %v191 = vld [vmem:[%s0 + $0x2a8] sm:$0xf]
  %v192 = vld [vmem:[%s0 + $0x2ac] sm:$0xf]
  %v193 = vld [vmem:[%s0 + $0x2b0] sm:$0xf]
  %v194 = vld [vmem:[%s0 + $0x2b4] sm:$0xf]
  %v195 = vld [vmem:[%s0 + $0x2b8] sm:$0xf]
  %v196 = vld [vmem:[%s0 + $0x2bc] sm:$0xf]
  %v197 = vld [vmem:[%s0 + $0x2c0] sm:$0xf]
  %v198 = vld [vmem:[%s0 + $0x2c4] sm:$0xf]
  %v199 = vld [vmem:[%s0 + $0x2c8] sm:$0xf]
  %v200 = vld [vmem:[%s0 + $0x2cc] sm:$0xf]
  %v201 = vld [vmem:[%s0 + $0x2d0] sm:$0xf]
  %v202 = vld [vmem:[%s0 + $0x2d4] sm:$0xf]
  %v203 = vld [vmem:[%s0 + $0x2d8] sm:$0xf]
  %v204 = vld [vmem:[%s0 + $0x2dc] sm:$0xf]
  %v205 = vld [vmem:[%s0 + $0x2e0] sm:$0xf]
  %v206 = vld [vmem:[%s0 + $0x2e4] sm:$0xf]
  %v207 = vld [vmem:[%s0 + $0x2e8] sm:$0xf]
  %v208 = vld [vmem:[%s0 + $0x2ec] sm:$0xf]
  %v209 = vld [vmem:[%s0 + $0x2f0] sm:$0xf]
  %v210 = vld [vmem:[%s0 + $0x2f4] sm:$0xf]
  %v211 = vld [vmem:[%s0 + $0x2f8] sm:$0xf]
  %v212 = vld [vmem:[%s0 + $0x2fc] sm:$0xf]
  %v213 = vld [vmem:[%s0 + $0x300] sm:$0xf]
  %v214 = vld [vmem:[%s0 + $0x304] sm:$0xf]
  %v215 = vld [vmem:[%s0 + $0x308] sm:$0xf]
  %v216 = vld [vmem:[%s0 + $0x30c] sm:$0xf]
  %v217 = vld [vmem:[%s0 + $0x310] sm:$0xf]
  %v218 = vld [vmem:[%s0 + $0x314] sm:$0xf]
  %v219 = vld [vmem:[%s0 + $0x318] sm:$0xf]
  %v220 = vld [vmem:[%s0 + $0x31c] sm:$0xf]
  %v221 = vld [vmem:[%s0 + $0x320] sm:$0xf]
  %v222 = vld [vmem:[%s0 + $0x324] sm:$0xf]
  %v223 = vld [vmem:[%s0 + $0x328] sm:$0xf]
  %v224 = vld [vmem:[%s0 + $0x32c] sm:$0xf]
  %v225 = vld [vmem:[%s0 + $0x330] sm:$0xf]
  %v226 = vld [vmem:[%s0 + $0x334] sm:$0xf]
  %v227 = vld [vmem:[%s0 + $0x338] sm:$0xf]
  %v228 = vld [vmem:[%s0 + $0x33c] sm:$0xf]
  %v229 = vld [vmem:[%s0 + $0x340] sm:$0xf]
  %v230 = vld [vmem:[%s0 + $0x344] sm:$0xf]
  %v231 = vld [vmem:[%s0 + $0x348] sm:$0xf]
  %v232 = vld [vmem:[%s0 + $0x34c] sm:$0xf]
  %v233 = vld [vmem:[%s0 + $0x350] sm:$0xf]
  %v234 = vld [vmem:[%s0 + $0x354] sm:$0xf]
  %v235 = vld [vmem:[%s0 + $0x358] sm:$0xf]
  %v236 = vld [vmem:[%s0 + $0x35c] sm:$0xf]
  %v237 = vld [vmem:[%s0 + $0x360] sm:$0xf]
  %v238 = vld [vmem:[%s0 + $0x364] sm:$0xf]
  %v239 = vld [vmem:[%s0 + $0x368] sm:$0xf]
  %v240 = vld [vmem:[%s0 + $0x36c] sm:$0xf]
  %v241 = vld [vmem:[%s0 + $0x370] sm:$0xf]
  %v242 = vld [vmem:[%s0 + $0x374] sm:$0xf]
  %v243 = vld [vmem:[%s0 + $0x378] sm:$0xf]
  %v244 = vld [vmem:[%s0 + $0x37c] sm:$0xf]
  %v245 = vld [vmem:[%s0 + $0x380] sm:$0xf]
  %v246 = vld [vmem:[%s0 + $0x384] sm:$0xf]
  %v247 = vld [vmem:[%s0 + $0x388] sm:$0xf]
  %v248 = vld [vmem:[%s0 + $0x38c] sm:$0xf]
  %v249 = vld [vmem:[%s0 + $0x390] sm:$0xf]
  %v250 = vld [vmem:[%s0 + $0x394] sm:$0xf]
  %v251 = vld [vmem:[%s0 + $0x398] sm:$0xf]
  %v252 = vld [vmem:[%s0 + $0x39c] sm:$0xf]
  %v253 = vld [vmem:[%s0 + $0x3a0] sm:$0xf]
  %v254 = vld [vmem:[%s0 + $0x3a4] sm:$0xf]
  %v255 = vld [vmem:[%s0 + $0x3a8] sm:$0xf]
  %v256 = vld [vmem:[%s0 + $0x3ac] sm:$0xf]
  %v257 = vld [vmem:[%s0 + $0x3b0] sm:$0xf]
  %v258 = vld [vmem:[%s0 + $0x3b4] sm:$0xf]
  %v259 = vld [vmem:[%s0 + $0x3b8] sm:$0xf]
  %v260 = vld [vmem:[%s0 + $0x3bc] sm:$0xf]
  %v261 = vld [vmem:[%s0 + $0x3c0] sm:$0xf]
  %v262 = vld [vmem:[%s0 + $0x3c4] sm:$0xf]
  %v263 = vld [vmem:[%s0 + $0x3c8] sm:$0xf]
  %v264 = vld [vmem:[%s0 + $0x3cc] sm:$0xf]
  %v265 = vld [vmem:[%s0 + $0x3d0] sm:$0xf]
  %v266 = vld [vmem:[%s0 + $0x3d4] sm:$0xf]
  %v267 = vld [vmem:[%s0 + $0x3d8] sm:$0xf]
  %v268 = vld [vmem:[%s0 + $0x3dc] sm:$0xf]
  %v269 = vld [vmem:[%s0 + $0x3e0] sm:$0xf]
  %v270 = vld [vmem:[%s0 + $0x3e4] sm:$0xf]
  %v271 = vld [vmem:[%s0 + $0x3e8] sm:$0xf]
  %v272 = vld [vmem:[%s0 + $0x3ec] sm:$0xf]
  %v273 = vld [vmem:[%s0 + $0x3f0] sm:$0xf]
  %v274 = vld [vmem:[%s0 + $0x3f4] sm:$0xf]
  %v275 = vld [vmem:[%s0 + $0x3f8] sm:$0xf]
  %v276 = vld [vmem:[%s0 + $0x3fc] sm:$0xf]
  %v277 = vunpack.c.l.bf16 %v21
  %v278 = vunpack.c.l.bf16 %v22
  %v279 = vunpack.c.l.bf16 %v23
  %v280 = vunpack.c.l.bf16 %v24
  %v281 = vunpack.c.l.bf16 %v25
  %v282 = vunpack.c.l.bf16 %v26
  %v283 = vunpack.c.l.bf16 %v27
  %v284 = vunpack.c.l.bf16 %v28
  %v285 = vunpack.c.l.bf16 %v29
  %v286 = vunpack.c.l.bf16 %v30
  %v287 = vunpack.c.l.bf16 %v31
  %v288 = vunpack.c.l.bf16 %v32
  %v289 = vunpack.c.l.bf16 %v33
  %v290 = vunpack.c.l.bf16 %v34
  %v291 = vunpack.c.l.bf16 %v35
  %v292 = vunpack.c.l.bf16 %v36
  %v293 = vunpack.c.l.bf16 %v37
  %v294 = vunpack.c.l.bf16 %v38
  %v295 = vunpack.c.l.bf16 %v39
  %v296 = vunpack.c.l.bf16 %v40
  %v297 = vunpack.c.l.bf16 %v41
  %v298 = vunpack.c.l.bf16 %v42
  %v299 = vunpack.c.l.bf16 %v43
  %v300 = vunpack.c.l.bf16 %v44
  %v301 = vunpack.c.l.bf16 %v45
  %v302 = vunpack.c.l.bf16 %v46
  %v303 = vunpack.c.l.bf16 %v47
  %v304 = vunpack.c.l.bf16 %v48
  %v305 = vunpack.c.l.bf16 %v49
  %v306 = vunpack.c.l.bf16 %v50
  %v307 = vunpack.c.l.bf16 %v51
  %v308 = vunpack.c.l.bf16 %v52
  %v309 = vunpack.c.l.bf16 %v53
  %v310 = vunpack.c.l.bf16 %v54
  %v311 = vunpack.c.l.bf16 %v55
  %v312 = vunpack.c.l.bf16 %v56
  %v313 = vunpack.c.l.bf16 %v57
  %v314 = vunpack.c.l.bf16 %v58
  %v315 = vunpack.c.l.bf16 %v59
  %v316 = vunpack.c.l.bf16 %v60
  %v317 = vunpack.c.l.bf16 %v61
  %v318 = vunpack.c.l.bf16 %v62
  %v319 = vunpack.c.l.bf16 %v63
  %v320 = vunpack.c.l.bf16 %v64
  %v321 = vunpack.c.l.bf16 %v65
  %v322 = vunpack.c.l.bf16 %v66
  %v323 = vunpack.c.l.bf16 %v67
  %v324 = vunpack.c.l.bf16 %v68
  %v325 = vunpack.c.l.bf16 %v69
  %v326 = vunpack.c.l.bf16 %v70
  %v327 = vunpack.c.l.bf16 %v71
  %v328 = vunpack.c.l.bf16 %v72
  %v329 = vunpack.c.l.bf16 %v73
  %v330 = vunpack.c.l.bf16 %v74
  %v331 = vunpack.c.l.bf16 %v75
  %v332 = vunpack.c.l.bf16 %v76
  %v333 = vunpack.c.l.bf16 %v77
  %v334 = vunpack.c.l.bf16 %v78
  %v335 = vunpack.c.l.bf16 %v79
  %v336 = vunpack.c.l.bf16 %v80
  %v337 = vunpack.c.l.bf16 %v81
  %v338 = vunpack.c.l.bf16 %v82
  %v339 = vunpack.c.l.bf16 %v83
  %v340 = vunpack.c.l.bf16 %v84
  %v341 = vunpack.c.l.bf16 %v85
  %v342 = vunpack.c.l.bf16 %v86
  %v343 = vunpack.c.l.bf16 %v87
  %v344 = vunpack.c.l.bf16 %v88
  %v345 = vunpack.c.l.bf16 %v89
  %v346 = vunpack.c.l.bf16 %v90
  %v347 = vunpack.c.l.bf16 %v91
  %v348 = vunpack.c.l.bf16 %v92
  %v349 = vunpack.c.l.bf16 %v93
  %v350 = vunpack.c.l.bf16 %v94
  %v351 = vunpack.c.l.bf16 %v95
  %v352 = vunpack.c.l.bf16 %v96
  %v353 = vunpack.c.l.bf16 %v97
  %v354 = vunpack.c.l.bf16 %v98
  %v355 = vunpack.c.l.bf16 %v99
  %v356 = vunpack.c.l.bf16 %v100
  %v357 = vunpack.c.l.bf16 %v101
  %v358 = vunpack.c.l.bf16 %v102
  %v359 = vunpack.c.l.bf16 %v103
  %v360 = vunpack.c.l.bf16 %v104
  %v361 = vunpack.c.l.bf16 %v105
  %v362 = vunpack.c.l.bf16 %v106
  %v363 = vunpack.c.l.bf16 %v107
  %v364 = vunpack.c.l.bf16 %v108
  %v365 = vunpack.c.l.bf16 %v109
  %v366 = vunpack.c.l.bf16 %v110
  %v367 = vunpack.c.l.bf16 %v111
  %v368 = vunpack.c.l.bf16 %v112
  %v369 = vunpack.c.l.bf16 %v113
  %v370 = vunpack.c.l.bf16 %v114
  %v371 = vunpack.c.l.bf16 %v115
  %v372 = vunpack.c.l.bf16 %v116
  %v373 = vunpack.c.l.bf16 %v117
  %v374 = vunpack.c.l.bf16 %v118
  %v375 = vunpack.c.l.bf16 %v119
  %v376 = vunpack.c.l.bf16 %v120
  %v377 = vunpack.c.l.bf16 %v121
  %v378 = vunpack.c.l.bf16 %v122
  %v379 = vunpack.c.l.bf16 %v123
  %v380 = vunpack.c.l.bf16 %v124
  %v381 = vunpack.c.l.bf16 %v125
  %v382 = vunpack.c.l.bf16 %v126
  %v383 = vunpack.c.l.bf16 %v127
  %v384 = vunpack.c.l.bf16 %v128
  %v385 = vunpack.c.l.bf16 %v129
  %v386 = vunpack.c.l.bf16 %v130
  %v387 = vunpack.c.l.bf16 %v131
  %v388 = vunpack.c.l.bf16 %v132
  %v389 = vunpack.c.l.bf16 %v133
  %v390 = vunpack.c.l.bf16 %v134
  %v391 = vunpack.c.l.bf16 %v135
  %v392 = vunpack.c.l.bf16 %v136
  %v393 = vunpack.c.l.bf16 %v137
  %v394 = vunpack.c.l.bf16 %v138
  %v395 = vunpack.c.l.bf16 %v139
  %v396 = vunpack.c.l.bf16 %v140
  %v397 = vunpack.c.l.bf16 %v141
  %v398 = vunpack.c.l.bf16 %v142
  %v399 = vunpack.c.l.bf16 %v143
  %v400 = vunpack.c.l.bf16 %v144
  %v401 = vunpack.c.l.bf16 %v145
  %v402 = vunpack.c.l.bf16 %v146
  %v403 = vunpack.c.l.bf16 %v147
  %v404 = vunpack.c.l.bf16 %v148
  %v405 = vunpack.c.l.bf16 %v149
  %v406 = vunpack.c.l.bf16 %v150
  %v407 = vunpack.c.l.bf16 %v151
  %v408 = vunpack.c.l.bf16 %v152
  %v409 = vunpack.c.l.bf16 %v153
  %v410 = vunpack.c.l.bf16 %v154
  %v411 = vunpack.c.l.bf16 %v155
  %v412 = vunpack.c.l.bf16 %v156
  %v413 = vunpack.c.l.bf16 %v157
  %v414 = vunpack.c.l.bf16 %v158
  %v415 = vunpack.c.l.bf16 %v159
  %v416 = vunpack.c.l.bf16 %v160
  %v417 = vunpack.c.l.bf16 %v161
  %v418 = vunpack.c.l.bf16 %v162
  %v419 = vunpack.c.l.bf16 %v163
  %v420 = vunpack.c.l.bf16 %v164
  %v421 = vunpack.c.l.bf16 %v165
  %v422 = vunpack.c.l.bf16 %v166
  %v423 = vunpack.c.l.bf16 %v167
  %v424 = vunpack.c.l.bf16 %v168
  %v425 = vunpack.c.l.bf16 %v169
  %v426 = vunpack.c.l.bf16 %v170
  %v427 = vunpack.c.l.bf16 %v171
  %v428 = vunpack.c.l.bf16 %v172
  %v429 = vunpack.c.l.bf16 %v173
  %v430 = vunpack.c.l.bf16 %v174
  %v431 = vunpack.c.l.bf16 %v175
  %v432 = vunpack.c.l.bf16 %v176
  %v433 = vunpack.c.l.bf16 %v177
  %v434 = vunpack.c.l.bf16 %v178
  %v435 = vunpack.c.l.bf16 %v179
  %v436 = vunpack.c.l.bf16 %v180
  %v437 = vunpack.c.l.bf16 %v181
  %v438 = vunpack.c.l.bf16 %v182
  %v439 = vunpack.c.l.bf16 %v183
  %v440 = vunpack.c.l.bf16 %v184
  %v441 = vunpack.c.l.bf16 %v185
  %v442 = vunpack.c.l.bf16 %v186
  %v443 = vunpack.c.l.bf16 %v187
  %v444 = vunpack.c.l.bf16 %v188
  %v445 = vunpack.c.l.bf16 %v189
  %v446 = vunpack.c.l.bf16 %v190
  %v447 = vunpack.c.l.bf16 %v191
  %v448 = vunpack.c.l.bf16 %v192
  %v449 = vunpack.c.l.bf16 %v193
  %v450 = vunpack.c.l.bf16 %v194
  %v451 = vunpack.c.l.bf16 %v195
  %v452 = vunpack.c.l.bf16 %v196
  %v453 = vunpack.c.l.bf16 %v197
  %v454 = vunpack.c.l.bf16 %v198
  %v455 = vunpack.c.l.bf16 %v199
  %v456 = vunpack.c.l.bf16 %v200
  %v457 = vunpack.c.l.bf16 %v201
  %v458 = vunpack.c.l.bf16 %v202
  %v459 = vunpack.c.l.bf16 %v203
  %v460 = vunpack.c.l.bf16 %v204
  %v461 = vunpack.c.l.bf16 %v205
  %v462 = vunpack.c.l.bf16 %v206
  %v463 = vunpack.c.l.bf16 %v207
  %v464 = vunpack.c.l.bf16 %v208
  %v465 = vunpack.c.l.bf16 %v209
  %v466 = vunpack.c.l.bf16 %v210
  %v467 = vunpack.c.l.bf16 %v211
  %v468 = vunpack.c.l.bf16 %v212
  %v469 = vunpack.c.l.bf16 %v213
  %v470 = vunpack.c.l.bf16 %v214
  %v471 = vunpack.c.l.bf16 %v215
  %v472 = vunpack.c.l.bf16 %v216
  %v473 = vunpack.c.l.bf16 %v217
  %v474 = vunpack.c.l.bf16 %v218
  %v475 = vunpack.c.l.bf16 %v219
  %v476 = vunpack.c.l.bf16 %v220
  %v477 = vunpack.c.l.bf16 %v221
  %v478 = vunpack.c.l.bf16 %v222
  %v479 = vunpack.c.l.bf16 %v223
  %v480 = vunpack.c.l.bf16 %v224
  %v481 = vunpack.c.l.bf16 %v225
  %v482 = vunpack.c.l.bf16 %v226
  %v483 = vunpack.c.l.bf16 %v227
  %v484 = vunpack.c.l.bf16 %v228
  %v485 = vunpack.c.l.bf16 %v229
  %v486 = vunpack.c.l.bf16 %v230
  %v487 = vunpack.c.l.bf16 %v231
  %v488 = vunpack.c.l.bf16 %v232
  %v489 = vunpack.c.l.bf16 %v233
  %v490 = vunpack.c.l.bf16 %v234
  %v491 = vunpack.c.l.bf16 %v235
  %v492 = vunpack.c.l.bf16 %v236
  %v493 = vunpack.c.l.bf16 %v237
  %v494 = vunpack.c.l.bf16 %v238
  %v495 = vunpack.c.l.bf16 %v239
  %v496 = vunpack.c.l.bf16 %v240
  %v497 = vunpack.c.l.bf16 %v241
  %v498 = vunpack.c.l.bf16 %v242
  %v499 = vunpack.c.l.bf16 %v243
  %v500 = vunpack.c.l.bf16 %v244
  %v501 = vunpack.c.l.bf16 %v245
  %v502 = vunpack.c.l.bf16 %v246
  %v503 = vunpack.c.l.bf16 %v247
  %v504 = vunpack.c.l.bf16 %v248
  %v505 = vunpack.c.l.bf16 %v249
  %v506 = vunpack.c.l.bf16 %v250
  %v507 = vunpack.c.l.bf16 %v251
  %v508 = vunpack.c.l.bf16 %v252
  %v509 = vunpack.c.l.bf16 %v253
  %v510 = vunpack.c.l.bf16 %v254
  %v511 = vunpack.c.l.bf16 %v255
  %v512 = vunpack.c.l.bf16 %v256
  %v513 = vunpack.c.l.bf16 %v257
  %v514 = vunpack.c.l.bf16 %v258
  %v515 = vunpack.c.l.bf16 %v259
  %v516 = vunpack.c.l.bf16 %v260
  %v517 = vunpack.c.l.bf16 %v261
  %v518 = vunpack.c.l.bf16 %v262
  %v519 = vunpack.c.l.bf16 %v263
  %v520 = vunpack.c.l.bf16 %v264
  %v521 = vunpack.c.l.bf16 %v265
  %v522 = vunpack.c.l.bf16 %v266
  %v523 = vunpack.c.l.bf16 %v267
  %v524 = vunpack.c.l.bf16 %v268
  %v525 = vunpack.c.l.bf16 %v269
  %v526 = vunpack.c.l.bf16 %v270
  %v527 = vunpack.c.l.bf16 %v271
  %v528 = vunpack.c.l.bf16 %v272
  %v529 = vunpack.c.l.bf16 %v273
  %v530 = vunpack.c.l.bf16 %v274
  %v531 = vunpack.c.l.bf16 %v275
  %v532 = vunpack.c.l.bf16 %v276
  %v533 = vld [vmem:[%s1] sm:$0x1]
  %v535 = vlaneseq
  %v536 = vshrl.u32 %v535, 7
  %v537 = vsub.s32 0, %v536
  %v538 = vrot.slane %v533, %v537
  %v540 = vmul.f32 %v277, %v538
  %v541 = vmul.f32 %v278, %v538
  %v542 = vmul.f32 %v279, %v538
  %v543 = vmul.f32 %v280, %v538
  %v544 = vmul.f32 %v281, %v538
  %v545 = vmul.f32 %v282, %v538
  %v546 = vmul.f32 %v283, %v538
  %v547 = vmul.f32 %v284, %v538
  %v548 = vmul.f32 %v285, %v538
  %v549 = vmul.f32 %v286, %v538
  %v550 = vmul.f32 %v287, %v538
  %v551 = vmul.f32 %v288, %v538
  %v552 = vmul.f32 %v289, %v538
  %v553 = vmul.f32 %v290, %v538
  %v554 = vmul.f32 %v291, %v538
  %v555 = vmul.f32 %v292, %v538
  %v556 = vmul.f32 %v293, %v538
  %v557 = vmul.f32 %v294, %v538
  %v558 = vmul.f32 %v295, %v538
  %v559 = vmul.f32 %v296, %v538
  %v560 = vmul.f32 %v297, %v538
  %v561 = vmul.f32 %v298, %v538
  %v562 = vmul.f32 %v299, %v538
  %v563 = vmul.f32 %v300, %v538
  %v564 = vmul.f32 %v301, %v538
  %v565 = vmul.f32 %v302, %v538
  %v566 = vmul.f32 %v303, %v538
  %v567 = vmul.f32 %v304, %v538
  %v568 = vmul.f32 %v305, %v538
  %v569 = vmul.f32 %v306, %v538
  %v570 = vmul.f32 %v307, %v538
  %v571 = vmul.f32 %v308, %v538
  %v572 = vmul.f32 %v309, %v538
  %v573 = vmul.f32 %v310, %v538
  %v574 = vmul.f32 %v311, %v538
  %v575 = vmul.f32 %v312, %v538
  %v576 = vmul.f32 %v313, %v538
  %v577 = vmul.f32 %v314, %v538
  %v578 = vmul.f32 %v315, %v538
  %v579 = vmul.f32 %v316, %v538
  %v580 = vmul.f32 %v317, %v538
  %v581 = vmul.f32 %v318, %v538
  %v582 = vmul.f32 %v319, %v538
  %v583 = vmul.f32 %v320, %v538
  %v584 = vmul.f32 %v321, %v538
  %v585 = vmul.f32 %v322, %v538
  %v586 = vmul.f32 %v323, %v538
  %v587 = vmul.f32 %v324, %v538
  %v588 = vmul.f32 %v325, %v538
  %v589 = vmul.f32 %v326, %v538
  %v590 = vmul.f32 %v327, %v538
  %v591 = vmul.f32 %v328, %v538
  %v592 = vmul.f32 %v329, %v538
  %v593 = vmul.f32 %v330, %v538
  %v594 = vmul.f32 %v331, %v538
  %v595 = vmul.f32 %v332, %v538
  %v596 = vmul.f32 %v333, %v538
  %v597 = vmul.f32 %v334, %v538
  %v598 = vmul.f32 %v335, %v538
  %v599 = vmul.f32 %v336, %v538
  %v600 = vmul.f32 %v337, %v538
  %v601 = vmul.f32 %v338, %v538
  %v602 = vmul.f32 %v339, %v538
  %v603 = vmul.f32 %v340, %v538
  %v604 = vmul.f32 %v341, %v538
  %v605 = vmul.f32 %v342, %v538
  %v606 = vmul.f32 %v343, %v538
  %v607 = vmul.f32 %v344, %v538
  %v608 = vmul.f32 %v345, %v538
  %v609 = vmul.f32 %v346, %v538
  %v610 = vmul.f32 %v347, %v538
  %v611 = vmul.f32 %v348, %v538
  %v612 = vmul.f32 %v349, %v538
  %v613 = vmul.f32 %v350, %v538
  %v614 = vmul.f32 %v351, %v538
  %v615 = vmul.f32 %v352, %v538
  %v616 = vmul.f32 %v353, %v538
  %v617 = vmul.f32 %v354, %v538
  %v618 = vmul.f32 %v355, %v538
  %v619 = vmul.f32 %v356, %v538
  %v620 = vmul.f32 %v357, %v538
  %v621 = vmul.f32 %v358, %v538
  %v622 = vmul.f32 %v359, %v538
  %v623 = vmul.f32 %v360, %v538
  %v624 = vmul.f32 %v361, %v538
  %v625 = vmul.f32 %v362, %v538
  %v626 = vmul.f32 %v363, %v538
  %v627 = vmul.f32 %v364, %v538
  %v628 = vmul.f32 %v365, %v538
  %v629 = vmul.f32 %v366, %v538
  %v630 = vmul.f32 %v367, %v538
  %v631 = vmul.f32 %v368, %v538
  %v632 = vmul.f32 %v369, %v538
  %v633 = vmul.f32 %v370, %v538
  %v634 = vmul.f32 %v371, %v538
  %v635 = vmul.f32 %v372, %v538
  %v636 = vmul.f32 %v373, %v538
  %v637 = vmul.f32 %v374, %v538
  %v638 = vmul.f32 %v375, %v538
  %v639 = vmul.f32 %v376, %v538
  %v640 = vmul.f32 %v377, %v538
  %v641 = vmul.f32 %v378, %v538
  %v642 = vmul.f32 %v379, %v538
  %v643 = vmul.f32 %v380, %v538
  %v644 = vmul.f32 %v381, %v538
  %v645 = vmul.f32 %v382, %v538
  %v646 = vmul.f32 %v383, %v538
  %v647 = vmul.f32 %v384, %v538
  %v648 = vmul.f32 %v385, %v538
  %v649 = vmul.f32 %v386, %v538
  %v650 = vmul.f32 %v387, %v538
  %v651 = vmul.f32 %v388, %v538
  %v652 = vmul.f32 %v389, %v538
  %v653 = vmul.f32 %v390, %v538
  %v654 = vmul.f32 %v391, %v538
  %v655 = vmul.f32 %v392, %v538
  %v656 = vmul.f32 %v393, %v538
  %v657 = vmul.f32 %v394, %v538
  %v658 = vmul.f32 %v395, %v538
  %v659 = vmul.f32 %v396, %v538
  %v660 = vmul.f32 %v397, %v538
  %v661 = vmul.f32 %v398, %v538
  %v662 = vmul.f32 %v399, %v538
  %v663 = vmul.f32 %v400, %v538
  %v664 = vmul.f32 %v401, %v538
  %v665 = vmul.f32 %v402, %v538
  %v666 = vmul.f32 %v403, %v538
  %v667 = vmul.f32 %v404, %v538
  %v668 = vmul.f32 %v405, %v538
  %v669 = vmul.f32 %v406, %v538
  %v670 = vmul.f32 %v407, %v538
  %v671 = vmul.f32 %v408, %v538
  %v672 = vmul.f32 %v409, %v538
  %v673 = vmul.f32 %v410, %v538
  %v674 = vmul.f32 %v411, %v538
  %v675 = vmul.f32 %v412, %v538
  %v676 = vmul.f32 %v413, %v538
  %v677 = vmul.f32 %v414, %v538
  %v678 = vmul.f32 %v415, %v538
  %v679 = vmul.f32 %v416, %v538
  %v680 = vmul.f32 %v417, %v538
  %v681 = vmul.f32 %v418, %v538
  %v682 = vmul.f32 %v419, %v538
  %v683 = vmul.f32 %v420, %v538
  %v684 = vmul.f32 %v421, %v538
  %v685 = vmul.f32 %v422, %v538
  %v686 = vmul.f32 %v423, %v538
  %v687 = vmul.f32 %v424, %v538
  %v688 = vmul.f32 %v425, %v538
  %v689 = vmul.f32 %v426, %v538
  %v690 = vmul.f32 %v427, %v538
  %v691 = vmul.f32 %v428, %v538
  %v692 = vmul.f32 %v429, %v538
  %v693 = vmul.f32 %v430, %v538
  %v694 = vmul.f32 %v431, %v538
  %v695 = vmul.f32 %v432, %v538
  %v696 = vmul.f32 %v433, %v538
  %v697 = vmul.f32 %v434, %v538
  %v698 = vmul.f32 %v435, %v538
  %v699 = vmul.f32 %v436, %v538
  %v700 = vmul.f32 %v437, %v538
  %v701 = vmul.f32 %v438, %v538
  %v702 = vmul.f32 %v439, %v538
  %v703 = vmul.f32 %v440, %v538
  %v704 = vmul.f32 %v441, %v538
  %v705 = vmul.f32 %v442, %v538
  %v706 = vmul.f32 %v443, %v538
  %v707 = vmul.f32 %v444, %v538
  %v708 = vmul.f32 %v445, %v538
  %v709 = vmul.f32 %v446, %v538
  %v710 = vmul.f32 %v447, %v538
  %v711 = vmul.f32 %v448, %v538
  %v712 = vmul.f32 %v449, %v538
  %v713 = vmul.f32 %v450, %v538
  %v714 = vmul.f32 %v451, %v538
  %v715 = vmul.f32 %v452, %v538
  %v716 = vmul.f32 %v453, %v538
  %v717 = vmul.f32 %v454, %v538
  %v718 = vmul.f32 %v455, %v538
  %v719 = vmul.f32 %v456, %v538
  %v720 = vmul.f32 %v457, %v538
  %v721 = vmul.f32 %v458, %v538
  %v722 = vmul.f32 %v459, %v538
  %v723 = vmul.f32 %v460, %v538
  %v724 = vmul.f32 %v461, %v538
  %v725 = vmul.f32 %v462, %v538
  %v726 = vmul.f32 %v463, %v538
  %v727 = vmul.f32 %v464, %v538
  %v728 = vmul.f32 %v465, %v538
  %v729 = vmul.f32 %v466, %v538
  %v730 = vmul.f32 %v467, %v538
  %v731 = vmul.f32 %v468, %v538
  %v732 = vmul.f32 %v469, %v538
  %v733 = vmul.f32 %v470, %v538
  %v734 = vmul.f32 %v471, %v538
  %v735 = vmul.f32 %v472, %v538
  %v736 = vmul.f32 %v473, %v538
  %v737 = vmul.f32 %v474, %v538
  %v738 = vmul.f32 %v475, %v538
  %v739 = vmul.f32 %v476, %v538
  %v740 = vmul.f32 %v477, %v538
  %v741 = vmul.f32 %v478, %v538
  %v742 = vmul.f32 %v479, %v538
  %v743 = vmul.f32 %v480, %v538
  %v744 = vmul.f32 %v481, %v538
  %v745 = vmul.f32 %v482, %v538
  %v746 = vmul.f32 %v483, %v538
  %v747 = vmul.f32 %v484, %v538
  %v748 = vmul.f32 %v485, %v538
  %v749 = vmul.f32 %v486, %v538
  %v750 = vmul.f32 %v487, %v538
  %v751 = vmul.f32 %v488, %v538
  %v752 = vmul.f32 %v489, %v538
  %v753 = vmul.f32 %v490, %v538
  %v754 = vmul.f32 %v491, %v538
  %v755 = vmul.f32 %v492, %v538
  %v756 = vmul.f32 %v493, %v538
  %v757 = vmul.f32 %v494, %v538
  %v758 = vmul.f32 %v495, %v538
  %v759 = vmul.f32 %v496, %v538
  %v760 = vmul.f32 %v497, %v538
  %v761 = vmul.f32 %v498, %v538
  %v762 = vmul.f32 %v499, %v538
  %v763 = vmul.f32 %v500, %v538
  %v764 = vmul.f32 %v501, %v538
  %v765 = vmul.f32 %v502, %v538
  %v766 = vmul.f32 %v503, %v538
  %v767 = vmul.f32 %v504, %v538
  %v768 = vmul.f32 %v505, %v538
  %v769 = vmul.f32 %v506, %v538
  %v770 = vmul.f32 %v507, %v538
  %v771 = vmul.f32 %v508, %v538
  %v772 = vmul.f32 %v509, %v538
  %v773 = vmul.f32 %v510, %v538
  %v774 = vmul.f32 %v511, %v538
  %v775 = vmul.f32 %v512, %v538
  %v776 = vmul.f32 %v513, %v538
  %v777 = vmul.f32 %v514, %v538
  %v778 = vmul.f32 %v515, %v538
  %v779 = vmul.f32 %v516, %v538
  %v780 = vmul.f32 %v517, %v538
  %v781 = vmul.f32 %v518, %v538
  %v782 = vmul.f32 %v519, %v538
  %v783 = vmul.f32 %v520, %v538
  %v784 = vmul.f32 %v521, %v538
  %v785 = vmul.f32 %v522, %v538
  %v786 = vmul.f32 %v523, %v538
  %v787 = vmul.f32 %v524, %v538
  %v788 = vmul.f32 %v525, %v538
  %v789 = vmul.f32 %v526, %v538
  %v790 = vmul.f32 %v527, %v538
  %v791 = vmul.f32 %v528, %v538
  %v792 = vmul.f32 %v529, %v538
  %v793 = vmul.f32 %v530, %v538
  %v794 = vmul.f32 %v531, %v538
  %v795 = vmul.f32 %v532, %v538
  %v796 = vld [vmem:[%s2] sm:$0x1]
  %v798 = vlaneseq
  %v799 = vshrl.u32 %v798, 7
  %v800 = vsub.s32 0, %v799
  %v801 = vrot.slane %v796, %v800
  %v803 = vadd.f32 %v540, %v801
  %v804 = vadd.f32 %v541, %v801
  %v805 = vadd.f32 %v542, %v801
  %v806 = vadd.f32 %v543, %v801
  %v807 = vadd.f32 %v544, %v801
  %v808 = vadd.f32 %v545, %v801
  %v809 = vadd.f32 %v546, %v801
  %v810 = vadd.f32 %v547, %v801
  %v811 = vadd.f32 %v548, %v801
  %v812 = vadd.f32 %v549, %v801
  %v813 = vadd.f32 %v550, %v801
  %v814 = vadd.f32 %v551, %v801
  %v815 = vadd.f32 %v552, %v801
  %v816 = vadd.f32 %v553, %v801
  %v817 = vadd.f32 %v554, %v801
  %v818 = vadd.f32 %v555, %v801
  %v819 = vadd.f32 %v556, %v801
  %v820 = vadd.f32 %v557, %v801
  %v821 = vadd.f32 %v558, %v801
  %v822 = vadd.f32 %v559, %v801
  %v823 = vadd.f32 %v560, %v801
  %v824 = vadd.f32 %v561, %v801
  %v825 = vadd.f32 %v562, %v801
  %v826 = vadd.f32 %v563, %v801
  %v827 = vadd.f32 %v564, %v801
  %v828 = vadd.f32 %v565, %v801
  %v829 = vadd.f32 %v566, %v801
  %v830 = vadd.f32 %v567, %v801
  %v831 = vadd.f32 %v568, %v801
  %v832 = vadd.f32 %v569, %v801
  %v833 = vadd.f32 %v570, %v801
  %v834 = vadd.f32 %v571, %v801
  %v835 = vadd.f32 %v572, %v801
  %v836 = vadd.f32 %v573, %v801
  %v837 = vadd.f32 %v574, %v801
  %v838 = vadd.f32 %v575, %v801
  %v839 = vadd.f32 %v576, %v801
  %v840 = vadd.f32 %v577, %v801
  %v841 = vadd.f32 %v578, %v801
  %v842 = vadd.f32 %v579, %v801
  %v843 = vadd.f32 %v580, %v801
  %v844 = vadd.f32 %v581, %v801
  %v845 = vadd.f32 %v582, %v801
  %v846 = vadd.f32 %v583, %v801
  %v847 = vadd.f32 %v584, %v801
  %v848 = vadd.f32 %v585, %v801
  %v849 = vadd.f32 %v586, %v801
  %v850 = vadd.f32 %v587, %v801
  %v851 = vadd.f32 %v588, %v801
  %v852 = vadd.f32 %v589, %v801
  %v853 = vadd.f32 %v590, %v801
  %v854 = vadd.f32 %v591, %v801
  %v855 = vadd.f32 %v592, %v801
  %v856 = vadd.f32 %v593, %v801
  %v857 = vadd.f32 %v594, %v801
  %v858 = vadd.f32 %v595, %v801
  %v859 = vadd.f32 %v596, %v801
  %v860 = vadd.f32 %v597, %v801
  %v861 = vadd.f32 %v598, %v801
  %v862 = vadd.f32 %v599, %v801
  %v863 = vadd.f32 %v600, %v801
  %v864 = vadd.f32 %v601, %v801
  %v865 = vadd.f32 %v602, %v801
  %v866 = vadd.f32 %v603, %v801
  %v867 = vadd.f32 %v604, %v801
  %v868 = vadd.f32 %v605, %v801
  %v869 = vadd.f32 %v606, %v801
  %v870 = vadd.f32 %v607, %v801
  %v871 = vadd.f32 %v608, %v801
  %v872 = vadd.f32 %v609, %v801
  %v873 = vadd.f32 %v610, %v801
  %v874 = vadd.f32 %v611, %v801
  %v875 = vadd.f32 %v612, %v801
  %v876 = vadd.f32 %v613, %v801
  %v877 = vadd.f32 %v614, %v801
  %v878 = vadd.f32 %v615, %v801
  %v879 = vadd.f32 %v616, %v801
  %v880 = vadd.f32 %v617, %v801
  %v881 = vadd.f32 %v618, %v801
  %v882 = vadd.f32 %v619, %v801
  %v883 = vadd.f32 %v620, %v801
  %v884 = vadd.f32 %v621, %v801
  %v885 = vadd.f32 %v622, %v801
  %v886 = vadd.f32 %v623, %v801
  %v887 = vadd.f32 %v624, %v801
  %v888 = vadd.f32 %v625, %v801
  %v889 = vadd.f32 %v626, %v801
  %v890 = vadd.f32 %v627, %v801
  %v891 = vadd.f32 %v628, %v801
  %v892 = vadd.f32 %v629, %v801
  %v893 = vadd.f32 %v630, %v801
  %v894 = vadd.f32 %v631, %v801
  %v895 = vadd.f32 %v632, %v801
  %v896 = vadd.f32 %v633, %v801
  %v897 = vadd.f32 %v634, %v801
  %v898 = vadd.f32 %v635, %v801
  %v899 = vadd.f32 %v636, %v801
  %v900 = vadd.f32 %v637, %v801
  %v901 = vadd.f32 %v638, %v801
  %v902 = vadd.f32 %v639, %v801
  %v903 = vadd.f32 %v640, %v801
  %v904 = vadd.f32 %v641, %v801
  %v905 = vadd.f32 %v642, %v801
  %v906 = vadd.f32 %v643, %v801
  %v907 = vadd.f32 %v644, %v801
  %v908 = vadd.f32 %v645, %v801
  %v909 = vadd.f32 %v646, %v801
  %v910 = vadd.f32 %v647, %v801
  %v911 = vadd.f32 %v648, %v801
  %v912 = vadd.f32 %v649, %v801
  %v913 = vadd.f32 %v650, %v801
  %v914 = vadd.f32 %v651, %v801
  %v915 = vadd.f32 %v652, %v801
  %v916 = vadd.f32 %v653, %v801
  %v917 = vadd.f32 %v654, %v801
  %v918 = vadd.f32 %v655, %v801
  %v919 = vadd.f32 %v656, %v801
  %v920 = vadd.f32 %v657, %v801
  %v921 = vadd.f32 %v658, %v801
  %v922 = vadd.f32 %v659, %v801
  %v923 = vadd.f32 %v660, %v801
  %v924 = vadd.f32 %v661, %v801
  %v925 = vadd.f32 %v662, %v801
  %v926 = vadd.f32 %v663, %v801
  %v927 = vadd.f32 %v664, %v801
  %v928 = vadd.f32 %v665, %v801
  %v929 = vadd.f32 %v666, %v801
  %v930 = vadd.f32 %v667, %v801
  %v931 = vadd.f32 %v668, %v801
  %v932 = vadd.f32 %v669, %v801
  %v933 = vadd.f32 %v670, %v801
  %v934 = vadd.f32 %v671, %v801
  %v935 = vadd.f32 %v672, %v801
  %v936 = vadd.f32 %v673, %v801
  %v937 = vadd.f32 %v674, %v801
  %v938 = vadd.f32 %v675, %v801
  %v939 = vadd.f32 %v676, %v801
  %v940 = vadd.f32 %v677, %v801
  %v941 = vadd.f32 %v678, %v801
  %v942 = vadd.f32 %v679, %v801
  %v943 = vadd.f32 %v680, %v801
  %v944 = vadd.f32 %v681, %v801
  %v945 = vadd.f32 %v682, %v801
  %v946 = vadd.f32 %v683, %v801
  %v947 = vadd.f32 %v684, %v801
  %v948 = vadd.f32 %v685, %v801
  %v949 = vadd.f32 %v686, %v801
  %v950 = vadd.f32 %v687, %v801
  %v951 = vadd.f32 %v688, %v801
  %v952 = vadd.f32 %v689, %v801
  %v953 = vadd.f32 %v690, %v801
  %v954 = vadd.f32 %v691, %v801
  %v955 = vadd.f32 %v692, %v801
  %v956 = vadd.f32 %v693, %v801
  %v957 = vadd.f32 %v694, %v801
  %v958 = vadd.f32 %v695, %v801
  %v959 = vadd.f32 %v696, %v801
  %v960 = vadd.f32 %v697, %v801
  %v961 = vadd.f32 %v698, %v801
  %v962 = vadd.f32 %v699, %v801
  %v963 = vadd.f32 %v700, %v801
  %v964 = vadd.f32 %v701, %v801
  %v965 = vadd.f32 %v702, %v801
  %v966 = vadd.f32 %v703, %v801
  %v967 = vadd.f32 %v704, %v801
  %v968 = vadd.f32 %v705, %v801
  %v969 = vadd.f32 %v706, %v801
  %v970 = vadd.f32 %v707, %v801
  %v971 = vadd.f32 %v708, %v801
  %v972 = vadd.f32 %v709, %v801
  %v973 = vadd.f32 %v710, %v801
  %v974 = vadd.f32 %v711, %v801
  %v975 = vadd.f32 %v712, %v801
  %v976 = vadd.f32 %v713, %v801
  %v977 = vadd.f32 %v714, %v801
  %v978 = vadd.f32 %v715, %v801
  %v979 = vadd.f32 %v716, %v801
  %v980 = vadd.f32 %v717, %v801
  %v981 = vadd.f32 %v718, %v801
  %v982 = vadd.f32 %v719, %v801
  %v983 = vadd.f32 %v720, %v801
  %v984 = vadd.f32 %v721, %v801
  %v985 = vadd.f32 %v722, %v801
  %v986 = vadd.f32 %v723, %v801
  %v987 = vadd.f32 %v724, %v801
  %v988 = vadd.f32 %v725, %v801
  %v989 = vadd.f32 %v726, %v801
  %v990 = vadd.f32 %v727, %v801
  %v991 = vadd.f32 %v728, %v801
  %v992 = vadd.f32 %v729, %v801
  %v993 = vadd.f32 %v730, %v801
  %v994 = vadd.f32 %v731, %v801
  %v995 = vadd.f32 %v732, %v801
  %v996 = vadd.f32 %v733, %v801
  %v997 = vadd.f32 %v734, %v801
  %v998 = vadd.f32 %v735, %v801
  %v999 = vadd.f32 %v736, %v801
  %v1000 = vadd.f32 %v737, %v801
  %v1001 = vadd.f32 %v738, %v801
  %v1002 = vadd.f32 %v739, %v801
  %v1003 = vadd.f32 %v740, %v801
  %v1004 = vadd.f32 %v741, %v801
  %v1005 = vadd.f32 %v742, %v801
  %v1006 = vadd.f32 %v743, %v801
  %v1007 = vadd.f32 %v744, %v801
  %v1008 = vadd.f32 %v745, %v801
  %v1009 = vadd.f32 %v746, %v801
  %v1010 = vadd.f32 %v747, %v801
  %v1011 = vadd.f32 %v748, %v801
  %v1012 = vadd.f32 %v749, %v801
  %v1013 = vadd.f32 %v750, %v801
  %v1014 = vadd.f32 %v751, %v801
  %v1015 = vadd.f32 %v752, %v801
  %v1016 = vadd.f32 %v753, %v801
  %v1017 = vadd.f32 %v754, %v801
  %v1018 = vadd.f32 %v755, %v801
  %v1019 = vadd.f32 %v756, %v801
  %v1020 = vadd.f32 %v757, %v801
  %v1021 = vadd.f32 %v758, %v801
  %v1022 = vadd.f32 %v759, %v801
  %v1023 = vadd.f32 %v760, %v801
  %v1024 = vadd.f32 %v761, %v801
  %v1025 = vadd.f32 %v762, %v801
  %v1026 = vadd.f32 %v763, %v801
  %v1027 = vadd.f32 %v764, %v801
  %v1028 = vadd.f32 %v765, %v801
  %v1029 = vadd.f32 %v766, %v801
  %v1030 = vadd.f32 %v767, %v801
  %v1031 = vadd.f32 %v768, %v801
  %v1032 = vadd.f32 %v769, %v801
  %v1033 = vadd.f32 %v770, %v801
  %v1034 = vadd.f32 %v771, %v801
  %v1035 = vadd.f32 %v772, %v801
  %v1036 = vadd.f32 %v773, %v801
  %v1037 = vadd.f32 %v774, %v801
  %v1038 = vadd.f32 %v775, %v801
  %v1039 = vadd.f32 %v776, %v801
  %v1040 = vadd.f32 %v777, %v801
  %v1041 = vadd.f32 %v778, %v801
  %v1042 = vadd.f32 %v779, %v801
  %v1043 = vadd.f32 %v780, %v801
  %v1044 = vadd.f32 %v781, %v801
  %v1045 = vadd.f32 %v782, %v801
  %v1046 = vadd.f32 %v783, %v801
  %v1047 = vadd.f32 %v784, %v801
  %v1048 = vadd.f32 %v785, %v801
  %v1049 = vadd.f32 %v786, %v801
  %v1050 = vadd.f32 %v787, %v801
  %v1051 = vadd.f32 %v788, %v801
  %v1052 = vadd.f32 %v789, %v801
  %v1053 = vadd.f32 %v790, %v801
  %v1054 = vadd.f32 %v791, %v801
  %v1055 = vadd.f32 %v792, %v801
  %v1056 = vadd.f32 %v793, %v801
  %v1057 = vadd.f32 %v794, %v801
  %v1058 = vadd.f32 %v795, %v801
  %v1059 = vmax.f32 %v803, 0.0
  %v1060 = vmax.f32 %v804, 0.0
  %v1061 = vmax.f32 %v805, 0.0
  %v1062 = vmax.f32 %v806, 0.0
  %v1063 = vmax.f32 %v807, 0.0
  %v1064 = vmax.f32 %v808, 0.0
  %v1065 = vmax.f32 %v809, 0.0
  %v1066 = vmax.f32 %v810, 0.0
  %v1067 = vmax.f32 %v811, 0.0
  %v1068 = vmax.f32 %v812, 0.0
  %v1069 = vmax.f32 %v813, 0.0
  %v1070 = vmax.f32 %v814, 0.0
  %v1071 = vmax.f32 %v815, 0.0
  %v1072 = vmax.f32 %v816, 0.0
  %v1073 = vmax.f32 %v817, 0.0
  %v1074 = vmax.f32 %v818, 0.0
  %v1075 = vmax.f32 %v819, 0.0
  %v1076 = vmax.f32 %v820, 0.0
  %v1077 = vmax.f32 %v821, 0.0
  %v1078 = vmax.f32 %v822, 0.0
  %v1079 = vmax.f32 %v823, 0.0
  %v1080 = vmax.f32 %v824, 0.0
  %v1081 = vmax.f32 %v825, 0.0
  %v1082 = vmax.f32 %v826, 0.0
  %v1083 = vmax.f32 %v827, 0.0
  %v1084 = vmax.f32 %v828, 0.0
  %v1085 = vmax.f32 %v829, 0.0
  %v1086 = vmax.f32 %v830, 0.0
  %v1087 = vmax.f32 %v831, 0.0
  %v1088 = vmax.f32 %v832, 0.0
  %v1089 = vmax.f32 %v833, 0.0
  %v1090 = vmax.f32 %v834, 0.0
  %v1091 = vmax.f32 %v835, 0.0
  %v1092 = vmax.f32 %v836, 0.0
  %v1093 = vmax.f32 %v837, 0.0
  %v1094 = vmax.f32 %v838, 0.0
  %v1095 = vmax.f32 %v839, 0.0
  %v1096 = vmax.f32 %v840, 0.0
  %v1097 = vmax.f32 %v841, 0.0
  %v1098 = vmax.f32 %v842, 0.0
  %v1099 = vmax.f32 %v843, 0.0
  %v1100 = vmax.f32 %v844, 0.0
  %v1101 = vmax.f32 %v845, 0.0
  %v1102 = vmax.f32 %v846, 0.0
  %v1103 = vmax.f32 %v847, 0.0
  %v1104 = vmax.f32 %v848, 0.0
  %v1105 = vmax.f32 %v849, 0.0
  %v1106 = vmax.f32 %v850, 0.0
  %v1107 = vmax.f32 %v851, 0.0
  %v1108 = vmax.f32 %v852, 0.0
  %v1109 = vmax.f32 %v853, 0.0
  %v1110 = vmax.f32 %v854, 0.0
  %v1111 = vmax.f32 %v855, 0.0
  %v1112 = vmax.f32 %v856, 0.0
  %v1113 = vmax.f32 %v857, 0.0
  %v1114 = vmax.f32 %v858, 0.0
  %v1115 = vmax.f32 %v859, 0.0
  %v1116 = vmax.f32 %v860, 0.0
  %v1117 = vmax.f32 %v861, 0.0
  %v1118 = vmax.f32 %v862, 0.0
  %v1119 = vmax.f32 %v863, 0.0
  %v1120 = vmax.f32 %v864, 0.0
  %v1121 = vmax.f32 %v865, 0.0
  %v1122 = vmax.f32 %v866, 0.0
  %v1123 = vmax.f32 %v867, 0.0
  %v1124 = vmax.f32 %v868, 0.0
  %v1125 = vmax.f32 %v869, 0.0
  %v1126 = vmax.f32 %v870, 0.0
  %v1127 = vmax.f32 %v871, 0.0
  %v1128 = vmax.f32 %v872, 0.0
  %v1129 = vmax.f32 %v873, 0.0
  %v1130 = vmax.f32 %v874, 0.0
  %v1131 = vmax.f32 %v875, 0.0
  %v1132 = vmax.f32 %v876, 0.0
  %v1133 = vmax.f32 %v877, 0.0
  %v1134 = vmax.f32 %v878, 0.0
  %v1135 = vmax.f32 %v879, 0.0
  %v1136 = vmax.f32 %v880, 0.0
  %v1137 = vmax.f32 %v881, 0.0
  %v1138 = vmax.f32 %v882, 0.0
  %v1139 = vmax.f32 %v883, 0.0
  %v1140 = vmax.f32 %v884, 0.0
  %v1141 = vmax.f32 %v885, 0.0
  %v1142 = vmax.f32 %v886, 0.0
  %v1143 = vmax.f32 %v887, 0.0
  %v1144 = vmax.f32 %v888, 0.0
  %v1145 = vmax.f32 %v889, 0.0
  %v1146 = vmax.f32 %v890, 0.0
  %v1147 = vmax.f32 %v891, 0.0
  %v1148 = vmax.f32 %v892, 0.0
  %v1149 = vmax.f32 %v893, 0.0
  %v1150 = vmax.f32 %v894, 0.0
  %v1151 = vmax.f32 %v895, 0.0
  %v1152 = vmax.f32 %v896, 0.0
  %v1153 = vmax.f32 %v897, 0.0
  %v1154 = vmax.f32 %v898, 0.0
  %v1155 = vmax.f32 %v899, 0.0
  %v1156 = vmax.f32 %v900, 0.0
  %v1157 = vmax.f32 %v901, 0.0
  %v1158 = vmax.f32 %v902, 0.0
  %v1159 = vmax.f32 %v903, 0.0
  %v1160 = vmax.f32 %v904, 0.0
  %v1161 = vmax.f32 %v905, 0.0
  %v1162 = vmax.f32 %v906, 0.0
  %v1163 = vmax.f32 %v907, 0.0
  %v1164 = vmax.f32 %v908, 0.0
  %v1165 = vmax.f32 %v909, 0.0
  %v1166 = vmax.f32 %v910, 0.0
  %v1167 = vmax.f32 %v911, 0.0
  %v1168 = vmax.f32 %v912, 0.0
  %v1169 = vmax.f32 %v913, 0.0
  %v1170 = vmax.f32 %v914, 0.0
  %v1171 = vmax.f32 %v915, 0.0
  %v1172 = vmax.f32 %v916, 0.0
  %v1173 = vmax.f32 %v917, 0.0
  %v1174 = vmax.f32 %v918, 0.0
  %v1175 = vmax.f32 %v919, 0.0
  %v1176 = vmax.f32 %v920, 0.0
  %v1177 = vmax.f32 %v921, 0.0
  %v1178 = vmax.f32 %v922, 0.0
  %v1179 = vmax.f32 %v923, 0.0
  %v1180 = vmax.f32 %v924, 0.0
  %v1181 = vmax.f32 %v925, 0.0
  %v1182 = vmax.f32 %v926, 0.0
  %v1183 = vmax.f32 %v927, 0.0
  %v1184 = vmax.f32 %v928, 0.0
  %v1185 = vmax.f32 %v929, 0.0
  %v1186 = vmax.f32 %v930, 0.0
  %v1187 = vmax.f32 %v931, 0.0
  %v1188 = vmax.f32 %v932, 0.0
  %v1189 = vmax.f32 %v933, 0.0
  %v1190 = vmax.f32 %v934, 0.0
  %v1191 = vmax.f32 %v935, 0.0
  %v1192 = vmax.f32 %v936, 0.0
  %v1193 = vmax.f32 %v937, 0.0
  %v1194 = vmax.f32 %v938, 0.0
  %v1195 = vmax.f32 %v939, 0.0
  %v1196 = vmax.f32 %v940, 0.0
  %v1197 = vmax.f32 %v941, 0.0
  %v1198 = vmax.f32 %v942, 0.0
  %v1199 = vmax.f32 %v943, 0.0
  %v1200 = vmax.f32 %v944, 0.0
  %v1201 = vmax.f32 %v945, 0.0
  %v1202 = vmax.f32 %v946, 0.0
  %v1203 = vmax.f32 %v947, 0.0
  %v1204 = vmax.f32 %v948, 0.0
  %v1205 = vmax.f32 %v949, 0.0
  %v1206 = vmax.f32 %v950, 0.0
  %v1207 = vmax.f32 %v951, 0.0
  %v1208 = vmax.f32 %v952, 0.0
  %v1209 = vmax.f32 %v953, 0.0
  %v1210 = vmax.f32 %v954, 0.0
  %v1211 = vmax.f32 %v955, 0.0
  %v1212 = vmax.f32 %v956, 0.0
  %v1213 = vmax.f32 %v957, 0.0
  %v1214 = vmax.f32 %v958, 0.0
  %v1215 = vmax.f32 %v959, 0.0
  %v1216 = vmax.f32 %v960, 0.0
  %v1217 = vmax.f32 %v961, 0.0
  %v1218 = vmax.f32 %v962, 0.0
  %v1219 = vmax.f32 %v963, 0.0
  %v1220 = vmax.f32 %v964, 0.0
  %v1221 = vmax.f32 %v965, 0.0
  %v1222 = vmax.f32 %v966, 0.0
  %v1223 = vmax.f32 %v967, 0.0
  %v1224 = vmax.f32 %v968, 0.0
  %v1225 = vmax.f32 %v969, 0.0
  %v1226 = vmax.f32 %v970, 0.0
  %v1227 = vmax.f32 %v971, 0.0
  %v1228 = vmax.f32 %v972, 0.0
  %v1229 = vmax.f32 %v973, 0.0
  %v1230 = vmax.f32 %v974, 0.0
  %v1231 = vmax.f32 %v975, 0.0
  %v1232 = vmax.f32 %v976, 0.0
  %v1233 = vmax.f32 %v977, 0.0
  %v1234 = vmax.f32 %v978, 0.0
  %v1235 = vmax.f32 %v979, 0.0
  %v1236 = vmax.f32 %v980, 0.0
  %v1237 = vmax.f32 %v981, 0.0
  %v1238 = vmax.f32 %v982, 0.0
  %v1239 = vmax.f32 %v983, 0.0
  %v1240 = vmax.f32 %v984, 0.0
  %v1241 = vmax.f32 %v985, 0.0
  %v1242 = vmax.f32 %v986, 0.0
  %v1243 = vmax.f32 %v987, 0.0
  %v1244 = vmax.f32 %v988, 0.0
  %v1245 = vmax.f32 %v989, 0.0
  %v1246 = vmax.f32 %v990, 0.0
  %v1247 = vmax.f32 %v991, 0.0
  %v1248 = vmax.f32 %v992, 0.0
  %v1249 = vmax.f32 %v993, 0.0
  %v1250 = vmax.f32 %v994, 0.0
  %v1251 = vmax.f32 %v995, 0.0
  %v1252 = vmax.f32 %v996, 0.0
  %v1253 = vmax.f32 %v997, 0.0
  %v1254 = vmax.f32 %v998, 0.0
  %v1255 = vmax.f32 %v999, 0.0
  %v1256 = vmax.f32 %v1000, 0.0
  %v1257 = vmax.f32 %v1001, 0.0
  %v1258 = vmax.f32 %v1002, 0.0
  %v1259 = vmax.f32 %v1003, 0.0
  %v1260 = vmax.f32 %v1004, 0.0
  %v1261 = vmax.f32 %v1005, 0.0
  %v1262 = vmax.f32 %v1006, 0.0
  %v1263 = vmax.f32 %v1007, 0.0
  %v1264 = vmax.f32 %v1008, 0.0
  %v1265 = vmax.f32 %v1009, 0.0
  %v1266 = vmax.f32 %v1010, 0.0
  %v1267 = vmax.f32 %v1011, 0.0
  %v1268 = vmax.f32 %v1012, 0.0
  %v1269 = vmax.f32 %v1013, 0.0
  %v1270 = vmax.f32 %v1014, 0.0
  %v1271 = vmax.f32 %v1015, 0.0
  %v1272 = vmax.f32 %v1016, 0.0
  %v1273 = vmax.f32 %v1017, 0.0
  %v1274 = vmax.f32 %v1018, 0.0
  %v1275 = vmax.f32 %v1019, 0.0
  %v1276 = vmax.f32 %v1020, 0.0
  %v1277 = vmax.f32 %v1021, 0.0
  %v1278 = vmax.f32 %v1022, 0.0
  %v1279 = vmax.f32 %v1023, 0.0
  %v1280 = vmax.f32 %v1024, 0.0
  %v1281 = vmax.f32 %v1025, 0.0
  %v1282 = vmax.f32 %v1026, 0.0
  %v1283 = vmax.f32 %v1027, 0.0
  %v1284 = vmax.f32 %v1028, 0.0
  %v1285 = vmax.f32 %v1029, 0.0
  %v1286 = vmax.f32 %v1030, 0.0
  %v1287 = vmax.f32 %v1031, 0.0
  %v1288 = vmax.f32 %v1032, 0.0
  %v1289 = vmax.f32 %v1033, 0.0
  %v1290 = vmax.f32 %v1034, 0.0
  %v1291 = vmax.f32 %v1035, 0.0
  %v1292 = vmax.f32 %v1036, 0.0
  %v1293 = vmax.f32 %v1037, 0.0
  %v1294 = vmax.f32 %v1038, 0.0
  %v1295 = vmax.f32 %v1039, 0.0
  %v1296 = vmax.f32 %v1040, 0.0
  %v1297 = vmax.f32 %v1041, 0.0
  %v1298 = vmax.f32 %v1042, 0.0
  %v1299 = vmax.f32 %v1043, 0.0
  %v1300 = vmax.f32 %v1044, 0.0
  %v1301 = vmax.f32 %v1045, 0.0
  %v1302 = vmax.f32 %v1046, 0.0
  %v1303 = vmax.f32 %v1047, 0.0
  %v1304 = vmax.f32 %v1048, 0.0
  %v1305 = vmax.f32 %v1049, 0.0
  %v1306 = vmax.f32 %v1050, 0.0
  %v1307 = vmax.f32 %v1051, 0.0
  %v1308 = vmax.f32 %v1052, 0.0
  %v1309 = vmax.f32 %v1053, 0.0
  %v1310 = vmax.f32 %v1054, 0.0
  %v1311 = vmax.f32 %v1055, 0.0
  %v1312 = vmax.f32 %v1056, 0.0
  %v1313 = vmax.f32 %v1057, 0.0
  %v1314 = vmax.f32 %v1058, 0.0
  %v1315 = vpack.c.bf16 %v1060, %v1059
  %v1316 = vpack.c.bf16 %v1062, %v1061
  %v1317 = vpack.c.bf16 %v1064, %v1063
  %v1318 = vpack.c.bf16 %v1066, %v1065
  %v1319 = vpack.c.bf16 %v1068, %v1067
  %v1320 = vpack.c.bf16 %v1070, %v1069
  %v1321 = vpack.c.bf16 %v1072, %v1071
  %v1322 = vpack.c.bf16 %v1074, %v1073
  %v1323 = vpack.c.bf16 %v1076, %v1075
  %v1324 = vpack.c.bf16 %v1078, %v1077
  %v1325 = vpack.c.bf16 %v1080, %v1079
  %v1326 = vpack.c.bf16 %v1082, %v1081
  %v1327 = vpack.c.bf16 %v1084, %v1083
  %v1328 = vpack.c.bf16 %v1086, %v1085
  %v1329 = vpack.c.bf16 %v1088, %v1087
  %v1330 = vpack.c.bf16 %v1090, %v1089
  %v1331 = vpack.c.bf16 %v1092, %v1091
  %v1332 = vpack.c.bf16 %v1094, %v1093
  %v1333 = vpack.c.bf16 %v1096, %v1095
  %v1334 = vpack.c.bf16 %v1098, %v1097
  %v1335 = vpack.c.bf16 %v1100, %v1099
  %v1336 = vpack.c.bf16 %v1102, %v1101
  %v1337 = vpack.c.bf16 %v1104, %v1103
  %v1338 = vpack.c.bf16 %v1106, %v1105
  %v1339 = vpack.c.bf16 %v1108, %v1107
  %v1340 = vpack.c.bf16 %v1110, %v1109
  %v1341 = vpack.c.bf16 %v1112, %v1111
  %v1342 = vpack.c.bf16 %v1114, %v1113
  %v1343 = vpack.c.bf16 %v1116, %v1115
  %v1344 = vpack.c.bf16 %v1118, %v1117
  %v1345 = vpack.c.bf16 %v1120, %v1119
  %v1346 = vpack.c.bf16 %v1122, %v1121
  %v1347 = vpack.c.bf16 %v1124, %v1123
  %v1348 = vpack.c.bf16 %v1126, %v1125
  %v1349 = vpack.c.bf16 %v1128, %v1127
  %v1350 = vpack.c.bf16 %v1130, %v1129
  %v1351 = vpack.c.bf16 %v1132, %v1131
  %v1352 = vpack.c.bf16 %v1134, %v1133
  %v1353 = vpack.c.bf16 %v1136, %v1135
  %v1354 = vpack.c.bf16 %v1138, %v1137
  %v1355 = vpack.c.bf16 %v1140, %v1139
  %v1356 = vpack.c.bf16 %v1142, %v1141
  %v1357 = vpack.c.bf16 %v1144, %v1143
  %v1358 = vpack.c.bf16 %v1146, %v1145
  %v1359 = vpack.c.bf16 %v1148, %v1147
  %v1360 = vpack.c.bf16 %v1150, %v1149
  %v1361 = vpack.c.bf16 %v1152, %v1151
  %v1362 = vpack.c.bf16 %v1154, %v1153
  %v1363 = vpack.c.bf16 %v1156, %v1155
  %v1364 = vpack.c.bf16 %v1158, %v1157
  %v1365 = vpack.c.bf16 %v1160, %v1159
  %v1366 = vpack.c.bf16 %v1162, %v1161
  %v1367 = vpack.c.bf16 %v1164, %v1163
  %v1368 = vpack.c.bf16 %v1166, %v1165
  %v1369 = vpack.c.bf16 %v1168, %v1167
  %v1370 = vpack.c.bf16 %v1170, %v1169
  %v1371 = vpack.c.bf16 %v1172, %v1171
  %v1372 = vpack.c.bf16 %v1174, %v1173
  %v1373 = vpack.c.bf16 %v1176, %v1175
  %v1374 = vpack.c.bf16 %v1178, %v1177
  %v1375 = vpack.c.bf16 %v1180, %v1179
  %v1376 = vpack.c.bf16 %v1182, %v1181
  %v1377 = vpack.c.bf16 %v1184, %v1183
  %v1378 = vpack.c.bf16 %v1186, %v1185
  %v1379 = vpack.c.bf16 %v1188, %v1187
  %v1380 = vpack.c.bf16 %v1190, %v1189
  %v1381 = vpack.c.bf16 %v1192, %v1191
  %v1382 = vpack.c.bf16 %v1194, %v1193
  %v1383 = vpack.c.bf16 %v1196, %v1195
  %v1384 = vpack.c.bf16 %v1198, %v1197
  %v1385 = vpack.c.bf16 %v1200, %v1199
  %v1386 = vpack.c.bf16 %v1202, %v1201
  %v1387 = vpack.c.bf16 %v1204, %v1203
  %v1388 = vpack.c.bf16 %v1206, %v1205
  %v1389 = vpack.c.bf16 %v1208, %v1207
  %v1390 = vpack.c.bf16 %v1210, %v1209
  %v1391 = vpack.c.bf16 %v1212, %v1211
  %v1392 = vpack.c.bf16 %v1214, %v1213
  %v1393 = vpack.c.bf16 %v1216, %v1215
  %v1394 = vpack.c.bf16 %v1218, %v1217
  %v1395 = vpack.c.bf16 %v1220, %v1219
  %v1396 = vpack.c.bf16 %v1222, %v1221
  %v1397 = vpack.c.bf16 %v1224, %v1223
  %v1398 = vpack.c.bf16 %v1226, %v1225
  %v1399 = vpack.c.bf16 %v1228, %v1227
  %v1400 = vpack.c.bf16 %v1230, %v1229
  %v1401 = vpack.c.bf16 %v1232, %v1231
  %v1402 = vpack.c.bf16 %v1234, %v1233
  %v1403 = vpack.c.bf16 %v1236, %v1235
  %v1404 = vpack.c.bf16 %v1238, %v1237
  %v1405 = vpack.c.bf16 %v1240, %v1239
  %v1406 = vpack.c.bf16 %v1242, %v1241
  %v1407 = vpack.c.bf16 %v1244, %v1243
  %v1408 = vpack.c.bf16 %v1246, %v1245
  %v1409 = vpack.c.bf16 %v1248, %v1247
  %v1410 = vpack.c.bf16 %v1250, %v1249
  %v1411 = vpack.c.bf16 %v1252, %v1251
  %v1412 = vpack.c.bf16 %v1254, %v1253
  %v1413 = vpack.c.bf16 %v1256, %v1255
  %v1414 = vpack.c.bf16 %v1258, %v1257
  %v1415 = vpack.c.bf16 %v1260, %v1259
  %v1416 = vpack.c.bf16 %v1262, %v1261
  %v1417 = vpack.c.bf16 %v1264, %v1263
  %v1418 = vpack.c.bf16 %v1266, %v1265
  %v1419 = vpack.c.bf16 %v1268, %v1267
  %v1420 = vpack.c.bf16 %v1270, %v1269
  %v1421 = vpack.c.bf16 %v1272, %v1271
  %v1422 = vpack.c.bf16 %v1274, %v1273
  %v1423 = vpack.c.bf16 %v1276, %v1275
  %v1424 = vpack.c.bf16 %v1278, %v1277
  %v1425 = vpack.c.bf16 %v1280, %v1279
  %v1426 = vpack.c.bf16 %v1282, %v1281
  %v1427 = vpack.c.bf16 %v1284, %v1283
  %v1428 = vpack.c.bf16 %v1286, %v1285
  %v1429 = vpack.c.bf16 %v1288, %v1287
  %v1430 = vpack.c.bf16 %v1290, %v1289
  %v1431 = vpack.c.bf16 %v1292, %v1291
  %v1432 = vpack.c.bf16 %v1294, %v1293
  %v1433 = vpack.c.bf16 %v1296, %v1295
  %v1434 = vpack.c.bf16 %v1298, %v1297
  %v1435 = vpack.c.bf16 %v1300, %v1299
  %v1436 = vpack.c.bf16 %v1302, %v1301
  %v1437 = vpack.c.bf16 %v1304, %v1303
  %v1438 = vpack.c.bf16 %v1306, %v1305
  %v1439 = vpack.c.bf16 %v1308, %v1307
  %v1440 = vpack.c.bf16 %v1310, %v1309
  %v1441 = vpack.c.bf16 %v1312, %v1311
  %v1442 = vpack.c.bf16 %v1314, %v1313
  %v1443 = vld [vmem:[%s3] sm:$0xff]
  %v1444 = vld [vmem:[%s3 + $0x8] sm:$0xff]
  %v1445 = vld [vmem:[%s3 + $0x10] sm:$0xff]
  %v1446 = vld [vmem:[%s3 + $0x18] sm:$0xff]
  %v1447 = vld [vmem:[%s3 + $0x20] sm:$0xff]
  %v1448 = vld [vmem:[%s3 + $0x28] sm:$0xff]
  %v1449 = vld [vmem:[%s3 + $0x30] sm:$0xff]
  %v1450 = vld [vmem:[%s3 + $0x38] sm:$0xff]
  %v1451 = vld [vmem:[%s3 + $0x40] sm:$0xff]
  %v1452 = vld [vmem:[%s3 + $0x48] sm:$0xff]
  %v1453 = vld [vmem:[%s3 + $0x50] sm:$0xff]
  %v1454 = vld [vmem:[%s3 + $0x58] sm:$0xff]
  %v1455 = vld [vmem:[%s4] sm:$0x3]
  %v1457 = vlaneseq
  %v1458 = vshrl.u32 %v1457, 7
  %v1459 = vsub.s32 0, %v1458
  %v1460 = vrot.slane %v1455, %v1459
  %v1461 = vlaneseq
  %v1462 = vshrl.u32 %v1461, 7
  %v1463 = vsub.s32 1, %v1462
  %v1464 = vrot.slane %v1455, %v1463
  %v1479 = vunpack.c.l.b16 %v1443
  %v1480 = vunpack.c.h.b16 %v1443
  %v1481 = vunpack.c.l.b16 %v1444
  %v1482 = vunpack.c.h.b16 %v1444
  %v1483 = vunpack.c.l.b16 %v1445
  %v1484 = vunpack.c.h.b16 %v1445
  %v1485 = vunpack.c.l.b16 %v1446
  %v1486 = vunpack.c.h.b16 %v1446
  %v1487 = vunpack.c.l.b16 %v1447
  %v1488 = vunpack.c.h.b16 %v1447
  %v1489 = vunpack.c.l.b16 %v1448
  %v1490 = vunpack.c.h.b16 %v1448
  %v1491 = vunpack.c.l.b16 %v1449
  %v1492 = vunpack.c.h.b16 %v1449
  %v1493 = vunpack.c.l.b16 %v1450
  %v1494 = vunpack.c.h.b16 %v1450
  %v1495 = vunpack.c.l.b16 %v1451
  %v1496 = vunpack.c.h.b16 %v1451
  %v1497 = vunpack.c.l.b16 %v1452
  %v1498 = vunpack.c.h.b16 %v1452
  %v1499 = vunpack.c.l.b16 %v1453
  %v1500 = vunpack.c.h.b16 %v1453
  %v1501 = vunpack.c.l.b16 %v1454
  %v1502 = vunpack.c.h.b16 %v1454
  %v1503 = vpack.c.b16 %v1481, %v1479
  %v1504 = vpack.c.b16 %v1482, %v1480
  %v1505 = vpack.c.b16 %v1485, %v1483
  %v1506 = vpack.c.b16 %v1486, %v1484
  %v1507 = vpack.c.b16 %v1489, %v1487
  %v1508 = vpack.c.b16 %v1490, %v1488
  %v1509 = vpack.c.b16 %v1493, %v1491
  %v1510 = vpack.c.b16 %v1494, %v1492
  %v1511 = vpack.c.b16 %v1497, %v1495
  %v1512 = vpack.c.b16 %v1498, %v1496
  %v1513 = vpack.c.b16 %v1501, %v1499
  %v1514 = vpack.c.b16 %v1502, %v1500
  %vm1527 = vcmask 785408
  %v1529 = vsel %vm1527, %v1315, 0
  %v1532 = vsel %vm1527, %v1316, 0
  %v1535 = vsel %vm1527, %v1317, 0
  %v1538 = vsel %vm1527, %v1318, 0
  %v1541 = vsel %vm1527, %v1319, 0
  %v1544 = vsel %vm1527, %v1320, 0
  %v1547 = vsel %vm1527, %v1321, 0
  %v1550 = vsel %vm1527, %v1322, 0
  %v1553 = vsel %vm1527, %v1323, 0
  %v1556 = vsel %vm1527, %v1324, 0
  %v1559 = vsel %vm1527, %v1325, 0
  %v1562 = vsel %vm1527, %v1326, 0
  %v1565 = vsel %vm1527, %v1327, 0
  %v1568 = vsel %vm1527, %v1328, 0
  %v1571 = vsel %vm1527, %v1329, 0
  %v1574 = vsel %vm1527, %v1330, 0
  %v1577 = vsel %vm1527, %v1331, 0
  %v1580 = vsel %vm1527, %v1332, 0
  %v1583 = vsel %vm1527, %v1333, 0
  %v1586 = vsel %vm1527, %v1334, 0
  %v1589 = vsel %vm1527, %v1335, 0
  %v1592 = vsel %vm1527, %v1336, 0
  %v1595 = vsel %vm1527, %v1337, 0
  %v1598 = vsel %vm1527, %v1338, 0
  %v1601 = vsel %vm1527, %v1339, 0
  %v1604 = vsel %vm1527, %v1340, 0
  %v1607 = vsel %vm1527, %v1341, 0
  %v1610 = vsel %vm1527, %v1342, 0
  %v1613 = vsel %vm1527, %v1343, 0
  %v1616 = vsel %vm1527, %v1344, 0
  %v1619 = vsel %vm1527, %v1345, 0
  %v1622 = vsel %vm1527, %v1346, 0
  %v1625 = vsel %vm1527, %v1347, 0
  %v1628 = vsel %vm1527, %v1348, 0
  %v1631 = vsel %vm1527, %v1349, 0
  %v1634 = vsel %vm1527, %v1350, 0
  %v1637 = vsel %vm1527, %v1351, 0
  %v1640 = vsel %vm1527, %v1352, 0
  %v1643 = vsel %vm1527, %v1353, 0
  %v1646 = vsel %vm1527, %v1354, 0
  %v1649 = vsel %vm1527, %v1355, 0
  %v1652 = vsel %vm1527, %v1356, 0
  %v1655 = vsel %vm1527, %v1357, 0
  %v1658 = vsel %vm1527, %v1358, 0
  %v1661 = vsel %vm1527, %v1359, 0
  %v1664 = vsel %vm1527, %v1360, 0
  %v1667 = vsel %vm1527, %v1361, 0
  %v1670 = vsel %vm1527, %v1362, 0
  %v1673 = vsel %vm1527, %v1363, 0
  %v1676 = vsel %vm1527, %v1364, 0
  %v1679 = vsel %vm1527, %v1365, 0
  %v1682 = vsel %vm1527, %v1366, 0
  %v1685 = vsel %vm1527, %v1367, 0
  %v1688 = vsel %vm1527, %v1368, 0
  %v1691 = vsel %vm1527, %v1369, 0
  %v1694 = vsel %vm1527, %v1370, 0
  %v1697 = vsel %vm1527, %v1371, 0
  %v1700 = vsel %vm1527, %v1372, 0
  %v1703 = vsel %vm1527, %v1373, 0
  %v1706 = vsel %vm1527, %v1374, 0
  %v1709 = vsel %vm1527, %v1375, 0
  %v1712 = vsel %vm1527, %v1376, 0
  %v1715 = vsel %vm1527, %v1377, 0
  %v1718 = vsel %vm1527, %v1378, 0
  %v1721 = vsel %vm1527, %v1379, 0
  %v1724 = vsel %vm1527, %v1380, 0
  %v1727 = vsel %vm1527, %v1381, 0
  %v1730 = vsel %vm1527, %v1382, 0
  %v1733 = vsel %vm1527, %v1383, 0
  %v1736 = vsel %vm1527, %v1384, 0
  %v1739 = vsel %vm1527, %v1385, 0
  %v1742 = vsel %vm1527, %v1386, 0
  %v1745 = vsel %vm1527, %v1387, 0
  %v1748 = vsel %vm1527, %v1388, 0
  %v1751 = vsel %vm1527, %v1389, 0
  %v1754 = vsel %vm1527, %v1390, 0
  %v1757 = vsel %vm1527, %v1391, 0
  %v1760 = vsel %vm1527, %v1392, 0
  %v1763 = vsel %vm1527, %v1393, 0
  %v1766 = vsel %vm1527, %v1394, 0
  %v1769 = vsel %vm1527, %v1395, 0
  %v1772 = vsel %vm1527, %v1396, 0
  %v1775 = vsel %vm1527, %v1397, 0
  %v1778 = vsel %vm1527, %v1398, 0
  %v1781 = vsel %vm1527, %v1399, 0
  %v1784 = vsel %vm1527, %v1400, 0
  %v1787 = vsel %vm1527, %v1401, 0
  %v1790 = vsel %vm1527, %v1402, 0
  %v1793 = vsel %vm1527, %v1403, 0
  %v1796 = vsel %vm1527, %v1404, 0
  %v1799 = vsel %vm1527, %v1405, 0
  %v1802 = vsel %vm1527, %v1406, 0
  %v1805 = vsel %vm1527, %v1407, 0
  %v1808 = vsel %vm1527, %v1408, 0
  %v1811 = vsel %vm1527, %v1409, 0
  %v1814 = vsel %vm1527, %v1410, 0
  %v1817 = vsel %vm1527, %v1411, 0
  %v1820 = vsel %vm1527, %v1412, 0
  %v1823 = vsel %vm1527, %v1413, 0
  %v1826 = vsel %vm1527, %v1414, 0
  %v1829 = vsel %vm1527, %v1415, 0
  %v1832 = vsel %vm1527, %v1416, 0
  %v1835 = vsel %vm1527, %v1417, 0
  %v1838 = vsel %vm1527, %v1418, 0
  %v1841 = vsel %vm1527, %v1419, 0
  %v1844 = vsel %vm1527, %v1420, 0
  %v1847 = vsel %vm1527, %v1421, 0
  %v1850 = vsel %vm1527, %v1422, 0
  %v1853 = vsel %vm1527, %v1423, 0
  %v1856 = vsel %vm1527, %v1424, 0
  %v1859 = vsel %vm1527, %v1425, 0
  %v1862 = vsel %vm1527, %v1426, 0
  %v1865 = vsel %vm1527, %v1427, 0
  %v1868 = vsel %vm1527, %v1428, 0
  %v1871 = vsel %vm1527, %v1429, 0
  %v1874 = vsel %vm1527, %v1430, 0
  %v1877 = vsel %vm1527, %v1431, 0
  %v1880 = vsel %vm1527, %v1432, 0
  %v1883 = vsel %vm1527, %v1433, 0
  %v1886 = vsel %vm1527, %v1434, 0
  %v1889 = vsel %vm1527, %v1435, 0
  %v1892 = vsel %vm1527, %v1436, 0
  %v1895 = vsel %vm1527, %v1437, 0
  %v1898 = vsel %vm1527, %v1438, 0
  %v1901 = vsel %vm1527, %v1439, 0
  %v1904 = vsel %vm1527, %v1440, 0
  %v1907 = vsel %vm1527, %v1441, 0
  %v1910 = vsel %vm1527, %v1442, 0
  %1912 = vmatprep.subr.bf16.mxu0 %v1504
  %1913 = vmatpush1.bf16.msra.mxu0 %v1503
  %1914 = vmatprep.subr.bf16.mxu0 %v1506
  %1915 = vmatpush1.bf16.msra.mxu0 %v1505
  %1916 = vmatprep.subr.bf16.mxu0 %v1508
  %1917 = vmatpush1.bf16.msra.mxu0 %v1507
  %1918 = vmatprep.subr.bf16.mxu0 %v1510
  %1919 = vmatpush1.bf16.msra.mxu0 %v1509
  %1920 = vmatprep.subr.bf16.mxu0 %v1512
  %1921 = vmatpush1.bf16.msra.mxu0 %v1511
  %1922 = vmatprep.subr.bf16.mxu0 %v1514
  %1923 = vmatpush1.bf16.msra.mxu0 %v1513
  %1924 = vmatprep.subr.bf16.mxu0 0
  %1925 = vmatpush1.bf16.msra.mxu0 0
  %1926 = vmatprep.subr.bf16.mxu0 0
  %1927 = vmatpush1.bf16.msra.mxu0 0
  %1928 = vmatprep.subr.bf16.mxu0 0
  %1929 = vmatpush1.bf16.msra.mxu0 0
  %1930 = vmatprep.subr.bf16.mxu0 0
  %1931 = vmatpush1.bf16.msra.mxu0 0
  %1932 = vmatprep.subr.bf16.mxu0 0
  %1933 = vmatpush1.bf16.msra.mxu0 0
  %1934 = vmatprep.subr.bf16.mxu0 0
  %1935 = vmatpush1.bf16.msra.mxu0 0
  %1936 = vmatprep.subr.bf16.mxu0 0
  %1937 = vmatpush1.bf16.msra.mxu0 0
  %1938 = vmatprep.subr.bf16.mxu0 0
  %1939 = vmatpush1.bf16.msra.mxu0 0
  %1940 = vmatprep.subr.bf16.mxu0 0
  %1941 = vmatpush1.bf16.msra.mxu0 0
  %1942 = vmatprep.subr.bf16.mxu0 0
  %1943 = vmatpush1.bf16.msra.mxu0 0
  %1944 = vmatprep.mubr.bf16.mxu0 0
  %1945 = vmatmul.mubr.bf16.gmra.mrb[0].mxu0 %v1529
  %v1946 = vpop.f32.mrb[0].mxu0
  %v1947 = vadd.f32 %v1460, %v1946
  %v1948 = vpop.f32.mrb[0].mxu0
  %v1949 = vadd.f32 %v1464, %v1948
  %v1950 = vpop.f32.mrb[0].mxu0
  %v1951 = vadd.f32 %v1460, %v1950
  %v1952 = vpop.f32.mrb[0].mxu0
  %v1953 = vadd.f32 %v1464, %v1952
  %1954 = vmatprep.mubr.bf16.mxu0 0
  %1955 = vmatmul.mubr.bf16.gmra.mrb[0].mxu0 %v1532
  %v1956 = vpop.f32.mrb[0].mxu0
  %v1957 = vadd.f32 %v1460, %v1956
  %v1958 = vpop.f32.mrb[0].mxu0
  %v1959 = vadd.f32 %v1464, %v1958
  %v1960 = vpop.f32.mrb[0].mxu0
  %v1961 = vadd.f32 %v1460, %v1960
  %v1962 = vpop.f32.mrb[0].mxu0
  %v1963 = vadd.f32 %v1464, %v1962
  %1964 = vmatprep.mubr.bf16.mxu0 0
  %1965 = vmatmul.mubr.bf16.gmra.mrb[0].mxu0 %v1535
  %v1966 = vpop.f32.mrb[0].mxu0
  %v1967 = vadd.f32 %v1460, %v1966
  %v1968 = vpop.f32.mrb[0].mxu0
  %v1969 = vadd.f32 %v1464, %v1968
  %v1970 = vpop.f32.mrb[0].mxu0
  %v1971 = vadd.f32 %v1460, %v1970
  %v1972 = vpop.f32.mrb[0].mxu0
  %v1973 = vadd.f32 %v1464, %v1972
  %1974 = vmatprep.mubr.bf16.mxu0 0
  %1975 = vmatmul.mubr.bf16.gmra.mrb[0].mxu0 %v1538
  %v1976 = vpop.f32.mrb[0].mxu0
  %v1977 = vadd.f32 %v1460, %v1976
  %v1978 = vpop.f32.mrb[0].mxu0
  %v1979 = vadd.f32 %v1464, %v1978
  %v1980 = vpop.f32.mrb[0].mxu0
  %v1981 = vadd.f32 %v1460, %v1980
  %v1982 = vpop.f32.mrb[0].mxu0
  %v1983 = vadd.f32 %v1464, %v1982
  %1984 = vmatprep.mubr.bf16.mxu0 0
  %1985 = vmatmul.mubr.bf16.gmra.mrb[0].mxu0 %v1541
  %v1986 = vpop.f32.mrb[0].mxu0
  %v1987 = vadd.f32 %v1460, %v1986
  %v1988 = vpop.f32.mrb[0].mxu0
  %v1989 = vadd.f32 %v1464, %v1988
  %v1990 = vpop.f32.mrb[0].mxu0
  %v1991 = vadd.f32 %v1460, %v1990
  %v1992 = vpop.f32.mrb[0].mxu0
  %v1993 = vadd.f32 %v1464, %v1992
  %1994 = vmatprep.mubr.bf16.mxu0 0
  %1995 = vmatmul.mubr.bf16.gmra.mrb[0].mxu0 %v1544
  %v1996 = vpop.f32.mrb[0].mxu0
  %v1997 = vadd.f32 %v1460, %v1996
  %v1998 = vpop.f32.mrb[0].mxu0
  %v1999 = vadd.f32 %v1464, %v1998
  %v2000 = vpop.f32.mrb[0].mxu0
  %v2001 = vadd.f32 %v1460, %v2000
  %v2002 = vpop.f32.mrb[0].mxu0
  %v2003 = vadd.f32 %v1464, %v2002
  %2004 = vmatprep.mubr.bf16.mxu0 0
  %2005 = vmatmul.mubr.bf16.gmra.mrb[0].mxu0 %v1547
  %v2006 = vpop.f32.mrb[0].mxu0
  %v2007 = vadd.f32 %v1460, %v2006
  %v2008 = vpop.f32.mrb[0].mxu0
  %v2009 = vadd.f32 %v1464, %v2008
  %v2010 = vpop.f32.mrb[0].mxu0
  %v2011 = vadd.f32 %v1460, %v2010
  %v2012 = vpop.f32.mrb[0].mxu0
  %v2013 = vadd.f32 %v1464, %v2012
  %2014 = vmatprep.mubr.bf16.mxu0 0
  %2015 = vmatmul.mubr.bf16.gmra.mrb[0].mxu0 %v1550
  %v2016 = vpop.f32.mrb[0].mxu0
  %v2017 = vadd.f32 %v1460, %v2016
  %v2018 = vpop.f32.mrb[0].mxu0
  %v2019 = vadd.f32 %v1464, %v2018
  %v2020 = vpop.f32.mrb[0].mxu0
  %v2021 = vadd.f32 %v1460, %v2020
  %v2022 = vpop.f32.mrb[0].mxu0
  %v2023 = vadd.f32 %v1464, %v2022
  %2024 = vmatprep.mubr.bf16.mxu0 0
  %2025 = vmatmul.mubr.bf16.gmra.mrb[0].mxu0 %v1553
  %v2026 = vpop.f32.mrb[0].mxu0
  %v2027 = vadd.f32 %v1460, %v2026
  %v2028 = vpop.f32.mrb[0].mxu0
  %v2029 = vadd.f32 %v1464, %v2028
  %v2030 = vpop.f32.mrb[0].mxu0
  %v2031 = vadd.f32 %v1460, %v2030
  %v2032 = vpop.f32.mrb[0].mxu0
  %v2033 = vadd.f32 %v1464, %v2032
  %2034 = vmatprep.mubr.bf16.mxu0 0
  %2035 = vmatmul.mubr.bf16.gmra.mrb[0].mxu0 %v1556
  %v2036 = vpop.f32.mrb[0].mxu0
  %v2037 = vadd.f32 %v1460, %v2036
  %v2038 = vpop.f32.mrb[0].mxu0
  %v2039 = vadd.f32 %v1464, %v2038
  %v2040 = vpop.f32.mrb[0].mxu0
  %v2041 = vadd.f32 %v1460, %v2040
  %v2042 = vpop.f32.mrb[0].mxu0
  %v2043 = vadd.f32 %v1464, %v2042
  %2044 = vmatprep.mubr.bf16.mxu0 0
  %2045 = vmatmul.mubr.bf16.gmra.mrb[0].mxu0 %v1559
  %v2046 = vpop.f32.mrb[0].mxu0
  %v2047 = vadd.f32 %v1460, %v2046
  %v2048 = vpop.f32.mrb[0].mxu0
  %v2049 = vadd.f32 %v1464, %v2048
  %v2050 = vpop.f32.mrb[0].mxu0
  %v2051 = vadd.f32 %v1460, %v2050
  %v2052 = vpop.f32.mrb[0].mxu0
  %v2053 = vadd.f32 %v1464, %v2052
  %2054 = vmatprep.mubr.bf16.mxu0 0
  %2055 = vmatmul.mubr.bf16.gmra.mrb[0].mxu0 %v1562
  %v2056 = vpop.f32.mrb[0].mxu0
  %v2057 = vadd.f32 %v1460, %v2056
  %v2058 = vpop.f32.mrb[0].mxu0
  %v2059 = vadd.f32 %v1464, %v2058
  %v2060 = vpop.f32.mrb[0].mxu0
  %v2061 = vadd.f32 %v1460, %v2060
  %v2062 = vpop.f32.mrb[0].mxu0
  %v2063 = vadd.f32 %v1464, %v2062
  %2064 = vmatprep.mubr.bf16.mxu0 0
  %2065 = vmatmul.mubr.bf16.gmra.mrb[0].mxu0 %v1565
  %v2066 = vpop.f32.mrb[0].mxu0
  %v2067 = vadd.f32 %v1460, %v2066
  %v2068 = vpop.f32.mrb[0].mxu0
  %v2069 = vadd.f32 %v1464, %v2068
  %v2070 = vpop.f32.mrb[0].mxu0
  %v2071 = vadd.f32 %v1460, %v2070
  %v2072 = vpop.f32.mrb[0].mxu0
  %v2073 = vadd.f32 %v1464, %v2072
  %2074 = vmatprep.mubr.bf16.mxu0 0
  %2075 = vmatmul.mubr.bf16.gmra.mrb[0].mxu0 %v1568
  %v2076 = vpop.f32.mrb[0].mxu0
  %v2077 = vadd.f32 %v1460, %v2076
  %v2078 = vpop.f32.mrb[0].mxu0
  %v2079 = vadd.f32 %v1464, %v2078
  %v2080 = vpop.f32.mrb[0].mxu0
  %v2081 = vadd.f32 %v1460, %v2080
  %v2082 = vpop.f32.mrb[0].mxu0
  %v2083 = vadd.f32 %v1464, %v2082
  %2084 = vmatprep.mubr.bf16.mxu0 0
  %2085 = vmatmul.mubr.bf16.gmra.mrb[0].mxu0 %v1571
  %v2086 = vpop.f32.mrb[0].mxu0
  %v2087 = vadd.f32 %v1460, %v2086
  %v2088 = vpop.f32.mrb[0].mxu0
  %v2089 = vadd.f32 %v1464, %v2088
  %v2090 = vpop.f32.mrb[0].mxu0
  %v2091 = vadd.f32 %v1460, %v2090
  %v2092 = vpop.f32.mrb[0].mxu0
  %v2093 = vadd.f32 %v1464, %v2092
  %2094 = vmatprep.mubr.bf16.mxu0 0
  %2095 = vmatmul.mubr.bf16.gmra.mrb[0].mxu0 %v1574
  %v2096 = vpop.f32.mrb[0].mxu0
  %v2097 = vadd.f32 %v1460, %v2096
  %v2098 = vpop.f32.mrb[0].mxu0
  %v2099 = vadd.f32 %v1464, %v2098
  %v2100 = vpop.f32.mrb[0].mxu0
  %v2101 = vadd.f32 %v1460, %v2100
  %v2102 = vpop.f32.mrb[0].mxu0
  %v2103 = vadd.f32 %v1464, %v2102
  %2104 = vmatprep.mubr.bf16.mxu0 0
  %2105 = vmatmul.mubr.bf16.gmra.mrb[0].mxu0 %v1577
  %v2106 = vpop.f32.mrb[0].mxu0
  %v2107 = vadd.f32 %v1460, %v2106
  %v2108 = vpop.f32.mrb[0].mxu0
  %v2109 = vadd.f32 %v1464, %v2108
  %v2110 = vpop.f32.mrb[0].mxu0
  %v2111 = vadd.f32 %v1460, %v2110
  %v2112 = vpop.f32.mrb[0].mxu0
  %v2113 = vadd.f32 %v1464, %v2112
  %2114 = vmatprep.mubr.bf16.mxu0 0
  %2115 = vmatmul.mubr.bf16.gmra.mrb[0].mxu0 %v1580
  %v2116 = vpop.f32.mrb[0].mxu0
  %v2117 = vadd.f32 %v1460, %v2116
  %v2118 = vpop.f32.mrb[0].mxu0
  %v2119 = vadd.f32 %v1464, %v2118
  %v2120 = vpop.f32.mrb[0].mxu0
  %v2121 = vadd.f32 %v1460, %v2120
  %v2122 = vpop.f32.mrb[0].mxu0
  %v2123 = vadd.f32 %v1464, %v2122
  %2124 = vmatprep.mubr.bf16.mxu0 0
  %2125 = vmatmul.mubr.bf16.gmra.mrb[0].mxu0 %v1583
  %v2126 = vpop.f32.mrb[0].mxu0
  %v2127 = vadd.f32 %v1460, %v2126
  %v2128 = vpop.f32.mrb[0].mxu0
  %v2129 = vadd.f32 %v1464, %v2128
  %v2130 = vpop.f32.mrb[0].mxu0
  %v2131 = vadd.f32 %v1460, %v2130
  %v2132 = vpop.f32.mrb[0].mxu0
  %v2133 = vadd.f32 %v1464, %v2132
  %2134 = vmatprep.mubr.bf16.mxu0 0
  %2135 = vmatmul.mubr.bf16.gmra.mrb[0].mxu0 %v1586
  %v2136 = vpop.f32.mrb[0].mxu0
  %v2137 = vadd.f32 %v1460, %v2136
  %v2138 = vpop.f32.mrb[0].mxu0
  %v2139 = vadd.f32 %v1464, %v2138
  %v2140 = vpop.f32.mrb[0].mxu0
  %v2141 = vadd.f32 %v1460, %v2140
  %v2142 = vpop.f32.mrb[0].mxu0
  %v2143 = vadd.f32 %v1464, %v2142
  %2144 = vmatprep.mubr.bf16.mxu0 0
  %2145 = vmatmul.mubr.bf16.gmra.mrb[0].mxu0 %v1589
  %v2146 = vpop.f32.mrb[0].mxu0
  %v2147 = vadd.f32 %v1460, %v2146
  %v2148 = vpop.f32.mrb[0].mxu0
  %v2149 = vadd.f32 %v1464, %v2148
  %v2150 = vpop.f32.mrb[0].mxu0
  %v2151 = vadd.f32 %v1460, %v2150
  %v2152 = vpop.f32.mrb[0].mxu0
  %v2153 = vadd.f32 %v1464, %v2152
  %2154 = vmatprep.mubr.bf16.mxu0 0
  %2155 = vmatmul.mubr.bf16.gmra.mrb[0].mxu0 %v1592
  %v2156 = vpop.f32.mrb[0].mxu0
  %v2157 = vadd.f32 %v1460, %v2156
  %v2158 = vpop.f32.mrb[0].mxu0
  %v2159 = vadd.f32 %v1464, %v2158
  %v2160 = vpop.f32.mrb[0].mxu0
  %v2161 = vadd.f32 %v1460, %v2160
  %v2162 = vpop.f32.mrb[0].mxu0
  %v2163 = vadd.f32 %v1464, %v2162
  %2164 = vmatprep.mubr.bf16.mxu0 0
  %2165 = vmatmul.mubr.bf16.gmra.mrb[0].mxu0 %v1595
  %v2166 = vpop.f32.mrb[0].mxu0
  %v2167 = vadd.f32 %v1460, %v2166
  %v2168 = vpop.f32.mrb[0].mxu0
  %v2169 = vadd.f32 %v1464, %v2168
  %v2170 = vpop.f32.mrb[0].mxu0
  %v2171 = vadd.f32 %v1460, %v2170
  %v2172 = vpop.f32.mrb[0].mxu0
  %v2173 = vadd.f32 %v1464, %v2172
  %2174 = vmatprep.mubr.bf16.mxu0 0
  %2175 = vmatmul.mubr.bf16.gmra.mrb[0].mxu0 %v1598
  %v2176 = vpop.f32.mrb[0].mxu0
  %v2177 = vadd.f32 %v1460, %v2176
  %v2178 = vpop.f32.mrb[0].mxu0
  %v2179 = vadd.f32 %v1464, %v2178
  %v2180 = vpop.f32.mrb[0].mxu0
  %v2181 = vadd.f32 %v1460, %v2180
  %v2182 = vpop.f32.mrb[0].mxu0
  %v2183 = vadd.f32 %v1464, %v2182
  %2184 = vmatprep.mubr.bf16.mxu0 0
  %2185 = vmatmul.mubr.bf16.gmra.mrb[0].mxu0 %v1601
  %v2186 = vpop.f32.mrb[0].mxu0
  %v2187 = vadd.f32 %v1460, %v2186
  %v2188 = vpop.f32.mrb[0].mxu0
  %v2189 = vadd.f32 %v1464, %v2188
  %v2190 = vpop.f32.mrb[0].mxu0
  %v2191 = vadd.f32 %v1460, %v2190
  %v2192 = vpop.f32.mrb[0].mxu0
  %v2193 = vadd.f32 %v1464, %v2192
  %2194 = vmatprep.mubr.bf16.mxu0 0
  %2195 = vmatmul.mubr.bf16.gmra.mrb[0].mxu0 %v1604
  %v2196 = vpop.f32.mrb[0].mxu0
  %v2197 = vadd.f32 %v1460, %v2196
  %v2198 = vpop.f32.mrb[0].mxu0
  %v2199 = vadd.f32 %v1464, %v2198
  %v2200 = vpop.f32.mrb[0].mxu0
  %v2201 = vadd.f32 %v1460, %v2200
  %v2202 = vpop.f32.mrb[0].mxu0
  %v2203 = vadd.f32 %v1464, %v2202
  %2204 = vmatprep.mubr.bf16.mxu0 0
  %2205 = vmatmul.mubr.bf16.gmra.mrb[0].mxu0 %v1607
  %v2206 = vpop.f32.mrb[0].mxu0
  %v2207 = vadd.f32 %v1460, %v2206
  %v2208 = vpop.f32.mrb[0].mxu0
  %v2209 = vadd.f32 %v1464, %v2208
  %v2210 = vpop.f32.mrb[0].mxu0
  %v2211 = vadd.f32 %v1460, %v2210
  %v2212 = vpop.f32.mrb[0].mxu0
  %v2213 = vadd.f32 %v1464, %v2212
  %2214 = vmatprep.mubr.bf16.mxu0 0
  %2215 = vmatmul.mubr.bf16.gmra.mrb[0].mxu0 %v1610
  %v2216 = vpop.f32.mrb[0].mxu0
  %v2217 = vadd.f32 %v1460, %v2216
  %v2218 = vpop.f32.mrb[0].mxu0
  %v2219 = vadd.f32 %v1464, %v2218
  %v2220 = vpop.f32.mrb[0].mxu0
  %v2221 = vadd.f32 %v1460, %v2220
  %v2222 = vpop.f32.mrb[0].mxu0
  %v2223 = vadd.f32 %v1464, %v2222
  %2224 = vmatprep.mubr.bf16.mxu0 0
  %2225 = vmatmul.mubr.bf16.gmra.mrb[0].mxu0 %v1613
  %v2226 = vpop.f32.mrb[0].mxu0
  %v2227 = vadd.f32 %v1460, %v2226
  %v2228 = vpop.f32.mrb[0].mxu0
  %v2229 = vadd.f32 %v1464, %v2228
  %v2230 = vpop.f32.mrb[0].mxu0
  %v2231 = vadd.f32 %v1460, %v2230
  %v2232 = vpop.f32.mrb[0].mxu0
  %v2233 = vadd.f32 %v1464, %v2232
  %2234 = vmatprep.mubr.bf16.mxu0 0
  %2235 = vmatmul.mubr.bf16.gmra.mrb[0].mxu0 %v1616
  %v2236 = vpop.f32.mrb[0].mxu0
  %v2237 = vadd.f32 %v1460, %v2236
  %v2238 = vpop.f32.mrb[0].mxu0
  %v2239 = vadd.f32 %v1464, %v2238
  %v2240 = vpop.f32.mrb[0].mxu0
  %v2241 = vadd.f32 %v1460, %v2240
  %v2242 = vpop.f32.mrb[0].mxu0
  %v2243 = vadd.f32 %v1464, %v2242
  %2244 = vmatprep.mubr.bf16.mxu0 0
  %2245 = vmatmul.mubr.bf16.gmra.mrb[0].mxu0 %v1619
  %v2246 = vpop.f32.mrb[0].mxu0
  %v2247 = vadd.f32 %v1460, %v2246
  %v2248 = vpop.f32.mrb[0].mxu0
  %v2249 = vadd.f32 %v1464, %v2248
  %v2250 = vpop.f32.mrb[0].mxu0
  %v2251 = vadd.f32 %v1460, %v2250
  %v2252 = vpop.f32.mrb[0].mxu0
  %v2253 = vadd.f32 %v1464, %v2252
  %2254 = vmatprep.mubr.bf16.mxu0 0
  %2255 = vmatmul.mubr.bf16.gmra.mrb[0].mxu0 %v1622
  %v2256 = vpop.f32.mrb[0].mxu0
  %v2257 = vadd.f32 %v1460, %v2256
  %v2258 = vpop.f32.mrb[0].mxu0
  %v2259 = vadd.f32 %v1464, %v2258
  %v2260 = vpop.f32.mrb[0].mxu0
  %v2261 = vadd.f32 %v1460, %v2260
  %v2262 = vpop.f32.mrb[0].mxu0
  %v2263 = vadd.f32 %v1464, %v2262
  %2264 = vmatprep.mubr.bf16.mxu0 0
  %2265 = vmatmul.mubr.bf16.gmra.mrb[0].mxu0 %v1625
  %v2266 = vpop.f32.mrb[0].mxu0
  %v2267 = vadd.f32 %v1460, %v2266
  %v2268 = vpop.f32.mrb[0].mxu0
  %v2269 = vadd.f32 %v1464, %v2268
  %v2270 = vpop.f32.mrb[0].mxu0
  %v2271 = vadd.f32 %v1460, %v2270
  %v2272 = vpop.f32.mrb[0].mxu0
  %v2273 = vadd.f32 %v1464, %v2272
  %2274 = vmatprep.mubr.bf16.mxu0 0
  %2275 = vmatmul.mubr.bf16.gmra.mrb[0].mxu0 %v1628
  %v2276 = vpop.f32.mrb[0].mxu0
  %v2277 = vadd.f32 %v1460, %v2276
  %v2278 = vpop.f32.mrb[0].mxu0
  %v2279 = vadd.f32 %v1464, %v2278
  %v2280 = vpop.f32.mrb[0].mxu0
  %v2281 = vadd.f32 %v1460, %v2280
  %v2282 = vpop.f32.mrb[0].mxu0
  %v2283 = vadd.f32 %v1464, %v2282
  %2284 = vmatprep.mubr.bf16.mxu0 0
  %2285 = vmatmul.mubr.bf16.gmra.mrb[0].mxu0 %v1631
  %v2286 = vpop.f32.mrb[0].mxu0
  %v2287 = vadd.f32 %v1460, %v2286
  %v2288 = vpop.f32.mrb[0].mxu0
  %v2289 = vadd.f32 %v1464, %v2288
  %v2290 = vpop.f32.mrb[0].mxu0
  %v2291 = vadd.f32 %v1460, %v2290
  %v2292 = vpop.f32.mrb[0].mxu0
  %v2293 = vadd.f32 %v1464, %v2292
  %2294 = vmatprep.mubr.bf16.mxu0 0
  %2295 = vmatmul.mubr.bf16.gmra.mrb[0].mxu0 %v1634
  %v2296 = vpop.f32.mrb[0].mxu0
  %v2297 = vadd.f32 %v1460, %v2296
  %v2298 = vpop.f32.mrb[0].mxu0
  %v2299 = vadd.f32 %v1464, %v2298
  %v2300 = vpop.f32.mrb[0].mxu0
  %v2301 = vadd.f32 %v1460, %v2300
  %v2302 = vpop.f32.mrb[0].mxu0
  %v2303 = vadd.f32 %v1464, %v2302
  %2304 = vmatprep.mubr.bf16.mxu0 0
  %2305 = vmatmul.mubr.bf16.gmra.mrb[0].mxu0 %v1637
  %v2306 = vpop.f32.mrb[0].mxu0
  %v2307 = vadd.f32 %v1460, %v2306
  %v2308 = vpop.f32.mrb[0].mxu0
  %v2309 = vadd.f32 %v1464, %v2308
  %v2310 = vpop.f32.mrb[0].mxu0
  %v2311 = vadd.f32 %v1460, %v2310
  %v2312 = vpop.f32.mrb[0].mxu0
  %v2313 = vadd.f32 %v1464, %v2312
  %2314 = vmatprep.mubr.bf16.mxu0 0
  %2315 = vmatmul.mubr.bf16.gmra.mrb[0].mxu0 %v1640
  %v2316 = vpop.f32.mrb[0].mxu0
  %v2317 = vadd.f32 %v1460, %v2316
  %v2318 = vpop.f32.mrb[0].mxu0
  %v2319 = vadd.f32 %v1464, %v2318
  %v2320 = vpop.f32.mrb[0].mxu0
  %v2321 = vadd.f32 %v1460, %v2320
  %v2322 = vpop.f32.mrb[0].mxu0
  %v2323 = vadd.f32 %v1464, %v2322
  %2324 = vmatprep.mubr.bf16.mxu0 0
  %2325 = vmatmul.mubr.bf16.gmra.mrb[0].mxu0 %v1643
  %v2326 = vpop.f32.mrb[0].mxu0
  %v2327 = vadd.f32 %v1460, %v2326
  %v2328 = vpop.f32.mrb[0].mxu0
  %v2329 = vadd.f32 %v1464, %v2328
  %v2330 = vpop.f32.mrb[0].mxu0
  %v2331 = vadd.f32 %v1460, %v2330
  %v2332 = vpop.f32.mrb[0].mxu0
  %v2333 = vadd.f32 %v1464, %v2332
  %2334 = vmatprep.mubr.bf16.mxu0 0
  %2335 = vmatmul.mubr.bf16.gmra.mrb[0].mxu0 %v1646
  %v2336 = vpop.f32.mrb[0].mxu0
  %v2337 = vadd.f32 %v1460, %v2336
  %v2338 = vpop.f32.mrb[0].mxu0
  %v2339 = vadd.f32 %v1464, %v2338
  %v2340 = vpop.f32.mrb[0].mxu0
  %v2341 = vadd.f32 %v1460, %v2340
  %v2342 = vpop.f32.mrb[0].mxu0
  %v2343 = vadd.f32 %v1464, %v2342
  %2344 = vmatprep.mubr.bf16.mxu0 0
  %2345 = vmatmul.mubr.bf16.gmra.mrb[0].mxu0 %v1649
  %v2346 = vpop.f32.mrb[0].mxu0
  %v2347 = vadd.f32 %v1460, %v2346
  %v2348 = vpop.f32.mrb[0].mxu0
  %v2349 = vadd.f32 %v1464, %v2348
  %v2350 = vpop.f32.mrb[0].mxu0
  %v2351 = vadd.f32 %v1460, %v2350
  %v2352 = vpop.f32.mrb[0].mxu0
  %v2353 = vadd.f32 %v1464, %v2352
  %2354 = vmatprep.mubr.bf16.mxu0 0
  %2355 = vmatmul.mubr.bf16.gmra.mrb[0].mxu0 %v1652
  %v2356 = vpop.f32.mrb[0].mxu0
  %v2357 = vadd.f32 %v1460, %v2356
  %v2358 = vpop.f32.mrb[0].mxu0
  %v2359 = vadd.f32 %v1464, %v2358
  %v2360 = vpop.f32.mrb[0].mxu0
  %v2361 = vadd.f32 %v1460, %v2360
  %v2362 = vpop.f32.mrb[0].mxu0
  %v2363 = vadd.f32 %v1464, %v2362
  %2364 = vmatprep.mubr.bf16.mxu0 0
  %2365 = vmatmul.mubr.bf16.gmra.mrb[0].mxu0 %v1655
  %v2366 = vpop.f32.mrb[0].mxu0
  %v2367 = vadd.f32 %v1460, %v2366
  %v2368 = vpop.f32.mrb[0].mxu0
  %v2369 = vadd.f32 %v1464, %v2368
  %v2370 = vpop.f32.mrb[0].mxu0
  %v2371 = vadd.f32 %v1460, %v2370
  %v2372 = vpop.f32.mrb[0].mxu0
  %v2373 = vadd.f32 %v1464, %v2372
  %2374 = vmatprep.mubr.bf16.mxu0 0
  %2375 = vmatmul.mubr.bf16.gmra.mrb[0].mxu0 %v1658
  %v2376 = vpop.f32.mrb[0].mxu0
  %v2377 = vadd.f32 %v1460, %v2376
  %v2378 = vpop.f32.mrb[0].mxu0
  %v2379 = vadd.f32 %v1464, %v2378
  %v2380 = vpop.f32.mrb[0].mxu0
  %v2381 = vadd.f32 %v1460, %v2380
  %v2382 = vpop.f32.mrb[0].mxu0
  %v2383 = vadd.f32 %v1464, %v2382
  %2384 = vmatprep.mubr.bf16.mxu0 0
  %2385 = vmatmul.mubr.bf16.gmra.mrb[0].mxu0 %v1661
  %v2386 = vpop.f32.mrb[0].mxu0
  %v2387 = vadd.f32 %v1460, %v2386
  %v2388 = vpop.f32.mrb[0].mxu0
  %v2389 = vadd.f32 %v1464, %v2388
  %v2390 = vpop.f32.mrb[0].mxu0
  %v2391 = vadd.f32 %v1460, %v2390
  %v2392 = vpop.f32.mrb[0].mxu0
  %v2393 = vadd.f32 %v1464, %v2392
  %2394 = vmatprep.mubr.bf16.mxu0 0
  %2395 = vmatmul.mubr.bf16.gmra.mrb[0].mxu0 %v1664
  %v2396 = vpop.f32.mrb[0].mxu0
  %v2397 = vadd.f32 %v1460, %v2396
  %v2398 = vpop.f32.mrb[0].mxu0
  %v2399 = vadd.f32 %v1464, %v2398
  %v2400 = vpop.f32.mrb[0].mxu0
  %v2401 = vadd.f32 %v1460, %v2400
  %v2402 = vpop.f32.mrb[0].mxu0
  %v2403 = vadd.f32 %v1464, %v2402
  %2404 = vmatprep.mubr.bf16.mxu0 0
  %2405 = vmatmul.mubr.bf16.gmra.mrb[0].mxu0 %v1667
  %v2406 = vpop.f32.mrb[0].mxu0
  %v2407 = vadd.f32 %v1460, %v2406
  %v2408 = vpop.f32.mrb[0].mxu0
  %v2409 = vadd.f32 %v1464, %v2408
  %v2410 = vpop.f32.mrb[0].mxu0
  %v2411 = vadd.f32 %v1460, %v2410
  %v2412 = vpop.f32.mrb[0].mxu0
  %v2413 = vadd.f32 %v1464, %v2412
  %2414 = vmatprep.mubr.bf16.mxu0 0
  %2415 = vmatmul.mubr.bf16.gmra.mrb[0].mxu0 %v1670
  %v2416 = vpop.f32.mrb[0].mxu0
  %v2417 = vadd.f32 %v1460, %v2416
  %v2418 = vpop.f32.mrb[0].mxu0
  %v2419 = vadd.f32 %v1464, %v2418
  %v2420 = vpop.f32.mrb[0].mxu0
  %v2421 = vadd.f32 %v1460, %v2420
  %v2422 = vpop.f32.mrb[0].mxu0
  %v2423 = vadd.f32 %v1464, %v2422
  %2424 = vmatprep.mubr.bf16.mxu0 0
  %2425 = vmatmul.mubr.bf16.gmra.mrb[0].mxu0 %v1673
  %v2426 = vpop.f32.mrb[0].mxu0
  %v2427 = vadd.f32 %v1460, %v2426
  %v2428 = vpop.f32.mrb[0].mxu0
  %v2429 = vadd.f32 %v1464, %v2428
  %v2430 = vpop.f32.mrb[0].mxu0
  %v2431 = vadd.f32 %v1460, %v2430
  %v2432 = vpop.f32.mrb[0].mxu0
  %v2433 = vadd.f32 %v1464, %v2432
  %2434 = vmatprep.mubr.bf16.mxu0 0
  %2435 = vmatmul.mubr.bf16.gmra.mrb[0].mxu0 %v1676
  %v2436 = vpop.f32.mrb[0].mxu0
  %v2437 = vadd.f32 %v1460, %v2436
  %v2438 = vpop.f32.mrb[0].mxu0
  %v2439 = vadd.f32 %v1464, %v2438
  %v2440 = vpop.f32.mrb[0].mxu0
  %v2441 = vadd.f32 %v1460, %v2440
  %v2442 = vpop.f32.mrb[0].mxu0
  %v2443 = vadd.f32 %v1464, %v2442
  %2444 = vmatprep.mubr.bf16.mxu0 0
  %2445 = vmatmul.mubr.bf16.gmra.mrb[0].mxu0 %v1679
  %v2446 = vpop.f32.mrb[0].mxu0
  %v2447 = vadd.f32 %v1460, %v2446
  %v2448 = vpop.f32.mrb[0].mxu0
  %v2449 = vadd.f32 %v1464, %v2448
  %v2450 = vpop.f32.mrb[0].mxu0
  %v2451 = vadd.f32 %v1460, %v2450
  %v2452 = vpop.f32.mrb[0].mxu0
  %v2453 = vadd.f32 %v1464, %v2452
  %2454 = vmatprep.mubr.bf16.mxu0 0
  %2455 = vmatmul.mubr.bf16.gmra.mrb[0].mxu0 %v1682
  %v2456 = vpop.f32.mrb[0].mxu0
  %v2457 = vadd.f32 %v1460, %v2456
  %v2458 = vpop.f32.mrb[0].mxu0
  %v2459 = vadd.f32 %v1464, %v2458
  %v2460 = vpop.f32.mrb[0].mxu0
  %v2461 = vadd.f32 %v1460, %v2460
  %v2462 = vpop.f32.mrb[0].mxu0
  %v2463 = vadd.f32 %v1464, %v2462
  %2464 = vmatprep.mubr.bf16.mxu0 0
  %2465 = vmatmul.mubr.bf16.gmra.mrb[0].mxu0 %v1685
  %v2466 = vpop.f32.mrb[0].mxu0
  %v2467 = vadd.f32 %v1460, %v2466
  %v2468 = vpop.f32.mrb[0].mxu0
  %v2469 = vadd.f32 %v1464, %v2468
  %v2470 = vpop.f32.mrb[0].mxu0
  %v2471 = vadd.f32 %v1460, %v2470
  %v2472 = vpop.f32.mrb[0].mxu0
  %v2473 = vadd.f32 %v1464, %v2472
  %2474 = vmatprep.mubr.bf16.mxu0 0
  %2475 = vmatmul.mubr.bf16.gmra.mrb[0].mxu0 %v1688
  %v2476 = vpop.f32.mrb[0].mxu0
  %v2477 = vadd.f32 %v1460, %v2476
  %v2478 = vpop.f32.mrb[0].mxu0
  %v2479 = vadd.f32 %v1464, %v2478
  %v2480 = vpop.f32.mrb[0].mxu0
  %v2481 = vadd.f32 %v1460, %v2480
  %v2482 = vpop.f32.mrb[0].mxu0
  %v2483 = vadd.f32 %v1464, %v2482
  %2484 = vmatprep.mubr.bf16.mxu0 0
  %2485 = vmatmul.mubr.bf16.gmra.mrb[0].mxu0 %v1691
  %v2486 = vpop.f32.mrb[0].mxu0
  %v2487 = vadd.f32 %v1460, %v2486
  %v2488 = vpop.f32.mrb[0].mxu0
  %v2489 = vadd.f32 %v1464, %v2488
  %v2490 = vpop.f32.mrb[0].mxu0
  %v2491 = vadd.f32 %v1460, %v2490
  %v2492 = vpop.f32.mrb[0].mxu0
  %v2493 = vadd.f32 %v1464, %v2492
  %2494 = vmatprep.mubr.bf16.mxu0 0
  %2495 = vmatmul.mubr.bf16.gmra.mrb[0].mxu0 %v1694
  %v2496 = vpop.f32.mrb[0].mxu0
  %v2497 = vadd.f32 %v1460, %v2496
  %v2498 = vpop.f32.mrb[0].mxu0
  %v2499 = vadd.f32 %v1464, %v2498
  %v2500 = vpop.f32.mrb[0].mxu0
  %v2501 = vadd.f32 %v1460, %v2500
  %v2502 = vpop.f32.mrb[0].mxu0
  %v2503 = vadd.f32 %v1464, %v2502
  %2504 = vmatprep.mubr.bf16.mxu0 0
  %2505 = vmatmul.mubr.bf16.gmra.mrb[0].mxu0 %v1697
  %v2506 = vpop.f32.mrb[0].mxu0
  %v2507 = vadd.f32 %v1460, %v2506
  %v2508 = vpop.f32.mrb[0].mxu0
  %v2509 = vadd.f32 %v1464, %v2508
  %v2510 = vpop.f32.mrb[0].mxu0
  %v2511 = vadd.f32 %v1460, %v2510
  %v2512 = vpop.f32.mrb[0].mxu0
  %v2513 = vadd.f32 %v1464, %v2512
  %2514 = vmatprep.mubr.bf16.mxu0 0
  %2515 = vmatmul.mubr.bf16.gmra.mrb[0].mxu0 %v1700
  %v2516 = vpop.f32.mrb[0].mxu0
  %v2517 = vadd.f32 %v1460, %v2516
  %v2518 = vpop.f32.mrb[0].mxu0
  %v2519 = vadd.f32 %v1464, %v2518
  %v2520 = vpop.f32.mrb[0].mxu0
  %v2521 = vadd.f32 %v1460, %v2520
  %v2522 = vpop.f32.mrb[0].mxu0
  %v2523 = vadd.f32 %v1464, %v2522
  %2524 = vmatprep.mubr.bf16.mxu0 0
  %2525 = vmatmul.mubr.bf16.gmra.mrb[0].mxu0 %v1703
  %v2526 = vpop.f32.mrb[0].mxu0
  %v2527 = vadd.f32 %v1460, %v2526
  %v2528 = vpop.f32.mrb[0].mxu0
  %v2529 = vadd.f32 %v1464, %v2528
  %v2530 = vpop.f32.mrb[0].mxu0
  %v2531 = vadd.f32 %v1460, %v2530
  %v2532 = vpop.f32.mrb[0].mxu0
  %v2533 = vadd.f32 %v1464, %v2532
  %2534 = vmatprep.mubr.bf16.mxu0 0
  %2535 = vmatmul.mubr.bf16.gmra.mrb[0].mxu0 %v1706
  %v2536 = vpop.f32.mrb[0].mxu0
  %v2537 = vadd.f32 %v1460, %v2536
  %v2538 = vpop.f32.mrb[0].mxu0
  %v2539 = vadd.f32 %v1464, %v2538
  %v2540 = vpop.f32.mrb[0].mxu0
  %v2541 = vadd.f32 %v1460, %v2540
  %v2542 = vpop.f32.mrb[0].mxu0
  %v2543 = vadd.f32 %v1464, %v2542
  %2544 = vmatprep.mubr.bf16.mxu0 0
  %2545 = vmatmul.mubr.bf16.gmra.mrb[0].mxu0 %v1709
  %v2546 = vpop.f32.mrb[0].mxu0
  %v2547 = vadd.f32 %v1460, %v2546
  %v2548 = vpop.f32.mrb[0].mxu0
  %v2549 = vadd.f32 %v1464, %v2548
  %v2550 = vpop.f32.mrb[0].mxu0
  %v2551 = vadd.f32 %v1460, %v2550
  %v2552 = vpop.f32.mrb[0].mxu0
  %v2553 = vadd.f32 %v1464, %v2552
  %2554 = vmatprep.mubr.bf16.mxu0 0
  %2555 = vmatmul.mubr.bf16.gmra.mrb[0].mxu0 %v1712
  %v2556 = vpop.f32.mrb[0].mxu0
  %v2557 = vadd.f32 %v1460, %v2556
  %v2558 = vpop.f32.mrb[0].mxu0
  %v2559 = vadd.f32 %v1464, %v2558
  %v2560 = vpop.f32.mrb[0].mxu0
  %v2561 = vadd.f32 %v1460, %v2560
  %v2562 = vpop.f32.mrb[0].mxu0
  %v2563 = vadd.f32 %v1464, %v2562
  %2564 = vmatprep.mubr.bf16.mxu0 0
  %2565 = vmatmul.mubr.bf16.gmra.mrb[0].mxu0 %v1715
  %v2566 = vpop.f32.mrb[0].mxu0
  %v2567 = vadd.f32 %v1460, %v2566
  %v2568 = vpop.f32.mrb[0].mxu0
  %v2569 = vadd.f32 %v1464, %v2568
  %v2570 = vpop.f32.mrb[0].mxu0
  %v2571 = vadd.f32 %v1460, %v2570
  %v2572 = vpop.f32.mrb[0].mxu0
  %v2573 = vadd.f32 %v1464, %v2572
  %2574 = vmatprep.mubr.bf16.mxu0 0
  %2575 = vmatmul.mubr.bf16.gmra.mrb[0].mxu0 %v1718
  %v2576 = vpop.f32.mrb[0].mxu0
  %v2577 = vadd.f32 %v1460, %v2576
  %v2578 = vpop.f32.mrb[0].mxu0
  %v2579 = vadd.f32 %v1464, %v2578
  %v2580 = vpop.f32.mrb[0].mxu0
  %v2581 = vadd.f32 %v1460, %v2580
  %v2582 = vpop.f32.mrb[0].mxu0
  %v2583 = vadd.f32 %v1464, %v2582
  %2584 = vmatprep.mubr.bf16.mxu0 0
  %2585 = vmatmul.mubr.bf16.gmra.mrb[0].mxu0 %v1721
  %v2586 = vpop.f32.mrb[0].mxu0
  %v2587 = vadd.f32 %v1460, %v2586
  %v2588 = vpop.f32.mrb[0].mxu0
  %v2589 = vadd.f32 %v1464, %v2588
  %v2590 = vpop.f32.mrb[0].mxu0
  %v2591 = vadd.f32 %v1460, %v2590
  %v2592 = vpop.f32.mrb[0].mxu0
  %v2593 = vadd.f32 %v1464, %v2592
  %2594 = vmatprep.mubr.bf16.mxu0 0
  %2595 = vmatmul.mubr.bf16.gmra.mrb[0].mxu0 %v1724
  %v2596 = vpop.f32.mrb[0].mxu0
  %v2597 = vadd.f32 %v1460, %v2596
  %v2598 = vpop.f32.mrb[0].mxu0
  %v2599 = vadd.f32 %v1464, %v2598
  %v2600 = vpop.f32.mrb[0].mxu0
  %v2601 = vadd.f32 %v1460, %v2600
  %v2602 = vpop.f32.mrb[0].mxu0
  %v2603 = vadd.f32 %v1464, %v2602
  %2604 = vmatprep.mubr.bf16.mxu0 0
  %2605 = vmatmul.mubr.bf16.gmra.mrb[0].mxu0 %v1727
  %v2606 = vpop.f32.mrb[0].mxu0
  %v2607 = vadd.f32 %v1460, %v2606
  %v2608 = vpop.f32.mrb[0].mxu0
  %v2609 = vadd.f32 %v1464, %v2608
  %v2610 = vpop.f32.mrb[0].mxu0
  %v2611 = vadd.f32 %v1460, %v2610
  %v2612 = vpop.f32.mrb[0].mxu0
  %v2613 = vadd.f32 %v1464, %v2612
  %2614 = vmatprep.mubr.bf16.mxu0 0
  %2615 = vmatmul.mubr.bf16.gmra.mrb[0].mxu0 %v1730
  %v2616 = vpop.f32.mrb[0].mxu0
  %v2617 = vadd.f32 %v1460, %v2616
  %v2618 = vpop.f32.mrb[0].mxu0
  %v2619 = vadd.f32 %v1464, %v2618
  %v2620 = vpop.f32.mrb[0].mxu0
  %v2621 = vadd.f32 %v1460, %v2620
  %v2622 = vpop.f32.mrb[0].mxu0
  %v2623 = vadd.f32 %v1464, %v2622
  %2624 = vmatprep.mubr.bf16.mxu0 0
  %2625 = vmatmul.mubr.bf16.gmra.mrb[0].mxu0 %v1733
  %v2626 = vpop.f32.mrb[0].mxu0
  %v2627 = vadd.f32 %v1460, %v2626
  %v2628 = vpop.f32.mrb[0].mxu0
  %v2629 = vadd.f32 %v1464, %v2628
  %v2630 = vpop.f32.mrb[0].mxu0
  %v2631 = vadd.f32 %v1460, %v2630
  %v2632 = vpop.f32.mrb[0].mxu0
  %v2633 = vadd.f32 %v1464, %v2632
  %2634 = vmatprep.mubr.bf16.mxu0 0
  %2635 = vmatmul.mubr.bf16.gmra.mrb[0].mxu0 %v1736
  %v2636 = vpop.f32.mrb[0].mxu0
  %v2637 = vadd.f32 %v1460, %v2636
  %v2638 = vpop.f32.mrb[0].mxu0
  %v2639 = vadd.f32 %v1464, %v2638
  %v2640 = vpop.f32.mrb[0].mxu0
  %v2641 = vadd.f32 %v1460, %v2640
  %v2642 = vpop.f32.mrb[0].mxu0
  %v2643 = vadd.f32 %v1464, %v2642
  %2644 = vmatprep.mubr.bf16.mxu0 0
  %2645 = vmatmul.mubr.bf16.gmra.mrb[0].mxu0 %v1739
  %v2646 = vpop.f32.mrb[0].mxu0
  %v2647 = vadd.f32 %v1460, %v2646
  %v2648 = vpop.f32.mrb[0].mxu0
  %v2649 = vadd.f32 %v1464, %v2648
  %v2650 = vpop.f32.mrb[0].mxu0
  %v2651 = vadd.f32 %v1460, %v2650
  %v2652 = vpop.f32.mrb[0].mxu0
  %v2653 = vadd.f32 %v1464, %v2652
  %2654 = vmatprep.mubr.bf16.mxu0 0
  %2655 = vmatmul.mubr.bf16.gmra.mrb[0].mxu0 %v1742
  %v2656 = vpop.f32.mrb[0].mxu0
  %v2657 = vadd.f32 %v1460, %v2656
  %v2658 = vpop.f32.mrb[0].mxu0
  %v2659 = vadd.f32 %v1464, %v2658
  %v2660 = vpop.f32.mrb[0].mxu0
  %v2661 = vadd.f32 %v1460, %v2660
  %v2662 = vpop.f32.mrb[0].mxu0
  %v2663 = vadd.f32 %v1464, %v2662
  %2664 = vmatprep.mubr.bf16.mxu0 0
  %2665 = vmatmul.mubr.bf16.gmra.mrb[0].mxu0 %v1745
  %v2666 = vpop.f32.mrb[0].mxu0
  %v2667 = vadd.f32 %v1460, %v2666
  %v2668 = vpop.f32.mrb[0].mxu0
  %v2669 = vadd.f32 %v1464, %v2668
  %v2670 = vpop.f32.mrb[0].mxu0
  %v2671 = vadd.f32 %v1460, %v2670
  %v2672 = vpop.f32.mrb[0].mxu0
  %v2673 = vadd.f32 %v1464, %v2672
  %2674 = vmatprep.mubr.bf16.mxu0 0
  %2675 = vmatmul.mubr.bf16.gmra.mrb[0].mxu0 %v1748
  %v2676 = vpop.f32.mrb[0].mxu0
  %v2677 = vadd.f32 %v1460, %v2676
  %v2678 = vpop.f32.mrb[0].mxu0
  %v2679 = vadd.f32 %v1464, %v2678
  %v2680 = vpop.f32.mrb[0].mxu0
  %v2681 = vadd.f32 %v1460, %v2680
  %v2682 = vpop.f32.mrb[0].mxu0
  %v2683 = vadd.f32 %v1464, %v2682
  %2684 = vmatprep.mubr.bf16.mxu0 0
  %2685 = vmatmul.mubr.bf16.gmra.mrb[0].mxu0 %v1751
  %v2686 = vpop.f32.mrb[0].mxu0
  %v2687 = vadd.f32 %v1460, %v2686
  %v2688 = vpop.f32.mrb[0].mxu0
  %v2689 = vadd.f32 %v1464, %v2688
  %v2690 = vpop.f32.mrb[0].mxu0
  %v2691 = vadd.f32 %v1460, %v2690
  %v2692 = vpop.f32.mrb[0].mxu0
  %v2693 = vadd.f32 %v1464, %v2692
  %2694 = vmatprep.mubr.bf16.mxu0 0
  %2695 = vmatmul.mubr.bf16.gmra.mrb[0].mxu0 %v1754
  %v2696 = vpop.f32.mrb[0].mxu0
  %v2697 = vadd.f32 %v1460, %v2696
  %v2698 = vpop.f32.mrb[0].mxu0
  %v2699 = vadd.f32 %v1464, %v2698
  %v2700 = vpop.f32.mrb[0].mxu0
  %v2701 = vadd.f32 %v1460, %v2700
  %v2702 = vpop.f32.mrb[0].mxu0
  %v2703 = vadd.f32 %v1464, %v2702
  %2704 = vmatprep.mubr.bf16.mxu0 0
  %2705 = vmatmul.mubr.bf16.gmra.mrb[0].mxu0 %v1757
  %v2706 = vpop.f32.mrb[0].mxu0
  %v2707 = vadd.f32 %v1460, %v2706
  %v2708 = vpop.f32.mrb[0].mxu0
  %v2709 = vadd.f32 %v1464, %v2708
  %v2710 = vpop.f32.mrb[0].mxu0
  %v2711 = vadd.f32 %v1460, %v2710
  %v2712 = vpop.f32.mrb[0].mxu0
  %v2713 = vadd.f32 %v1464, %v2712
  %2714 = vmatprep.mubr.bf16.mxu0 0
  %2715 = vmatmul.mubr.bf16.gmra.mrb[0].mxu0 %v1760
  %v2716 = vpop.f32.mrb[0].mxu0
  %v2717 = vadd.f32 %v1460, %v2716
  %v2718 = vpop.f32.mrb[0].mxu0
  %v2719 = vadd.f32 %v1464, %v2718
  %v2720 = vpop.f32.mrb[0].mxu0
  %v2721 = vadd.f32 %v1460, %v2720
  %v2722 = vpop.f32.mrb[0].mxu0
  %v2723 = vadd.f32 %v1464, %v2722
  %2724 = vmatprep.mubr.bf16.mxu0 0
  %2725 = vmatmul.mubr.bf16.gmra.mrb[0].mxu0 %v1763
  %v2726 = vpop.f32.mrb[0].mxu0
  %v2727 = vadd.f32 %v1460, %v2726
  %v2728 = vpop.f32.mrb[0].mxu0
  %v2729 = vadd.f32 %v1464, %v2728
  %v2730 = vpop.f32.mrb[0].mxu0
  %v2731 = vadd.f32 %v1460, %v2730
  %v2732 = vpop.f32.mrb[0].mxu0
  %v2733 = vadd.f32 %v1464, %v2732
  %2734 = vmatprep.mubr.bf16.mxu0 0
  %2735 = vmatmul.mubr.bf16.gmra.mrb[0].mxu0 %v1766
  %v2736 = vpop.f32.mrb[0].mxu0
  %v2737 = vadd.f32 %v1460, %v2736
  %v2738 = vpop.f32.mrb[0].mxu0
  %v2739 = vadd.f32 %v1464, %v2738
  %v2740 = vpop.f32.mrb[0].mxu0
  %v2741 = vadd.f32 %v1460, %v2740
  %v2742 = vpop.f32.mrb[0].mxu0
  %v2743 = vadd.f32 %v1464, %v2742
  %2744 = vmatprep.mubr.bf16.mxu0 0
  %2745 = vmatmul.mubr.bf16.gmra.mrb[0].mxu0 %v1769
  %v2746 = vpop.f32.mrb[0].mxu0
  %v2747 = vadd.f32 %v1460, %v2746
  %v2748 = vpop.f32.mrb[0].mxu0
  %v2749 = vadd.f32 %v1464, %v2748
  %v2750 = vpop.f32.mrb[0].mxu0
  %v2751 = vadd.f32 %v1460, %v2750
  %v2752 = vpop.f32.mrb[0].mxu0
  %v2753 = vadd.f32 %v1464, %v2752
  %2754 = vmatprep.mubr.bf16.mxu0 0
  %2755 = vmatmul.mubr.bf16.gmra.mrb[0].mxu0 %v1772
  %v2756 = vpop.f32.mrb[0].mxu0
  %v2757 = vadd.f32 %v1460, %v2756
  %v2758 = vpop.f32.mrb[0].mxu0
  %v2759 = vadd.f32 %v1464, %v2758
  %v2760 = vpop.f32.mrb[0].mxu0
  %v2761 = vadd.f32 %v1460, %v2760
  %v2762 = vpop.f32.mrb[0].mxu0
  %v2763 = vadd.f32 %v1464, %v2762
  %2764 = vmatprep.mubr.bf16.mxu0 0
  %2765 = vmatmul.mubr.bf16.gmra.mrb[0].mxu0 %v1775
  %v2766 = vpop.f32.mrb[0].mxu0
  %v2767 = vadd.f32 %v1460, %v2766
  %v2768 = vpop.f32.mrb[0].mxu0
  %v2769 = vadd.f32 %v1464, %v2768
  %v2770 = vpop.f32.mrb[0].mxu0
  %v2771 = vadd.f32 %v1460, %v2770
  %v2772 = vpop.f32.mrb[0].mxu0
  %v2773 = vadd.f32 %v1464, %v2772
  %2774 = vmatprep.mubr.bf16.mxu0 0
  %2775 = vmatmul.mubr.bf16.gmra.mrb[0].mxu0 %v1778
  %v2776 = vpop.f32.mrb[0].mxu0
  %v2777 = vadd.f32 %v1460, %v2776
  %v2778 = vpop.f32.mrb[0].mxu0
  %v2779 = vadd.f32 %v1464, %v2778
  %v2780 = vpop.f32.mrb[0].mxu0
  %v2781 = vadd.f32 %v1460, %v2780
  %v2782 = vpop.f32.mrb[0].mxu0
  %v2783 = vadd.f32 %v1464, %v2782
  %2784 = vmatprep.mubr.bf16.mxu0 0
  %2785 = vmatmul.mubr.bf16.gmra.mrb[0].mxu0 %v1781
  %v2786 = vpop.f32.mrb[0].mxu0
  %v2787 = vadd.f32 %v1460, %v2786
  %v2788 = vpop.f32.mrb[0].mxu0
  %v2789 = vadd.f32 %v1464, %v2788
  %v2790 = vpop.f32.mrb[0].mxu0
  %v2791 = vadd.f32 %v1460, %v2790
  %v2792 = vpop.f32.mrb[0].mxu0
  %v2793 = vadd.f32 %v1464, %v2792
  %2794 = vmatprep.mubr.bf16.mxu0 0
  %2795 = vmatmul.mubr.bf16.gmra.mrb[0].mxu0 %v1784
  %v2796 = vpop.f32.mrb[0].mxu0
  %v2797 = vadd.f32 %v1460, %v2796
  %v2798 = vpop.f32.mrb[0].mxu0
  %v2799 = vadd.f32 %v1464, %v2798
  %v2800 = vpop.f32.mrb[0].mxu0
  %v2801 = vadd.f32 %v1460, %v2800
  %v2802 = vpop.f32.mrb[0].mxu0
  %v2803 = vadd.f32 %v1464, %v2802
  %2804 = vmatprep.mubr.bf16.mxu0 0
  %2805 = vmatmul.mubr.bf16.gmra.mrb[0].mxu0 %v1787
  %v2806 = vpop.f32.mrb[0].mxu0
  %v2807 = vadd.f32 %v1460, %v2806
  %v2808 = vpop.f32.mrb[0].mxu0
  %v2809 = vadd.f32 %v1464, %v2808
  %v2810 = vpop.f32.mrb[0].mxu0
  %v2811 = vadd.f32 %v1460, %v2810
  %v2812 = vpop.f32.mrb[0].mxu0
  %v2813 = vadd.f32 %v1464, %v2812
  %2814 = vmatprep.mubr.bf16.mxu0 0
  %2815 = vmatmul.mubr.bf16.gmra.mrb[0].mxu0 %v1790
  %v2816 = vpop.f32.mrb[0].mxu0
  %v2817 = vadd.f32 %v1460, %v2816
  %v2818 = vpop.f32.mrb[0].mxu0
  %v2819 = vadd.f32 %v1464, %v2818
  %v2820 = vpop.f32.mrb[0].mxu0
  %v2821 = vadd.f32 %v1460, %v2820
  %v2822 = vpop.f32.mrb[0].mxu0
  %v2823 = vadd.f32 %v1464, %v2822
  %2824 = vmatprep.mubr.bf16.mxu0 0
  %2825 = vmatmul.mubr.bf16.gmra.mrb[0].mxu0 %v1793
  %v2826 = vpop.f32.mrb[0].mxu0
  %v2827 = vadd.f32 %v1460, %v2826
  %v2828 = vpop.f32.mrb[0].mxu0
  %v2829 = vadd.f32 %v1464, %v2828
  %v2830 = vpop.f32.mrb[0].mxu0
  %v2831 = vadd.f32 %v1460, %v2830
  %v2832 = vpop.f32.mrb[0].mxu0
  %v2833 = vadd.f32 %v1464, %v2832
  %2834 = vmatprep.mubr.bf16.mxu0 0
  %2835 = vmatmul.mubr.bf16.gmra.mrb[0].mxu0 %v1796
  %v2836 = vpop.f32.mrb[0].mxu0
  %v2837 = vadd.f32 %v1460, %v2836
  %v2838 = vpop.f32.mrb[0].mxu0
  %v2839 = vadd.f32 %v1464, %v2838
  %v2840 = vpop.f32.mrb[0].mxu0
  %v2841 = vadd.f32 %v1460, %v2840
  %v2842 = vpop.f32.mrb[0].mxu0
  %v2843 = vadd.f32 %v1464, %v2842
  %2844 = vmatprep.mubr.bf16.mxu0 0
  %2845 = vmatmul.mubr.bf16.gmra.mrb[0].mxu0 %v1799
  %v2846 = vpop.f32.mrb[0].mxu0
  %v2847 = vadd.f32 %v1460, %v2846
  %v2848 = vpop.f32.mrb[0].mxu0
  %v2849 = vadd.f32 %v1464, %v2848
  %v2850 = vpop.f32.mrb[0].mxu0
  %v2851 = vadd.f32 %v1460, %v2850
  %v2852 = vpop.f32.mrb[0].mxu0
  %v2853 = vadd.f32 %v1464, %v2852
  %2854 = vmatprep.mubr.bf16.mxu0 0
  %2855 = vmatmul.mubr.bf16.gmra.mrb[0].mxu0 %v1802
  %v2856 = vpop.f32.mrb[0].mxu0
  %v2857 = vadd.f32 %v1460, %v2856
  %v2858 = vpop.f32.mrb[0].mxu0
  %v2859 = vadd.f32 %v1464, %v2858
  %v2860 = vpop.f32.mrb[0].mxu0
  %v2861 = vadd.f32 %v1460, %v2860
  %v2862 = vpop.f32.mrb[0].mxu0
  %v2863 = vadd.f32 %v1464, %v2862
  %2864 = vmatprep.mubr.bf16.mxu0 0
  %2865 = vmatmul.mubr.bf16.gmra.mrb[0].mxu0 %v1805
  %v2866 = vpop.f32.mrb[0].mxu0
  %v2867 = vadd.f32 %v1460, %v2866
  %v2868 = vpop.f32.mrb[0].mxu0
  %v2869 = vadd.f32 %v1464, %v2868
  %v2870 = vpop.f32.mrb[0].mxu0
  %v2871 = vadd.f32 %v1460, %v2870
  %v2872 = vpop.f32.mrb[0].mxu0
  %v2873 = vadd.f32 %v1464, %v2872
  %2874 = vmatprep.mubr.bf16.mxu0 0
  %2875 = vmatmul.mubr.bf16.gmra.mrb[0].mxu0 %v1808
  %v2876 = vpop.f32.mrb[0].mxu0
  %v2877 = vadd.f32 %v1460, %v2876
  %v2878 = vpop.f32.mrb[0].mxu0
  %v2879 = vadd.f32 %v1464, %v2878
  %v2880 = vpop.f32.mrb[0].mxu0
  %v2881 = vadd.f32 %v1460, %v2880
  %v2882 = vpop.f32.mrb[0].mxu0
  %v2883 = vadd.f32 %v1464, %v2882
  %2884 = vmatprep.mubr.bf16.mxu0 0
  %2885 = vmatmul.mubr.bf16.gmra.mrb[0].mxu0 %v1811
  %v2886 = vpop.f32.mrb[0].mxu0
  %v2887 = vadd.f32 %v1460, %v2886
  %v2888 = vpop.f32.mrb[0].mxu0
  %v2889 = vadd.f32 %v1464, %v2888
  %v2890 = vpop.f32.mrb[0].mxu0
  %v2891 = vadd.f32 %v1460, %v2890
  %v2892 = vpop.f32.mrb[0].mxu0
  %v2893 = vadd.f32 %v1464, %v2892
  %2894 = vmatprep.mubr.bf16.mxu0 0
  %2895 = vmatmul.mubr.bf16.gmra.mrb[0].mxu0 %v1814
  %v2896 = vpop.f32.mrb[0].mxu0
  %v2897 = vadd.f32 %v1460, %v2896
  %v2898 = vpop.f32.mrb[0].mxu0
  %v2899 = vadd.f32 %v1464, %v2898
  %v2900 = vpop.f32.mrb[0].mxu0
  %v2901 = vadd.f32 %v1460, %v2900
  %v2902 = vpop.f32.mrb[0].mxu0
  %v2903 = vadd.f32 %v1464, %v2902
  %2904 = vmatprep.mubr.bf16.mxu0 0
  %2905 = vmatmul.mubr.bf16.gmra.mrb[0].mxu0 %v1817
  %v2906 = vpop.f32.mrb[0].mxu0
  %v2907 = vadd.f32 %v1460, %v2906
  %v2908 = vpop.f32.mrb[0].mxu0
  %v2909 = vadd.f32 %v1464, %v2908
  %v2910 = vpop.f32.mrb[0].mxu0
  %v2911 = vadd.f32 %v1460, %v2910
  %v2912 = vpop.f32.mrb[0].mxu0
  %v2913 = vadd.f32 %v1464, %v2912
  %2914 = vmatprep.mubr.bf16.mxu0 0
  %2915 = vmatmul.mubr.bf16.gmra.mrb[0].mxu0 %v1820
  %v2916 = vpop.f32.mrb[0].mxu0
  %v2917 = vadd.f32 %v1460, %v2916
  %v2918 = vpop.f32.mrb[0].mxu0
  %v2919 = vadd.f32 %v1464, %v2918
  %v2920 = vpop.f32.mrb[0].mxu0
  %v2921 = vadd.f32 %v1460, %v2920
  %v2922 = vpop.f32.mrb[0].mxu0
  %v2923 = vadd.f32 %v1464, %v2922
  %2924 = vmatprep.mubr.bf16.mxu0 0
  %2925 = vmatmul.mubr.bf16.gmra.mrb[0].mxu0 %v1823
  %v2926 = vpop.f32.mrb[0].mxu0
  %v2927 = vadd.f32 %v1460, %v2926
  %v2928 = vpop.f32.mrb[0].mxu0
  %v2929 = vadd.f32 %v1464, %v2928
  %v2930 = vpop.f32.mrb[0].mxu0
  %v2931 = vadd.f32 %v1460, %v2930
  %v2932 = vpop.f32.mrb[0].mxu0
  %v2933 = vadd.f32 %v1464, %v2932
  %2934 = vmatprep.mubr.bf16.mxu0 0
  %2935 = vmatmul.mubr.bf16.gmra.mrb[0].mxu0 %v1826
  %v2936 = vpop.f32.mrb[0].mxu0
  %v2937 = vadd.f32 %v1460, %v2936
  %v2938 = vpop.f32.mrb[0].mxu0
  %v2939 = vadd.f32 %v1464, %v2938
  %v2940 = vpop.f32.mrb[0].mxu0
  %v2941 = vadd.f32 %v1460, %v2940
  %v2942 = vpop.f32.mrb[0].mxu0
  %v2943 = vadd.f32 %v1464, %v2942
  %2944 = vmatprep.mubr.bf16.mxu0 0
  %2945 = vmatmul.mubr.bf16.gmra.mrb[0].mxu0 %v1829
  %v2946 = vpop.f32.mrb[0].mxu0
  %v2947 = vadd.f32 %v1460, %v2946
  %v2948 = vpop.f32.mrb[0].mxu0
  %v2949 = vadd.f32 %v1464, %v2948
  %v2950 = vpop.f32.mrb[0].mxu0
  %v2951 = vadd.f32 %v1460, %v2950
  %v2952 = vpop.f32.mrb[0].mxu0
  %v2953 = vadd.f32 %v1464, %v2952
  %2954 = vmatprep.mubr.bf16.mxu0 0
  %2955 = vmatmul.mubr.bf16.gmra.mrb[0].mxu0 %v1832
  %v2956 = vpop.f32.mrb[0].mxu0
  %v2957 = vadd.f32 %v1460, %v2956
  %v2958 = vpop.f32.mrb[0].mxu0
  %v2959 = vadd.f32 %v1464, %v2958
  %v2960 = vpop.f32.mrb[0].mxu0
  %v2961 = vadd.f32 %v1460, %v2960
  %v2962 = vpop.f32.mrb[0].mxu0
  %v2963 = vadd.f32 %v1464, %v2962
  %2964 = vmatprep.mubr.bf16.mxu0 0
  %2965 = vmatmul.mubr.bf16.gmra.mrb[0].mxu0 %v1835
  %v2966 = vpop.f32.mrb[0].mxu0
  %v2967 = vadd.f32 %v1460, %v2966
  %v2968 = vpop.f32.mrb[0].mxu0
  %v2969 = vadd.f32 %v1464, %v2968
  %v2970 = vpop.f32.mrb[0].mxu0
  %v2971 = vadd.f32 %v1460, %v2970
  %v2972 = vpop.f32.mrb[0].mxu0
  %v2973 = vadd.f32 %v1464, %v2972
  %2974 = vmatprep.mubr.bf16.mxu0 0
  %2975 = vmatmul.mubr.bf16.gmra.mrb[0].mxu0 %v1838
  %v2976 = vpop.f32.mrb[0].mxu0
  %v2977 = vadd.f32 %v1460, %v2976
  %v2978 = vpop.f32.mrb[0].mxu0
  %v2979 = vadd.f32 %v1464, %v2978
  %v2980 = vpop.f32.mrb[0].mxu0
  %v2981 = vadd.f32 %v1460, %v2980
  %v2982 = vpop.f32.mrb[0].mxu0
  %v2983 = vadd.f32 %v1464, %v2982
  %2984 = vmatprep.mubr.bf16.mxu0 0
  %2985 = vmatmul.mubr.bf16.gmra.mrb[0].mxu0 %v1841
  %v2986 = vpop.f32.mrb[0].mxu0
  %v2987 = vadd.f32 %v1460, %v2986
  %v2988 = vpop.f32.mrb[0].mxu0
  %v2989 = vadd.f32 %v1464, %v2988
  %v2990 = vpop.f32.mrb[0].mxu0
  %v2991 = vadd.f32 %v1460, %v2990
  %v2992 = vpop.f32.mrb[0].mxu0
  %v2993 = vadd.f32 %v1464, %v2992
  %2994 = vmatprep.mubr.bf16.mxu0 0
  %2995 = vmatmul.mubr.bf16.gmra.mrb[0].mxu0 %v1844
  %v2996 = vpop.f32.mrb[0].mxu0
  %v2997 = vadd.f32 %v1460, %v2996
  %v2998 = vpop.f32.mrb[0].mxu0
  %v2999 = vadd.f32 %v1464, %v2998
  %v3000 = vpop.f32.mrb[0].mxu0
  %v3001 = vadd.f32 %v1460, %v3000
  %v3002 = vpop.f32.mrb[0].mxu0
  %v3003 = vadd.f32 %v1464, %v3002
  %3004 = vmatprep.mubr.bf16.mxu0 0
  %3005 = vmatmul.mubr.bf16.gmra.mrb[0].mxu0 %v1847
  %v3006 = vpop.f32.mrb[0].mxu0
  %v3007 = vadd.f32 %v1460, %v3006
  %v3008 = vpop.f32.mrb[0].mxu0
  %v3009 = vadd.f32 %v1464, %v3008
  %v3010 = vpop.f32.mrb[0].mxu0
  %v3011 = vadd.f32 %v1460, %v3010
  %v3012 = vpop.f32.mrb[0].mxu0
  %v3013 = vadd.f32 %v1464, %v3012
  %3014 = vmatprep.mubr.bf16.mxu0 0
  %3015 = vmatmul.mubr.bf16.gmra.mrb[0].mxu0 %v1850
  %v3016 = vpop.f32.mrb[0].mxu0
  %v3017 = vadd.f32 %v1460, %v3016
  %v3018 = vpop.f32.mrb[0].mxu0
  %v3019 = vadd.f32 %v1464, %v3018
  %v3020 = vpop.f32.mrb[0].mxu0
  %v3021 = vadd.f32 %v1460, %v3020
  %v3022 = vpop.f32.mrb[0].mxu0
  %v3023 = vadd.f32 %v1464, %v3022
  %3024 = vmatprep.mubr.bf16.mxu0 0
  %3025 = vmatmul.mubr.bf16.gmra.mrb[0].mxu0 %v1853
  %v3026 = vpop.f32.mrb[0].mxu0
  %v3027 = vadd.f32 %v1460, %v3026
  %v3028 = vpop.f32.mrb[0].mxu0
  %v3029 = vadd.f32 %v1464, %v3028
  %v3030 = vpop.f32.mrb[0].mxu0
  %v3031 = vadd.f32 %v1460, %v3030
  %v3032 = vpop.f32.mrb[0].mxu0
  %v3033 = vadd.f32 %v1464, %v3032
  %3034 = vmatprep.mubr.bf16.mxu0 0
  %3035 = vmatmul.mubr.bf16.gmra.mrb[0].mxu0 %v1856
  %v3036 = vpop.f32.mrb[0].mxu0
  %v3037 = vadd.f32 %v1460, %v3036
  %v3038 = vpop.f32.mrb[0].mxu0
  %v3039 = vadd.f32 %v1464, %v3038
  %v3040 = vpop.f32.mrb[0].mxu0
  %v3041 = vadd.f32 %v1460, %v3040
  %v3042 = vpop.f32.mrb[0].mxu0
  %v3043 = vadd.f32 %v1464, %v3042
  %3044 = vmatprep.mubr.bf16.mxu0 0
  %3045 = vmatmul.mubr.bf16.gmra.mrb[0].mxu0 %v1859
  %v3046 = vpop.f32.mrb[0].mxu0
  %v3047 = vadd.f32 %v1460, %v3046
  %v3048 = vpop.f32.mrb[0].mxu0
  %v3049 = vadd.f32 %v1464, %v3048
  %v3050 = vpop.f32.mrb[0].mxu0
  %v3051 = vadd.f32 %v1460, %v3050
  %v3052 = vpop.f32.mrb[0].mxu0
  %v3053 = vadd.f32 %v1464, %v3052
  %3054 = vmatprep.mubr.bf16.mxu0 0
  %3055 = vmatmul.mubr.bf16.gmra.mrb[0].mxu0 %v1862
  %v3056 = vpop.f32.mrb[0].mxu0
  %v3057 = vadd.f32 %v1460, %v3056
  %v3058 = vpop.f32.mrb[0].mxu0
  %v3059 = vadd.f32 %v1464, %v3058
  %v3060 = vpop.f32.mrb[0].mxu0
  %v3061 = vadd.f32 %v1460, %v3060
  %v3062 = vpop.f32.mrb[0].mxu0
  %v3063 = vadd.f32 %v1464, %v3062
  %3064 = vmatprep.mubr.bf16.mxu0 0
  %3065 = vmatmul.mubr.bf16.gmra.mrb[0].mxu0 %v1865
  %v3066 = vpop.f32.mrb[0].mxu0
  %v3067 = vadd.f32 %v1460, %v3066
  %v3068 = vpop.f32.mrb[0].mxu0
  %v3069 = vadd.f32 %v1464, %v3068
  %v3070 = vpop.f32.mrb[0].mxu0
  %v3071 = vadd.f32 %v1460, %v3070
  %v3072 = vpop.f32.mrb[0].mxu0
  %v3073 = vadd.f32 %v1464, %v3072
  %3074 = vmatprep.mubr.bf16.mxu0 0
  %3075 = vmatmul.mubr.bf16.gmra.mrb[0].mxu0 %v1868
  %v3076 = vpop.f32.mrb[0].mxu0
  %v3077 = vadd.f32 %v1460, %v3076
  %v3078 = vpop.f32.mrb[0].mxu0
  %v3079 = vadd.f32 %v1464, %v3078
  %v3080 = vpop.f32.mrb[0].mxu0
  %v3081 = vadd.f32 %v1460, %v3080
  %v3082 = vpop.f32.mrb[0].mxu0
  %v3083 = vadd.f32 %v1464, %v3082
  %3084 = vmatprep.mubr.bf16.mxu0 0
  %3085 = vmatmul.mubr.bf16.gmra.mrb[0].mxu0 %v1871
  %v3086 = vpop.f32.mrb[0].mxu0
  %v3087 = vadd.f32 %v1460, %v3086
  %v3088 = vpop.f32.mrb[0].mxu0
  %v3089 = vadd.f32 %v1464, %v3088
  %v3090 = vpop.f32.mrb[0].mxu0
  %v3091 = vadd.f32 %v1460, %v3090
  %v3092 = vpop.f32.mrb[0].mxu0
  %v3093 = vadd.f32 %v1464, %v3092
  %3094 = vmatprep.mubr.bf16.mxu0 0
  %3095 = vmatmul.mubr.bf16.gmra.mrb[0].mxu0 %v1874
  %v3096 = vpop.f32.mrb[0].mxu0
  %v3097 = vadd.f32 %v1460, %v3096
  %v3098 = vpop.f32.mrb[0].mxu0
  %v3099 = vadd.f32 %v1464, %v3098
  %v3100 = vpop.f32.mrb[0].mxu0
  %v3101 = vadd.f32 %v1460, %v3100
  %v3102 = vpop.f32.mrb[0].mxu0
  %v3103 = vadd.f32 %v1464, %v3102
  %3104 = vmatprep.mubr.bf16.mxu0 0
  %3105 = vmatmul.mubr.bf16.gmra.mrb[0].mxu0 %v1877
  %v3106 = vpop.f32.mrb[0].mxu0
  %v3107 = vadd.f32 %v1460, %v3106
  %v3108 = vpop.f32.mrb[0].mxu0
  %v3109 = vadd.f32 %v1464, %v3108
  %v3110 = vpop.f32.mrb[0].mxu0
  %v3111 = vadd.f32 %v1460, %v3110
  %v3112 = vpop.f32.mrb[0].mxu0
  %v3113 = vadd.f32 %v1464, %v3112
  %3114 = vmatprep.mubr.bf16.mxu0 0
  %3115 = vmatmul.mubr.bf16.gmra.mrb[0].mxu0 %v1880
  %v3116 = vpop.f32.mrb[0].mxu0
  %v3117 = vadd.f32 %v1460, %v3116
  %v3118 = vpop.f32.mrb[0].mxu0
  %v3119 = vadd.f32 %v1464, %v3118
  %v3120 = vpop.f32.mrb[0].mxu0
  %v3121 = vadd.f32 %v1460, %v3120
  %v3122 = vpop.f32.mrb[0].mxu0
  %v3123 = vadd.f32 %v1464, %v3122
  %3124 = vmatprep.mubr.bf16.mxu0 0
  %3125 = vmatmul.mubr.bf16.gmra.mrb[0].mxu0 %v1883
  %v3126 = vpop.f32.mrb[0].mxu0
  %v3127 = vadd.f32 %v1460, %v3126
  %v3128 = vpop.f32.mrb[0].mxu0
  %v3129 = vadd.f32 %v1464, %v3128
  %v3130 = vpop.f32.mrb[0].mxu0
  %v3131 = vadd.f32 %v1460, %v3130
  %v3132 = vpop.f32.mrb[0].mxu0
  %v3133 = vadd.f32 %v1464, %v3132
  %3134 = vmatprep.mubr.bf16.mxu0 0
  %3135 = vmatmul.mubr.bf16.gmra.mrb[0].mxu0 %v1886
  %v3136 = vpop.f32.mrb[0].mxu0
  %v3137 = vadd.f32 %v1460, %v3136
  %v3138 = vpop.f32.mrb[0].mxu0
  %v3139 = vadd.f32 %v1464, %v3138
  %v3140 = vpop.f32.mrb[0].mxu0
  %v3141 = vadd.f32 %v1460, %v3140
  %v3142 = vpop.f32.mrb[0].mxu0
  %v3143 = vadd.f32 %v1464, %v3142
  %3144 = vmatprep.mubr.bf16.mxu0 0
  %3145 = vmatmul.mubr.bf16.gmra.mrb[0].mxu0 %v1889
  %v3146 = vpop.f32.mrb[0].mxu0
  %v3147 = vadd.f32 %v1460, %v3146
  %v3148 = vpop.f32.mrb[0].mxu0
  %v3149 = vadd.f32 %v1464, %v3148
  %v3150 = vpop.f32.mrb[0].mxu0
  %v3151 = vadd.f32 %v1460, %v3150
  %v3152 = vpop.f32.mrb[0].mxu0
  %v3153 = vadd.f32 %v1464, %v3152
  %3154 = vmatprep.mubr.bf16.mxu0 0
  %3155 = vmatmul.mubr.bf16.gmra.mrb[0].mxu0 %v1892
  %v3156 = vpop.f32.mrb[0].mxu0
  %v3157 = vadd.f32 %v1460, %v3156
  %v3158 = vpop.f32.mrb[0].mxu0
  %v3159 = vadd.f32 %v1464, %v3158
  %v3160 = vpop.f32.mrb[0].mxu0
  %v3161 = vadd.f32 %v1460, %v3160
  %v3162 = vpop.f32.mrb[0].mxu0
  %v3163 = vadd.f32 %v1464, %v3162
  %3164 = vmatprep.mubr.bf16.mxu0 0
  %3165 = vmatmul.mubr.bf16.gmra.mrb[0].mxu0 %v1895
  %v3166 = vpop.f32.mrb[0].mxu0
  %v3167 = vadd.f32 %v1460, %v3166
  %v3168 = vpop.f32.mrb[0].mxu0
  %v3169 = vadd.f32 %v1464, %v3168
  %v3170 = vpop.f32.mrb[0].mxu0
  %v3171 = vadd.f32 %v1460, %v3170
  %v3172 = vpop.f32.mrb[0].mxu0
  %v3173 = vadd.f32 %v1464, %v3172
  %3174 = vmatprep.mubr.bf16.mxu0 0
  %3175 = vmatmul.mubr.bf16.gmra.mrb[0].mxu0 %v1898
  %v3176 = vpop.f32.mrb[0].mxu0
  %v3177 = vadd.f32 %v1460, %v3176
  %v3178 = vpop.f32.mrb[0].mxu0
  %v3179 = vadd.f32 %v1464, %v3178
  %v3180 = vpop.f32.mrb[0].mxu0
  %v3181 = vadd.f32 %v1460, %v3180
  %v3182 = vpop.f32.mrb[0].mxu0
  %v3183 = vadd.f32 %v1464, %v3182
  %3184 = vmatprep.mubr.bf16.mxu0 0
  %3185 = vmatmul.mubr.bf16.gmra.mrb[0].mxu0 %v1901
  %v3186 = vpop.f32.mrb[0].mxu0
  %v3187 = vadd.f32 %v1460, %v3186
  %v3188 = vpop.f32.mrb[0].mxu0
  %v3189 = vadd.f32 %v1464, %v3188
  %v3190 = vpop.f32.mrb[0].mxu0
  %v3191 = vadd.f32 %v1460, %v3190
  %v3192 = vpop.f32.mrb[0].mxu0
  %v3193 = vadd.f32 %v1464, %v3192
  %3194 = vmatprep.mubr.bf16.mxu0 0
  %3195 = vmatmul.mubr.bf16.gmra.mrb[0].mxu0 %v1904
  %v3196 = vpop.f32.mrb[0].mxu0
  %v3197 = vadd.f32 %v1460, %v3196
  %v3198 = vpop.f32.mrb[0].mxu0
  %v3199 = vadd.f32 %v1464, %v3198
  %v3200 = vpop.f32.mrb[0].mxu0
  %v3201 = vadd.f32 %v1460, %v3200
  %v3202 = vpop.f32.mrb[0].mxu0
  %v3203 = vadd.f32 %v1464, %v3202
  %3204 = vmatprep.mubr.bf16.mxu0 0
  %3205 = vmatmul.mubr.bf16.gmra.mrb[0].mxu0 %v1907
  %v3206 = vpop.f32.mrb[0].mxu0
  %v3207 = vadd.f32 %v1460, %v3206
  %v3208 = vpop.f32.mrb[0].mxu0
  %v3209 = vadd.f32 %v1464, %v3208
  %v3210 = vpop.f32.mrb[0].mxu0
  %v3211 = vadd.f32 %v1460, %v3210
  %v3212 = vpop.f32.mrb[0].mxu0
  %v3213 = vadd.f32 %v1464, %v3212
  %3214 = vmatprep.mubr.bf16.mxu0 0
  %3215 = vmatmul.mubr.bf16.gmra.mrb[0].mxu0 %v1910
  %v3216 = vpop.f32.mrb[0].mxu0
  %v3217 = vadd.f32 %v1460, %v3216
  %v3218 = vpop.f32.mrb[0].mxu0
  %v3219 = vadd.f32 %v1464, %v3218
  %v3220 = vpop.f32.mrb[0].mxu0
  %v3221 = vadd.f32 %v1460, %v3220
  %v3222 = vpop.f32.mrb[0].mxu0
  %v3223 = vadd.f32 %v1464, %v3222
  %3224 = vdwg.mxu0
  %3225 = vst [vmem:[%s5] sm:$0xff] %v1947
  %3226 = vst [vmem:[%s5 + $0x8] sm:$0xff] %v1949
  %3227 = vst [vmem:[%s5 + $0x10] sm:$0xff] %v1951
  %3228 = vst [vmem:[%s5 + $0x18] sm:$0xff] %v1953
  %3229 = vst [vmem:[%s5 + $0x20] sm:$0xff] %v1957
  %3230 = vst [vmem:[%s5 + $0x28] sm:$0xff] %v1959
  %3231 = vst [vmem:[%s5 + $0x30] sm:$0xff] %v1961
  %3232 = vst [vmem:[%s5 + $0x38] sm:$0xff] %v1963
  %3233 = vst [vmem:[%s5 + $0x40] sm:$0xff] %v1967
  %3234 = vst [vmem:[%s5 + $0x48] sm:$0xff] %v1969
  %3235 = vst [vmem:[%s5 + $0x50] sm:$0xff] %v1971
  %3236 = vst [vmem:[%s5 + $0x58] sm:$0xff] %v1973
  %3237 = vst [vmem:[%s5 + $0x60] sm:$0xff] %v1977
  %3238 = vst [vmem:[%s5 + $0x68] sm:$0xff] %v1979
  %3239 = vst [vmem:[%s5 + $0x70] sm:$0xff] %v1981
  %3240 = vst [vmem:[%s5 + $0x78] sm:$0xff] %v1983
  %3241 = vst [vmem:[%s5 + $0x80] sm:$0xff] %v1987
  %3242 = vst [vmem:[%s5 + $0x88] sm:$0xff] %v1989
  %3243 = vst [vmem:[%s5 + $0x90] sm:$0xff] %v1991
  %3244 = vst [vmem:[%s5 + $0x98] sm:$0xff] %v1993
  %3245 = vst [vmem:[%s5 + $0xa0] sm:$0xff] %v1997
  %3246 = vst [vmem:[%s5 + $0xa8] sm:$0xff] %v1999
  %3247 = vst [vmem:[%s5 + $0xb0] sm:$0xff] %v2001
  %3248 = vst [vmem:[%s5 + $0xb8] sm:$0xff] %v2003
  %3249 = vst [vmem:[%s5 + $0xc0] sm:$0xff] %v2007
  %3250 = vst [vmem:[%s5 + $0xc8] sm:$0xff] %v2009
  %3251 = vst [vmem:[%s5 + $0xd0] sm:$0xff] %v2011
  %3252 = vst [vmem:[%s5 + $0xd8] sm:$0xff] %v2013
  %3253 = vst [vmem:[%s5 + $0xe0] sm:$0xff] %v2017
  %3254 = vst [vmem:[%s5 + $0xe8] sm:$0xff] %v2019
  %3255 = vst [vmem:[%s5 + $0xf0] sm:$0xff] %v2021
  %3256 = vst [vmem:[%s5 + $0xf8] sm:$0xff] %v2023
  %3257 = vst [vmem:[%s5 + $0x100] sm:$0xff] %v2027
  %3258 = vst [vmem:[%s5 + $0x108] sm:$0xff] %v2029
  %3259 = vst [vmem:[%s5 + $0x110] sm:$0xff] %v2031
  %3260 = vst [vmem:[%s5 + $0x118] sm:$0xff] %v2033
  %3261 = vst [vmem:[%s5 + $0x120] sm:$0xff] %v2037
  %3262 = vst [vmem:[%s5 + $0x128] sm:$0xff] %v2039
  %3263 = vst [vmem:[%s5 + $0x130] sm:$0xff] %v2041
  %3264 = vst [vmem:[%s5 + $0x138] sm:$0xff] %v2043
  %3265 = vst [vmem:[%s5 + $0x140] sm:$0xff] %v2047
  %3266 = vst [vmem:[%s5 + $0x148] sm:$0xff] %v2049
  %3267 = vst [vmem:[%s5 + $0x150] sm:$0xff] %v2051
  %3268 = vst [vmem:[%s5 + $0x158] sm:$0xff] %v2053
  %3269 = vst [vmem:[%s5 + $0x160] sm:$0xff] %v2057
  %3270 = vst [vmem:[%s5 + $0x168] sm:$0xff] %v2059
  %3271 = vst [vmem:[%s5 + $0x170] sm:$0xff] %v2061
  %3272 = vst [vmem:[%s5 + $0x178] sm:$0xff] %v2063
  %3273 = vst [vmem:[%s5 + $0x180] sm:$0xff] %v2067
  %3274 = vst [vmem:[%s5 + $0x188] sm:$0xff] %v2069
  %3275 = vst [vmem:[%s5 + $0x190] sm:$0xff] %v2071
  %3276 = vst [vmem:[%s5 + $0x198] sm:$0xff] %v2073
  %3277 = vst [vmem:[%s5 + $0x1a0] sm:$0xff] %v2077
  %3278 = vst [vmem:[%s5 + $0x1a8] sm:$0xff] %v2079
  %3279 = vst [vmem:[%s5 + $0x1b0] sm:$0xff] %v2081
  %3280 = vst [vmem:[%s5 + $0x1b8] sm:$0xff] %v2083
  %3281 = vst [vmem:[%s5 + $0x1c0] sm:$0xff] %v2087
  %3282 = vst [vmem:[%s5 + $0x1c8] sm:$0xff] %v2089
  %3283 = vst [vmem:[%s5 + $0x1d0] sm:$0xff] %v2091
  %3284 = vst [vmem:[%s5 + $0x1d8] sm:$0xff] %v2093
  %3285 = vst [vmem:[%s5 + $0x1e0] sm:$0xff] %v2097
  %3286 = vst [vmem:[%s5 + $0x1e8] sm:$0xff] %v2099
  %3287 = vst [vmem:[%s5 + $0x1f0] sm:$0xff] %v2101
  %3288 = vst [vmem:[%s5 + $0x1f8] sm:$0xff] %v2103
  %3289 = vst [vmem:[%s5 + $0x200] sm:$0xff] %v2107
  %3290 = vst [vmem:[%s5 + $0x208] sm:$0xff] %v2109
  %3291 = vst [vmem:[%s5 + $0x210] sm:$0xff] %v2111
  %3292 = vst [vmem:[%s5 + $0x218] sm:$0xff] %v2113
  %3293 = vst [vmem:[%s5 + $0x220] sm:$0xff] %v2117
  %3294 = vst [vmem:[%s5 + $0x228] sm:$0xff] %v2119
  %3295 = vst [vmem:[%s5 + $0x230] sm:$0xff] %v2121
  %3296 = vst [vmem:[%s5 + $0x238] sm:$0xff] %v2123
  %3297 = vst [vmem:[%s5 + $0x240] sm:$0xff] %v2127
  %3298 = vst [vmem:[%s5 + $0x248] sm:$0xff] %v2129
  %3299 = vst [vmem:[%s5 + $0x250] sm:$0xff] %v2131
  %3300 = vst [vmem:[%s5 + $0x258] sm:$0xff] %v2133
  %3301 = vst [vmem:[%s5 + $0x260] sm:$0xff] %v2137
  %3302 = vst [vmem:[%s5 + $0x268] sm:$0xff] %v2139
  %3303 = vst [vmem:[%s5 + $0x270] sm:$0xff] %v2141
  %3304 = vst [vmem:[%s5 + $0x278] sm:$0xff] %v2143
  %3305 = vst [vmem:[%s5 + $0x280] sm:$0xff] %v2147
  %3306 = vst [vmem:[%s5 + $0x288] sm:$0xff] %v2149
  %3307 = vst [vmem:[%s5 + $0x290] sm:$0xff] %v2151
  %3308 = vst [vmem:[%s5 + $0x298] sm:$0xff] %v2153
  %3309 = vst [vmem:[%s5 + $0x2a0] sm:$0xff] %v2157
  %3310 = vst [vmem:[%s5 + $0x2a8] sm:$0xff] %v2159
  %3311 = vst [vmem:[%s5 + $0x2b0] sm:$0xff] %v2161
  %3312 = vst [vmem:[%s5 + $0x2b8] sm:$0xff] %v2163
  %3313 = vst [vmem:[%s5 + $0x2c0] sm:$0xff] %v2167
  %3314 = vst [vmem:[%s5 + $0x2c8] sm:$0xff] %v2169
  %3315 = vst [vmem:[%s5 + $0x2d0] sm:$0xff] %v2171
  %3316 = vst [vmem:[%s5 + $0x2d8] sm:$0xff] %v2173
  %3317 = vst [vmem:[%s5 + $0x2e0] sm:$0xff] %v2177
  %3318 = vst [vmem:[%s5 + $0x2e8] sm:$0xff] %v2179
  %3319 = vst [vmem:[%s5 + $0x2f0] sm:$0xff] %v2181
  %3320 = vst [vmem:[%s5 + $0x2f8] sm:$0xff] %v2183
  %3321 = vst [vmem:[%s5 + $0x300] sm:$0xff] %v2187
  %3322 = vst [vmem:[%s5 + $0x308] sm:$0xff] %v2189
  %3323 = vst [vmem:[%s5 + $0x310] sm:$0xff] %v2191
  %3324 = vst [vmem:[%s5 + $0x318] sm:$0xff] %v2193
  %3325 = vst [vmem:[%s5 + $0x320] sm:$0xff] %v2197
  %3326 = vst [vmem:[%s5 + $0x328] sm:$0xff] %v2199
  %3327 = vst [vmem:[%s5 + $0x330] sm:$0xff] %v2201
  %3328 = vst [vmem:[%s5 + $0x338] sm:$0xff] %v2203
  %3329 = vst [vmem:[%s5 + $0x340] sm:$0xff] %v2207
  %3330 = vst [vmem:[%s5 + $0x348] sm:$0xff] %v2209
  %3331 = vst [vmem:[%s5 + $0x350] sm:$0xff] %v2211
  %3332 = vst [vmem:[%s5 + $0x358] sm:$0xff] %v2213
  %3333 = vst [vmem:[%s5 + $0x360] sm:$0xff] %v2217
  %3334 = vst [vmem:[%s5 + $0x368] sm:$0xff] %v2219
  %3335 = vst [vmem:[%s5 + $0x370] sm:$0xff] %v2221
  %3336 = vst [vmem:[%s5 + $0x378] sm:$0xff] %v2223
  %3337 = vst [vmem:[%s5 + $0x380] sm:$0xff] %v2227
  %3338 = vst [vmem:[%s5 + $0x388] sm:$0xff] %v2229
  %3339 = vst [vmem:[%s5 + $0x390] sm:$0xff] %v2231
  %3340 = vst [vmem:[%s5 + $0x398] sm:$0xff] %v2233
  %3341 = vst [vmem:[%s5 + $0x3a0] sm:$0xff] %v2237
  %3342 = vst [vmem:[%s5 + $0x3a8] sm:$0xff] %v2239
  %3343 = vst [vmem:[%s5 + $0x3b0] sm:$0xff] %v2241
  %3344 = vst [vmem:[%s5 + $0x3b8] sm:$0xff] %v2243
  %3345 = vst [vmem:[%s5 + $0x3c0] sm:$0xff] %v2247
  %3346 = vst [vmem:[%s5 + $0x3c8] sm:$0xff] %v2249
  %3347 = vst [vmem:[%s5 + $0x3d0] sm:$0xff] %v2251
  %3348 = vst [vmem:[%s5 + $0x3d8] sm:$0xff] %v2253
  %3349 = vst [vmem:[%s5 + $0x3e0] sm:$0xff] %v2257
  %3350 = vst [vmem:[%s5 + $0x3e8] sm:$0xff] %v2259
  %3351 = vst [vmem:[%s5 + $0x3f0] sm:$0xff] %v2261
  %3352 = vst [vmem:[%s5 + $0x3f8] sm:$0xff] %v2263
  %3353 = vst [vmem:[%s5 + $0x400] sm:$0xff] %v2267
  %3354 = vst [vmem:[%s5 + $0x408] sm:$0xff] %v2269
  %3355 = vst [vmem:[%s5 + $0x410] sm:$0xff] %v2271
  %3356 = vst [vmem:[%s5 + $0x418] sm:$0xff] %v2273
  %3357 = vst [vmem:[%s5 + $0x420] sm:$0xff] %v2277
  %3358 = vst [vmem:[%s5 + $0x428] sm:$0xff] %v2279
  %3359 = vst [vmem:[%s5 + $0x430] sm:$0xff] %v2281
  %3360 = vst [vmem:[%s5 + $0x438] sm:$0xff] %v2283
  %3361 = vst [vmem:[%s5 + $0x440] sm:$0xff] %v2287
  %3362 = vst [vmem:[%s5 + $0x448] sm:$0xff] %v2289
  %3363 = vst [vmem:[%s5 + $0x450] sm:$0xff] %v2291
  %3364 = vst [vmem:[%s5 + $0x458] sm:$0xff] %v2293
  %3365 = vst [vmem:[%s5 + $0x460] sm:$0xff] %v2297
  %3366 = vst [vmem:[%s5 + $0x468] sm:$0xff] %v2299
  %3367 = vst [vmem:[%s5 + $0x470] sm:$0xff] %v2301
  %3368 = vst [vmem:[%s5 + $0x478] sm:$0xff] %v2303
  %3369 = vst [vmem:[%s5 + $0x480] sm:$0xff] %v2307
  %3370 = vst [vmem:[%s5 + $0x488] sm:$0xff] %v2309
  %3371 = vst [vmem:[%s5 + $0x490] sm:$0xff] %v2311
  %3372 = vst [vmem:[%s5 + $0x498] sm:$0xff] %v2313
  %3373 = vst [vmem:[%s5 + $0x4a0] sm:$0xff] %v2317
  %3374 = vst [vmem:[%s5 + $0x4a8] sm:$0xff] %v2319
  %3375 = vst [vmem:[%s5 + $0x4b0] sm:$0xff] %v2321
  %3376 = vst [vmem:[%s5 + $0x4b8] sm:$0xff] %v2323
  %3377 = vst [vmem:[%s5 + $0x4c0] sm:$0xff] %v2327
  %3378 = vst [vmem:[%s5 + $0x4c8] sm:$0xff] %v2329
  %3379 = vst [vmem:[%s5 + $0x4d0] sm:$0xff] %v2331
  %3380 = vst [vmem:[%s5 + $0x4d8] sm:$0xff] %v2333
  %3381 = vst [vmem:[%s5 + $0x4e0] sm:$0xff] %v2337
  %3382 = vst [vmem:[%s5 + $0x4e8] sm:$0xff] %v2339
  %3383 = vst [vmem:[%s5 + $0x4f0] sm:$0xff] %v2341
  %3384 = vst [vmem:[%s5 + $0x4f8] sm:$0xff] %v2343
  %3385 = vst [vmem:[%s5 + $0x500] sm:$0xff] %v2347
  %3386 = vst [vmem:[%s5 + $0x508] sm:$0xff] %v2349
  %3387 = vst [vmem:[%s5 + $0x510] sm:$0xff] %v2351
  %3388 = vst [vmem:[%s5 + $0x518] sm:$0xff] %v2353
  %3389 = vst [vmem:[%s5 + $0x520] sm:$0xff] %v2357
  %3390 = vst [vmem:[%s5 + $0x528] sm:$0xff] %v2359
  %3391 = vst [vmem:[%s5 + $0x530] sm:$0xff] %v2361
  %3392 = vst [vmem:[%s5 + $0x538] sm:$0xff] %v2363
  %3393 = vst [vmem:[%s5 + $0x540] sm:$0xff] %v2367
  %3394 = vst [vmem:[%s5 + $0x548] sm:$0xff] %v2369
  %3395 = vst [vmem:[%s5 + $0x550] sm:$0xff] %v2371
  %3396 = vst [vmem:[%s5 + $0x558] sm:$0xff] %v2373
  %3397 = vst [vmem:[%s5 + $0x560] sm:$0xff] %v2377
  %3398 = vst [vmem:[%s5 + $0x568] sm:$0xff] %v2379
  %3399 = vst [vmem:[%s5 + $0x570] sm:$0xff] %v2381
  %3400 = vst [vmem:[%s5 + $0x578] sm:$0xff] %v2383
  %3401 = vst [vmem:[%s5 + $0x580] sm:$0xff] %v2387
  %3402 = vst [vmem:[%s5 + $0x588] sm:$0xff] %v2389
  %3403 = vst [vmem:[%s5 + $0x590] sm:$0xff] %v2391
  %3404 = vst [vmem:[%s5 + $0x598] sm:$0xff] %v2393
  %3405 = vst [vmem:[%s5 + $0x5a0] sm:$0xff] %v2397
  %3406 = vst [vmem:[%s5 + $0x5a8] sm:$0xff] %v2399
  %3407 = vst [vmem:[%s5 + $0x5b0] sm:$0xff] %v2401
  %3408 = vst [vmem:[%s5 + $0x5b8] sm:$0xff] %v2403
  %3409 = vst [vmem:[%s5 + $0x5c0] sm:$0xff] %v2407
  %3410 = vst [vmem:[%s5 + $0x5c8] sm:$0xff] %v2409
  %3411 = vst [vmem:[%s5 + $0x5d0] sm:$0xff] %v2411
  %3412 = vst [vmem:[%s5 + $0x5d8] sm:$0xff] %v2413
  %3413 = vst [vmem:[%s5 + $0x5e0] sm:$0xff] %v2417
  %3414 = vst [vmem:[%s5 + $0x5e8] sm:$0xff] %v2419
  %3415 = vst [vmem:[%s5 + $0x5f0] sm:$0xff] %v2421
  %3416 = vst [vmem:[%s5 + $0x5f8] sm:$0xff] %v2423
  %3417 = vst [vmem:[%s5 + $0x600] sm:$0xff] %v2427
  %3418 = vst [vmem:[%s5 + $0x608] sm:$0xff] %v2429
  %3419 = vst [vmem:[%s5 + $0x610] sm:$0xff] %v2431
  %3420 = vst [vmem:[%s5 + $0x618] sm:$0xff] %v2433
  %3421 = vst [vmem:[%s5 + $0x620] sm:$0xff] %v2437
  %3422 = vst [vmem:[%s5 + $0x628] sm:$0xff] %v2439
  %3423 = vst [vmem:[%s5 + $0x630] sm:$0xff] %v2441
  %3424 = vst [vmem:[%s5 + $0x638] sm:$0xff] %v2443
  %3425 = vst [vmem:[%s5 + $0x640] sm:$0xff] %v2447
  %3426 = vst [vmem:[%s5 + $0x648] sm:$0xff] %v2449
  %3427 = vst [vmem:[%s5 + $0x650] sm:$0xff] %v2451
  %3428 = vst [vmem:[%s5 + $0x658] sm:$0xff] %v2453
  %3429 = vst [vmem:[%s5 + $0x660] sm:$0xff] %v2457
  %3430 = vst [vmem:[%s5 + $0x668] sm:$0xff] %v2459
  %3431 = vst [vmem:[%s5 + $0x670] sm:$0xff] %v2461
  %3432 = vst [vmem:[%s5 + $0x678] sm:$0xff] %v2463
  %3433 = vst [vmem:[%s5 + $0x680] sm:$0xff] %v2467
  %3434 = vst [vmem:[%s5 + $0x688] sm:$0xff] %v2469
  %3435 = vst [vmem:[%s5 + $0x690] sm:$0xff] %v2471
  %3436 = vst [vmem:[%s5 + $0x698] sm:$0xff] %v2473
  %3437 = vst [vmem:[%s5 + $0x6a0] sm:$0xff] %v2477
  %3438 = vst [vmem:[%s5 + $0x6a8] sm:$0xff] %v2479
  %3439 = vst [vmem:[%s5 + $0x6b0] sm:$0xff] %v2481
  %3440 = vst [vmem:[%s5 + $0x6b8] sm:$0xff] %v2483
  %3441 = vst [vmem:[%s5 + $0x6c0] sm:$0xff] %v2487
  %3442 = vst [vmem:[%s5 + $0x6c8] sm:$0xff] %v2489
  %3443 = vst [vmem:[%s5 + $0x6d0] sm:$0xff] %v2491
  %3444 = vst [vmem:[%s5 + $0x6d8] sm:$0xff] %v2493
  %3445 = vst [vmem:[%s5 + $0x6e0] sm:$0xff] %v2497
  %3446 = vst [vmem:[%s5 + $0x6e8] sm:$0xff] %v2499
  %3447 = vst [vmem:[%s5 + $0x6f0] sm:$0xff] %v2501
  %3448 = vst [vmem:[%s5 + $0x6f8] sm:$0xff] %v2503
  %3449 = vst [vmem:[%s5 + $0x700] sm:$0xff] %v2507
  %3450 = vst [vmem:[%s5 + $0x708] sm:$0xff] %v2509
  %3451 = vst [vmem:[%s5 + $0x710] sm:$0xff] %v2511
  %3452 = vst [vmem:[%s5 + $0x718] sm:$0xff] %v2513
  %3453 = vst [vmem:[%s5 + $0x720] sm:$0xff] %v2517
  %3454 = vst [vmem:[%s5 + $0x728] sm:$0xff] %v2519
  %3455 = vst [vmem:[%s5 + $0x730] sm:$0xff] %v2521
  %3456 = vst [vmem:[%s5 + $0x738] sm:$0xff] %v2523
  %3457 = vst [vmem:[%s5 + $0x740] sm:$0xff] %v2527
  %3458 = vst [vmem:[%s5 + $0x748] sm:$0xff] %v2529
  %3459 = vst [vmem:[%s5 + $0x750] sm:$0xff] %v2531
  %3460 = vst [vmem:[%s5 + $0x758] sm:$0xff] %v2533
  %3461 = vst [vmem:[%s5 + $0x760] sm:$0xff] %v2537
  %3462 = vst [vmem:[%s5 + $0x768] sm:$0xff] %v2539
  %3463 = vst [vmem:[%s5 + $0x770] sm:$0xff] %v2541
  %3464 = vst [vmem:[%s5 + $0x778] sm:$0xff] %v2543
  %3465 = vst [vmem:[%s5 + $0x780] sm:$0xff] %v2547
  %3466 = vst [vmem:[%s5 + $0x788] sm:$0xff] %v2549
  %3467 = vst [vmem:[%s5 + $0x790] sm:$0xff] %v2551
  %3468 = vst [vmem:[%s5 + $0x798] sm:$0xff] %v2553
  %3469 = vst [vmem:[%s5 + $0x7a0] sm:$0xff] %v2557
  %3470 = vst [vmem:[%s5 + $0x7a8] sm:$0xff] %v2559
  %3471 = vst [vmem:[%s5 + $0x7b0] sm:$0xff] %v2561
  %3472 = vst [vmem:[%s5 + $0x7b8] sm:$0xff] %v2563
  %3473 = vst [vmem:[%s5 + $0x7c0] sm:$0xff] %v2567
  %3474 = vst [vmem:[%s5 + $0x7c8] sm:$0xff] %v2569
  %3475 = vst [vmem:[%s5 + $0x7d0] sm:$0xff] %v2571
  %3476 = vst [vmem:[%s5 + $0x7d8] sm:$0xff] %v2573
  %3477 = vst [vmem:[%s5 + $0x7e0] sm:$0xff] %v2577
  %3478 = vst [vmem:[%s5 + $0x7e8] sm:$0xff] %v2579
  %3479 = vst [vmem:[%s5 + $0x7f0] sm:$0xff] %v2581
  %3480 = vst [vmem:[%s5 + $0x7f8] sm:$0xff] %v2583
  %3481 = vst [vmem:[%s5 + $0x800] sm:$0xff] %v2587
  %3482 = vst [vmem:[%s5 + $0x808] sm:$0xff] %v2589
  %3483 = vst [vmem:[%s5 + $0x810] sm:$0xff] %v2591
  %3484 = vst [vmem:[%s5 + $0x818] sm:$0xff] %v2593
  %3485 = vst [vmem:[%s5 + $0x820] sm:$0xff] %v2597
  %3486 = vst [vmem:[%s5 + $0x828] sm:$0xff] %v2599
  %3487 = vst [vmem:[%s5 + $0x830] sm:$0xff] %v2601
  %3488 = vst [vmem:[%s5 + $0x838] sm:$0xff] %v2603
  %3489 = vst [vmem:[%s5 + $0x840] sm:$0xff] %v2607
  %3490 = vst [vmem:[%s5 + $0x848] sm:$0xff] %v2609
  %3491 = vst [vmem:[%s5 + $0x850] sm:$0xff] %v2611
  %3492 = vst [vmem:[%s5 + $0x858] sm:$0xff] %v2613
  %3493 = vst [vmem:[%s5 + $0x860] sm:$0xff] %v2617
  %3494 = vst [vmem:[%s5 + $0x868] sm:$0xff] %v2619
  %3495 = vst [vmem:[%s5 + $0x870] sm:$0xff] %v2621
  %3496 = vst [vmem:[%s5 + $0x878] sm:$0xff] %v2623
  %3497 = vst [vmem:[%s5 + $0x880] sm:$0xff] %v2627
  %3498 = vst [vmem:[%s5 + $0x888] sm:$0xff] %v2629
  %3499 = vst [vmem:[%s5 + $0x890] sm:$0xff] %v2631
  %3500 = vst [vmem:[%s5 + $0x898] sm:$0xff] %v2633
  %3501 = vst [vmem:[%s5 + $0x8a0] sm:$0xff] %v2637
  %3502 = vst [vmem:[%s5 + $0x8a8] sm:$0xff] %v2639
  %3503 = vst [vmem:[%s5 + $0x8b0] sm:$0xff] %v2641
  %3504 = vst [vmem:[%s5 + $0x8b8] sm:$0xff] %v2643
  %3505 = vst [vmem:[%s5 + $0x8c0] sm:$0xff] %v2647
  %3506 = vst [vmem:[%s5 + $0x8c8] sm:$0xff] %v2649
  %3507 = vst [vmem:[%s5 + $0x8d0] sm:$0xff] %v2651
  %3508 = vst [vmem:[%s5 + $0x8d8] sm:$0xff] %v2653
  %3509 = vst [vmem:[%s5 + $0x8e0] sm:$0xff] %v2657
  %3510 = vst [vmem:[%s5 + $0x8e8] sm:$0xff] %v2659
  %3511 = vst [vmem:[%s5 + $0x8f0] sm:$0xff] %v2661
  %3512 = vst [vmem:[%s5 + $0x8f8] sm:$0xff] %v2663
  %3513 = vst [vmem:[%s5 + $0x900] sm:$0xff] %v2667
  %3514 = vst [vmem:[%s5 + $0x908] sm:$0xff] %v2669
  %3515 = vst [vmem:[%s5 + $0x910] sm:$0xff] %v2671
  %3516 = vst [vmem:[%s5 + $0x918] sm:$0xff] %v2673
  %3517 = vst [vmem:[%s5 + $0x920] sm:$0xff] %v2677
  %3518 = vst [vmem:[%s5 + $0x928] sm:$0xff] %v2679
  %3519 = vst [vmem:[%s5 + $0x930] sm:$0xff] %v2681
  %3520 = vst [vmem:[%s5 + $0x938] sm:$0xff] %v2683
  %3521 = vst [vmem:[%s5 + $0x940] sm:$0xff] %v2687
  %3522 = vst [vmem:[%s5 + $0x948] sm:$0xff] %v2689
  %3523 = vst [vmem:[%s5 + $0x950] sm:$0xff] %v2691
  %3524 = vst [vmem:[%s5 + $0x958] sm:$0xff] %v2693
  %3525 = vst [vmem:[%s5 + $0x960] sm:$0xff] %v2697
  %3526 = vst [vmem:[%s5 + $0x968] sm:$0xff] %v2699
  %3527 = vst [vmem:[%s5 + $0x970] sm:$0xff] %v2701
  %3528 = vst [vmem:[%s5 + $0x978] sm:$0xff] %v2703
  %3529 = vst [vmem:[%s5 + $0x980] sm:$0xff] %v2707
  %3530 = vst [vmem:[%s5 + $0x988] sm:$0xff] %v2709
  %3531 = vst [vmem:[%s5 + $0x990] sm:$0xff] %v2711
  %3532 = vst [vmem:[%s5 + $0x998] sm:$0xff] %v2713
  %3533 = vst [vmem:[%s5 + $0x9a0] sm:$0xff] %v2717
  %3534 = vst [vmem:[%s5 + $0x9a8] sm:$0xff] %v2719
  %3535 = vst [vmem:[%s5 + $0x9b0] sm:$0xff] %v2721
  %3536 = vst [vmem:[%s5 + $0x9b8] sm:$0xff] %v2723
  %3537 = vst [vmem:[%s5 + $0x9c0] sm:$0xff] %v2727
  %3538 = vst [vmem:[%s5 + $0x9c8] sm:$0xff] %v2729
  %3539 = vst [vmem:[%s5 + $0x9d0] sm:$0xff] %v2731
  %3540 = vst [vmem:[%s5 + $0x9d8] sm:$0xff] %v2733
  %3541 = vst [vmem:[%s5 + $0x9e0] sm:$0xff] %v2737
  %3542 = vst [vmem:[%s5 + $0x9e8] sm:$0xff] %v2739
  %3543 = vst [vmem:[%s5 + $0x9f0] sm:$0xff] %v2741
  %3544 = vst [vmem:[%s5 + $0x9f8] sm:$0xff] %v2743
  %3545 = vst [vmem:[%s5 + $0xa00] sm:$0xff] %v2747
  %3546 = vst [vmem:[%s5 + $0xa08] sm:$0xff] %v2749
  %3547 = vst [vmem:[%s5 + $0xa10] sm:$0xff] %v2751
  %3548 = vst [vmem:[%s5 + $0xa18] sm:$0xff] %v2753
  %3549 = vst [vmem:[%s5 + $0xa20] sm:$0xff] %v2757
  %3550 = vst [vmem:[%s5 + $0xa28] sm:$0xff] %v2759
  %3551 = vst [vmem:[%s5 + $0xa30] sm:$0xff] %v2761
  %3552 = vst [vmem:[%s5 + $0xa38] sm:$0xff] %v2763
  %3553 = vst [vmem:[%s5 + $0xa40] sm:$0xff] %v2767
  %3554 = vst [vmem:[%s5 + $0xa48] sm:$0xff] %v2769
  %3555 = vst [vmem:[%s5 + $0xa50] sm:$0xff] %v2771
  %3556 = vst [vmem:[%s5 + $0xa58] sm:$0xff] %v2773
  %3557 = vst [vmem:[%s5 + $0xa60] sm:$0xff] %v2777
  %3558 = vst [vmem:[%s5 + $0xa68] sm:$0xff] %v2779
  %3559 = vst [vmem:[%s5 + $0xa70] sm:$0xff] %v2781
  %3560 = vst [vmem:[%s5 + $0xa78] sm:$0xff] %v2783
  %3561 = vst [vmem:[%s5 + $0xa80] sm:$0xff] %v2787
  %3562 = vst [vmem:[%s5 + $0xa88] sm:$0xff] %v2789
  %3563 = vst [vmem:[%s5 + $0xa90] sm:$0xff] %v2791
  %3564 = vst [vmem:[%s5 + $0xa98] sm:$0xff] %v2793
  %3565 = vst [vmem:[%s5 + $0xaa0] sm:$0xff] %v2797
  %3566 = vst [vmem:[%s5 + $0xaa8] sm:$0xff] %v2799
  %3567 = vst [vmem:[%s5 + $0xab0] sm:$0xff] %v2801
  %3568 = vst [vmem:[%s5 + $0xab8] sm:$0xff] %v2803
  %3569 = vst [vmem:[%s5 + $0xac0] sm:$0xff] %v2807
  %3570 = vst [vmem:[%s5 + $0xac8] sm:$0xff] %v2809
  %3571 = vst [vmem:[%s5 + $0xad0] sm:$0xff] %v2811
  %3572 = vst [vmem:[%s5 + $0xad8] sm:$0xff] %v2813
  %3573 = vst [vmem:[%s5 + $0xae0] sm:$0xff] %v2817
  %3574 = vst [vmem:[%s5 + $0xae8] sm:$0xff] %v2819
  %3575 = vst [vmem:[%s5 + $0xaf0] sm:$0xff] %v2821
  %3576 = vst [vmem:[%s5 + $0xaf8] sm:$0xff] %v2823
  %3577 = vst [vmem:[%s5 + $0xb00] sm:$0xff] %v2827
  %3578 = vst [vmem:[%s5 + $0xb08] sm:$0xff] %v2829
  %3579 = vst [vmem:[%s5 + $0xb10] sm:$0xff] %v2831
  %3580 = vst [vmem:[%s5 + $0xb18] sm:$0xff] %v2833
  %3581 = vst [vmem:[%s5 + $0xb20] sm:$0xff] %v2837
  %3582 = vst [vmem:[%s5 + $0xb28] sm:$0xff] %v2839
  %3583 = vst [vmem:[%s5 + $0xb30] sm:$0xff] %v2841
  %3584 = vst [vmem:[%s5 + $0xb38] sm:$0xff] %v2843
  %3585 = vst [vmem:[%s5 + $0xb40] sm:$0xff] %v2847
  %3586 = vst [vmem:[%s5 + $0xb48] sm:$0xff] %v2849
  %3587 = vst [vmem:[%s5 + $0xb50] sm:$0xff] %v2851
  %3588 = vst [vmem:[%s5 + $0xb58] sm:$0xff] %v2853
  %3589 = vst [vmem:[%s5 + $0xb60] sm:$0xff] %v2857
  %3590 = vst [vmem:[%s5 + $0xb68] sm:$0xff] %v2859
  %3591 = vst [vmem:[%s5 + $0xb70] sm:$0xff] %v2861
  %3592 = vst [vmem:[%s5 + $0xb78] sm:$0xff] %v2863
  %3593 = vst [vmem:[%s5 + $0xb80] sm:$0xff] %v2867
  %3594 = vst [vmem:[%s5 + $0xb88] sm:$0xff] %v2869
  %3595 = vst [vmem:[%s5 + $0xb90] sm:$0xff] %v2871
  %3596 = vst [vmem:[%s5 + $0xb98] sm:$0xff] %v2873
  %3597 = vst [vmem:[%s5 + $0xba0] sm:$0xff] %v2877
  %3598 = vst [vmem:[%s5 + $0xba8] sm:$0xff] %v2879
  %3599 = vst [vmem:[%s5 + $0xbb0] sm:$0xff] %v2881
  %3600 = vst [vmem:[%s5 + $0xbb8] sm:$0xff] %v2883
  %3601 = vst [vmem:[%s5 + $0xbc0] sm:$0xff] %v2887
  %3602 = vst [vmem:[%s5 + $0xbc8] sm:$0xff] %v2889
  %3603 = vst [vmem:[%s5 + $0xbd0] sm:$0xff] %v2891
  %3604 = vst [vmem:[%s5 + $0xbd8] sm:$0xff] %v2893
  %3605 = vst [vmem:[%s5 + $0xbe0] sm:$0xff] %v2897
  %3606 = vst [vmem:[%s5 + $0xbe8] sm:$0xff] %v2899
  %3607 = vst [vmem:[%s5 + $0xbf0] sm:$0xff] %v2901
  %3608 = vst [vmem:[%s5 + $0xbf8] sm:$0xff] %v2903
  %3609 = vst [vmem:[%s5 + $0xc00] sm:$0xff] %v2907
  %3610 = vst [vmem:[%s5 + $0xc08] sm:$0xff] %v2909
  %3611 = vst [vmem:[%s5 + $0xc10] sm:$0xff] %v2911
  %3612 = vst [vmem:[%s5 + $0xc18] sm:$0xff] %v2913
  %3613 = vst [vmem:[%s5 + $0xc20] sm:$0xff] %v2917
  %3614 = vst [vmem:[%s5 + $0xc28] sm:$0xff] %v2919
  %3615 = vst [vmem:[%s5 + $0xc30] sm:$0xff] %v2921
  %3616 = vst [vmem:[%s5 + $0xc38] sm:$0xff] %v2923
  %3617 = vst [vmem:[%s5 + $0xc40] sm:$0xff] %v2927
  %3618 = vst [vmem:[%s5 + $0xc48] sm:$0xff] %v2929
  %3619 = vst [vmem:[%s5 + $0xc50] sm:$0xff] %v2931
  %3620 = vst [vmem:[%s5 + $0xc58] sm:$0xff] %v2933
  %3621 = vst [vmem:[%s5 + $0xc60] sm:$0xff] %v2937
  %3622 = vst [vmem:[%s5 + $0xc68] sm:$0xff] %v2939
  %3623 = vst [vmem:[%s5 + $0xc70] sm:$0xff] %v2941
  %3624 = vst [vmem:[%s5 + $0xc78] sm:$0xff] %v2943
  %3625 = vst [vmem:[%s5 + $0xc80] sm:$0xff] %v2947
  %3626 = vst [vmem:[%s5 + $0xc88] sm:$0xff] %v2949
  %3627 = vst [vmem:[%s5 + $0xc90] sm:$0xff] %v2951
  %3628 = vst [vmem:[%s5 + $0xc98] sm:$0xff] %v2953
  %3629 = vst [vmem:[%s5 + $0xca0] sm:$0xff] %v2957
  %3630 = vst [vmem:[%s5 + $0xca8] sm:$0xff] %v2959
  %3631 = vst [vmem:[%s5 + $0xcb0] sm:$0xff] %v2961
  %3632 = vst [vmem:[%s5 + $0xcb8] sm:$0xff] %v2963
  %3633 = vst [vmem:[%s5 + $0xcc0] sm:$0xff] %v2967
  %3634 = vst [vmem:[%s5 + $0xcc8] sm:$0xff] %v2969
  %3635 = vst [vmem:[%s5 + $0xcd0] sm:$0xff] %v2971
  %3636 = vst [vmem:[%s5 + $0xcd8] sm:$0xff] %v2973
  %3637 = vst [vmem:[%s5 + $0xce0] sm:$0xff] %v2977
  %3638 = vst [vmem:[%s5 + $0xce8] sm:$0xff] %v2979
  %3639 = vst [vmem:[%s5 + $0xcf0] sm:$0xff] %v2981
  %3640 = vst [vmem:[%s5 + $0xcf8] sm:$0xff] %v2983
  %3641 = vst [vmem:[%s5 + $0xd00] sm:$0xff] %v2987
  %3642 = vst [vmem:[%s5 + $0xd08] sm:$0xff] %v2989
  %3643 = vst [vmem:[%s5 + $0xd10] sm:$0xff] %v2991
  %3644 = vst [vmem:[%s5 + $0xd18] sm:$0xff] %v2993
  %3645 = vst [vmem:[%s5 + $0xd20] sm:$0xff] %v2997
  %3646 = vst [vmem:[%s5 + $0xd28] sm:$0xff] %v2999
  %3647 = vst [vmem:[%s5 + $0xd30] sm:$0xff] %v3001
  %3648 = vst [vmem:[%s5 + $0xd38] sm:$0xff] %v3003
  %3649 = vst [vmem:[%s5 + $0xd40] sm:$0xff] %v3007
  %3650 = vst [vmem:[%s5 + $0xd48] sm:$0xff] %v3009
  %3651 = vst [vmem:[%s5 + $0xd50] sm:$0xff] %v3011
  %3652 = vst [vmem:[%s5 + $0xd58] sm:$0xff] %v3013
  %3653 = vst [vmem:[%s5 + $0xd60] sm:$0xff] %v3017
  %3654 = vst [vmem:[%s5 + $0xd68] sm:$0xff] %v3019
  %3655 = vst [vmem:[%s5 + $0xd70] sm:$0xff] %v3021
  %3656 = vst [vmem:[%s5 + $0xd78] sm:$0xff] %v3023
  %3657 = vst [vmem:[%s5 + $0xd80] sm:$0xff] %v3027
  %3658 = vst [vmem:[%s5 + $0xd88] sm:$0xff] %v3029
  %3659 = vst [vmem:[%s5 + $0xd90] sm:$0xff] %v3031
  %3660 = vst [vmem:[%s5 + $0xd98] sm:$0xff] %v3033
  %3661 = vst [vmem:[%s5 + $0xda0] sm:$0xff] %v3037
  %3662 = vst [vmem:[%s5 + $0xda8] sm:$0xff] %v3039
  %3663 = vst [vmem:[%s5 + $0xdb0] sm:$0xff] %v3041
  %3664 = vst [vmem:[%s5 + $0xdb8] sm:$0xff] %v3043
  %3665 = vst [vmem:[%s5 + $0xdc0] sm:$0xff] %v3047
  %3666 = vst [vmem:[%s5 + $0xdc8] sm:$0xff] %v3049
  %3667 = vst [vmem:[%s5 + $0xdd0] sm:$0xff] %v3051
  %3668 = vst [vmem:[%s5 + $0xdd8] sm:$0xff] %v3053
  %3669 = vst [vmem:[%s5 + $0xde0] sm:$0xff] %v3057
  %3670 = vst [vmem:[%s5 + $0xde8] sm:$0xff] %v3059
  %3671 = vst [vmem:[%s5 + $0xdf0] sm:$0xff] %v3061
  %3672 = vst [vmem:[%s5 + $0xdf8] sm:$0xff] %v3063
  %3673 = vst [vmem:[%s5 + $0xe00] sm:$0xff] %v3067
  %3674 = vst [vmem:[%s5 + $0xe08] sm:$0xff] %v3069
  %3675 = vst [vmem:[%s5 + $0xe10] sm:$0xff] %v3071
  %3676 = vst [vmem:[%s5 + $0xe18] sm:$0xff] %v3073
  %3677 = vst [vmem:[%s5 + $0xe20] sm:$0xff] %v3077
  %3678 = vst [vmem:[%s5 + $0xe28] sm:$0xff] %v3079
  %3679 = vst [vmem:[%s5 + $0xe30] sm:$0xff] %v3081
  %3680 = vst [vmem:[%s5 + $0xe38] sm:$0xff] %v3083
  %3681 = vst [vmem:[%s5 + $0xe40] sm:$0xff] %v3087
  %3682 = vst [vmem:[%s5 + $0xe48] sm:$0xff] %v3089
  %3683 = vst [vmem:[%s5 + $0xe50] sm:$0xff] %v3091
  %3684 = vst [vmem:[%s5 + $0xe58] sm:$0xff] %v3093
  %3685 = vst [vmem:[%s5 + $0xe60] sm:$0xff] %v3097
  %3686 = vst [vmem:[%s5 + $0xe68] sm:$0xff] %v3099
  %3687 = vst [vmem:[%s5 + $0xe70] sm:$0xff] %v3101
  %3688 = vst [vmem:[%s5 + $0xe78] sm:$0xff] %v3103
  %3689 = vst [vmem:[%s5 + $0xe80] sm:$0xff] %v3107
  %3690 = vst [vmem:[%s5 + $0xe88] sm:$0xff] %v3109
  %3691 = vst [vmem:[%s5 + $0xe90] sm:$0xff] %v3111
  %3692 = vst [vmem:[%s5 + $0xe98] sm:$0xff] %v3113
  %3693 = vst [vmem:[%s5 + $0xea0] sm:$0xff] %v3117
  %3694 = vst [vmem:[%s5 + $0xea8] sm:$0xff] %v3119
  %3695 = vst [vmem:[%s5 + $0xeb0] sm:$0xff] %v3121
  %3696 = vst [vmem:[%s5 + $0xeb8] sm:$0xff] %v3123
  %3697 = vst [vmem:[%s5 + $0xec0] sm:$0xff] %v3127
  %3698 = vst [vmem:[%s5 + $0xec8] sm:$0xff] %v3129
  %3699 = vst [vmem:[%s5 + $0xed0] sm:$0xff] %v3131
  %3700 = vst [vmem:[%s5 + $0xed8] sm:$0xff] %v3133
  %3701 = vst [vmem:[%s5 + $0xee0] sm:$0xff] %v3137
  %3702 = vst [vmem:[%s5 + $0xee8] sm:$0xff] %v3139
  %3703 = vst [vmem:[%s5 + $0xef0] sm:$0xff] %v3141
  %3704 = vst [vmem:[%s5 + $0xef8] sm:$0xff] %v3143
  %3705 = vst [vmem:[%s5 + $0xf00] sm:$0xff] %v3147
  %3706 = vst [vmem:[%s5 + $0xf08] sm:$0xff] %v3149
  %3707 = vst [vmem:[%s5 + $0xf10] sm:$0xff] %v3151
  %3708 = vst [vmem:[%s5 + $0xf18] sm:$0xff] %v3153
  %3709 = vst [vmem:[%s5 + $0xf20] sm:$0xff] %v3157
  %3710 = vst [vmem:[%s5 + $0xf28] sm:$0xff] %v3159
  %3711 = vst [vmem:[%s5 + $0xf30] sm:$0xff] %v3161
  %3712 = vst [vmem:[%s5 + $0xf38] sm:$0xff] %v3163
  %3713 = vst [vmem:[%s5 + $0xf40] sm:$0xff] %v3167
  %3714 = vst [vmem:[%s5 + $0xf48] sm:$0xff] %v3169
  %3715 = vst [vmem:[%s5 + $0xf50] sm:$0xff] %v3171
  %3716 = vst [vmem:[%s5 + $0xf58] sm:$0xff] %v3173
  %3717 = vst [vmem:[%s5 + $0xf60] sm:$0xff] %v3177
  %3718 = vst [vmem:[%s5 + $0xf68] sm:$0xff] %v3179
  %3719 = vst [vmem:[%s5 + $0xf70] sm:$0xff] %v3181
  %3720 = vst [vmem:[%s5 + $0xf78] sm:$0xff] %v3183
  %3721 = vst [vmem:[%s5 + $0xf80] sm:$0xff] %v3187
  %3722 = vst [vmem:[%s5 + $0xf88] sm:$0xff] %v3189
  %3723 = vst [vmem:[%s5 + $0xf90] sm:$0xff] %v3191
  %3724 = vst [vmem:[%s5 + $0xf98] sm:$0xff] %v3193
  %3725 = vst [vmem:[%s5 + $0xfa0] sm:$0xff] %v3197
  %3726 = vst [vmem:[%s5 + $0xfa8] sm:$0xff] %v3199
  %3727 = vst [vmem:[%s5 + $0xfb0] sm:$0xff] %v3201
  %3728 = vst [vmem:[%s5 + $0xfb8] sm:$0xff] %v3203
  %3729 = vst [vmem:[%s5 + $0xfc0] sm:$0xff] %v3207
  %3730 = vst [vmem:[%s5 + $0xfc8] sm:$0xff] %v3209
  %3731 = vst [vmem:[%s5 + $0xfd0] sm:$0xff] %v3211
  %3732 = vst [vmem:[%s5 + $0xfd8] sm:$0xff] %v3213
  %3733 = vst [vmem:[%s5 + $0xfe0] sm:$0xff] %v3217
  %3734 = vst [vmem:[%s5 + $0xfe8] sm:$0xff] %v3219
  %3735 = vst [vmem:[%s5 + $0xff0] sm:$0xff] %v3221
  %3736 = vst [vmem:[%s5 + $0xff8] sm:$0xff] %v3223
  // Predicated region
  $region22: #{stcae_decoder_forward.9} parent=0 // pred_check
    _
  $region23: #{stcae_decoder_forward.9} parent=0 // pred_check_branch
    %3738 = sbr.rel (0) target = $region25
  $region24: #{stcae_decoder_forward.9} parent=0 // pred_region
    _
  $region25: #{stcae_decoder_forward.9} parent=0 // pred_fallthru
    _
  // Predicated region
  $region26: #{stcae_decoder_forward.9} parent=0 // pred_check
    _
  $region27: #{stcae_decoder_forward.9} parent=0 // pred_check_branch
    %3740 = sbr.rel (0) target = $region29
  $region28: #{stcae_decoder_forward.9} parent=0 // pred_region
    _
  $region29: #{stcae_decoder_forward.9} parent=0 // pred_fallthru
    _

</llo_original>
